<compile_context>
chip_gen: v6e
topology: v6e:2x2x1
jax: 0.10.0
libtpu: 0.0.40
codegen_flags: <defaults>
</compile_context>

<pallas_src>
import functools

import jax
import jax.numpy as jnp
from jax.experimental import pallas as pl
from jax.experimental.pallas import tpu as pltpu


# ----------------------------------------------------------------------------
# Generation-aware knobs
# ----------------------------------------------------------------------------
def _query_vmem_capacity():
    try:
        info = pltpu.get_tpu_info()
        for attr in ("vmem_capacity_bytes", "vmem_bytes", "vmem_size_bytes"):
            v = getattr(info, attr, None)
            if v:
                return int(v)
    except Exception:
        pass
    return 128 * 1024 * 1024  # v5e/v6e default


_VMEM_CAP = _query_vmem_capacity()
_VMEM_LIMIT = min((_VMEM_CAP * 3) // 4, 112 * 1024 * 1024)   # leave compiler headroom
_ATTN_TILE_CAP = 128 if _VMEM_CAP <= 80 * 1024 * 1024 else 256
_SQD_TILE_CAP = 256
_MLP_TILE_CAP = 1024


def _cp(sem):
    return pltpu.CompilerParams(dimension_semantics=sem,
                                vmem_limit_bytes=_VMEM_LIMIT)


def _pick_tile(n, cap):
    """Largest N-tile <= cap that divides n and is a multiple of 8 (else full n)."""
    if n <= cap:
        return n
    t = cap - cap % 8
    while t >= 8:
        if n % t == 0:
            return t
        t -= 8
    return n


def _mm(x, w):
    """bf16 MXU matmul with f32 accumulation (weights stored bf16)."""
    return jnp.dot(x.astype(jnp.bfloat16), w, preferred_element_type=jnp.float32)


def _wspec(a):
    """Full-extent (replicated) BlockSpec for a 2-D weight/bias array."""
    return pl.BlockSpec(a.shape, lambda b, t: (0, 0))


# ----------------------------------------------------------------------------
# Kernels
# ----------------------------------------------------------------------------
def _mlp1_kernel(x_ref, w1, b1, w2, b2, f1_ref, pmax_ref):
    x = x_ref[0]                                              # (tn, 3) f32
    h = jnp.maximum(_mm(x, w1[...]) + b1[...], 0.0)           # (tn, 64)
    f1 = _mm(h, w2[...]) + b2[...]                            # (tn, 128) f32
    f1_ref[0] = f1.astype(f1_ref.dtype)
    pmax_ref[0, 0] = jnp.max(f1, axis=0, keepdims=True)       # per-tile partial max


def _mlp2_kernel(f1_ref, bias_ref, w1a, w2, b2, q_ref):
    # bias = W1b@fmax + W1c@feat_global + b1 is N-invariant, precomputed per batch.
    h = jnp.maximum(_mm(f1_ref[0], w1a[...]) + bias_ref[0], 0.0)     # (tn, 256)
    q_ref[0] = (_mm(h, w2[...]) + b2[...]).astype(q_ref.dtype)       # (tn, 128)


def _value_qkv_kernel(kf_ref, qf_ref, wkf, wqf, bv1, bvs, bk, bq,
                      wv2, bv2, wval, bval, key_ref, qvi_ref):
    c = kf_ref.shape[2]                                       # 128
    kf = kf_ref[0]                                            # (tn, 128) bf16
    qf = qf_ref[0]
    # Fused: [mlp_v.conv1 | mlp_v.shortcut | conv_key/query] per operand -> (tn, 320).
    kk = _mm(kf, wkf[...])
    qq = _mm(qf, wqf[...])
    h = jnp.maximum(kk[:, :c] + qq[:, :c] + bv1[...], 0.0)
    shortcut = kk[:, c:2 * c] + qq[:, c:2 * c] + bvs[...]
    value_mid = _mm(h, wv2[...]) + bv2[...] + shortcut        # identity (tn, 128)
    key_c = kk[:, 2 * c:] + bk[...]                           # (tn, dim)
    query_c = qq[:, 2 * c:] + bq[...]
    value_c = _mm(value_mid, wval[...]) + bval[...]           # (tn, dim)
    key_ref[0] = key_c.astype(key_ref.dtype)
    qvi_ref[0] = jnp.concatenate([query_c, value_c, value_mid],
                                 axis=-1).astype(qvi_ref.dtype)       # (tn, 256)


def _sqdist_kernel(pr_ref, pa_ref, o_ref):
    # |pi - pj|^2 = |pi|^2 + |pj|^2 - 2 pi.pj  (cross term on the MXU).
    pr = pr_ref[0]                                            # (tn, 3) f32
    pa = pa_ref[0]                                            # (N, 3) f32
    dn = (((1,), (1,)), ((), ()))
    cross = jax.lax.dot_general(pr, pa, dn, preferred_element_type=jnp.float32)
    sq_r = jnp.sum(pr * pr, axis=-1, keepdims=True)           # (tn, 1)
    ones = jnp.ones((1, 3), jnp.float32)
    sq_a = jax.lax.dot_general(ones, pa * pa, dn,
                               preferred_element_type=jnp.float32)    # (1, N)
    o_ref[0] = (sq_r + sq_a - 2.0 * cross).astype(o_ref.dtype)        # bf16, ordering only


def _attention_kernel(qvi_ref, kg_ref, pos_ref, pg_ref,
                      wp1, bp1, wp2, bp2, wa1, ba1, wa2, ba2, we, be, h_ref):
    tn = qvi_ref.shape[1]
    kk = pg_ref.shape[2] // 3
    dim = kg_ref.shape[2] // kk

    qvi = qvi_ref[0]                                          # (tn, 256) bf16
    qc = qvi[:, :dim]                                         # query projection (bf16)
    vc = qvi[:, dim:2 * dim].astype(jnp.float32)              # value projection
    idn = qvi[:, 2 * dim:].astype(jnp.float32)                # residual identity
    kg = kg_ref[0].reshape(tn, kk, dim)                       # (tn, K, dim) bf16
    pos = pos_ref[0]                                          # (tn, 3) f32
    pg = pg_ref[0].reshape(tn, kk, 3)                         # (tn, K, 3) f32

    pos_rel = (pos[:, None, :] - pg).reshape(tn * kk, 3)
    pe = jnp.maximum(_mm(pos_rel, wp1[...]) + bp1[...], 0.0)  # pos_mlp (BN folded)
    pe = _mm(pe, wp2[...]) + bp2[...]                         # (tn*K, dim) f32

    qk_rel = (qc[:, None, :] - kg).reshape(tn * kk, dim).astype(jnp.float32)
    a = jnp.maximum(_mm(qk_rel + pe, wa1[...]) + ba1[...], 0.0)
    a = (_mm(a, wa2[...]) + ba2[...]).reshape(tn, kk, dim)    # attention logits

    m = jnp.max(a, axis=1, keepdims=True)                     # softmax over K
    e = jnp.exp(a - m)
    p = e * pl.reciprocal(jnp.sum(e, axis=1, keepdims=True), approx=True)

    # sum_k p == 1  =>  sum_k p*(v + pe) == v + sum_k p*pe
    agg = vc + jnp.sum(p * pe.reshape(tn, kk, dim), axis=1)   # (tn, dim)
    h_ref[0] = (_mm(agg, we[...]) + be[...] + idn).astype(h_ref.dtype)


def _tail_kernel(h_ref, pcd_ref,
                 wps1, bps1, wps2, bps2, wct,
                 wda, wdb, bd1, bds, wd2, bd2,
                 wdl1, bdl1, wdl2, bdl2,
                 k_ref, pc_ref, *, up, scale, bounding):
    h = h_ref[0]                                              # (tn, 128) bf16
    pcd = pcd_ref[0]                                          # (tn, 3) f32
    fc = jnp.maximum(_mm(h, wps1[...]) + bps1[...], 0.0)
    fc = _mm(fc, wps2[...]) + bps2[...]                       # (tn, ps_dim)
    taps = _mm(fc, wct[...])                                  # all ConvT taps at once
    hdb = _mm(h, wdb[...])                                    # r-invariant (tn, 256)

    k_parts, p_parts = [], []
    for r in range(up):                                       # static unroll over taps
        tap = taps[:, r * 128:(r + 1) * 128]
        tc = _mm(tap, wda[...])                               # [conv1 | shortcut] halves
        hh = jnp.maximum(tc[:, :128] + hdb[:, :128] + bd1[...], 0.0)
        sc = tc[:, 128:] + hdb[:, 128:] + bds[...]
        kc = _mm(hh, wd2[...]) + bd2[...] + sc                # K_curr rows for tap r
        d = jnp.maximum(kc, 0.0)                              # mlp_delta(relu(K_curr))
        d = jnp.maximum(_mm(d, wdl1[...]) + bdl1[...], 0.0)
        d = _mm(d, wdl2[...]) + bdl2[...]                     # (tn, 3)
        if bounding:
            d = jnp.tanh(d) * scale
        k_parts.append(kc.astype(k_ref.dtype))
        p_parts.append(pcd + d)                               # nearest-upsample + delta
    k_ref[0] = jnp.concatenate(k_parts, axis=-1)              # (tn, up*128) single store
    pc_ref[0] = jnp.concatenate(p_parts, axis=-1)             # (tn, up*3)


# ----------------------------------------------------------------------------
# pallas_call wrappers
# ----------------------------------------------------------------------------
def mlp1_with_partial_max(x, p):
    B, N, cin = x.shape
    c2 = p["w2"].shape[1]
    tn = _pick_tile(N, _MLP_TILE_CAP)
    nt = N // tn
    weights = (p["w1"], p["b1"], p["w2"], p["b2"])
    return pl.pallas_call(
        _mlp1_kernel,
        out_shape=(jax.ShapeDtypeStruct((B, N, c2), jnp.bfloat16),
                   jax.ShapeDtypeStruct((B, nt, 1, c2), jnp.float32)),
        grid=(B, nt),
        in_specs=[pl.BlockSpec((1, tn, cin), lambda b, t: (b, t, 0))]
                 + [_wspec(a) for a in weights],
        out_specs=(pl.BlockSpec((1, tn, c2), lambda b, t: (b, t, 0)),
                   pl.BlockSpec((1, 1, 1, c2), lambda b, t: (b, t, 0, 0))),
        compiler_params=_cp(("parallel", "parallel")),
    )(x, *weights)


def mlp2_fused(feat_1, bias, p):
    B, N, cin = feat_1.shape
    c2 = p["w2"].shape[1]
    tn = _pick_tile(N, _MLP_TILE_CAP)
    weights = (p["w1a"], p["w2"], p["b2"])
    return pl.pallas_call(
        _mlp2_kernel,
        out_shape=jax.ShapeDtypeStruct((B, N, c2), jnp.bfloat16),
        grid=(B, N // tn),
        in_specs=[pl.BlockSpec((1, tn, cin), lambda b, t: (b, t, 0)),
                  pl.BlockSpec((1, 1, bias.shape[2]), lambda b, t: (b, 0, 0))]
                 + [_wspec(a) for a in weights],
        out_specs=pl.BlockSpec((1, tn, c2), lambda b, t: (b, t, 0)),
        compiler_params=_cp(("parallel", "parallel")),
    )(feat_1, bias, *weights)


def value_qkv(key_feat, query_feat, sk):
    B, N, c = key_feat.shape
    dim = sk["w_value"].shape[1]
    weights = (sk["wkf"], sk["wqf"], sk["bv1"], sk["bvs"], sk["b_key"], sk["b_query"],
               sk["wv2"], sk["bv2"], sk["w_value"], sk["b_value"])
    tn = _pick_tile(N, _MLP_TILE_CAP)
    t3 = lambda cc: pl.BlockSpec((1, tn, cc), lambda b, t: (b, t, 0))
    return pl.pallas_call(
        _value_qkv_kernel,
        out_shape=(jax.ShapeDtypeStruct((B, N, dim), jnp.bfloat16),           # key_c
                   jax.ShapeDtypeStruct((B, N, 2 * dim + c), jnp.bfloat16)),  # [q|v|identity]
        grid=(B, N // tn),
        in_specs=[t3(c), t3(c)] + [_wspec(a) for a in weights],
        out_specs=(t3(dim), t3(2 * dim + c)),
        compiler_params=_cp(("parallel", "parallel")),
    )(key_feat, query_feat, *weights)


def pairwise_sqdist(pos):
    B, N, _ = pos.shape
    tn = _pick_tile(N, _SQD_TILE_CAP)
    return pl.pallas_call(
        _sqdist_kernel,
        out_shape=jax.ShapeDtypeStruct((B, N, N), jnp.bfloat16),
        grid=(B, N // tn),
        in_specs=[pl.BlockSpec((1, tn, 3), lambda b, t: (b, t, 0)),
                  pl.BlockSpec((1, N, 3), lambda b, t: (b, 0, 0))],
        out_specs=pl.BlockSpec((1, tn, N), lambda b, t: (b, t, 0)),
        compiler_params=_cp(("parallel", "parallel")),
    )(pos, pos)


def skip_attention(qvi, key_g_flat, pos, pos_g_flat, sk):
    B, N, _ = qvi.shape
    c_out = sk["w_end"].shape[1]
    weights = (sk["wp1"], sk["bp1"], sk["wp2"], sk["bp2"],
               sk["wa1"], sk["ba1"], sk["wa2"], sk["ba2"],
               sk["w_end"], sk["b_end"])
    tn = _pick_tile(N, _ATTN_TILE_CAP)
    t3 = lambda cc: pl.BlockSpec((1, tn, cc), lambda b, t: (b, t, 0))
    return pl.pallas_call(
        _attention_kernel,
        out_shape=jax.ShapeDtypeStruct((B, N, c_out), jnp.bfloat16),
        grid=(B, N // tn),
        in_specs=[t3(qvi.shape[2]), t3(key_g_flat.shape[2]), t3(3), t3(pos_g_flat.shape[2])]
                 + [_wspec(a) for a in weights],
        out_specs=t3(c_out),
        compiler_params=_cp(("parallel", "parallel")),
    )(qvi, key_g_flat, pos, pos_g_flat, *weights)


def spd_tail(H, pcd, tail, *, up, scale, bounding):
    B, N, c = H.shape
    weights = (tail["wps1"], tail["bps1"], tail["wps2"], tail["bps2"], tail["wct"],
               tail["wda"], tail["wdb"], tail["bd1"], tail["bds"],
               tail["wd2"], tail["bd2"],
               tail["wdl1"], tail["bdl1"], tail["wdl2"], tail["bdl2"])
    tn = _pick_tile(N, _MLP_TILE_CAP)
    t3 = lambda cc: pl.BlockSpec((1, tn, cc), lambda b, t: (b, t, 0))
    return pl.pallas_call(
        functools.partial(_tail_kernel, up=up, scale=scale, bounding=bounding),
        out_shape=(jax.ShapeDtypeStruct((B, N, up * 128), jnp.bfloat16),
                   jax.ShapeDtypeStruct((B, N, up * 3), jnp.float32)),
        grid=(B, N // tn),
        in_specs=[t3(c), t3(3)] + [_wspec(a) for a in weights],
        out_specs=(t3(up * 128), t3(up * 3)),
        compiler_params=_cp(("parallel", "parallel")),
    )(H, pcd, *weights)


# ----------------------------------------------------------------------------
# Glue (layout, kNN, gather) + forward pass
# ----------------------------------------------------------------------------
def _group(feats, idx):
    """feats (B, N, C), idx (B, N, K) -> (B, N, K, C): out[b,i,j] = feats[b, idx[b,i,j]]."""
    return jax.vmap(lambda f, ix: f[ix])(feats, idx)


def spd_forward(params, pcd_prev, feat_global=None, K_prev=None, rgb=None, cfg=None):
    B, _, N = pcd_prev.shape
    up = cfg["up_factor"]
    n_knn = cfg["n_knn"]

    # channels-first (PyTorch NCW) -> channels-last for lane-dense kernels.
    pcd_nl = jnp.transpose(pcd_prev.astype(jnp.float32), (0, 2, 1))        # (B, N, 3)

    feat_1, pmax = mlp1_with_partial_max(pcd_nl, params["mlp_1"])          # bf16, partial maxes
    fmax = jnp.max(pmax[:, :, 0, :], axis=1, keepdims=True)                # (B, 1, 128) f32

    if not cfg["global_feat"]:
        # TODO(synk): global_feat=False branch (mlp_2 over feat_1 only) not wired here.
        raise NotImplementedError("global_feat=False path not implemented")

    # feat_global is (B, dim_feat, 1); fold the N-invariant concat part into a bias column.
    fg_nl = jnp.transpose(feat_global.astype(jnp.float32), (0, 2, 1))      # (B, 1, dim_feat)
    m2 = params["mlp_2"]
    bias2 = (jnp.einsum('bij,jk->bik', fmax, m2["w1b"].astype(jnp.float32))
             + jnp.einsum('bij,jk->bik', fg_nl, m2["w1c"].astype(jnp.float32))
             + m2["b1"])                                                   # (B, 1, 256)
    Q = mlp2_fused(feat_1, bias2, m2)                                      # (B, N, 128) bf16

    key_feat = (jnp.transpose(K_prev.astype(jnp.float32), (0, 2, 1)).astype(jnp.bfloat16)
                if K_prev is not None else Q)
    key_c, qvi = value_qkv(key_feat, Q, params["skip"])                    # (B,N,64), (B,N,256)

    sqd = pairwise_sqdist(pcd_nl)                                          # (B, N, N) bf16
    # TODO(synk): top_k + gather stay in XLA; an in-kernel partial top-k / scalar-prefetch
    # row gather would remove this O(N^2) HBM round trip and overlap with attention.
    idx_knn = jax.lax.top_k(-sqd, n_knn)[1]                                # (B, N, K) include_self
    dim = key_c.shape[-1]
    key_g = _group(key_c, idx_knn).reshape(B, N, n_knn * dim)              # lane-dense bf16
    pos_g = _group(pcd_nl, idx_knn).reshape(B, N, n_knn * 3)               # lane-dense f32

    H = skip_attention(qvi, key_g, pcd_nl, pos_g, params["skip"])          # (B, N, 128) bf16

    scale = 1.0 / float(cfg["radius"] ** cfg["i"])
    K_out, pcd_out = spd_tail(H, pcd_nl, params["tail"], up=up, scale=scale,
                              bounding=cfg["bounding"])

    # (B, N, up*C) -> (B, N*up, C) reproduces ConvTranspose1d/Upsample child ordering i*up+r.
    K_curr = jnp.transpose(K_out.reshape(B, N * up, 128), (0, 2, 1)).astype(jnp.float32)
    pcd_child = jnp.transpose(pcd_out.reshape(B, N * up, 3), (0, 2, 1))    # (B, 3, N*up)
    # TODO(synk): in_rgb=True branch (mlp_delta_rgb) not implemented; rgb passed through.
    return pcd_child, K_curr, rgb


# ----------------------------------------------------------------------------
# Deterministic parameter init (PyTorch conv layout, converted to kernel layout)
# ----------------------------------------------------------------------------
def _conv_init(key, cout, cin, scale=0.1):
    kw, kb = jax.random.split(key)
    w = scale * jax.random.normal(kw, (cout, cin), jnp.float32)   # PyTorch (Cout, Cin)
    b = scale * jax.random.normal(kb, (cout,), jnp.float32)
    return w, b


def _fold_bn(w, b, gamma, beta, mean, var, eps=1e-5):
    # TODO(synk): BatchNorm2d evaluated in eval mode (running stats) and folded here.
    s = gamma / jnp.sqrt(var + eps)
    return w * s[:, None], (b - mean) * s + beta


def _kw(w):
    """PyTorch (Cout, Cin) conv weight -> kernel (Cin, Cout) bf16."""
    return jnp.asarray(w, jnp.float32).T.astype(jnp.bfloat16)


def _kb(b):
    return jnp.asarray(b, jnp.float32).reshape(1, -1)


def init_spd_params(key, cfg):
    keys = iter(jax.random.split(key, 64))
    nxt = lambda: next(keys)
    conv = lambda cout, cin: _conv_init(nxt(), cout, cin)
    dim_feat, dim, ps_dim, up = cfg["dim_feat"], cfg["dim"], cfg["ps_dim"], cfg["up_factor"]
    p = {}

    w1, b1 = conv(64, 3)
    w2, b2 = conv(128, 64)
    p["mlp_1"] = dict(w1=_kw(w1), b1=_kb(b1), w2=_kw(w2), b2=_kb(b2))

    # mlp_2 first layer acts on concat([feat_1, fmax, feat_global]) -> split weights.
    w1, b1 = conv(256, 128 * 2 + dim_feat)
    w2, b2 = conv(128, 256)
    p["mlp_2"] = dict(w1a=_kw(w1[:, :128]), w1b=_kw(w1[:, 128:256]), w1c=_kw(w1[:, 256:]),
                      b1=_kb(b1), w2=_kw(w2), b2=_kb(b2))

    sk = {}
    # SkipTransformer mlp_v = MLP_Res(256, 128, 128) over concat([key, query]);
    # fuse [conv1 | shortcut | key/query projection] into one (128, 320) matmul per operand.
    wv1, bv1 = conv(128, 256)
    wv2, bv2 = conv(128, 128)
    wvs, bvs = conv(128, 256)
    wk, bk = conv(dim, 128)
    wq, bq = conv(dim, 128)
    wv, bv = conv(dim, 128)
    sk["wkf"] = jnp.concatenate([_kw(wv1[:, :128]), _kw(wvs[:, :128]), _kw(wk)], axis=1)
    sk["wqf"] = jnp.concatenate([_kw(wv1[:, 128:]), _kw(wvs[:, 128:]), _kw(wq)], axis=1)
    sk.update(bv1=_kb(bv1), bvs=_kb(bvs), b_key=_kb(bk), b_query=_kb(bq),
              wv2=_kw(wv2), bv2=_kb(bv2), w_value=_kw(wv), b_value=_kb(bv))

    # pos_mlp: Conv2d(3,64) + BN(folded) + ReLU + Conv2d(64,dim)
    w1, b1 = conv(64, 3)
    g = 1.0 + 0.1 * jax.random.normal(nxt(), (64,), jnp.float32)
    bt = 0.1 * jax.random.normal(nxt(), (64,), jnp.float32)
    w1, b1 = _fold_bn(w1, b1, g, bt, jnp.zeros((64,)), jnp.ones((64,)))
    w2, b2 = conv(dim, 64)
    sk.update(wp1=_kw(w1), bp1=_kb(b1), wp2=_kw(w2), bp2=_kb(b2))

    # attn_mlp: Conv2d(dim, 4*dim) + BN(folded) + ReLU + Conv2d(4*dim, dim)
    w1, b1 = conv(dim * 4, dim)
    g = 1.0 + 0.1 * jax.random.normal(nxt(), (dim * 4,), jnp.float32)
    bt = 0.1 * jax.random.normal(nxt(), (dim * 4,), jnp.float32)
    w1, b1 = _fold_bn(w1, b1, g, bt, jnp.zeros((dim * 4,)), jnp.ones((dim * 4,)))
    w2, b2 = conv(dim, dim * 4)
    sk.update(wa1=_kw(w1), ba1=_kb(b1), wa2=_kw(w2), ba2=_kb(b2))

    we, be = conv(128, dim)
    sk.update(w_end=_kw(we), b_end=_kb(be))
    p["skip"] = sk

    tail = {}
    w1, b1 = conv(64, 128)
    w2, b2 = conv(ps_dim, 64)
    tail.update(wps1=_kw(w1), bps1=_kb(b1), wps2=_kw(w2), bps2=_kb(b2))

    # ConvTranspose1d(ps_dim, 128, up, up, bias=False): weight (ps_dim, 128, up)
    # -> wct[c, r*128+o] = w[c, o, r]; all taps in one (ps_dim, up*128) matmul.
    ps_w = 0.1 * jax.random.normal(nxt(), (ps_dim, 128, up), jnp.float32)
    tail["wct"] = jnp.transpose(ps_w, (0, 2, 1)).reshape(ps_dim, up * 128).astype(jnp.bfloat16)

    # mlp_delta_feature = MLP_Res(256, 128, 128) over concat([feat_child_up, H_up]);
    # split the concat across weights and fuse [conv1 | shortcut] halves per operand.
    w1, b1 = conv(128, 256)
    w2, b2 = conv(128, 128)
    ws, bs = conv(128, 256)
    tail["wda"] = jnp.concatenate([_kw(w1[:, :128]), _kw(ws[:, :128])], axis=1)   # feat_child
    tail["wdb"] = jnp.concatenate([_kw(w1[:, 128:]), _kw(ws[:, 128:])], axis=1)   # H_up
    tail.update(bd1=_kb(b1), bds=_kb(bs), wd2=_kw(w2), bd2=_kb(b2))

    w1, b1 = conv(64, 128)
    w2, b2 = conv(3, 64)
    tail.update(wdl1=_kw(w1), bdl1=_kb(b1), wdl2=_kw(w2), bdl2=_kb(b2))
    p["tail"] = tail
    return p


# ----------------------------------------------------------------------------
if __name__ == "__main__":
    cfg = dict(dim_feat=32, up_factor=2, i=0, radius=10, bounding=True,
               global_feat=True, n_knn=16, dim=64, ps_dim=32)

    root = jax.random.PRNGKey(0)
    kp, k1, k2, k3 = jax.random.split(root, 4)
    params = init_spd_params(kp, cfg)

    B, N = 2, 16
    pcd_prev = jax.random.normal(k1, (B, 3, N), jnp.float32)
    feat_global = jax.random.normal(k2, (B, cfg["dim_feat"], 1), jnp.float32)
    K_prev = jax.random.normal(k3, (B, 128, N), jnp.float32)

    fwd = jax.jit(functools.partial(spd_forward, cfg=cfg))
    pcd_child, K_curr, _ = fwd(params, pcd_prev, feat_global, K_prev)
    jax.block_until_ready((pcd_child, K_curr))

    assert pcd_child.shape == (B, 3, N * cfg["up_factor"])
    assert K_curr.shape == (B, 128, N * cfg["up_factor"])
    assert bool(jnp.all(jnp.isfinite(pcd_child))) and bool(jnp.all(jnp.isfinite(K_curr)))
    print("KERNEL_OK")
</pallas_src>

<mosaic_0001>
module attributes {stable_mosaic.version = 11 : i64} {
  func.func @_mlp1_kernel(%arg0: i32, %arg1: i32, %arg2: memref<1x16x3xf32, #tpu.memory_space<vmem>>, %arg3: memref<3x64xbf16, #tpu.memory_space<vmem>>, %arg4: memref<1x64xf32, #tpu.memory_space<vmem>>, %arg5: memref<64x128xbf16, #tpu.memory_space<vmem>>, %arg6: memref<1x128xf32, #tpu.memory_space<vmem>>, %arg7: memref<1x16x128xbf16, #tpu.memory_space<vmem>>, %arg8: memref<1x1x1x128xf32, #tpu.memory_space<vmem>>) attributes {dimension_semantics = [#tpu.dimension_semantics<parallel>, #tpu.dimension_semantics<parallel>], iteration_bounds = array<i64: 2, 1>, scalar_prefetch = 0 : i64, scratch_operands = 0 : i64, tpu.core_type = #tpu.core_type<tc>, window_params = [{transform_indices = @transform_0, window_bounds = array<i64: 1, 16, 3>}, {pipeline_mode = #tpu.pipeline_mode<synchronous>, transform_indices = @transform_1, window_bounds = array<i64: 3, 64>}, {pipeline_mode = #tpu.pipeline_mode<synchronous>, transform_indices = @transform_2, window_bounds = array<i64: 1, 64>}, {pipeline_mode = #tpu.pipeline_mode<synchronous>, transform_indices = @transform_3, window_bounds = array<i64: 64, 128>}, {pipeline_mode = #tpu.pipeline_mode<synchronous>, transform_indices = @transform_4, window_bounds = array<i64: 1, 128>}, {transform_indices = @transform_5, window_bounds = array<i64: 1, 16, 128>}, {transform_indices = @transform_6, window_bounds = array<i64: 1, 1, 1, 128>}]} {
    %c0 = arith.constant 0 : index
    %c0_0 = arith.constant 0 : index
    %c0_1 = arith.constant 0 : index
    %0 = vector.load %arg2[%c0, %c0_0, %c0_1] : memref<1x16x3xf32, #tpu.memory_space<vmem>>, vector<1x16x3xf32>
    %1 = vector.shape_cast %0 : vector<1x16x3xf32> to vector<16x3xf32>
    %c0_2 = arith.constant 0 : index
    %c0_3 = arith.constant 0 : index
    %2 = vector.load %arg3[%c0_2, %c0_3] : memref<3x64xbf16, #tpu.memory_space<vmem>>, vector<3x64xbf16>
    %3 = arith.truncf %1 : vector<16x3xf32> to vector<16x3xbf16>
    %cst = arith.constant dense<0.000000e+00> : vector<16x64xf32>
    %4 = tpu.matmul %3, %2, %cst {dimension_numbers = #tpu.dot_dimension_numbers<[1], [0], [0], [1], [0, 0, 1, 1], [], []>} : vector<16x3xbf16>, vector<3x64xbf16>, vector<16x64xf32> -> vector<16x64xf32>
    %c0_4 = arith.constant 0 : index
    %c0_5 = arith.constant 0 : index
    %5 = vector.load %arg4[%c0_4, %c0_5] : memref<1x64xf32, #tpu.memory_space<vmem>>, vector<1x64xf32>
    %6 = vector.broadcast %5 : vector<1x64xf32> to vector<16x64xf32>
    %7 = arith.addf %4, %6 : vector<16x64xf32>
    %cst_6 = arith.constant 0.000000e+00 : f32
    %8 = vector.broadcast %cst_6 : f32 to vector<16x64xf32>
    %9 = arith.maximumf %7, %8 : vector<16x64xf32>
    %c0_7 = arith.constant 0 : index
    %c0_8 = arith.constant 0 : index
    %10 = vector.load %arg5[%c0_7, %c0_8] : memref<64x128xbf16, #tpu.memory_space<vmem>>, vector<64x128xbf16>
    %11 = arith.truncf %9 : vector<16x64xf32> to vector<16x64xbf16>
    %cst_9 = arith.constant dense<0.000000e+00> : vector<16x128xf32>
    %12 = tpu.matmul %11, %10, %cst_9 {dimension_numbers = #tpu.dot_dimension_numbers<[1], [0], [0], [1], [0, 0, 1, 1], [], []>} : vector<16x64xbf16>, vector<64x128xbf16>, vector<16x128xf32> -> vector<16x128xf32>
    %c0_10 = arith.constant 0 : index
    %c0_11 = arith.constant 0 : index
    %13 = vector.load %arg6[%c0_10, %c0_11] : memref<1x128xf32, #tpu.memory_space<vmem>>, vector<1x128xf32>
    %14 = vector.broadcast %13 : vector<1x128xf32> to vector<16x128xf32>
    %15 = arith.addf %12, %14 : vector<16x128xf32>
    %16 = arith.truncf %15 : vector<16x128xf32> to vector<16x128xbf16>
    %c0_12 = arith.constant 0 : index
    %c0_13 = arith.constant 0 : index
    %c0_14 = arith.constant 0 : index
    %17 = vector.load %arg7[%c0_12, %c0_13, %c0_14] : memref<1x16x128xbf16, #tpu.memory_space<vmem>>, vector<1x16x128xbf16>
    %18 = vector.shape_cast %17 : vector<1x16x128xbf16> to vector<16x128xbf16>
    %19 = vector.shape_cast %16 : vector<16x128xbf16> to vector<1x16x128xbf16>
    tpu.vector_store %arg7[%c0_12, %c0_13, %c0_14], %19 {strides = array<i32>} : memref<1x16x128xbf16, #tpu.memory_space<vmem>>, vector<1x16x128xbf16>,
    %cst_15 = arith.constant dense<0xFF800000> : vector<128xf32>
    %20 = vector.multi_reduction <maximumf>, %15, %cst_15 [0] : vector<16x128xf32> to vector<128xf32>
    %21 = vector.shape_cast %20 : vector<128xf32> to vector<1x128xf32>
    %c0_16 = arith.constant 0 : index
    %c0_17 = arith.constant 0 : index
    %c0_18 = arith.constant 0 : index
    %c0_19 = arith.constant 0 : index
    %22 = vector.load %arg8[%c0_16, %c0_17, %c0_18, %c0_19] : memref<1x1x1x128xf32, #tpu.memory_space<vmem>>, vector<1x1x1x128xf32>
    %23 = vector.shape_cast %22 : vector<1x1x1x128xf32> to vector<1x128xf32>
    %24 = vector.shape_cast %21 : vector<1x128xf32> to vector<1x1x1x128xf32>
    tpu.vector_store %arg8[%c0_16, %c0_17, %c0_18, %c0_19], %24 {strides = array<i32>} : memref<1x1x1x128xf32, #tpu.memory_space<vmem>>, vector<1x1x1x128xf32>,
    return
  }
  func.func @transform_0(%arg0: i32, %arg1: i32) -> (i32, i32, i32) {
    %c0_i32 = arith.constant 0 : i32
    %c0_i32_0 = arith.constant 0 : i32
    return %arg0, %arg1, %c0_i32 : i32, i32, i32
  }
  func.func @transform_1(%arg0: i32, %arg1: i32) -> (i32, i32) {
    %c0_i32 = arith.constant 0 : i32
    %c0_i32_0 = arith.constant 0 : i32
    %c0_i32_1 = arith.constant 0 : i32
    return %c0_i32, %c0_i32_0 : i32, i32
  }
  func.func @transform_2(%arg0: i32, %arg1: i32) -> (i32, i32) {
    %c0_i32 = arith.constant 0 : i32
    %c0_i32_0 = arith.constant 0 : i32
    %c0_i32_1 = arith.constant 0 : i32
    return %c0_i32, %c0_i32_0 : i32, i32
  }
  func.func @transform_3(%arg0: i32, %arg1: i32) -> (i32, i32) {
    %c0_i32 = arith.constant 0 : i32
    %c0_i32_0 = arith.constant 0 : i32
    %c0_i32_1 = arith.constant 0 : i32
    return %c0_i32, %c0_i32_0 : i32, i32
  }
  func.func @transform_4(%arg0: i32, %arg1: i32) -> (i32, i32) {
    %c0_i32 = arith.constant 0 : i32
    %c0_i32_0 = arith.constant 0 : i32
    %c0_i32_1 = arith.constant 0 : i32
    return %c0_i32, %c0_i32_0 : i32, i32
  }
  func.func @transform_5(%arg0: i32, %arg1: i32) -> (i32, i32, i32) {
    %c0_i32 = arith.constant 0 : i32
    %c0_i32_0 = arith.constant 0 : i32
    return %arg0, %arg1, %c0_i32 : i32, i32, i32
  }
  func.func @transform_6(%arg0: i32, %arg1: i32) -> (i32, i32, i32, i32) {
    %c0_i32 = arith.constant 0 : i32
    %c0_i32_0 = arith.constant 0 : i32
    %c0_i32_1 = arith.constant 0 : i32
    return %arg0, %arg1, %c0_i32, %c0_i32_0 : i32, i32, i32, i32
  }
}

module attributes {stable_mosaic.version = 11 : i64} {
  func.func @_mlp2_kernel(%arg0: i32, %arg1: i32, %arg2: memref<1x16x128xbf16, #tpu.memory_space<vmem>>, %arg3: memref<1x1x256xf32, #tpu.memory_space<vmem>>, %arg4: memref<128x256xbf16, #tpu.memory_space<vmem>>, %arg5: memref<256x128xbf16, #tpu.memory_space<vmem>>, %arg6: memref<1x128xf32, #tpu.memory_space<vmem>>, %arg7: memref<1x16x128xbf16, #tpu.memory_space<vmem>>) attributes {dimension_semantics = [#tpu.dimension_semantics<parallel>, #tpu.dimension_semantics<parallel>], iteration_bounds = array<i64: 2, 1>, scalar_prefetch = 0 : i64, scratch_operands = 0 : i64, tpu.core_type = #tpu.core_type<tc>, window_params = [{transform_indices = @transform_0, window_bounds = array<i64: 1, 16, 128>}, {transform_indices = @transform_1, window_bounds = array<i64: 1, 1, 256>}, {pipeline_mode = #tpu.pipeline_mode<synchronous>, transform_indices = @transform_2, window_bounds = array<i64: 128, 256>}, {pipeline_mode = #tpu.pipeline_mode<synchronous>, transform_indices = @transform_3, window_bounds = array<i64: 256, 128>}, {pipeline_mode = #tpu.pipeline_mode<synchronous>, transform_indices = @transform_4, window_bounds = array<i64: 1, 128>}, {transform_indices = @transform_5, window_bounds = array<i64: 1, 16, 128>}]} {
    %c0 = arith.constant 0 : index
    %c0_0 = arith.constant 0 : index
    %c0_1 = arith.constant 0 : index
    %0 = vector.load %arg2[%c0, %c0_0, %c0_1] : memref<1x16x128xbf16, #tpu.memory_space<vmem>>, vector<1x16x128xbf16>
    %1 = vector.shape_cast %0 : vector<1x16x128xbf16> to vector<16x128xbf16>
    %c0_2 = arith.constant 0 : index
    %c0_3 = arith.constant 0 : index
    %2 = vector.load %arg4[%c0_2, %c0_3] : memref<128x256xbf16, #tpu.memory_space<vmem>>, vector<128x256xbf16>
    %cst = arith.constant dense<0.000000e+00> : vector<16x256xf32>
    %3 = tpu.matmul %1, %2, %cst {dimension_numbers = #tpu.dot_dimension_numbers<[1], [0], [0], [1], [0, 0, 1, 1], [], []>} : vector<16x128xbf16>, vector<128x256xbf16>, vector<16x256xf32> -> vector<16x256xf32>
    %c0_4 = arith.constant 0 : index
    %c0_5 = arith.constant 0 : index
    %c0_6 = arith.constant 0 : index
    %4 = vector.load %arg3[%c0_4, %c0_5, %c0_6] : memref<1x1x256xf32, #tpu.memory_space<vmem>>, vector<1x1x256xf32>
    %5 = vector.shape_cast %4 : vector<1x1x256xf32> to vector<1x256xf32>
    %6 = vector.broadcast %5 : vector<1x256xf32> to vector<16x256xf32>
    %7 = arith.addf %3, %6 : vector<16x256xf32>
    %cst_7 = arith.constant 0.000000e+00 : f32
    %8 = vector.broadcast %cst_7 : f32 to vector<16x256xf32>
    %9 = arith.maximumf %7, %8 : vector<16x256xf32>
    %c0_8 = arith.constant 0 : index
    %c0_9 = arith.constant 0 : index
    %10 = vector.load %arg5[%c0_8, %c0_9] : memref<256x128xbf16, #tpu.memory_space<vmem>>, vector<256x128xbf16>
    %11 = arith.truncf %9 : vector<16x256xf32> to vector<16x256xbf16>
    %cst_10 = arith.constant dense<0.000000e+00> : vector<16x128xf32>
    %12 = tpu.matmul %11, %10, %cst_10 {dimension_numbers = #tpu.dot_dimension_numbers<[1], [0], [0], [1], [0, 0, 1, 1], [], []>} : vector<16x256xbf16>, vector<256x128xbf16>, vector<16x128xf32> -> vector<16x128xf32>
    %c0_11 = arith.constant 0 : index
    %c0_12 = arith.constant 0 : index
    %13 = vector.load %arg6[%c0_11, %c0_12] : memref<1x128xf32, #tpu.memory_space<vmem>>, vector<1x128xf32>
    %14 = vector.broadcast %13 : vector<1x128xf32> to vector<16x128xf32>
    %15 = arith.addf %12, %14 : vector<16x128xf32>
    %16 = arith.truncf %15 : vector<16x128xf32> to vector<16x128xbf16>
    %c0_13 = arith.constant 0 : index
    %c0_14 = arith.constant 0 : index
    %c0_15 = arith.constant 0 : index
    %17 = vector.load %arg7[%c0_13, %c0_14, %c0_15] : memref<1x16x128xbf16, #tpu.memory_space<vmem>>, vector<1x16x128xbf16>
    %18 = vector.shape_cast %17 : vector<1x16x128xbf16> to vector<16x128xbf16>
    %19 = vector.shape_cast %16 : vector<16x128xbf16> to vector<1x16x128xbf16>
    tpu.vector_store %arg7[%c0_13, %c0_14, %c0_15], %19 {strides = array<i32>} : memref<1x16x128xbf16, #tpu.memory_space<vmem>>, vector<1x16x128xbf16>,
    return
  }
  func.func @transform_0(%arg0: i32, %arg1: i32) -> (i32, i32, i32) {
    %c0_i32 = arith.constant 0 : i32
    %c0_i32_0 = arith.constant 0 : i32
    return %arg0, %arg1, %c0_i32 : i32, i32, i32
  }
  func.func @transform_1(%arg0: i32, %arg1: i32) -> (i32, i32, i32) {
    %c0_i32 = arith.constant 0 : i32
    %c0_i32_0 = arith.constant 0 : i32
    %c0_i32_1 = arith.constant 0 : i32
    return %arg0, %c0_i32, %c0_i32_0 : i32, i32, i32
  }
  func.func @transform_2(%arg0: i32, %arg1: i32) -> (i32, i32) {
    %c0_i32 = arith.constant 0 : i32
    %c0_i32_0 = arith.constant 0 : i32
    %c0_i32_1 = arith.constant 0 : i32
    return %c0_i32, %c0_i32_0 : i32, i32
  }
  func.func @transform_3(%arg0: i32, %arg1: i32) -> (i32, i32) {
    %c0_i32 = arith.constant 0 : i32
    %c0_i32_0 = arith.constant 0 : i32
    %c0_i32_1 = arith.constant 0 : i32
    return %c0_i32, %c0_i32_0 : i32, i32
  }
  func.func @transform_4(%arg0: i32, %arg1: i32) -> (i32, i32) {
    %c0_i32 = arith.constant 0 : i32
    %c0_i32_0 = arith.constant 0 : i32
    %c0_i32_1 = arith.constant 0 : i32
    return %c0_i32, %c0_i32_0 : i32, i32
  }
  func.func @transform_5(%arg0: i32, %arg1: i32) -> (i32, i32, i32) {
    %c0_i32 = arith.constant 0 : i32
    %c0_i32_0 = arith.constant 0 : i32
    return %arg0, %arg1, %c0_i32 : i32, i32, i32
  }
}

module attributes {stable_mosaic.version = 11 : i64} {
  func.func @_sqdist_kernel(%arg0: i32, %arg1: i32, %arg2: memref<1x16x3xf32, #tpu.memory_space<vmem>>, %arg3: memref<1x16x3xf32, #tpu.memory_space<vmem>>, %arg4: memref<1x16x16xbf16, #tpu.memory_space<vmem>>) attributes {dimension_semantics = [#tpu.dimension_semantics<parallel>, #tpu.dimension_semantics<parallel>], iteration_bounds = array<i64: 2, 1>, scalar_prefetch = 0 : i64, scratch_operands = 0 : i64, tpu.core_type = #tpu.core_type<tc>, window_params = [{transform_indices = @transform_0, window_bounds = array<i64: 1, 16, 3>}, {transform_indices = @transform_1, window_bounds = array<i64: 1, 16, 3>}, {transform_indices = @transform_2, window_bounds = array<i64: 1, 16, 16>}]} {
    %c0 = arith.constant 0 : index
    %c0_0 = arith.constant 0 : index
    %c0_1 = arith.constant 0 : index
    %0 = vector.load %arg2[%c0, %c0_0, %c0_1] : memref<1x16x3xf32, #tpu.memory_space<vmem>>, vector<1x16x3xf32>
    %1 = vector.shape_cast %0 : vector<1x16x3xf32> to vector<16x3xf32>
    %c0_2 = arith.constant 0 : index
    %c0_3 = arith.constant 0 : index
    %c0_4 = arith.constant 0 : index
    %2 = vector.load %arg3[%c0_2, %c0_3, %c0_4] : memref<1x16x3xf32, #tpu.memory_space<vmem>>, vector<1x16x3xf32>
    %3 = vector.shape_cast %2 : vector<1x16x3xf32> to vector<16x3xf32>
    %cst = arith.constant dense<0.000000e+00> : vector<16x16xf32>
    %4 = tpu.matmul %1, %3, %cst {dimension_numbers = #tpu.dot_dimension_numbers<[1], [1], [0], [0], [0, 0, 1, 0], [], []>} : vector<16x3xf32>, vector<16x3xf32>, vector<16x16xf32> -> vector<16x16xf32>
    %5 = arith.mulf %1, %1 : vector<16x3xf32>
    %cst_5 = arith.constant dense<0.000000e+00> : vector<16xf32>
    %6 = vector.multi_reduction <add>, %5, %cst_5 [1] : vector<16x3xf32> to vector<16xf32>
    %7 = vector.shape_cast %6 : vector<16xf32> to vector<16x1xf32>
    %cst_6 = arith.constant 1.000000e+00 : f32
    %8 = vector.broadcast %cst_6 : f32 to vector<1x3xf32>
    %9 = arith.mulf %3, %3 : vector<16x3xf32>
    %cst_7 = arith.constant dense<0.000000e+00> : vector<1x16xf32>
    %10 = tpu.matmul %8, %9, %cst_7 {dimension_numbers = #tpu.dot_dimension_numbers<[1], [1], [0], [0], [0, 0, 1, 0], [], []>} : vector<1x3xf32>, vector<16x3xf32>, vector<1x16xf32> -> vector<1x16xf32>
    %11 = vector.broadcast %7 : vector<16x1xf32> to vector<16x16xf32>
    %12 = vector.broadcast %10 : vector<1x16xf32> to vector<16x16xf32>
    %13 = arith.addf %11, %12 : vector<16x16xf32>
    %cst_8 = arith.constant 2.000000e+00 : f32
    %14 = vector.broadcast %cst_8 : f32 to vector<16x16xf32>
    %15 = arith.mulf %14, %4 : vector<16x16xf32>
    %16 = arith.subf %13, %15 : vector<16x16xf32>
    %17 = arith.truncf %16 : vector<16x16xf32> to vector<16x16xbf16>
    %c0_9 = arith.constant 0 : index
    %c0_10 = arith.constant 0 : index
    %c0_11 = arith.constant 0 : index
    %18 = vector.load %arg4[%c0_9, %c0_10, %c0_11] : memref<1x16x16xbf16, #tpu.memory_space<vmem>>, vector<1x16x16xbf16>
    %19 = vector.shape_cast %18 : vector<1x16x16xbf16> to vector<16x16xbf16>
    %20 = vector.shape_cast %17 : vector<16x16xbf16> to vector<1x16x16xbf16>
    tpu.vector_store %arg4[%c0_9, %c0_10, %c0_11], %20 {strides = array<i32>} : memref<1x16x16xbf16, #tpu.memory_space<vmem>>, vector<1x16x16xbf16>,
    return
  }
  func.func @transform_0(%arg0: i32, %arg1: i32) -> (i32, i32, i32) {
    %c0_i32 = arith.constant 0 : i32
    %c0_i32_0 = arith.constant 0 : i32
    return %arg0, %arg1, %c0_i32 : i32, i32, i32
  }
  func.func @transform_1(%arg0: i32, %arg1: i32) -> (i32, i32, i32) {
    %c0_i32 = arith.constant 0 : i32
    %c0_i32_0 = arith.constant 0 : i32
    %c0_i32_1 = arith.constant 0 : i32
    return %arg0, %c0_i32, %c0_i32_0 : i32, i32, i32
  }
  func.func @transform_2(%arg0: i32, %arg1: i32) -> (i32, i32, i32) {
    %c0_i32 = arith.constant 0 : i32
    %c0_i32_0 = arith.constant 0 : i32
    return %arg0, %arg1, %c0_i32 : i32, i32, i32
  }
}

module attributes {stable_mosaic.version = 11 : i64} {
  func.func @_value_qkv_kernel(%arg0: i32, %arg1: i32, %arg2: memref<1x16x128xbf16, #tpu.memory_space<vmem>>, %arg3: memref<1x16x128xbf16, #tpu.memory_space<vmem>>, %arg4: memref<128x320xbf16, #tpu.memory_space<vmem>>, %arg5: memref<128x320xbf16, #tpu.memory_space<vmem>>, %arg6: memref<1x128xf32, #tpu.memory_space<vmem>>, %arg7: memref<1x128xf32, #tpu.memory_space<vmem>>, %arg8: memref<1x64xf32, #tpu.memory_space<vmem>>, %arg9: memref<1x64xf32, #tpu.memory_space<vmem>>, %arg10: memref<128x128xbf16, #tpu.memory_space<vmem>>, %arg11: memref<1x128xf32, #tpu.memory_space<vmem>>, %arg12: memref<128x64xbf16, #tpu.memory_space<vmem>>, %arg13: memref<1x64xf32, #tpu.memory_space<vmem>>, %arg14: memref<1x16x64xbf16, #tpu.memory_space<vmem>>, %arg15: memref<1x16x256xbf16, #tpu.memory_space<vmem>>) attributes {dimension_semantics = [#tpu.dimension_semantics<parallel>, #tpu.dimension_semantics<parallel>], iteration_bounds = array<i64: 2, 1>, scalar_prefetch = 0 : i64, scratch_operands = 0 : i64, tpu.core_type = #tpu.core_type<tc>, window_params = [{transform_indices = @transform_0, window_bounds = array<i64: 1, 16, 128>}, {transform_indices = @transform_1, window_bounds = array<i64: 1, 16, 128>}, {pipeline_mode = #tpu.pipeline_mode<synchronous>, transform_indices = @transform_2, window_bounds = array<i64: 128, 320>}, {pipeline_mode = #tpu.pipeline_mode<synchronous>, transform_indices = @transform_3, window_bounds = array<i64: 128, 320>}, {pipeline_mode = #tpu.pipeline_mode<synchronous>, transform_indices = @transform_4, window_bounds = array<i64: 1, 128>}, {pipeline_mode = #tpu.pipeline_mode<synchronous>, transform_indices = @transform_5, window_bounds = array<i64: 1, 128>}, {pipeline_mode = #tpu.pipeline_mode<synchronous>, transform_indices = @transform_6, window_bounds = array<i64: 1, 64>}, {pipeline_mode = #tpu.pipeline_mode<synchronous>, transform_indices = @transform_7, window_bounds = array<i64: 1, 64>}, {pipeline_mode = #tpu.pipeline_mode<synchronous>, transform_indices = @transform_8, window_bounds = array<i64: 128, 128>}, {pipeline_mode = #tpu.pipeline_mode<synchronous>, transform_indices = @transform_9, window_bounds = array<i64: 1, 128>}, {pipeline_mode = #tpu.pipeline_mode<synchronous>, transform_indices = @transform_10, window_bounds = array<i64: 128, 64>}, {pipeline_mode = #tpu.pipeline_mode<synchronous>, transform_indices = @transform_11, window_bounds = array<i64: 1, 64>}, {transform_indices = @transform_12, window_bounds = array<i64: 1, 16, 64>}, {transform_indices = @transform_13, window_bounds = array<i64: 1, 16, 256>}]} {
    %c0 = arith.constant 0 : index
    %c0_0 = arith.constant 0 : index
    %c0_1 = arith.constant 0 : index
    %0 = vector.load %arg2[%c0, %c0_0, %c0_1] : memref<1x16x128xbf16, #tpu.memory_space<vmem>>, vector<1x16x128xbf16>
    %1 = vector.shape_cast %0 : vector<1x16x128xbf16> to vector<16x128xbf16>
    %c0_2 = arith.constant 0 : index
    %c0_3 = arith.constant 0 : index
    %c0_4 = arith.constant 0 : index
    %2 = vector.load %arg3[%c0_2, %c0_3, %c0_4] : memref<1x16x128xbf16, #tpu.memory_space<vmem>>, vector<1x16x128xbf16>
    %3 = vector.shape_cast %2 : vector<1x16x128xbf16> to vector<16x128xbf16>
    %c0_5 = arith.constant 0 : index
    %c0_6 = arith.constant 0 : index
    %4 = vector.load %arg4[%c0_5, %c0_6] : memref<128x320xbf16, #tpu.memory_space<vmem>>, vector<128x320xbf16>
    %cst = arith.constant dense<0.000000e+00> : vector<16x320xf32>
    %5 = tpu.matmul %1, %4, %cst {dimension_numbers = #tpu.dot_dimension_numbers<[1], [0], [0], [1], [0, 0, 1, 1], [], []>} : vector<16x128xbf16>, vector<128x320xbf16>, vector<16x320xf32> -> vector<16x320xf32>
    %c0_7 = arith.constant 0 : index
    %c0_8 = arith.constant 0 : index
    %6 = vector.load %arg5[%c0_7, %c0_8] : memref<128x320xbf16, #tpu.memory_space<vmem>>, vector<128x320xbf16>
    %cst_9 = arith.constant dense<0.000000e+00> : vector<16x320xf32>
    %7 = tpu.matmul %3, %6, %cst_9 {dimension_numbers = #tpu.dot_dimension_numbers<[1], [0], [0], [1], [0, 0, 1, 1], [], []>} : vector<16x128xbf16>, vector<128x320xbf16>, vector<16x320xf32> -> vector<16x320xf32>
    %8 = vector.extract_strided_slice %5 {offsets = [0, 0], sizes = [16, 128], strides = [1, 1]} : vector<16x320xf32> to vector<16x128xf32>
    %9 = vector.extract_strided_slice %7 {offsets = [0, 0], sizes = [16, 128], strides = [1, 1]} : vector<16x320xf32> to vector<16x128xf32>
    %10 = arith.addf %8, %9 : vector<16x128xf32>
    %c0_10 = arith.constant 0 : index
    %c0_11 = arith.constant 0 : index
    %11 = vector.load %arg6[%c0_10, %c0_11] : memref<1x128xf32, #tpu.memory_space<vmem>>, vector<1x128xf32>
    %12 = vector.broadcast %11 : vector<1x128xf32> to vector<16x128xf32>
    %13 = arith.addf %10, %12 : vector<16x128xf32>
    %cst_12 = arith.constant 0.000000e+00 : f32
    %14 = vector.broadcast %cst_12 : f32 to vector<16x128xf32>
    %15 = arith.maximumf %13, %14 : vector<16x128xf32>
    %16 = vector.extract_strided_slice %5 {offsets = [0, 128], sizes = [16, 128], strides = [1, 1]} : vector<16x320xf32> to vector<16x128xf32>
    %17 = vector.extract_strided_slice %7 {offsets = [0, 128], sizes = [16, 128], strides = [1, 1]} : vector<16x320xf32> to vector<16x128xf32>
    %18 = arith.addf %16, %17 : vector<16x128xf32>
    %c0_13 = arith.constant 0 : index
    %c0_14 = arith.constant 0 : index
    %19 = vector.load %arg7[%c0_13, %c0_14] : memref<1x128xf32, #tpu.memory_space<vmem>>, vector<1x128xf32>
    %20 = vector.broadcast %19 : vector<1x128xf32> to vector<16x128xf32>
    %21 = arith.addf %18, %20 : vector<16x128xf32>
    %c0_15 = arith.constant 0 : index
    %c0_16 = arith.constant 0 : index
    %22 = vector.load %arg10[%c0_15, %c0_16] : memref<128x128xbf16, #tpu.memory_space<vmem>>, vector<128x128xbf16>
    %23 = arith.truncf %15 : vector<16x128xf32> to vector<16x128xbf16>
    %cst_17 = arith.constant dense<0.000000e+00> : vector<16x128xf32>
    %24 = tpu.matmul %23, %22, %cst_17 {dimension_numbers = #tpu.dot_dimension_numbers<[1], [0], [0], [1], [0, 0, 1, 1], [], []>} : vector<16x128xbf16>, vector<128x128xbf16>, vector<16x128xf32> -> vector<16x128xf32>
    %c0_18 = arith.constant 0 : index
    %c0_19 = arith.constant 0 : index
    %25 = vector.load %arg11[%c0_18, %c0_19] : memref<1x128xf32, #tpu.memory_space<vmem>>, vector<1x128xf32>
    %26 = vector.broadcast %25 : vector<1x128xf32> to vector<16x128xf32>
    %27 = arith.addf %24, %26 : vector<16x128xf32>
    %28 = arith.addf %27, %21 : vector<16x128xf32>
    %29 = vector.extract_strided_slice %5 {offsets = [0, 256], sizes = [16, 64], strides = [1, 1]} : vector<16x320xf32> to vector<16x64xf32>
    %c0_20 = arith.constant 0 : index
    %c0_21 = arith.constant 0 : index
    %30 = vector.load %arg8[%c0_20, %c0_21] : memref<1x64xf32, #tpu.memory_space<vmem>>, vector<1x64xf32>
    %31 = vector.broadcast %30 : vector<1x64xf32> to vector<16x64xf32>
    %32 = arith.addf %29, %31 : vector<16x64xf32>
    %33 = vector.extract_strided_slice %7 {offsets = [0, 256], sizes = [16, 64], strides = [1, 1]} : vector<16x320xf32> to vector<16x64xf32>
    %c0_22 = arith.constant 0 : index
    %c0_23 = arith.constant 0 : index
    %34 = vector.load %arg9[%c0_22, %c0_23] : memref<1x64xf32, #tpu.memory_space<vmem>>, vector<1x64xf32>
    %35 = vector.broadcast %34 : vector<1x64xf32> to vector<16x64xf32>
    %36 = arith.addf %33, %35 : vector<16x64xf32>
    %c0_24 = arith.constant 0 : index
    %c0_25 = arith.constant 0 : index
    %37 = vector.load %arg12[%c0_24, %c0_25] : memref<128x64xbf16, #tpu.memory_space<vmem>>, vector<128x64xbf16>
    %38 = arith.truncf %28 : vector<16x128xf32> to vector<16x128xbf16>
    %cst_26 = arith.constant dense<0.000000e+00> : vector<16x64xf32>
    %39 = tpu.matmul %38, %37, %cst_26 {dimension_numbers = #tpu.dot_dimension_numbers<[1], [0], [0], [1], [0, 0, 1, 1], [], []>} : vector<16x128xbf16>, vector<128x64xbf16>, vector<16x64xf32> -> vector<16x64xf32>
    %c0_27 = arith.constant 0 : index
    %c0_28 = arith.constant 0 : index
    %40 = vector.load %arg13[%c0_27, %c0_28] : memref<1x64xf32, #tpu.memory_space<vmem>>, vector<1x64xf32>
    %41 = vector.broadcast %40 : vector<1x64xf32> to vector<16x64xf32>
    %42 = arith.addf %39, %41 : vector<16x64xf32>
    %43 = arith.truncf %32 : vector<16x64xf32> to vector<16x64xbf16>
    %c0_29 = arith.constant 0 : index
    %c0_30 = arith.constant 0 : index
    %c0_31 = arith.constant 0 : index
    %44 = vector.load %arg14[%c0_29, %c0_30, %c0_31] : memref<1x16x64xbf16, #tpu.memory_space<vmem>>, vector<1x16x64xbf16>
    %45 = vector.shape_cast %44 : vector<1x16x64xbf16> to vector<16x64xbf16>
    %46 = vector.shape_cast %43 : vector<16x64xbf16> to vector<1x16x64xbf16>
    tpu.vector_store %arg14[%c0_29, %c0_30, %c0_31], %46 {strides = array<i32>} : memref<1x16x64xbf16, #tpu.memory_space<vmem>>, vector<1x16x64xbf16>,
    %47 = tpu.concatenate %36, %42, %28 in 1 : vector<16x64xf32>, vector<16x64xf32>, vector<16x128xf32> -> vector<16x256xf32>
    %48 = arith.truncf %47 : vector<16x256xf32> to vector<16x256xbf16>
    %c0_32 = arith.constant 0 : index
    %c0_33 = arith.constant 0 : index
    %c0_34 = arith.constant 0 : index
    %49 = vector.load %arg15[%c0_32, %c0_33, %c0_34] : memref<1x16x256xbf16, #tpu.memory_space<vmem>>, vector<1x16x256xbf16>
    %50 = vector.shape_cast %49 : vector<1x16x256xbf16> to vector<16x256xbf16>
    %51 = vector.shape_cast %48 : vector<16x256xbf16> to vector<1x16x256xbf16>
    tpu.vector_store %arg15[%c0_32, %c0_33, %c0_34], %51 {strides = array<i32>} : memref<1x16x256xbf16, #tpu.memory_space<vmem>>, vector<1x16x256xbf16>,
    return
  }
  func.func @transform_0(%arg0: i32, %arg1: i32) -> (i32, i32, i32) {
    %c0_i32 = arith.constant 0 : i32
    %c0_i32_0 = arith.constant 0 : i32
    return %arg0, %arg1, %c0_i32 : i32, i32, i32
  }
  func.func @transform_1(%arg0: i32, %arg1: i32) -> (i32, i32, i32) {
    %c0_i32 = arith.constant 0 : i32
    %c0_i32_0 = arith.constant 0 : i32
    return %arg0, %arg1, %c0_i32 : i32, i32, i32
  }
  func.func @transform_2(%arg0: i32, %arg1: i32) -> (i32, i32) {
    %c0_i32 = arith.constant 0 : i32
    %c0_i32_0 = arith.constant 0 : i32
    %c0_i32_1 = arith.constant 0 : i32
    return %c0_i32, %c0_i32_0 : i32, i32
  }
  func.func @transform_3(%arg0: i32, %arg1: i32) -> (i32, i32) {
    %c0_i32 = arith.constant 0 : i32
    %c0_i32_0 = arith.constant 0 : i32
    %c0_i32_1 = arith.constant 0 : i32
    return %c0_i32, %c0_i32_0 : i32, i32
  }
  func.func @transform_4(%arg0: i32, %arg1: i32) -> (i32, i32) {
    %c0_i32 = arith.constant 0 : i32
    %c0_i32_0 = arith.constant 0 : i32
    %c0_i32_1 = arith.constant 0 : i32
    return %c0_i32, %c0_i32_0 : i32, i32
  }
  func.func @transform_5(%arg0: i32, %arg1: i32) -> (i32, i32) {
    %c0_i32 = arith.constant 0 : i32
    %c0_i32_0 = arith.constant 0 : i32
    %c0_i32_1 = arith.constant 0 : i32
    return %c0_i32, %c0_i32_0 : i32, i32
  }
  func.func @transform_6(%arg0: i32, %arg1: i32) -> (i32, i32) {
    %c0_i32 = arith.constant 0 : i32
    %c0_i32_0 = arith.constant 0 : i32
    %c0_i32_1 = arith.constant 0 : i32
    return %c0_i32, %c0_i32_0 : i32, i32
  }
  func.func @transform_7(%arg0: i32, %arg1: i32) -> (i32, i32) {
    %c0_i32 = arith.constant 0 : i32
    %c0_i32_0 = arith.constant 0 : i32
    %c0_i32_1 = arith.constant 0 : i32
    return %c0_i32, %c0_i32_0 : i32, i32
  }
  func.func @transform_8(%arg0: i32, %arg1: i32) -> (i32, i32) {
    %c0_i32 = arith.constant 0 : i32
    %c0_i32_0 = arith.constant 0 : i32
    %c0_i32_1 = arith.constant 0 : i32
    return %c0_i32, %c0_i32_0 : i32, i32
  }
  func.func @transform_9(%arg0: i32, %arg1: i32) -> (i32, i32) {
    %c0_i32 = arith.constant 0 : i32
    %c0_i32_0 = arith.constant 0 : i32
    %c0_i32_1 = arith.constant 0 : i32
    return %c0_i32, %c0_i32_0 : i32, i32
  }
  func.func @transform_10(%arg0: i32, %arg1: i32) -> (i32, i32) {
    %c0_i32 = arith.constant 0 : i32
    %c0_i32_0 = arith.constant 0 : i32
    %c0_i32_1 = arith.constant 0 : i32
    return %c0_i32, %c0_i32_0 : i32, i32
  }
  func.func @transform_11(%arg0: i32, %arg1: i32) -> (i32, i32) {
    %c0_i32 = arith.constant 0 : i32
    %c0_i32_0 = arith.constant 0 : i32
    %c0_i32_1 = arith.constant 0 : i32
    return %c0_i32, %c0_i32_0 : i32, i32
  }
  func.func @transform_12(%arg0: i32, %arg1: i32) -> (i32, i32, i32) {
    %c0_i32 = arith.constant 0 : i32
    %c0_i32_0 = arith.constant 0 : i32
    return %arg0, %arg1, %c0_i32 : i32, i32, i32
  }
  func.func @transform_13(%arg0: i32, %arg1: i32) -> (i32, i32, i32) {
    %c0_i32 = arith.constant 0 : i32
    %c0_i32_0 = arith.constant 0 : i32
    return %arg0, %arg1, %c0_i32 : i32, i32, i32
  }
}

module attributes {stable_mosaic.version = 11 : i64} {
  func.func @_attention_kernel(%arg0: i32, %arg1: i32, %arg2: memref<1x16x256xbf16, #tpu.memory_space<vmem>>, %arg3: memref<1x16x1024xbf16, #tpu.memory_space<vmem>>, %arg4: memref<1x16x3xf32, #tpu.memory_space<vmem>>, %arg5: memref<1x16x48xf32, #tpu.memory_space<vmem>>, %arg6: memref<3x64xbf16, #tpu.memory_space<vmem>>, %arg7: memref<1x64xf32, #tpu.memory_space<vmem>>, %arg8: memref<64x64xbf16, #tpu.memory_space<vmem>>, %arg9: memref<1x64xf32, #tpu.memory_space<vmem>>, %arg10: memref<64x256xbf16, #tpu.memory_space<vmem>>, %arg11: memref<1x256xf32, #tpu.memory_space<vmem>>, %arg12: memref<256x64xbf16, #tpu.memory_space<vmem>>, %arg13: memref<1x64xf32, #tpu.memory_space<vmem>>, %arg14: memref<64x128xbf16, #tpu.memory_space<vmem>>, %arg15: memref<1x128xf32, #tpu.memory_space<vmem>>, %arg16: memref<1x16x128xbf16, #tpu.memory_space<vmem>>) attributes {dimension_semantics = [#tpu.dimension_semantics<parallel>, #tpu.dimension_semantics<parallel>], iteration_bounds = array<i64: 2, 1>, scalar_prefetch = 0 : i64, scratch_operands = 0 : i64, tpu.core_type = #tpu.core_type<tc>, window_params = [{transform_indices = @transform_0, window_bounds = array<i64: 1, 16, 256>}, {transform_indices = @transform_1, window_bounds = array<i64: 1, 16, 1024>}, {transform_indices = @transform_2, window_bounds = array<i64: 1, 16, 3>}, {transform_indices = @transform_3, window_bounds = array<i64: 1, 16, 48>}, {pipeline_mode = #tpu.pipeline_mode<synchronous>, transform_indices = @transform_4, window_bounds = array<i64: 3, 64>}, {pipeline_mode = #tpu.pipeline_mode<synchronous>, transform_indices = @transform_5, window_bounds = array<i64: 1, 64>}, {pipeline_mode = #tpu.pipeline_mode<synchronous>, transform_indices = @transform_6, window_bounds = array<i64: 64, 64>}, {pipeline_mode = #tpu.pipeline_mode<synchronous>, transform_indices = @transform_7, window_bounds = array<i64: 1, 64>}, {pipeline_mode = #tpu.pipeline_mode<synchronous>, transform_indices = @transform_8, window_bounds = array<i64: 64, 256>}, {pipeline_mode = #tpu.pipeline_mode<synchronous>, transform_indices = @transform_9, window_bounds = array<i64: 1, 256>}, {pipeline_mode = #tpu.pipeline_mode<synchronous>, transform_indices = @transform_10, window_bounds = array<i64: 256, 64>}, {pipeline_mode = #tpu.pipeline_mode<synchronous>, transform_indices = @transform_11, window_bounds = array<i64: 1, 64>}, {pipeline_mode = #tpu.pipeline_mode<synchronous>, transform_indices = @transform_12, window_bounds = array<i64: 64, 128>}, {pipeline_mode = #tpu.pipeline_mode<synchronous>, transform_indices = @transform_13, window_bounds = array<i64: 1, 128>}, {transform_indices = @transform_14, window_bounds = array<i64: 1, 16, 128>}]} {
    %c0 = arith.constant 0 : index
    %c0_0 = arith.constant 0 : index
    %c0_1 = arith.constant 0 : index
    %0 = vector.load %arg2[%c0, %c0_0, %c0_1] : memref<1x16x256xbf16, #tpu.memory_space<vmem>>, vector<1x16x256xbf16>
    %1 = vector.shape_cast %0 : vector<1x16x256xbf16> to vector<16x256xbf16>
    %2 = vector.extract_strided_slice %1 {offsets = [0, 0], sizes = [16, 64], strides = [1, 1]} : vector<16x256xbf16> to vector<16x64xbf16>
    %3 = vector.extract_strided_slice %1 {offsets = [0, 64], sizes = [16, 64], strides = [1, 1]} : vector<16x256xbf16> to vector<16x64xbf16>
    %4 = arith.extf %3 : vector<16x64xbf16> to vector<16x64xf32>
    %5 = vector.extract_strided_slice %1 {offsets = [0, 128], sizes = [16, 128], strides = [1, 1]} : vector<16x256xbf16> to vector<16x128xbf16>
    %6 = arith.extf %5 : vector<16x128xbf16> to vector<16x128xf32>
    %c0_2 = arith.constant 0 : index
    %c0_3 = arith.constant 0 : index
    %c0_4 = arith.constant 0 : index
    %7 = vector.load %arg3[%c0_2, %c0_3, %c0_4] : memref<1x16x1024xbf16, #tpu.memory_space<vmem>>, vector<1x16x1024xbf16>
    %8 = vector.shape_cast %7 : vector<1x16x1024xbf16> to vector<16x1024xbf16>
    %9 = vector.shape_cast %8 : vector<16x1024xbf16> to vector<16x16x64xbf16>
    %c0_5 = arith.constant 0 : index
    %c0_6 = arith.constant 0 : index
    %c0_7 = arith.constant 0 : index
    %10 = vector.load %arg4[%c0_5, %c0_6, %c0_7] : memref<1x16x3xf32, #tpu.memory_space<vmem>>, vector<1x16x3xf32>
    %11 = vector.shape_cast %10 : vector<1x16x3xf32> to vector<16x3xf32>
    %c0_8 = arith.constant 0 : index
    %c0_9 = arith.constant 0 : index
    %c0_10 = arith.constant 0 : index
    %12 = vector.load %arg5[%c0_8, %c0_9, %c0_10] : memref<1x16x48xf32, #tpu.memory_space<vmem>>, vector<1x16x48xf32>
    %13 = vector.shape_cast %12 : vector<1x16x48xf32> to vector<16x48xf32>
    %14 = vector.shape_cast %13 : vector<16x48xf32> to vector<16x16x3xf32>
    %15 = vector.shape_cast %11 : vector<16x3xf32> to vector<16x1x3xf32>
    %16 = vector.broadcast %15 : vector<16x1x3xf32> to vector<16x16x3xf32>
    %17 = arith.subf %16, %14 : vector<16x16x3xf32>
    %18 = vector.shape_cast %17 : vector<16x16x3xf32> to vector<256x3xf32>
    %c0_11 = arith.constant 0 : index
    %c0_12 = arith.constant 0 : index
    %19 = vector.load %arg6[%c0_11, %c0_12] : memref<3x64xbf16, #tpu.memory_space<vmem>>, vector<3x64xbf16>
    %20 = arith.truncf %18 : vector<256x3xf32> to vector<256x3xbf16>
    %cst = arith.constant dense<0.000000e+00> : vector<256x64xf32>
    %21 = tpu.matmul %20, %19, %cst {dimension_numbers = #tpu.dot_dimension_numbers<[1], [0], [0], [1], [0, 0, 1, 1], [], []>} : vector<256x3xbf16>, vector<3x64xbf16>, vector<256x64xf32> -> vector<256x64xf32>
    %c0_13 = arith.constant 0 : index
    %c0_14 = arith.constant 0 : index
    %22 = vector.load %arg7[%c0_13, %c0_14] : memref<1x64xf32, #tpu.memory_space<vmem>>, vector<1x64xf32>
    %23 = vector.broadcast %22 : vector<1x64xf32> to vector<256x64xf32>
    %24 = arith.addf %21, %23 : vector<256x64xf32>
    %cst_15 = arith.constant 0.000000e+00 : f32
    %25 = vector.broadcast %cst_15 : f32 to vector<256x64xf32>
    %26 = arith.maximumf %24, %25 : vector<256x64xf32>
    %c0_16 = arith.constant 0 : index
    %c0_17 = arith.constant 0 : index
    %27 = vector.load %arg8[%c0_16, %c0_17] : memref<64x64xbf16, #tpu.memory_space<vmem>>, vector<64x64xbf16>
    %28 = arith.truncf %26 : vector<256x64xf32> to vector<256x64xbf16>
    %cst_18 = arith.constant dense<0.000000e+00> : vector<256x64xf32>
    %29 = tpu.matmul %28, %27, %cst_18 {dimension_numbers = #tpu.dot_dimension_numbers<[1], [0], [0], [1], [0, 0, 1, 1], [], []>} : vector<256x64xbf16>, vector<64x64xbf16>, vector<256x64xf32> -> vector<256x64xf32>
    %c0_19 = arith.constant 0 : index
    %c0_20 = arith.constant 0 : index
    %30 = vector.load %arg9[%c0_19, %c0_20] : memref<1x64xf32, #tpu.memory_space<vmem>>, vector<1x64xf32>
    %31 = vector.broadcast %30 : vector<1x64xf32> to vector<256x64xf32>
    %32 = arith.addf %29, %31 : vector<256x64xf32>
    %33 = vector.shape_cast %2 : vector<16x64xbf16> to vector<16x1x64xbf16>
    %34 = vector.broadcast %33 : vector<16x1x64xbf16> to vector<16x16x64xbf16>
    %35 = arith.subf %34, %9 : vector<16x16x64xbf16>
    %36 = vector.shape_cast %35 : vector<16x16x64xbf16> to vector<256x64xbf16>
    %37 = arith.extf %36 : vector<256x64xbf16> to vector<256x64xf32>
    %38 = arith.addf %37, %32 : vector<256x64xf32>
    %c0_21 = arith.constant 0 : index
    %c0_22 = arith.constant 0 : index
    %39 = vector.load %arg10[%c0_21, %c0_22] : memref<64x256xbf16, #tpu.memory_space<vmem>>, vector<64x256xbf16>
    %40 = arith.truncf %38 : vector<256x64xf32> to vector<256x64xbf16>
    %cst_23 = arith.constant dense<0.000000e+00> : vector<256x256xf32>
    %41 = tpu.matmul %40, %39, %cst_23 {dimension_numbers = #tpu.dot_dimension_numbers<[1], [0], [0], [1], [0, 0, 1, 1], [], []>} : vector<256x64xbf16>, vector<64x256xbf16>, vector<256x256xf32> -> vector<256x256xf32>
    %c0_24 = arith.constant 0 : index
    %c0_25 = arith.constant 0 : index
    %42 = vector.load %arg11[%c0_24, %c0_25] : memref<1x256xf32, #tpu.memory_space<vmem>>, vector<1x256xf32>
    %43 = vector.broadcast %42 : vector<1x256xf32> to vector<256x256xf32>
    %44 = arith.addf %41, %43 : vector<256x256xf32>
    %cst_26 = arith.constant 0.000000e+00 : f32
    %45 = vector.broadcast %cst_26 : f32 to vector<256x256xf32>
    %46 = arith.maximumf %44, %45 : vector<256x256xf32>
    %c0_27 = arith.constant 0 : index
    %c0_28 = arith.constant 0 : index
    %47 = vector.load %arg12[%c0_27, %c0_28] : memref<256x64xbf16, #tpu.memory_space<vmem>>, vector<256x64xbf16>
    %48 = arith.truncf %46 : vector<256x256xf32> to vector<256x256xbf16>
    %cst_29 = arith.constant dense<0.000000e+00> : vector<256x64xf32>
    %49 = tpu.matmul %48, %47, %cst_29 {dimension_numbers = #tpu.dot_dimension_numbers<[1], [0], [0], [1], [0, 0, 1, 1], [], []>} : vector<256x256xbf16>, vector<256x64xbf16>, vector<256x64xf32> -> vector<256x64xf32>
    %c0_30 = arith.constant 0 : index
    %c0_31 = arith.constant 0 : index
    %50 = vector.load %arg13[%c0_30, %c0_31] : memref<1x64xf32, #tpu.memory_space<vmem>>, vector<1x64xf32>
    %51 = vector.broadcast %50 : vector<1x64xf32> to vector<256x64xf32>
    %52 = arith.addf %49, %51 : vector<256x64xf32>
    %53 = vector.shape_cast %52 : vector<256x64xf32> to vector<16x16x64xf32>
    %cst_32 = arith.constant dense<0xFF800000> : vector<16x64xf32>
    %54 = vector.multi_reduction <maximumf>, %53, %cst_32 [1] : vector<16x16x64xf32> to vector<16x64xf32>
    %55 = vector.shape_cast %54 : vector<16x64xf32> to vector<16x1x64xf32>
    %56 = vector.broadcast %55 : vector<16x1x64xf32> to vector<16x16x64xf32>
    %57 = arith.subf %53, %56 : vector<16x16x64xf32>
    %58 = math.exp %57 : vector<16x16x64xf32>
    %cst_33 = arith.constant dense<0.000000e+00> : vector<16x64xf32>
    %59 = vector.multi_reduction <add>, %58, %cst_33 [1] : vector<16x16x64xf32> to vector<16x64xf32>
    %60 = vector.shape_cast %59 : vector<16x64xf32> to vector<16x1x64xf32>
    %61 = tpu.reciprocal %60 {approx = true} : vector<16x1x64xf32> -> vector<16x1x64xf32>
    %62 = vector.broadcast %61 : vector<16x1x64xf32> to vector<16x16x64xf32>
    %63 = arith.mulf %58, %62 : vector<16x16x64xf32>
    %64 = vector.shape_cast %32 : vector<256x64xf32> to vector<16x16x64xf32>
    %65 = arith.mulf %63, %64 : vector<16x16x64xf32>
    %cst_34 = arith.constant dense<0.000000e+00> : vector<16x64xf32>
    %66 = vector.multi_reduction <add>, %65, %cst_34 [1] : vector<16x16x64xf32> to vector<16x64xf32>
    %67 = arith.addf %4, %66 : vector<16x64xf32>
    %c0_35 = arith.constant 0 : index
    %c0_36 = arith.constant 0 : index
    %68 = vector.load %arg14[%c0_35, %c0_36] : memref<64x128xbf16, #tpu.memory_space<vmem>>, vector<64x128xbf16>
    %69 = arith.truncf %67 : vector<16x64xf32> to vector<16x64xbf16>
    %cst_37 = arith.constant dense<0.000000e+00> : vector<16x128xf32>
    %70 = tpu.matmul %69, %68, %cst_37 {dimension_numbers = #tpu.dot_dimension_numbers<[1], [0], [0], [1], [0, 0, 1, 1], [], []>} : vector<16x64xbf16>, vector<64x128xbf16>, vector<16x128xf32> -> vector<16x128xf32>
    %c0_38 = arith.constant 0 : index
    %c0_39 = arith.constant 0 : index
    %71 = vector.load %arg15[%c0_38, %c0_39] : memref<1x128xf32, #tpu.memory_space<vmem>>, vector<1x128xf32>
    %72 = vector.broadcast %71 : vector<1x128xf32> to vector<16x128xf32>
    %73 = arith.addf %70, %72 : vector<16x128xf32>
    %74 = arith.addf %73, %6 : vector<16x128xf32>
    %75 = arith.truncf %74 : vector<16x128xf32> to vector<16x128xbf16>
    %c0_40 = arith.constant 0 : index
    %c0_41 = arith.constant 0 : index
    %c0_42 = arith.constant 0 : index
    %76 = vector.load %arg16[%c0_40, %c0_41, %c0_42] : memref<1x16x128xbf16, #tpu.memory_space<vmem>>, vector<1x16x128xbf16>
    %77 = vector.shape_cast %76 : vector<1x16x128xbf16> to vector<16x128xbf16>
    %78 = vector.shape_cast %75 : vector<16x128xbf16> to vector<1x16x128xbf16>
    tpu.vector_store %arg16[%c0_40, %c0_41, %c0_42], %78 {strides = array<i32>} : memref<1x16x128xbf16, #tpu.memory_space<vmem>>, vector<1x16x128xbf16>,
    return
  }
  func.func @transform_0(%arg0: i32, %arg1: i32) -> (i32, i32, i32) {
    %c0_i32 = arith.constant 0 : i32
    %c0_i32_0 = arith.constant 0 : i32
    return %arg0, %arg1, %c0_i32 : i32, i32, i32
  }
  func.func @transform_1(%arg0: i32, %arg1: i32) -> (i32, i32, i32) {
    %c0_i32 = arith.constant 0 : i32
    %c0_i32_0 = arith.constant 0 : i32
    return %arg0, %arg1, %c0_i32 : i32, i32, i32
  }
  func.func @transform_2(%arg0: i32, %arg1: i32) -> (i32, i32, i32) {
    %c0_i32 = arith.constant 0 : i32
    %c0_i32_0 = arith.constant 0 : i32
    return %arg0, %arg1, %c0_i32 : i32, i32, i32
  }
  func.func @transform_3(%arg0: i32, %arg1: i32) -> (i32, i32, i32) {
    %c0_i32 = arith.constant 0 : i32
    %c0_i32_0 = arith.constant 0 : i32
    return %arg0, %arg1, %c0_i32 : i32, i32, i32
  }
  func.func @transform_4(%arg0: i32, %arg1: i32) -> (i32, i32) {
    %c0_i32 = arith.constant 0 : i32
    %c0_i32_0 = arith.constant 0 : i32
    %c0_i32_1 = arith.constant 0 : i32
    return %c0_i32, %c0_i32_0 : i32, i32
  }
  func.func @transform_5(%arg0: i32, %arg1: i32) -> (i32, i32) {
    %c0_i32 = arith.constant 0 : i32
    %c0_i32_0 = arith.constant 0 : i32
    %c0_i32_1 = arith.constant 0 : i32
    return %c0_i32, %c0_i32_0 : i32, i32
  }
  func.func @transform_6(%arg0: i32, %arg1: i32) -> (i32, i32) {
    %c0_i32 = arith.constant 0 : i32
    %c0_i32_0 = arith.constant 0 : i32
    %c0_i32_1 = arith.constant 0 : i32
    return %c0_i32, %c0_i32_0 : i32, i32
  }
  func.func @transform_7(%arg0: i32, %arg1: i32) -> (i32, i32) {
    %c0_i32 = arith.constant 0 : i32
    %c0_i32_0 = arith.constant 0 : i32
    %c0_i32_1 = arith.constant 0 : i32
    return %c0_i32, %c0_i32_0 : i32, i32
  }
  func.func @transform_8(%arg0: i32, %arg1: i32) -> (i32, i32) {
    %c0_i32 = arith.constant 0 : i32
    %c0_i32_0 = arith.constant 0 : i32
    %c0_i32_1 = arith.constant 0 : i32
    return %c0_i32, %c0_i32_0 : i32, i32
  }
  func.func @transform_9(%arg0: i32, %arg1: i32) -> (i32, i32) {
    %c0_i32 = arith.constant 0 : i32
    %c0_i32_0 = arith.constant 0 : i32
    %c0_i32_1 = arith.constant 0 : i32
    return %c0_i32, %c0_i32_0 : i32, i32
  }
  func.func @transform_10(%arg0: i32, %arg1: i32) -> (i32, i32) {
    %c0_i32 = arith.constant 0 : i32
    %c0_i32_0 = arith.constant 0 : i32
    %c0_i32_1 = arith.constant 0 : i32
    return %c0_i32, %c0_i32_0 : i32, i32
  }
  func.func @transform_11(%arg0: i32, %arg1: i32) -> (i32, i32) {
    %c0_i32 = arith.constant 0 : i32
    %c0_i32_0 = arith.constant 0 : i32
    %c0_i32_1 = arith.constant 0 : i32
    return %c0_i32, %c0_i32_0 : i32, i32
  }
  func.func @transform_12(%arg0: i32, %arg1: i32) -> (i32, i32) {
    %c0_i32 = arith.constant 0 : i32
    %c0_i32_0 = arith.constant 0 : i32
    %c0_i32_1 = arith.constant 0 : i32
    return %c0_i32, %c0_i32_0 : i32, i32
  }
  func.func @transform_13(%arg0: i32, %arg1: i32) -> (i32, i32) {
    %c0_i32 = arith.constant 0 : i32
    %c0_i32_0 = arith.constant 0 : i32
    %c0_i32_1 = arith.constant 0 : i32
    return %c0_i32, %c0_i32_0 : i32, i32
  }
  func.func @transform_14(%arg0: i32, %arg1: i32) -> (i32, i32, i32) {
    %c0_i32 = arith.constant 0 : i32
    %c0_i32_0 = arith.constant 0 : i32
    return %arg0, %arg1, %c0_i32 : i32, i32, i32
  }
}

module attributes {stable_mosaic.version = 11 : i64} {
  func.func @_tail_kernel(%arg0: i32, %arg1: i32, %arg2: memref<1x16x128xbf16, #tpu.memory_space<vmem>>, %arg3: memref<1x16x3xf32, #tpu.memory_space<vmem>>, %arg4: memref<128x64xbf16, #tpu.memory_space<vmem>>, %arg5: memref<1x64xf32, #tpu.memory_space<vmem>>, %arg6: memref<64x32xbf16, #tpu.memory_space<vmem>>, %arg7: memref<1x32xf32, #tpu.memory_space<vmem>>, %arg8: memref<32x256xbf16, #tpu.memory_space<vmem>>, %arg9: memref<128x256xbf16, #tpu.memory_space<vmem>>, %arg10: memref<128x256xbf16, #tpu.memory_space<vmem>>, %arg11: memref<1x128xf32, #tpu.memory_space<vmem>>, %arg12: memref<1x128xf32, #tpu.memory_space<vmem>>, %arg13: memref<128x128xbf16, #tpu.memory_space<vmem>>, %arg14: memref<1x128xf32, #tpu.memory_space<vmem>>, %arg15: memref<128x64xbf16, #tpu.memory_space<vmem>>, %arg16: memref<1x64xf32, #tpu.memory_space<vmem>>, %arg17: memref<64x3xbf16, #tpu.memory_space<vmem>>, %arg18: memref<1x3xf32, #tpu.memory_space<vmem>>, %arg19: memref<1x16x256xbf16, #tpu.memory_space<vmem>>, %arg20: memref<1x16x6xf32, #tpu.memory_space<vmem>>) attributes {dimension_semantics = [#tpu.dimension_semantics<parallel>, #tpu.dimension_semantics<parallel>], iteration_bounds = array<i64: 2, 1>, scalar_prefetch = 0 : i64, scratch_operands = 0 : i64, tpu.core_type = #tpu.core_type<tc>, window_params = [{transform_indices = @transform_0, window_bounds = array<i64: 1, 16, 128>}, {transform_indices = @transform_1, window_bounds = array<i64: 1, 16, 3>}, {pipeline_mode = #tpu.pipeline_mode<synchronous>, transform_indices = @transform_2, window_bounds = array<i64: 128, 64>}, {pipeline_mode = #tpu.pipeline_mode<synchronous>, transform_indices = @transform_3, window_bounds = array<i64: 1, 64>}, {pipeline_mode = #tpu.pipeline_mode<synchronous>, transform_indices = @transform_4, window_bounds = array<i64: 64, 32>}, {pipeline_mode = #tpu.pipeline_mode<synchronous>, transform_indices = @transform_5, window_bounds = array<i64: 1, 32>}, {pipeline_mode = #tpu.pipeline_mode<synchronous>, transform_indices = @transform_6, window_bounds = array<i64: 32, 256>}, {pipeline_mode = #tpu.pipeline_mode<synchronous>, transform_indices = @transform_7, window_bounds = array<i64: 128, 256>}, {pipeline_mode = #tpu.pipeline_mode<synchronous>, transform_indices = @transform_8, window_bounds = array<i64: 128, 256>}, {pipeline_mode = #tpu.pipeline_mode<synchronous>, transform_indices = @transform_9, window_bounds = array<i64: 1, 128>}, {pipeline_mode = #tpu.pipeline_mode<synchronous>, transform_indices = @transform_10, window_bounds = array<i64: 1, 128>}, {pipeline_mode = #tpu.pipeline_mode<synchronous>, transform_indices = @transform_11, window_bounds = array<i64: 128, 128>}, {pipeline_mode = #tpu.pipeline_mode<synchronous>, transform_indices = @transform_12, window_bounds = array<i64: 1, 128>}, {pipeline_mode = #tpu.pipeline_mode<synchronous>, transform_indices = @transform_13, window_bounds = array<i64: 128, 64>}, {pipeline_mode = #tpu.pipeline_mode<synchronous>, transform_indices = @transform_14, window_bounds = array<i64: 1, 64>}, {pipeline_mode = #tpu.pipeline_mode<synchronous>, transform_indices = @transform_15, window_bounds = array<i64: 64, 3>}, {pipeline_mode = #tpu.pipeline_mode<synchronous>, transform_indices = @transform_16, window_bounds = array<i64: 1, 3>}, {transform_indices = @transform_17, window_bounds = array<i64: 1, 16, 256>}, {transform_indices = @transform_18, window_bounds = array<i64: 1, 16, 6>}]} {
    %c0 = arith.constant 0 : index
    %c0_0 = arith.constant 0 : index
    %c0_1 = arith.constant 0 : index
    %0 = vector.load %arg2[%c0, %c0_0, %c0_1] : memref<1x16x128xbf16, #tpu.memory_space<vmem>>, vector<1x16x128xbf16>
    %1 = vector.shape_cast %0 : vector<1x16x128xbf16> to vector<16x128xbf16>
    %c0_2 = arith.constant 0 : index
    %c0_3 = arith.constant 0 : index
    %c0_4 = arith.constant 0 : index
    %2 = vector.load %arg3[%c0_2, %c0_3, %c0_4] : memref<1x16x3xf32, #tpu.memory_space<vmem>>, vector<1x16x3xf32>
    %3 = vector.shape_cast %2 : vector<1x16x3xf32> to vector<16x3xf32>
    %c0_5 = arith.constant 0 : index
    %c0_6 = arith.constant 0 : index
    %4 = vector.load %arg4[%c0_5, %c0_6] : memref<128x64xbf16, #tpu.memory_space<vmem>>, vector<128x64xbf16>
    %cst = arith.constant dense<0.000000e+00> : vector<16x64xf32>
    %5 = tpu.matmul %1, %4, %cst {dimension_numbers = #tpu.dot_dimension_numbers<[1], [0], [0], [1], [0, 0, 1, 1], [], []>} : vector<16x128xbf16>, vector<128x64xbf16>, vector<16x64xf32> -> vector<16x64xf32>
    %c0_7 = arith.constant 0 : index
    %c0_8 = arith.constant 0 : index
    %6 = vector.load %arg5[%c0_7, %c0_8] : memref<1x64xf32, #tpu.memory_space<vmem>>, vector<1x64xf32>
    %7 = vector.broadcast %6 : vector<1x64xf32> to vector<16x64xf32>
    %8 = arith.addf %5, %7 : vector<16x64xf32>
    %cst_9 = arith.constant 0.000000e+00 : f32
    %9 = vector.broadcast %cst_9 : f32 to vector<16x64xf32>
    %10 = arith.maximumf %8, %9 : vector<16x64xf32>
    %c0_10 = arith.constant 0 : index
    %c0_11 = arith.constant 0 : index
    %11 = vector.load %arg6[%c0_10, %c0_11] : memref<64x32xbf16, #tpu.memory_space<vmem>>, vector<64x32xbf16>
    %12 = arith.truncf %10 : vector<16x64xf32> to vector<16x64xbf16>
    %cst_12 = arith.constant dense<0.000000e+00> : vector<16x32xf32>
    %13 = tpu.matmul %12, %11, %cst_12 {dimension_numbers = #tpu.dot_dimension_numbers<[1], [0], [0], [1], [0, 0, 1, 1], [], []>} : vector<16x64xbf16>, vector<64x32xbf16>, vector<16x32xf32> -> vector<16x32xf32>
    %c0_13 = arith.constant 0 : index
    %c0_14 = arith.constant 0 : index
    %14 = vector.load %arg7[%c0_13, %c0_14] : memref<1x32xf32, #tpu.memory_space<vmem>>, vector<1x32xf32>
    %15 = vector.broadcast %14 : vector<1x32xf32> to vector<16x32xf32>
    %16 = arith.addf %13, %15 : vector<16x32xf32>
    %c0_15 = arith.constant 0 : index
    %c0_16 = arith.constant 0 : index
    %17 = vector.load %arg8[%c0_15, %c0_16] : memref<32x256xbf16, #tpu.memory_space<vmem>>, vector<32x256xbf16>
    %18 = arith.truncf %16 : vector<16x32xf32> to vector<16x32xbf16>
    %cst_17 = arith.constant dense<0.000000e+00> : vector<16x256xf32>
    %19 = tpu.matmul %18, %17, %cst_17 {dimension_numbers = #tpu.dot_dimension_numbers<[1], [0], [0], [1], [0, 0, 1, 1], [], []>} : vector<16x32xbf16>, vector<32x256xbf16>, vector<16x256xf32> -> vector<16x256xf32>
    %c0_18 = arith.constant 0 : index
    %c0_19 = arith.constant 0 : index
    %20 = vector.load %arg10[%c0_18, %c0_19] : memref<128x256xbf16, #tpu.memory_space<vmem>>, vector<128x256xbf16>
    %cst_20 = arith.constant dense<0.000000e+00> : vector<16x256xf32>
    %21 = tpu.matmul %1, %20, %cst_20 {dimension_numbers = #tpu.dot_dimension_numbers<[1], [0], [0], [1], [0, 0, 1, 1], [], []>} : vector<16x128xbf16>, vector<128x256xbf16>, vector<16x256xf32> -> vector<16x256xf32>
    %22 = vector.extract_strided_slice %19 {offsets = [0, 0], sizes = [16, 128], strides = [1, 1]} : vector<16x256xf32> to vector<16x128xf32>
    %c0_21 = arith.constant 0 : index
    %c0_22 = arith.constant 0 : index
    %23 = vector.load %arg9[%c0_21, %c0_22] : memref<128x256xbf16, #tpu.memory_space<vmem>>, vector<128x256xbf16>
    %24 = arith.truncf %22 : vector<16x128xf32> to vector<16x128xbf16>
    %cst_23 = arith.constant dense<0.000000e+00> : vector<16x256xf32>
    %25 = tpu.matmul %24, %23, %cst_23 {dimension_numbers = #tpu.dot_dimension_numbers<[1], [0], [0], [1], [0, 0, 1, 1], [], []>} : vector<16x128xbf16>, vector<128x256xbf16>, vector<16x256xf32> -> vector<16x256xf32>
    %26 = vector.extract_strided_slice %25 {offsets = [0, 0], sizes = [16, 128], strides = [1, 1]} : vector<16x256xf32> to vector<16x128xf32>
    %27 = vector.extract_strided_slice %21 {offsets = [0, 0], sizes = [16, 128], strides = [1, 1]} : vector<16x256xf32> to vector<16x128xf32>
    %28 = arith.addf %26, %27 : vector<16x128xf32>
    %c0_24 = arith.constant 0 : index
    %c0_25 = arith.constant 0 : index
    %29 = vector.load %arg11[%c0_24, %c0_25] : memref<1x128xf32, #tpu.memory_space<vmem>>, vector<1x128xf32>
    %30 = vector.broadcast %29 : vector<1x128xf32> to vector<16x128xf32>
    %31 = arith.addf %28, %30 : vector<16x128xf32>
    %cst_26 = arith.constant 0.000000e+00 : f32
    %32 = vector.broadcast %cst_26 : f32 to vector<16x128xf32>
    %33 = arith.maximumf %31, %32 : vector<16x128xf32>
    %34 = vector.extract_strided_slice %25 {offsets = [0, 128], sizes = [16, 128], strides = [1, 1]} : vector<16x256xf32> to vector<16x128xf32>
    %35 = vector.extract_strided_slice %21 {offsets = [0, 128], sizes = [16, 128], strides = [1, 1]} : vector<16x256xf32> to vector<16x128xf32>
    %36 = arith.addf %34, %35 : vector<16x128xf32>
    %c0_27 = arith.constant 0 : index
    %c0_28 = arith.constant 0 : index
    %37 = vector.load %arg12[%c0_27, %c0_28] : memref<1x128xf32, #tpu.memory_space<vmem>>, vector<1x128xf32>
    %38 = vector.broadcast %37 : vector<1x128xf32> to vector<16x128xf32>
    %39 = arith.addf %36, %38 : vector<16x128xf32>
    %c0_29 = arith.constant 0 : index
    %c0_30 = arith.constant 0 : index
    %40 = vector.load %arg13[%c0_29, %c0_30] : memref<128x128xbf16, #tpu.memory_space<vmem>>, vector<128x128xbf16>
    %41 = arith.truncf %33 : vector<16x128xf32> to vector<16x128xbf16>
    %cst_31 = arith.constant dense<0.000000e+00> : vector<16x128xf32>
    %42 = tpu.matmul %41, %40, %cst_31 {dimension_numbers = #tpu.dot_dimension_numbers<[1], [0], [0], [1], [0, 0, 1, 1], [], []>} : vector<16x128xbf16>, vector<128x128xbf16>, vector<16x128xf32> -> vector<16x128xf32>
    %c0_32 = arith.constant 0 : index
    %c0_33 = arith.constant 0 : index
    %43 = vector.load %arg14[%c0_32, %c0_33] : memref<1x128xf32, #tpu.memory_space<vmem>>, vector<1x128xf32>
    %44 = vector.broadcast %43 : vector<1x128xf32> to vector<16x128xf32>
    %45 = arith.addf %42, %44 : vector<16x128xf32>
    %46 = arith.addf %45, %39 : vector<16x128xf32>
    %cst_34 = arith.constant 0.000000e+00 : f32
    %47 = vector.broadcast %cst_34 : f32 to vector<16x128xf32>
    %48 = arith.maximumf %46, %47 : vector<16x128xf32>
    %c0_35 = arith.constant 0 : index
    %c0_36 = arith.constant 0 : index
    %49 = vector.load %arg15[%c0_35, %c0_36] : memref<128x64xbf16, #tpu.memory_space<vmem>>, vector<128x64xbf16>
    %50 = arith.truncf %48 : vector<16x128xf32> to vector<16x128xbf16>
    %cst_37 = arith.constant dense<0.000000e+00> : vector<16x64xf32>
    %51 = tpu.matmul %50, %49, %cst_37 {dimension_numbers = #tpu.dot_dimension_numbers<[1], [0], [0], [1], [0, 0, 1, 1], [], []>} : vector<16x128xbf16>, vector<128x64xbf16>, vector<16x64xf32> -> vector<16x64xf32>
    %c0_38 = arith.constant 0 : index
    %c0_39 = arith.constant 0 : index
    %52 = vector.load %arg16[%c0_38, %c0_39] : memref<1x64xf32, #tpu.memory_space<vmem>>, vector<1x64xf32>
    %53 = vector.broadcast %52 : vector<1x64xf32> to vector<16x64xf32>
    %54 = arith.addf %51, %53 : vector<16x64xf32>
    %cst_40 = arith.constant 0.000000e+00 : f32
    %55 = vector.broadcast %cst_40 : f32 to vector<16x64xf32>
    %56 = arith.maximumf %54, %55 : vector<16x64xf32>
    %c0_41 = arith.constant 0 : index
    %c0_42 = arith.constant 0 : index
    %57 = vector.load %arg17[%c0_41, %c0_42] : memref<64x3xbf16, #tpu.memory_space<vmem>>, vector<64x3xbf16>
    %58 = arith.truncf %56 : vector<16x64xf32> to vector<16x64xbf16>
    %cst_43 = arith.constant dense<0.000000e+00> : vector<16x3xf32>
    %59 = tpu.matmul %58, %57, %cst_43 {dimension_numbers = #tpu.dot_dimension_numbers<[1], [0], [0], [1], [0, 0, 1, 1], [], []>} : vector<16x64xbf16>, vector<64x3xbf16>, vector<16x3xf32> -> vector<16x3xf32>
    %c0_44 = arith.constant 0 : index
    %c0_45 = arith.constant 0 : index
    %60 = vector.load %arg18[%c0_44, %c0_45] : memref<1x3xf32, #tpu.memory_space<vmem>>, vector<1x3xf32>
    %61 = vector.broadcast %60 : vector<1x3xf32> to vector<16x3xf32>
    %62 = arith.addf %59, %61 : vector<16x3xf32>
    %63 = math.tanh %62 : vector<16x3xf32>
    %cst_46 = arith.constant 1.000000e+00 : f32
    %64 = vector.broadcast %cst_46 : f32 to vector<16x3xf32>
    %65 = arith.mulf %63, %64 : vector<16x3xf32>
    %66 = arith.truncf %46 : vector<16x128xf32> to vector<16x128xbf16>
    %67 = arith.addf %3, %65 : vector<16x3xf32>
    %68 = vector.extract_strided_slice %19 {offsets = [0, 128], sizes = [16, 128], strides = [1, 1]} : vector<16x256xf32> to vector<16x128xf32>
    %c0_47 = arith.constant 0 : index
    %c0_48 = arith.constant 0 : index
    %69 = vector.load %arg9[%c0_47, %c0_48] : memref<128x256xbf16, #tpu.memory_space<vmem>>, vector<128x256xbf16>
    %70 = arith.truncf %68 : vector<16x128xf32> to vector<16x128xbf16>
    %cst_49 = arith.constant dense<0.000000e+00> : vector<16x256xf32>
    %71 = tpu.matmul %70, %69, %cst_49 {dimension_numbers = #tpu.dot_dimension_numbers<[1], [0], [0], [1], [0, 0, 1, 1], [], []>} : vector<16x128xbf16>, vector<128x256xbf16>, vector<16x256xf32> -> vector<16x256xf32>
    %72 = vector.extract_strided_slice %71 {offsets = [0, 0], sizes = [16, 128], strides = [1, 1]} : vector<16x256xf32> to vector<16x128xf32>
    %73 = vector.extract_strided_slice %21 {offsets = [0, 0], sizes = [16, 128], strides = [1, 1]} : vector<16x256xf32> to vector<16x128xf32>
    %74 = arith.addf %72, %73 : vector<16x128xf32>
    %c0_50 = arith.constant 0 : index
    %c0_51 = arith.constant 0 : index
    %75 = vector.load %arg11[%c0_50, %c0_51] : memref<1x128xf32, #tpu.memory_space<vmem>>, vector<1x128xf32>
    %76 = vector.broadcast %75 : vector<1x128xf32> to vector<16x128xf32>
    %77 = arith.addf %74, %76 : vector<16x128xf32>
    %cst_52 = arith.constant 0.000000e+00 : f32
    %78 = vector.broadcast %cst_52 : f32 to vector<16x128xf32>
    %79 = arith.maximumf %77, %78 : vector<16x128xf32>
    %80 = vector.extract_strided_slice %71 {offsets = [0, 128], sizes = [16, 128], strides = [1, 1]} : vector<16x256xf32> to vector<16x128xf32>
    %81 = vector.extract_strided_slice %21 {offsets = [0, 128], sizes = [16, 128], strides = [1, 1]} : vector<16x256xf32> to vector<16x128xf32>
    %82 = arith.addf %80, %81 : vector<16x128xf32>
    %c0_53 = arith.constant 0 : index
    %c0_54 = arith.constant 0 : index
    %83 = vector.load %arg12[%c0_53, %c0_54] : memref<1x128xf32, #tpu.memory_space<vmem>>, vector<1x128xf32>
    %84 = vector.broadcast %83 : vector<1x128xf32> to vector<16x128xf32>
    %85 = arith.addf %82, %84 : vector<16x128xf32>
    %c0_55 = arith.constant 0 : index
    %c0_56 = arith.constant 0 : index
    %86 = vector.load %arg13[%c0_55, %c0_56] : memref<128x128xbf16, #tpu.memory_space<vmem>>, vector<128x128xbf16>
    %87 = arith.truncf %79 : vector<16x128xf32> to vector<16x128xbf16>
    %cst_57 = arith.constant dense<0.000000e+00> : vector<16x128xf32>
    %88 = tpu.matmul %87, %86, %cst_57 {dimension_numbers = #tpu.dot_dimension_numbers<[1], [0], [0], [1], [0, 0, 1, 1], [], []>} : vector<16x128xbf16>, vector<128x128xbf16>, vector<16x128xf32> -> vector<16x128xf32>
    %c0_58 = arith.constant 0 : index
    %c0_59 = arith.constant 0 : index
    %89 = vector.load %arg14[%c0_58, %c0_59] : memref<1x128xf32, #tpu.memory_space<vmem>>, vector<1x128xf32>
    %90 = vector.broadcast %89 : vector<1x128xf32> to vector<16x128xf32>
    %91 = arith.addf %88, %90 : vector<16x128xf32>
    %92 = arith.addf %91, %85 : vector<16x128xf32>
    %cst_60 = arith.constant 0.000000e+00 : f32
    %93 = vector.broadcast %cst_60 : f32 to vector<16x128xf32>
    %94 = arith.maximumf %92, %93 : vector<16x128xf32>
    %c0_61 = arith.constant 0 : index
    %c0_62 = arith.constant 0 : index
    %95 = vector.load %arg15[%c0_61, %c0_62] : memref<128x64xbf16, #tpu.memory_space<vmem>>, vector<128x64xbf16>
    %96 = arith.truncf %94 : vector<16x128xf32> to vector<16x128xbf16>
    %cst_63 = arith.constant dense<0.000000e+00> : vector<16x64xf32>
    %97 = tpu.matmul %96, %95, %cst_63 {dimension_numbers = #tpu.dot_dimension_numbers<[1], [0], [0], [1], [0, 0, 1, 1], [], []>} : vector<16x128xbf16>, vector<128x64xbf16>, vector<16x64xf32> -> vector<16x64xf32>
    %c0_64 = arith.constant 0 : index
    %c0_65 = arith.constant 0 : index
    %98 = vector.load %arg16[%c0_64, %c0_65] : memref<1x64xf32, #tpu.memory_space<vmem>>, vector<1x64xf32>
    %99 = vector.broadcast %98 : vector<1x64xf32> to vector<16x64xf32>
    %100 = arith.addf %97, %99 : vector<16x64xf32>
    %cst_66 = arith.constant 0.000000e+00 : f32
    %101 = vector.broadcast %cst_66 : f32 to vector<16x64xf32>
    %102 = arith.maximumf %100, %101 : vector<16x64xf32>
    %c0_67 = arith.constant 0 : index
    %c0_68 = arith.constant 0 : index
    %103 = vector.load %arg17[%c0_67, %c0_68] : memref<64x3xbf16, #tpu.memory_space<vmem>>, vector<64x3xbf16>
    %104 = arith.truncf %102 : vector<16x64xf32> to vector<16x64xbf16>
    %cst_69 = arith.constant dense<0.000000e+00> : vector<16x3xf32>
    %105 = tpu.matmul %104, %103, %cst_69 {dimension_numbers = #tpu.dot_dimension_numbers<[1], [0], [0], [1], [0, 0, 1, 1], [], []>} : vector<16x64xbf16>, vector<64x3xbf16>, vector<16x3xf32> -> vector<16x3xf32>
    %c0_70 = arith.constant 0 : index
    %c0_71 = arith.constant 0 : index
    %106 = vector.load %arg18[%c0_70, %c0_71] : memref<1x3xf32, #tpu.memory_space<vmem>>, vector<1x3xf32>
    %107 = vector.broadcast %106 : vector<1x3xf32> to vector<16x3xf32>
    %108 = arith.addf %105, %107 : vector<16x3xf32>
    %109 = math.tanh %108 : vector<16x3xf32>
    %cst_72 = arith.constant 1.000000e+00 : f32
    %110 = vector.broadcast %cst_72 : f32 to vector<16x3xf32>
    %111 = arith.mulf %109, %110 : vector<16x3xf32>
    %112 = arith.truncf %92 : vector<16x128xf32> to vector<16x128xbf16>
    %113 = arith.addf %3, %111 : vector<16x3xf32>
    %114 = tpu.concatenate %66, %112 in 1 : vector<16x128xbf16>, vector<16x128xbf16> -> vector<16x256xbf16>
    %c0_73 = arith.constant 0 : index
    %c0_74 = arith.constant 0 : index
    %c0_75 = arith.constant 0 : index
    %115 = vector.load %arg19[%c0_73, %c0_74, %c0_75] : memref<1x16x256xbf16, #tpu.memory_space<vmem>>, vector<1x16x256xbf16>
    %116 = vector.shape_cast %115 : vector<1x16x256xbf16> to vector<16x256xbf16>
    %117 = vector.shape_cast %114 : vector<16x256xbf16> to vector<1x16x256xbf16>
    tpu.vector_store %arg19[%c0_73, %c0_74, %c0_75], %117 {strides = array<i32>} : memref<1x16x256xbf16, #tpu.memory_space<vmem>>, vector<1x16x256xbf16>,
    %118 = tpu.concatenate %67, %113 in 1 : vector<16x3xf32>, vector<16x3xf32> -> vector<16x6xf32>
    %c0_76 = arith.constant 0 : index
    %c0_77 = arith.constant 0 : index
    %c0_78 = arith.constant 0 : index
    %119 = vector.load %arg20[%c0_76, %c0_77, %c0_78] : memref<1x16x6xf32, #tpu.memory_space<vmem>>, vector<1x16x6xf32>
    %120 = vector.shape_cast %119 : vector<1x16x6xf32> to vector<16x6xf32>
    %121 = vector.shape_cast %118 : vector<16x6xf32> to vector<1x16x6xf32>
    tpu.vector_store %arg20[%c0_76, %c0_77, %c0_78], %121 {strides = array<i32>} : memref<1x16x6xf32, #tpu.memory_space<vmem>>, vector<1x16x6xf32>,
    return
  }
  func.func @transform_0(%arg0: i32, %arg1: i32) -> (i32, i32, i32) {
    %c0_i32 = arith.constant 0 : i32
    %c0_i32_0 = arith.constant 0 : i32
    return %arg0, %arg1, %c0_i32 : i32, i32, i32
  }
  func.func @transform_1(%arg0: i32, %arg1: i32) -> (i32, i32, i32) {
    %c0_i32 = arith.constant 0 : i32
    %c0_i32_0 = arith.constant 0 : i32
    return %arg0, %arg1, %c0_i32 : i32, i32, i32
  }
  func.func @transform_2(%arg0: i32, %arg1: i32) -> (i32, i32) {
    %c0_i32 = arith.constant 0 : i32
    %c0_i32_0 = arith.constant 0 : i32
    %c0_i32_1 = arith.constant 0 : i32
    return %c0_i32, %c0_i32_0 : i32, i32
  }
  func.func @transform_3(%arg0: i32, %arg1: i32) -> (i32, i32) {
    %c0_i32 = arith.constant 0 : i32
    %c0_i32_0 = arith.constant 0 : i32
    %c0_i32_1 = arith.constant 0 : i32
    return %c0_i32, %c0_i32_0 : i32, i32
  }
  func.func @transform_4(%arg0: i32, %arg1: i32) -> (i32, i32) {
    %c0_i32 = arith.constant 0 : i32
    %c0_i32_0 = arith.constant 0 : i32
    %c0_i32_1 = arith.constant 0 : i32
    return %c0_i32, %c0_i32_0 : i32, i32
  }
  func.func @transform_5(%arg0: i32, %arg1: i32) -> (i32, i32) {
    %c0_i32 = arith.constant 0 : i32
    %c0_i32_0 = arith.constant 0 : i32
    %c0_i32_1 = arith.constant 0 : i32
    return %c0_i32, %c0_i32_0 : i32, i32
  }
  func.func @transform_6(%arg0: i32, %arg1: i32) -> (i32, i32) {
    %c0_i32 = arith.constant 0 : i32
    %c0_i32_0 = arith.constant 0 : i32
    %c0_i32_1 = arith.constant 0 : i32
    return %c0_i32, %c0_i32_0 : i32, i32
  }
  func.func @transform_7(%arg0: i32, %arg1: i32) -> (i32, i32) {
    %c0_i32 = arith.constant 0 : i32
    %c0_i32_0 = arith.constant 0 : i32
    %c0_i32_1 = arith.constant 0 : i32
    return %c0_i32, %c0_i32_0 : i32, i32
  }
  func.func @transform_8(%arg0: i32, %arg1: i32) -> (i32, i32) {
    %c0_i32 = arith.constant 0 : i32
    %c0_i32_0 = arith.constant 0 : i32
    %c0_i32_1 = arith.constant 0 : i32
    return %c0_i32, %c0_i32_0 : i32, i32
  }
  func.func @transform_9(%arg0: i32, %arg1: i32) -> (i32, i32) {
    %c0_i32 = arith.constant 0 : i32
    %c0_i32_0 = arith.constant 0 : i32
    %c0_i32_1 = arith.constant 0 : i32
    return %c0_i32, %c0_i32_0 : i32, i32
  }
  func.func @transform_10(%arg0: i32, %arg1: i32) -> (i32, i32) {
    %c0_i32 = arith.constant 0 : i32
    %c0_i32_0 = arith.constant 0 : i32
    %c0_i32_1 = arith.constant 0 : i32
    return %c0_i32, %c0_i32_0 : i32, i32
  }
  func.func @transform_11(%arg0: i32, %arg1: i32) -> (i32, i32) {
    %c0_i32 = arith.constant 0 : i32
    %c0_i32_0 = arith.constant 0 : i32
    %c0_i32_1 = arith.constant 0 : i32
    return %c0_i32, %c0_i32_0 : i32, i32
  }
  func.func @transform_12(%arg0: i32, %arg1: i32) -> (i32, i32) {
    %c0_i32 = arith.constant 0 : i32
    %c0_i32_0 = arith.constant 0 : i32
    %c0_i32_1 = arith.constant 0 : i32
    return %c0_i32, %c0_i32_0 : i32, i32
  }
  func.func @transform_13(%arg0: i32, %arg1: i32) -> (i32, i32) {
    %c0_i32 = arith.constant 0 : i32
    %c0_i32_0 = arith.constant 0 : i32
    %c0_i32_1 = arith.constant 0 : i32
    return %c0_i32, %c0_i32_0 : i32, i32
  }
  func.func @transform_14(%arg0: i32, %arg1: i32) -> (i32, i32) {
    %c0_i32 = arith.constant 0 : i32
    %c0_i32_0 = arith.constant 0 : i32
    %c0_i32_1 = arith.constant 0 : i32
    return %c0_i32, %c0_i32_0 : i32, i32
  }
  func.func @transform_15(%arg0: i32, %arg1: i32) -> (i32, i32) {
    %c0_i32 = arith.constant 0 : i32
    %c0_i32_0 = arith.constant 0 : i32
    %c0_i32_1 = arith.constant 0 : i32
    return %c0_i32, %c0_i32_0 : i32, i32
  }
  func.func @transform_16(%arg0: i32, %arg1: i32) -> (i32, i32) {
    %c0_i32 = arith.constant 0 : i32
    %c0_i32_0 = arith.constant 0 : i32
    %c0_i32_1 = arith.constant 0 : i32
    return %c0_i32, %c0_i32_0 : i32, i32
  }
  func.func @transform_17(%arg0: i32, %arg1: i32) -> (i32, i32, i32) {
    %c0_i32 = arith.constant 0 : i32
    %c0_i32_0 = arith.constant 0 : i32
    return %arg0, %arg1, %c0_i32 : i32, i32, i32
  }
  func.func @transform_18(%arg0: i32, %arg1: i32) -> (i32, i32, i32) {
    %c0_i32 = arith.constant 0 : i32
    %c0_i32_0 = arith.constant 0 : i32
    return %arg0, %arg1, %c0_i32 : i32, i32, i32
  }
}

</mosaic_0001>

<llo_original>
// kernel: spd_forward.9
$region0: #{spd_forward.9}
  #allocation0 [shape = 'u32[]', space=smem, size = 0x4, offset = 0x4, fixed_abs, tag = 'smem constant byte address 0x4 - core index']
  #allocation1 [shape = 'u32[144,128]{1,0:T(1,128)}', space=vmem, size = 0x12000, scoped, tag = 'internal scratch']
  %s0 = inlined_call_operand.vmem [shape: f32[2,16,3], index: 0, kind: input, shape index: {}, may-alias: {0,1}]
  %s1 = inlined_call_operand.vmem [shape: f32[2,16,3], index: 1, kind: input, shape index: {}, may-alias: {0,1}]
  %s2 = inlined_call_operand.vmem [shape: bf16[2,16,16], index: 2, kind: output, shape index: {}]
  %s3 = sld [smem:[#allocation0]]
  $region41: #{spd_forward.9} parent=0
    _
  %s5 = ssub.s32 1, %s3
  %s6 = scalar_select 0, %s5, %s3
  loop: start=0, step=1, limit=4
  $region2: #{spd_forward.9} parent=0 // loop_pre_header
    _
  $region3: #{spd_forward.9} parent=0 // loop_header
    %s8 = sphi 0, %s12
    %p9 = scmp.ge.s32.totalorder %s8, 4
    %s15 = sphi 0, %s27
    %s16 = sphi 0, %s23
    %s17 = sphi 0, %s15
    %s18 = sphi 0, %s16
    %s19 = sphi 0, %s17
    %s20 = sphi 0, %s18
    %s32 = sphi 0, %s34
    %s35 = sphi 0, %s32
    %s36 = sphi 0, %s35
    %s52 = sphi 0, %s36
    %s58 = sphi 0, %s60
    %s61 = sphi 0, %s58
    %s62 = sphi 0, %s61
    %s78 = sphi 0, %s62
    %s86 = sphi 0, %s88
    %s89 = sphi 0, %s86
    %s90 = sphi 0, %s89
    %s106 = sphi 0, %s90
  $region4: #{spd_forward.9} parent=0 // loop_header_branch
    %11 = sbr.rel (%p9) target = $region8
  $region5: #{spd_forward.9} parent=0 // loop_body
    %s13 = ssub.s32 %s8, 1
    %s14 = ssub.s32 %s8, 2
    %s21 = sadd.s32 1, %s16
    %p22 = scmp.ge.s32.totalorder %s21, 1
    %s23 = scalar_select %p22, 0, %s21
    %s24 = sadd.s32 1, %s15
    %s25 = scalar_select %p22, %s24, %s15
    %p26 = scmp.ge.s32.totalorder %s25, 2
    %s27 = scalar_select %p26, 0, %s25
    %s28 = ssub.s32 %s15, %s27
    %s29 = ssub.s32 %s16, %s23
    %s30 = sor.u32 %s28, %s29
    %p31 = scmp.eq.s32.totalorder %s30, 0
    %s33 = sadd.s32 %s32, 1
    %s34 = scalar_select %p31, %s32, %s33
    %p37 = pneg %p31
    %p38 = scmp.eq.s32.totalorder %s8, 1
    %p39 = por %p37, %p38
    %p40 = scmp.ne.s32.totalorder %s32, %s35
    %p41 = scmp.eq.s32.totalorder %s8, 0
    %p42 = por %p40, %p41
    %p43 = scmp.ne.s32.totalorder %s32, %s35
    %p44 = scmp.eq.s32.totalorder %s13, 1
    %p45 = por %p43, %p44
    %p46 = scmp.ne.s32.totalorder %s35, %s36
    %p47 = scmp.eq.s32.totalorder %s13, 0
    %p48 = por %p46, %p47
    %p49 = scmp.ne.s32.totalorder %s35, %s36
    %p50 = scmp.eq.s32.totalorder %s14, 1
    %p51 = por %p49, %p50
    %p53 = scmp.ne.s32.totalorder %s36, %s52
    %p54 = scmp.eq.s32.totalorder %s14, 0
    %p55 = por %p53, %p54
    %s56 = ssub.s32 %s15, %s27
    %p57 = scmp.eq.s32.totalorder %s56, 0
    %s59 = sadd.s32 %s58, 1
    %s60 = scalar_select %p57, %s58, %s59
    %p63 = pneg %p57
    %p64 = scmp.eq.s32.totalorder %s8, 1
    %p65 = por %p63, %p64
    %p66 = scmp.ne.s32.totalorder %s58, %s61
    %p67 = scmp.eq.s32.totalorder %s8, 0
    %p68 = por %p66, %p67
    %p69 = scmp.ne.s32.totalorder %s58, %s61
    %p70 = scmp.eq.s32.totalorder %s13, 1
    %p71 = por %p69, %p70
    %p72 = scmp.ne.s32.totalorder %s61, %s62
    %p73 = scmp.eq.s32.totalorder %s13, 0
    %p74 = por %p72, %p73
    %p75 = scmp.ne.s32.totalorder %s61, %s62
    %p76 = scmp.eq.s32.totalorder %s14, 1
    %p77 = por %p75, %p76
    %p79 = scmp.ne.s32.totalorder %s62, %s78
    %p80 = scmp.eq.s32.totalorder %s14, 0
    %p81 = por %p79, %p80
    %s82 = ssub.s32 %s15, %s27
    %s83 = ssub.s32 %s16, %s23
    %s84 = sor.u32 %s82, %s83
    %p85 = scmp.eq.s32.totalorder %s84, 0
    %s87 = sadd.s32 %s86, 1
    %s88 = scalar_select %p85, %s86, %s87
    %p91 = pneg %p85
    %p92 = scmp.eq.s32.totalorder %s8, 1
    %p93 = por %p91, %p92
    %p94 = scmp.ne.s32.totalorder %s86, %s89
    %p95 = scmp.eq.s32.totalorder %s8, 0
    %p96 = por %p94, %p95
    %p97 = scmp.ne.s32.totalorder %s86, %s89
    %p98 = scmp.eq.s32.totalorder %s13, 1
    %p99 = por %p97, %p98
    %p100 = scmp.ne.s32.totalorder %s89, %s90
    %p101 = scmp.eq.s32.totalorder %s13, 0
    %p102 = por %p100, %p101
    %p103 = scmp.ne.s32.totalorder %s89, %s90
    %p104 = scmp.eq.s32.totalorder %s14, 1
    %p105 = por %p103, %p104
    %p107 = scmp.ne.s32.totalorder %s90, %s106
    %p108 = scmp.eq.s32.totalorder %s14, 0
    %p109 = por %p107, %p108
    %p110 = scmp.le.s32.totalorder 1, %s8
    %p111 = scmp.lt.s32.totalorder %s8, 3
    %p112 = pnand %p110, %p111
    %p113 = pneg %p112
    // Predicated region
    $region9: #{spd_forward.9} parent=5 // pred_check
      _
    $region10: #{spd_forward.9} parent=5 // pred_check_branch
      %115 = sbr.rel (%p112) target = $region12
    $region11: #{spd_forward.9} parent=5 // pred_region
      %s116 = ssub.s32 %s8, 1
    $region12: #{spd_forward.9} parent=5 // pred_fallthru
      _
    %p117 = scmp.lt.s32.totalorder %s8, 2
    // Predicated region
    $region13: #{spd_forward.9} parent=5 // pred_check
      %p118 = pneg %p117
    $region14: #{spd_forward.9} parent=5 // pred_check_branch
      %120 = sbr.rel (%p118) target = $region16
    $region15: #{spd_forward.9} parent=5 // pred_region
      // Predicated region
      $region17: #{spd_forward.9} parent=15 // pred_check
        %p121 = pneg %p42
      $region18: #{spd_forward.9} parent=15 // pred_check_branch
        %123 = sbr.rel (%p121) target = $region20
      $region19: #{spd_forward.9} parent=15 // pred_region
        %s124 = smul.u32 2, %s16
        %p125 = scmp.lt.s32.totalorder %s15, 1
        %s126 = scalar_select %p125, %s15, 1
        %p127 = scmp.lt.s32.totalorder %s124, 1
        %s128 = scalar_select %p127, %s124, 1
        %s129 = smul.addr %s126, 2
        %s130 = sadd.s32 %s128, %s129
        %s131 = smul.addr %s130, 8
        %s132 = scalar_lea.vmem %s0, %s131
        %s133 = smul.u32 2, %s16
      $region20: #{spd_forward.9} parent=15 // pred_fallthru
        _
      // Predicated region
      $region21: #{spd_forward.9} parent=15 // pred_check
        %p134 = pneg %p68
      $region22: #{spd_forward.9} parent=15 // pred_check_branch
        %136 = sbr.rel (%p134) target = $region24
      $region23: #{spd_forward.9} parent=15 // pred_region
        %p137 = scmp.lt.s32.totalorder %s15, 1
        %s138 = scalar_select %p137, %s15, 1
        %s139 = smul.addr %s138, 2
        %s140 = smul.addr %s139, 8
        %s141 = scalar_lea.vmem %s1, %s140
      $region24: #{spd_forward.9} parent=15 // pred_fallthru
        _
    $region16: #{spd_forward.9} parent=5 // pred_fallthru
      _
    %p142 = scmp.le.s32.totalorder 1, %s8
    %p143 = scmp.lt.s32.totalorder %s8, 3
    %p144 = pnand %p142, %p143
    %p145 = pneg %p144
    // Predicated region
    $region25: #{spd_forward.9} parent=5 // pred_check
      _
    $region26: #{spd_forward.9} parent=5 // pred_check_branch
      %147 = sbr.rel (%p144) target = $region28
    $region27: #{spd_forward.9} parent=5 // pred_region
      %s148 = ssub.s32 %s8, 1
      %s149 = smul.u32 2, %s18
      %p150 = scmp.lt.s32.totalorder %s17, 1
      %s151 = scalar_select %p150, %s17, 1
      %p152 = scmp.lt.s32.totalorder %s149, 1
      %s153 = scalar_select %p152, %s149, 1
      %s154 = smul.addr %s151, 2
      %s155 = sadd.s32 %s153, %s154
      %s156 = smul.addr %s155, 8
      %s157 = scalar_lea.vmem %s0, %s156
      %p158 = pneg %p48
      %p159 = pneg %p45
      %p160 = scmp.lt.s32.totalorder %s17, 1
      %s161 = scalar_select %p160, %s17, 1
      %s162 = smul.addr %s161, 2
      %s163 = smul.addr %s162, 8
      %s164 = scalar_lea.vmem %s1, %s163
      %p165 = pneg %p74
      %p166 = pneg %p71
      %p167 = pneg %p102
      %p168 = pneg %p99
      %s169 = smul.u32 2, %s18
      %p170 = scmp.lt.s32.totalorder %s17, 1
      %s171 = scalar_select %p170, %s17, 1
      %p172 = scmp.lt.s32.totalorder %s169, 1
      %s173 = scalar_select %p172, %s169, 1
      %s174 = smul.addr %s171, 2
      %s175 = sadd.s32 %s173, %s174
      %s176 = smul.addr %s175, 4
      %s177 = scalar_lea.vmem %s2, %s176
      %s178 = smul.u32 2, %s18
      %p179 = scmp.lt.s32.totalorder %s17, 1
      %s180 = scalar_select %p179, %s17, 1
      %p181 = scmp.lt.s32.totalorder %s178, 1
      %s182 = scalar_select %p181, %s178, 1
      %s183 = smul.addr %s180, 2
      %s184 = sadd.s32 %s182, %s183
      %s185 = smul.addr %s184, 8
      %s186 = scalar_lea.vmem %s0, %s185
      %s187 = smul.u32 2, %s18
      %p188 = scmp.lt.s32.totalorder %s17, 1
      %s189 = scalar_select %p188, %s17, 1
      %s190 = smul.addr %s189, 2
      %s191 = smul.addr %s190, 8
      %s192 = scalar_lea.vmem %s1, %s191
      %s193 = smul.u32 2, %s18
      %p194 = scmp.lt.s32.totalorder %s17, 1
      %s195 = scalar_select %p194, %s17, 1
      %p196 = scmp.lt.s32.totalorder %s193, 1
      %s197 = scalar_select %p196, %s193, 1
      %s198 = smul.addr %s195, 2
      %s199 = sadd.s32 %s197, %s198
      %s200 = smul.addr %s199, 4
      %s201 = scalar_lea.vmem %s2, %s200
      %s202 = smul.u32 2, %s18
      %v203 = vld [vmem:[%s186] sm:$0xff]
      %v204 = vld [vmem:[%s186 + $0x8] sm:$0xff]
      %v205 = vld [vmem:[%s192] sm:$0xff]
      %v206 = vld [vmem:[%s192 + $0x8] sm:$0xff]
      %vm207 = vcmask 23552
      %v209 = vsel %vm207, %v203, 0
      %v212 = vsel %vm207, %v204, 0
      %v215 = vsel %vm207, %v205, 0
      %v218 = vsel %vm207, %v206, 0
      %220 = vmatprep.subr.mxu0 0.0
      %221 = vmatpush1.xpose.msra.mxu0 0.0
      %222 = vmatprep.subr.mxu0 0.0
      %223 = vmatpush1.xpose.msra.mxu0 0.0
      %224 = vmatprep.subr.mxu0 0.0
      %225 = vmatpush1.xpose.msra.mxu0 0.0
      %226 = vmatprep.subr.mxu0 0.0
      %227 = vmatpush1.xpose.msra.mxu0 0.0
      %228 = vmatprep.subr.mxu0 0.0
      %229 = vmatpush1.xpose.msra.mxu0 0.0
      %230 = vmatprep.subr.mxu0 0.0
      %231 = vmatpush1.xpose.msra.mxu0 0.0
      %232 = vmatprep.subr.mxu0 0.0
      %233 = vmatpush1.xpose.msra.mxu0 0.0
      %234 = vmatprep.subr.mxu0 0.0
      %235 = vmatpush1.xpose.msra.mxu0 0.0
      %236 = vmatprep.subr.mxu0 0.0
      %237 = vmatpush1.xpose.msra.mxu0 0.0
      %238 = vmatprep.subr.mxu0 0.0
      %239 = vmatpush1.xpose.msra.mxu0 0.0
      %240 = vmatprep.subr.mxu0 0.0
      %241 = vmatpush1.xpose.msra.mxu0 0.0
      %242 = vmatprep.subr.mxu0 0.0
      %243 = vmatpush1.xpose.msra.mxu0 0.0
      %244 = vmatprep.subr.mxu0 0.0
      %245 = vmatpush1.xpose.msra.mxu0 0.0
      %246 = vmatprep.subr.mxu0 0.0
      %247 = vmatpush1.xpose.msra.mxu0 0.0
      %248 = vmatprep.subr.mxu0 0.0
      %249 = vmatpush1.xpose.msra.mxu0 %v218
      %250 = vmatprep.subr.mxu0 0.0
      %251 = vmatpush1.xpose.msra.mxu0 %v215
      %252 = vmatprep.subr.mxu0 0.0
      %253 = vmatpush2.xpose.msra.mxu0 0.0
      %254 = vmatprep.subr.mxu0 0.0
      %255 = vmatpush2.xpose.msra.mxu0 0.0
      %256 = vmatprep.subr.mxu0 0.0
      %257 = vmatpush2.xpose.msra.mxu0 0.0
      %258 = vmatprep.subr.mxu0 0.0
      %259 = vmatpush2.xpose.msra.mxu0 0.0
      %260 = vmatprep.subr.mxu0 0.0
      %261 = vmatpush2.xpose.msra.mxu0 0.0
      %262 = vmatprep.subr.mxu0 0.0
      %263 = vmatpush2.xpose.msra.mxu0 0.0
      %264 = vmatprep.subr.mxu0 0.0
      %265 = vmatpush2.xpose.msra.mxu0 0.0
      %266 = vmatprep.subr.mxu0 0.0
      %267 = vmatpush2.xpose.msra.mxu0 0.0
      %268 = vmatprep.subr.mxu0 0.0
      %269 = vmatpush2.xpose.msra.mxu0 0.0
      %270 = vmatprep.subr.mxu0 0.0
      %271 = vmatpush2.xpose.msra.mxu0 0.0
      %272 = vmatprep.subr.mxu0 0.0
      %273 = vmatpush2.xpose.msra.mxu0 0.0
      %274 = vmatprep.subr.mxu0 0.0
      %275 = vmatpush2.xpose.msra.mxu0 0.0
      %276 = vmatprep.subr.mxu0 0.0
      %277 = vmatpush2.xpose.msra.mxu0 0.0
      %278 = vmatprep.subr.mxu0 0.0
      %279 = vmatpush2.xpose.msra.mxu0 0.0
      %280 = vmatprep.subr.mxu0 0.0
      %281 = vmatpush2.xpose.msra.mxu0 0.0
      %282 = vmatprep.subr.mxu0 0.0
      %283 = vmatpush2.xpose.msra.mxu0 0.0
      %284 = vmatprep.mubr.f32.mxu0 0.0
      %285 = vmatmul.mubr.f32.gmra.mxu0 %v209
      %v286 = vpop.f32.mrf.mxu0
      %v287 = vadd.f32 0.0, %v286
      %v288 = vpop.f32.mrf.mxu0
      %289 = vmatprep.mubr.f32.mxu0 0.0
      %290 = vmatmul.mubr.f32.gmra.mxu0 %v212
      %v291 = vpop.f32.mrf.mxu0
      %v292 = vadd.f32 0.0, %v291
      %v293 = vpop.f32.mrf.mxu0
      %294 = vdwg.mxu0
      %v295 = vmul.f32 %v203, %v203
      %v296 = vmul.f32 %v204, %v204
      %v297 = vsel %vm207, %v295, 0.0
      %298 = vadd.xlane.f32.xlu0 %v297
      %v299 = vpop.xlane.xlu0 %298
      %v300 = vsel %vm207, %v296, 0.0
      %301 = vadd.xlane.f32.xlu0 %v300
      %v302 = vpop.xlane.xlu0 %301
      %v303 = vmul.f32 %v205, %v205
      %v304 = vmul.f32 %v206, %v206
      %v306 = vsel %vm207, 1.0, 0
      %v309 = vsel %vm207, %v303, 0
      %v312 = vsel %vm207, %v304, 0
      %314 = vmatprep.subr.mxu0 0.0
      %315 = vmatpush1.xpose.msra.mxu0 0.0
      %316 = vmatprep.subr.mxu0 0.0
      %317 = vmatpush1.xpose.msra.mxu0 0.0
      %318 = vmatprep.subr.mxu0 0.0
      %319 = vmatpush1.xpose.msra.mxu0 0.0
      %320 = vmatprep.subr.mxu0 0.0
      %321 = vmatpush1.xpose.msra.mxu0 0.0
      %322 = vmatprep.subr.mxu0 0.0
      %323 = vmatpush1.xpose.msra.mxu0 0.0
      %324 = vmatprep.subr.mxu0 0.0
      %325 = vmatpush1.xpose.msra.mxu0 0.0
      %326 = vmatprep.subr.mxu0 0.0
      %327 = vmatpush1.xpose.msra.mxu0 0.0
      %328 = vmatprep.subr.mxu0 0.0
      %329 = vmatpush1.xpose.msra.mxu0 0.0
      %330 = vmatprep.subr.mxu0 0.0
      %331 = vmatpush1.xpose.msra.mxu0 0.0
      %332 = vmatprep.subr.mxu0 0.0
      %333 = vmatpush1.xpose.msra.mxu0 0.0
      %334 = vmatprep.subr.mxu0 0.0
      %335 = vmatpush1.xpose.msra.mxu0 0.0
      %336 = vmatprep.subr.mxu0 0.0
      %337 = vmatpush1.xpose.msra.mxu0 0.0
      %338 = vmatprep.subr.mxu0 0.0
      %339 = vmatpush1.xpose.msra.mxu0 0.0
      %340 = vmatprep.subr.mxu0 0.0
      %341 = vmatpush1.xpose.msra.mxu0 0.0
      %342 = vmatprep.subr.mxu0 0.0
      %343 = vmatpush1.xpose.msra.mxu0 %v312
      %344 = vmatprep.subr.mxu0 0.0
      %345 = vmatpush1.xpose.msra.mxu0 %v309
      %346 = vmatprep.subr.mxu0 0.0
      %347 = vmatpush2.xpose.msra.mxu0 0.0
      %348 = vmatprep.subr.mxu0 0.0
      %349 = vmatpush2.xpose.msra.mxu0 0.0
      %350 = vmatprep.subr.mxu0 0.0
      %351 = vmatpush2.xpose.msra.mxu0 0.0
      %352 = vmatprep.subr.mxu0 0.0
      %353 = vmatpush2.xpose.msra.mxu0 0.0
      %354 = vmatprep.subr.mxu0 0.0
      %355 = vmatpush2.xpose.msra.mxu0 0.0
      %356 = vmatprep.subr.mxu0 0.0
      %357 = vmatpush2.xpose.msra.mxu0 0.0
      %358 = vmatprep.subr.mxu0 0.0
      %359 = vmatpush2.xpose.msra.mxu0 0.0
      %360 = vmatprep.subr.mxu0 0.0
      %361 = vmatpush2.xpose.msra.mxu0 0.0
      %362 = vmatprep.subr.mxu0 0.0
      %363 = vmatpush2.xpose.msra.mxu0 0.0
      %364 = vmatprep.subr.mxu0 0.0
      %365 = vmatpush2.xpose.msra.mxu0 0.0
      %366 = vmatprep.subr.mxu0 0.0
      %367 = vmatpush2.xpose.msra.mxu0 0.0
      %368 = vmatprep.subr.mxu0 0.0
      %369 = vmatpush2.xpose.msra.mxu0 0.0
      %370 = vmatprep.subr.mxu0 0.0
      %371 = vmatpush2.xpose.msra.mxu0 0.0
      %372 = vmatprep.subr.mxu0 0.0
      %373 = vmatpush2.xpose.msra.mxu0 0.0
      %374 = vmatprep.subr.mxu0 0.0
      %375 = vmatpush2.xpose.msra.mxu0 0.0
      %376 = vmatprep.subr.mxu0 0.0
      %377 = vmatpush2.xpose.msra.mxu0 0.0
      %378 = vmatprep.mubr.f32.mxu0 0.0
      %379 = vmatmul.mubr.f32.gmra.mxu0 %v306
      %v380 = vpop.f32.mrf.mxu0
      %v381 = vadd.f32 0.0, %v380
      %v382 = vpop.f32.mrf.mxu0
      %383 = vdwg.mxu0
      %v384 = vlaneseq
      %v385 = vshrl.u32 %v384, 7
      %v386 = vsub.s32 0, %v385
      %v387 = vrot.slane %v381, %v386
      %v388 = vadd.f32 %v299, %v387
      %v389 = vadd.f32 %v302, %v387
      %v390 = vmul.f32 %v287, 2.0
      %v391 = vmul.f32 %v292, 2.0
      %v392 = vsub.f32 %v388, %v390
      %v393 = vsub.f32 %v389, %v391
      %v394 = vpack.c.bf16 %v393, %v392
      %v396 = vunpack.c.l.b16 %v394
      %v397 = vunpack.c.h.b16 %v394
      %v398 = vpack.c.b16 %v396, %v396
      %v399 = vpack.c.b16 %v397, %v397
      %vm402 = vcmask 125952
      %403 = vst.msk [vmem:[%s201] sm:$0xf] %vm402, %v398
      %404 = vst.msk [vmem:[%s201 + $0x4] sm:$0xf] %vm402, %v399
      %s405 = smul.u32 2, %s18
      %p406 = scmp.lt.s32.totalorder %s17, 1
      %s407 = scalar_select %p406, %s17, 1
      %p408 = scmp.lt.s32.totalorder %s405, 1
      %s409 = scalar_select %p408, %s405, 1
      %s410 = smul.addr %s407, 2
      %s411 = sadd.s32 %s409, %s410
      %s412 = smul.addr %s411, 4
      %s413 = scalar_lea.vmem %s2, %s412
      // Predicated region
      $region29: #{spd_forward.9} parent=27 // pred_check
        %p414 = pneg %p99
      $region30: #{spd_forward.9} parent=27 // pred_check_branch
        %416 = sbr.rel (%p414) target = $region32
      $region31: #{spd_forward.9} parent=27 // pred_region
        %s417 = smul.u32 2, %s18
      $region32: #{spd_forward.9} parent=27 // pred_fallthru
        _
    $region28: #{spd_forward.9} parent=5 // pred_fallthru
      _
    %p418 = scmp.le.s32.totalorder 2, %s8
    // Predicated region
    $region33: #{spd_forward.9} parent=5 // pred_check
      %p419 = pneg %p418
    $region34: #{spd_forward.9} parent=5 // pred_check_branch
      %421 = sbr.rel (%p419) target = $region36
    $region35: #{spd_forward.9} parent=5 // pred_region
      %s422 = ssub.s32 %s8, 2
      // Predicated region
      $region37: #{spd_forward.9} parent=35 // pred_check
        %p423 = pneg %p105
      $region38: #{spd_forward.9} parent=35 // pred_check_branch
        %425 = sbr.rel (%p423) target = $region40
      $region39: #{spd_forward.9} parent=35 // pred_region
        %s426 = smul.u32 2, %s20
        %p427 = scmp.lt.s32.totalorder %s19, 1
        %s428 = scalar_select %p427, %s19, 1
        %p429 = scmp.lt.s32.totalorder %s426, 1
        %s430 = scalar_select %p429, %s426, 1
        %s431 = smul.addr %s428, 2
        %s432 = sadd.s32 %s430, %s431
        %s433 = smul.addr %s432, 4
        %s434 = scalar_lea.vmem %s2, %s433
      $region40: #{spd_forward.9} parent=35 // pred_fallthru
        _
    $region36: #{spd_forward.9} parent=5 // pred_fallthru
      _
  $region6: #{spd_forward.9} parent=0 // loop_footer
    %s12 = sadd.s32 1, %s8
  $region7: #{spd_forward.9} parent=0 // loop_footer_branch
    %7 = sbr.rel target = $region3
  $region8: #{spd_forward.9} parent=0 // loop_exit
    _

// kernel: spd_forward.6
$region0: #{spd_forward.6}
  #allocation0 [shape = 'u32[]', space=smem, size = 0x4, offset = 0x4, fixed_abs, tag = 'smem constant byte address 0x4 - core index']
  #allocation1 [shape = 'u32[144,128]{1,0:T(1,128)}', space=vmem, size = 0x12000, scoped, tag = 'internal scratch']
  %s0 = inlined_call_operand.vmem [shape: f32[2,16,3], index: 0, kind: input, shape index: {}]
  %s1 = inlined_call_operand.vmem [shape: bf16[3,64], index: 1, kind: input, shape index: {}]
  %s2 = inlined_call_operand.vmem [shape: f32[1,64], index: 2, kind: input, shape index: {}]
  %s3 = inlined_call_operand.vmem [shape: bf16[64,128], index: 3, kind: input, shape index: {}]
  %s4 = inlined_call_operand.vmem [shape: f32[1,128], index: 4, kind: input, shape index: {}]
  %s5 = inlined_call_operand.vmem [shape: bf16[2,16,128], index: 5, kind: output, shape index: {0}]
  %s6 = inlined_call_operand.vmem [shape: f32[2,1,1,128], index: 6, kind: output, shape index: {1}]
  %7 = xla_tuple %s5, %s6
  %s8 = sld [smem:[#allocation0]]
  $region61: #{spd_forward.6} parent=0
    _
  %s10 = ssub.s32 1, %s8
  %s11 = scalar_select 0, %s10, %s8
  loop: start=0, step=1, limit=4
  $region2: #{spd_forward.6} parent=0 // loop_pre_header
    _
  $region3: #{spd_forward.6} parent=0 // loop_header
    %s13 = sphi 0, %s17
    %p14 = scmp.ge.s32.totalorder %s13, 4
    %s20 = sphi 0, %s32
    %s21 = sphi 0, %s28
    %s22 = sphi 0, %s20
    %s23 = sphi 0, %s21
    %s24 = sphi 0, %s22
    %s25 = sphi 0, %s23
    %s37 = sphi 0, %s39
    %s40 = sphi 0, %s37
    %s41 = sphi 0, %s40
    %s57 = sphi 0, %s41
    %s61 = sphi 0, %s61
    %s63 = sphi 0, %s61
    %s64 = sphi 0, %s63
    %s78 = sphi 0, %s64
    %s82 = sphi 0, %s82
    %s84 = sphi 0, %s82
    %s85 = sphi 0, %s84
    %s99 = sphi 0, %s85
    %s103 = sphi 0, %s103
    %s105 = sphi 0, %s103
    %s106 = sphi 0, %s105
    %s120 = sphi 0, %s106
    %s124 = sphi 0, %s124
    %s126 = sphi 0, %s124
    %s127 = sphi 0, %s126
    %s141 = sphi 0, %s127
    %s149 = sphi 0, %s151
    %s152 = sphi 0, %s149
    %s153 = sphi 0, %s152
    %s169 = sphi 0, %s153
    %s177 = sphi 0, %s179
    %s180 = sphi 0, %s177
    %s181 = sphi 0, %s180
    %s197 = sphi 0, %s181
  $region4: #{spd_forward.6} parent=0 // loop_header_branch
    %16 = sbr.rel (%p14) target = $region8
  $region5: #{spd_forward.6} parent=0 // loop_body
    %s18 = ssub.s32 %s13, 1
    %s19 = ssub.s32 %s13, 2
    %s26 = sadd.s32 1, %s21
    %p27 = scmp.ge.s32.totalorder %s26, 1
    %s28 = scalar_select %p27, 0, %s26
    %s29 = sadd.s32 1, %s20
    %s30 = scalar_select %p27, %s29, %s20
    %p31 = scmp.ge.s32.totalorder %s30, 2
    %s32 = scalar_select %p31, 0, %s30
    %s33 = ssub.s32 %s20, %s32
    %s34 = ssub.s32 %s21, %s28
    %s35 = sor.u32 %s33, %s34
    %p36 = scmp.eq.s32.totalorder %s35, 0
    %s38 = sadd.s32 %s37, 1
    %s39 = scalar_select %p36, %s37, %s38
    %p42 = pneg %p36
    %p43 = scmp.eq.s32.totalorder %s13, 1
    %p44 = por %p42, %p43
    %p45 = scmp.ne.s32.totalorder %s37, %s40
    %p46 = scmp.eq.s32.totalorder %s13, 0
    %p47 = por %p45, %p46
    %p48 = scmp.ne.s32.totalorder %s37, %s40
    %p49 = scmp.eq.s32.totalorder %s18, 1
    %p50 = por %p48, %p49
    %p51 = scmp.ne.s32.totalorder %s40, %s41
    %p52 = scmp.eq.s32.totalorder %s18, 0
    %p53 = por %p51, %p52
    %p54 = scmp.ne.s32.totalorder %s40, %s41
    %p55 = scmp.eq.s32.totalorder %s19, 1
    %p56 = por %p54, %p55
    %p58 = scmp.ne.s32.totalorder %s41, %s57
    %p59 = scmp.eq.s32.totalorder %s19, 0
    %p60 = por %p58, %p59
    %s62 = sadd.s32 %s61, 1
    %p65 = scmp.eq.s32.totalorder %s13, 1
    %p66 = scmp.ne.s32.totalorder %s61, %s63
    %p67 = scmp.eq.s32.totalorder %s13, 0
    %p68 = por %p66, %p67
    %p69 = scmp.ne.s32.totalorder %s61, %s63
    %p70 = scmp.eq.s32.totalorder %s18, 1
    %p71 = por %p69, %p70
    %p72 = scmp.ne.s32.totalorder %s63, %s64
    %p73 = scmp.eq.s32.totalorder %s18, 0
    %p74 = por %p72, %p73
    %p75 = scmp.ne.s32.totalorder %s63, %s64
    %p76 = scmp.eq.s32.totalorder %s19, 1
    %p77 = por %p75, %p76
    %p79 = scmp.ne.s32.totalorder %s64, %s78
    %p80 = scmp.eq.s32.totalorder %s19, 0
    %p81 = por %p79, %p80
    %s83 = sadd.s32 %s82, 1
    %p86 = scmp.eq.s32.totalorder %s13, 1
    %p87 = scmp.ne.s32.totalorder %s82, %s84
    %p88 = scmp.eq.s32.totalorder %s13, 0
    %p89 = por %p87, %p88
    %p90 = scmp.ne.s32.totalorder %s82, %s84
    %p91 = scmp.eq.s32.totalorder %s18, 1
    %p92 = por %p90, %p91
    %p93 = scmp.ne.s32.totalorder %s84, %s85
    %p94 = scmp.eq.s32.totalorder %s18, 0
    %p95 = por %p93, %p94
    %p96 = scmp.ne.s32.totalorder %s84, %s85
    %p97 = scmp.eq.s32.totalorder %s19, 1
    %p98 = por %p96, %p97
    %p100 = scmp.ne.s32.totalorder %s85, %s99
    %p101 = scmp.eq.s32.totalorder %s19, 0
    %p102 = por %p100, %p101
    %s104 = sadd.s32 %s103, 1
    %p107 = scmp.eq.s32.totalorder %s13, 1
    %p108 = scmp.ne.s32.totalorder %s103, %s105
    %p109 = scmp.eq.s32.totalorder %s13, 0
    %p110 = por %p108, %p109
    %p111 = scmp.ne.s32.totalorder %s103, %s105
    %p112 = scmp.eq.s32.totalorder %s18, 1
    %p113 = por %p111, %p112
    %p114 = scmp.ne.s32.totalorder %s105, %s106
    %p115 = scmp.eq.s32.totalorder %s18, 0
    %p116 = por %p114, %p115
    %p117 = scmp.ne.s32.totalorder %s105, %s106
    %p118 = scmp.eq.s32.totalorder %s19, 1
    %p119 = por %p117, %p118
    %p121 = scmp.ne.s32.totalorder %s106, %s120
    %p122 = scmp.eq.s32.totalorder %s19, 0
    %p123 = por %p121, %p122
    %s125 = sadd.s32 %s124, 1
    %p128 = scmp.eq.s32.totalorder %s13, 1
    %p129 = scmp.ne.s32.totalorder %s124, %s126
    %p130 = scmp.eq.s32.totalorder %s13, 0
    %p131 = por %p129, %p130
    %p132 = scmp.ne.s32.totalorder %s124, %s126
    %p133 = scmp.eq.s32.totalorder %s18, 1
    %p134 = por %p132, %p133
    %p135 = scmp.ne.s32.totalorder %s126, %s127
    %p136 = scmp.eq.s32.totalorder %s18, 0
    %p137 = por %p135, %p136
    %p138 = scmp.ne.s32.totalorder %s126, %s127
    %p139 = scmp.eq.s32.totalorder %s19, 1
    %p140 = por %p138, %p139
    %p142 = scmp.ne.s32.totalorder %s127, %s141
    %p143 = scmp.eq.s32.totalorder %s19, 0
    %p144 = por %p142, %p143
    %s145 = ssub.s32 %s20, %s32
    %s146 = ssub.s32 %s21, %s28
    %s147 = sor.u32 %s145, %s146
    %p148 = scmp.eq.s32.totalorder %s147, 0
    %s150 = sadd.s32 %s149, 1
    %s151 = scalar_select %p148, %s149, %s150
    %p154 = pneg %p148
    %p155 = scmp.eq.s32.totalorder %s13, 1
    %p156 = por %p154, %p155
    %p157 = scmp.ne.s32.totalorder %s149, %s152
    %p158 = scmp.eq.s32.totalorder %s13, 0
    %p159 = por %p157, %p158
    %p160 = scmp.ne.s32.totalorder %s149, %s152
    %p161 = scmp.eq.s32.totalorder %s18, 1
    %p162 = por %p160, %p161
    %p163 = scmp.ne.s32.totalorder %s152, %s153
    %p164 = scmp.eq.s32.totalorder %s18, 0
    %p165 = por %p163, %p164
    %p166 = scmp.ne.s32.totalorder %s152, %s153
    %p167 = scmp.eq.s32.totalorder %s19, 1
    %p168 = por %p166, %p167
    %p170 = scmp.ne.s32.totalorder %s153, %s169
    %p171 = scmp.eq.s32.totalorder %s19, 0
    %p172 = por %p170, %p171
    %s173 = ssub.s32 %s20, %s32
    %s174 = ssub.s32 %s21, %s28
    %s175 = sor.u32 %s173, %s174
    %p176 = scmp.eq.s32.totalorder %s175, 0
    %s178 = sadd.s32 %s177, 1
    %s179 = scalar_select %p176, %s177, %s178
    %p182 = pneg %p176
    %p183 = scmp.eq.s32.totalorder %s13, 1
    %p184 = por %p182, %p183
    %p185 = scmp.ne.s32.totalorder %s177, %s180
    %p186 = scmp.eq.s32.totalorder %s13, 0
    %p187 = por %p185, %p186
    %p188 = scmp.ne.s32.totalorder %s177, %s180
    %p189 = scmp.eq.s32.totalorder %s18, 1
    %p190 = por %p188, %p189
    %p191 = scmp.ne.s32.totalorder %s180, %s181
    %p192 = scmp.eq.s32.totalorder %s18, 0
    %p193 = por %p191, %p192
    %p194 = scmp.ne.s32.totalorder %s180, %s181
    %p195 = scmp.eq.s32.totalorder %s19, 1
    %p196 = por %p194, %p195
    %p198 = scmp.ne.s32.totalorder %s181, %s197
    %p199 = scmp.eq.s32.totalorder %s19, 0
    %p200 = por %p198, %p199
    %p201 = scmp.le.s32.totalorder 1, %s13
    %p202 = scmp.lt.s32.totalorder %s13, 3
    %p203 = pnand %p201, %p202
    %p204 = pneg %p203
    // Predicated region
    $region9: #{spd_forward.6} parent=5 // pred_check
      _
    $region10: #{spd_forward.6} parent=5 // pred_check_branch
      %206 = sbr.rel (%p203) target = $region12
    $region11: #{spd_forward.6} parent=5 // pred_region
      %s207 = ssub.s32 %s13, 1
      // Predicated region
      $region13: #{spd_forward.6} parent=11 // pred_check
        %p208 = pneg %p74
      $region14: #{spd_forward.6} parent=11 // pred_check_branch
        %210 = sbr.rel (%p208) target = $region16
      $region15: #{spd_forward.6} parent=11 // pred_region
        _
      $region16: #{spd_forward.6} parent=11 // pred_fallthru
        _
      // Predicated region
      $region17: #{spd_forward.6} parent=11 // pred_check
        %p211 = pneg %p95
      $region18: #{spd_forward.6} parent=11 // pred_check_branch
        %213 = sbr.rel (%p211) target = $region20
      $region19: #{spd_forward.6} parent=11 // pred_region
        _
      $region20: #{spd_forward.6} parent=11 // pred_fallthru
        _
      // Predicated region
      $region21: #{spd_forward.6} parent=11 // pred_check
        %p214 = pneg %p116
      $region22: #{spd_forward.6} parent=11 // pred_check_branch
        %216 = sbr.rel (%p214) target = $region24
      $region23: #{spd_forward.6} parent=11 // pred_region
        _
      $region24: #{spd_forward.6} parent=11 // pred_fallthru
        _
      // Predicated region
      $region25: #{spd_forward.6} parent=11 // pred_check
        %p217 = pneg %p137
      $region26: #{spd_forward.6} parent=11 // pred_check_branch
        %219 = sbr.rel (%p217) target = $region28
      $region27: #{spd_forward.6} parent=11 // pred_region
        _
      $region28: #{spd_forward.6} parent=11 // pred_fallthru
        _
    $region12: #{spd_forward.6} parent=5 // pred_fallthru
      _
    %p220 = scmp.lt.s32.totalorder %s13, 2
    // Predicated region
    $region29: #{spd_forward.6} parent=5 // pred_check
      %p221 = pneg %p220
    $region30: #{spd_forward.6} parent=5 // pred_check_branch
      %223 = sbr.rel (%p221) target = $region32
    $region31: #{spd_forward.6} parent=5 // pred_region
      // Predicated region
      $region33: #{spd_forward.6} parent=31 // pred_check
        %p224 = pneg %p47
      $region34: #{spd_forward.6} parent=31 // pred_check_branch
        %226 = sbr.rel (%p224) target = $region36
      $region35: #{spd_forward.6} parent=31 // pred_region
        %s227 = smul.u32 2, %s21
        %p228 = scmp.lt.s32.totalorder %s20, 1
        %s229 = scalar_select %p228, %s20, 1
        %p230 = scmp.lt.s32.totalorder %s227, 1
        %s231 = scalar_select %p230, %s227, 1
        %s232 = smul.addr %s229, 2
        %s233 = sadd.s32 %s231, %s232
        %s234 = smul.addr %s233, 8
        %s235 = scalar_lea.vmem %s0, %s234
        %s236 = smul.u32 2, %s21
      $region36: #{spd_forward.6} parent=31 // pred_fallthru
        _
    $region32: #{spd_forward.6} parent=5 // pred_fallthru
      _
    %p237 = scmp.le.s32.totalorder 1, %s13
    %p238 = scmp.lt.s32.totalorder %s13, 3
    %p239 = pnand %p237, %p238
    %p240 = pneg %p239
    // Predicated region
    $region37: #{spd_forward.6} parent=5 // pred_check
      _
    $region38: #{spd_forward.6} parent=5 // pred_check_branch
      %242 = sbr.rel (%p239) target = $region40
    $region39: #{spd_forward.6} parent=5 // pred_region
      %s243 = ssub.s32 %s13, 1
      %s244 = smul.u32 2, %s23
      %p245 = scmp.lt.s32.totalorder %s22, 1
      %s246 = scalar_select %p245, %s22, 1
      %p247 = scmp.lt.s32.totalorder %s244, 1
      %s248 = scalar_select %p247, %s244, 1
      %s249 = smul.addr %s246, 2
      %s250 = sadd.s32 %s248, %s249
      %s251 = smul.addr %s250, 8
      %s252 = scalar_lea.vmem %s0, %s251
      %p253 = pneg %p53
      %p254 = pneg %p50
      %p255 = pneg %p74
      %p256 = pneg %p71
      %p257 = pneg %p95
      %p258 = pneg %p92
      %p259 = pneg %p116
      %p260 = pneg %p113
      %p261 = pneg %p137
      %p262 = pneg %p134
      %p263 = pneg %p165
      %p264 = pneg %p162
      %s265 = smul.u32 2, %s23
      %p266 = scmp.lt.s32.totalorder %s22, 1
      %s267 = scalar_select %p266, %s22, 1
      %p268 = scmp.lt.s32.totalorder %s265, 1
      %s269 = scalar_select %p268, %s265, 1
      %s270 = smul.addr %s267, 2
      %s271 = sadd.s32 %s269, %s270
      %s272 = smul.addr %s271, 4
      %s273 = scalar_lea.vmem %s5, %s272
      %p274 = pneg %p193
      %p275 = pneg %p190
      %p276 = scmp.lt.s32.totalorder %s22, 1
      %s277 = scalar_select %p276, %s22, 1
      %p278 = scmp.lt.s32.totalorder %s23, 0
      %s279 = scalar_select %p278, %s23, 0
      %s280 = sadd.s32 %s279, %s277
      %s281 = scalar_lea.vmem %s6, %s280
      %s282 = smul.u32 2, %s23
      %p283 = scmp.lt.s32.totalorder %s22, 1
      %s284 = scalar_select %p283, %s22, 1
      %p285 = scmp.lt.s32.totalorder %s282, 1
      %s286 = scalar_select %p285, %s282, 1
      %s287 = smul.addr %s284, 2
      %s288 = sadd.s32 %s286, %s287
      %s289 = smul.addr %s288, 8
      %s290 = scalar_lea.vmem %s0, %s289
      %s291 = smul.u32 2, %s23
      %s292 = smul.u32 2, %s23
      %p293 = scmp.lt.s32.totalorder %s22, 1
      %s294 = scalar_select %p293, %s22, 1
      %p295 = scmp.lt.s32.totalorder %s292, 1
      %s296 = scalar_select %p295, %s292, 1
      %s297 = smul.addr %s294, 2
      %s298 = sadd.s32 %s296, %s297
      %s299 = smul.addr %s298, 4
      %s300 = scalar_lea.vmem %s5, %s299
      %s301 = smul.u32 2, %s23
      %p302 = scmp.lt.s32.totalorder %s22, 1
      %s303 = scalar_select %p302, %s22, 1
      %p304 = scmp.lt.s32.totalorder %s23, 0
      %s305 = scalar_select %p304, %s23, 0
      %s306 = sadd.s32 %s305, %s303
      %s307 = scalar_lea.vmem %s6, %s306
      %v309 = vld [vmem:[%s290] sm:$0xff]
      %v310 = vld [vmem:[%s290 + $0x8] sm:$0xff]
      %v311 = vld [vmem:[%s1] sm:$0x3]
      %v312 = vpack.c.bf16 %v310, %v309
      %v313 = vld [vmem:[%s2] sm:$0x1]
      %v315 = vlaneseq
      %v316 = vshrl.u32 %v315, 7
      %v317 = vsub.s32 0, %v316
      %v318 = vrot.slane %v313, %v317
      %vm320 = vcmask 23552
      %v322 = vsel %vm320, %v312, 0
      %vm324 = vcmask 1040384
      %vm325 = vcmask 1041408
      %v326 = vsel %vm324, 4294967295, 65535
      %v327 = vsel %vm325, %v326, 0
      %v329 = vand.u32 %v311, %v327
      %331 = vmatprep.subr.bf16.mxu0 0
      %332 = vmatpush1.bf16.msra.mxu0 0
      %333 = vmatprep.subr.bf16.mxu0 0
      %334 = vmatpush1.bf16.msra.mxu0 0
      %335 = vmatprep.subr.bf16.mxu0 0
      %336 = vmatpush1.bf16.msra.mxu0 0
      %337 = vmatprep.subr.bf16.mxu0 0
      %338 = vmatpush1.bf16.msra.mxu0 0
      %339 = vmatprep.subr.bf16.mxu0 0
      %340 = vmatpush1.bf16.msra.mxu0 0
      %341 = vmatprep.subr.bf16.mxu0 0
      %342 = vmatpush1.bf16.msra.mxu0 0
      %343 = vmatprep.subr.bf16.mxu0 0
      %344 = vmatpush1.bf16.msra.mxu0 0
      %345 = vmatprep.subr.bf16.mxu0 0
      %346 = vmatpush1.bf16.msra.mxu0 %v329
      %347 = vmatprep.subr.bf16.mxu0 0
      %348 = vmatpush2.bf16.msra.mxu0 0
      %349 = vmatprep.subr.bf16.mxu0 0
      %350 = vmatpush2.bf16.msra.mxu0 0
      %351 = vmatprep.subr.bf16.mxu0 0
      %352 = vmatpush2.bf16.msra.mxu0 0
      %353 = vmatprep.subr.bf16.mxu0 0
      %354 = vmatpush2.bf16.msra.mxu0 0
      %355 = vmatprep.subr.bf16.mxu0 0
      %356 = vmatpush2.bf16.msra.mxu0 0
      %357 = vmatprep.subr.bf16.mxu0 0
      %358 = vmatpush2.bf16.msra.mxu0 0
      %359 = vmatprep.subr.bf16.mxu0 0
      %360 = vmatpush2.bf16.msra.mxu0 0
      %361 = vmatprep.subr.bf16.mxu0 0
      %362 = vmatpush2.bf16.msra.mxu0 0
      %363 = vmatprep.mubr.bf16.mxu0 0
      %364 = vmatmul.mubr.bf16.gmra.mxu0 %v322
      %v365 = vpop.f32.mrf.mxu0
      %v366 = vadd.f32 %v318, %v365
      %v367 = vpop.f32.mrf.mxu0
      %v368 = vpop.f32.mrf.mxu0
      %v369 = vadd.f32 %v318, %v368
      %v370 = vpop.f32.mrf.mxu0
      %371 = vdwg.mxu0
      %v372 = vmax.f32 %v366, 0.0
      %v373 = vmax.f32 %v369, 0.0
      %v374 = vld [vmem:[%s3] sm:$0xf]
      %v375 = vld [vmem:[%s3 + $0x4] sm:$0xf]
      %v376 = vld [vmem:[%s3 + $0x8] sm:$0xf]
      %v377 = vld [vmem:[%s3 + $0xc] sm:$0xf]
      %v378 = vld [vmem:[%s3 + $0x10] sm:$0xf]
      %v379 = vld [vmem:[%s3 + $0x14] sm:$0xf]
      %v380 = vld [vmem:[%s3 + $0x18] sm:$0xf]
      %v381 = vld [vmem:[%s3 + $0x1c] sm:$0xf]
      %v382 = vpack.c.bf16 %v373, %v372
      %v383 = vld [vmem:[%s4] sm:$0x1]
      %v385 = vlaneseq
      %v386 = vshrl.u32 %v385, 7
      %v387 = vsub.s32 0, %v386
      %v388 = vrot.slane %v383, %v387
      %v398 = vunpack.c.l.b16 %v374
      %v399 = vunpack.c.l.b16 %v375
      %v400 = vunpack.c.l.b16 %v376
      %v401 = vunpack.c.l.b16 %v377
      %v402 = vunpack.c.l.b16 %v378
      %v403 = vunpack.c.l.b16 %v379
      %v404 = vunpack.c.l.b16 %v380
      %v405 = vunpack.c.l.b16 %v381
      %v406 = vpack.c.b16 %v399, %v398
      %v407 = vpack.c.b16 %v401, %v400
      %v408 = vpack.c.b16 %v403, %v402
      %v409 = vpack.c.b16 %v405, %v404
      %vm414 = vcmask 523264
      %v416 = vsel %vm414, %v382, 0
      %418 = vmatprep.subr.bf16.mxu0 0
      %419 = vmatpush1.bf16.msra.mxu0 0
      %420 = vmatprep.subr.bf16.mxu0 0
      %421 = vmatpush1.bf16.msra.mxu0 0
      %422 = vmatprep.subr.bf16.mxu0 0
      %423 = vmatpush1.bf16.msra.mxu0 0
      %424 = vmatprep.subr.bf16.mxu0 0
      %425 = vmatpush1.bf16.msra.mxu0 0
      %426 = vmatprep.subr.bf16.mxu0 0
      %427 = vmatpush1.bf16.msra.mxu0 %v409
      %428 = vmatprep.subr.bf16.mxu0 0
      %429 = vmatpush1.bf16.msra.mxu0 %v408
      %430 = vmatprep.subr.bf16.mxu0 0
      %431 = vmatpush1.bf16.msra.mxu0 %v407
      %432 = vmatprep.subr.bf16.mxu0 0
      %433 = vmatpush1.bf16.msra.mxu0 %v406
      %434 = vmatprep.subr.bf16.mxu0 0
      %435 = vmatpush2.bf16.msra.mxu0 0
      %436 = vmatprep.subr.bf16.mxu0 0
      %437 = vmatpush2.bf16.msra.mxu0 0
      %438 = vmatprep.subr.bf16.mxu0 0
      %439 = vmatpush2.bf16.msra.mxu0 0
      %440 = vmatprep.subr.bf16.mxu0 0
      %441 = vmatpush2.bf16.msra.mxu0 0
      %442 = vmatprep.subr.bf16.mxu0 0
      %443 = vmatpush2.bf16.msra.mxu0 0
      %444 = vmatprep.subr.bf16.mxu0 0
      %445 = vmatpush2.bf16.msra.mxu0 0
      %446 = vmatprep.subr.bf16.mxu0 0
      %447 = vmatpush2.bf16.msra.mxu0 0
      %448 = vmatprep.subr.bf16.mxu0 0
      %449 = vmatpush2.bf16.msra.mxu0 0
      %450 = vmatprep.mubr.bf16.mxu0 0
      %451 = vmatmul.mubr.bf16.gmra.mxu0 %v416
      %v452 = vpop.f32.mrf.mxu0
      %v453 = vadd.f32 %v388, %v452
      %v454 = vpop.f32.mrf.mxu0
      %v455 = vpop.f32.mrf.mxu0
      %v456 = vadd.f32 %v388, %v455
      %v457 = vpop.f32.mrf.mxu0
      %458 = vdwg.mxu0
      %v459 = vpack.c.bf16 %v456, %v453
      %v461 = vunpack.c.l.b16 %v459
      %v462 = vunpack.c.h.b16 %v459
      %v463 = vpack.c.b16 %v461, %v461
      %v464 = vpack.c.b16 %v462, %v462
      %467 = vst [vmem:[%s300] sm:$0xf] %v463
      %468 = vst [vmem:[%s300 + $0x4] sm:$0xf] %v464
      %v469 = vmax.f32 %v453, %v456
      %v470 = vrot.slane %v469, 4
      %v471 = vmax.f32 %v469, %v470
      %v472 = vrot.slane %v471, 2
      %v473 = vmax.f32 %v471, %v472
      %v474 = vrot.slane %v473, 1
      %v475 = vmax.f32 %v473, %v474
      %476 = vst [vmem:[%s307] sm:$0x1] %v475
      %s477 = smul.u32 2, %s23
      %p478 = scmp.lt.s32.totalorder %s22, 1
      %s479 = scalar_select %p478, %s22, 1
      %p480 = scmp.lt.s32.totalorder %s477, 1
      %s481 = scalar_select %p480, %s477, 1
      %s482 = smul.addr %s479, 2
      %s483 = sadd.s32 %s481, %s482
      %s484 = smul.addr %s483, 4
      %s485 = scalar_lea.vmem %s5, %s484
      %p486 = scmp.lt.s32.totalorder %s22, 1
      %s487 = scalar_select %p486, %s22, 1
      %p488 = scmp.lt.s32.totalorder %s23, 0
      %s489 = scalar_select %p488, %s23, 0
      %s490 = sadd.s32 %s489, %s487
      %s491 = scalar_lea.vmem %s6, %s490
      // Predicated region
      $region41: #{spd_forward.6} parent=39 // pred_check
        %p492 = pneg %p162
      $region42: #{spd_forward.6} parent=39 // pred_check_branch
        %494 = sbr.rel (%p492) target = $region44
      $region43: #{spd_forward.6} parent=39 // pred_region
        %s495 = smul.u32 2, %s23
      $region44: #{spd_forward.6} parent=39 // pred_fallthru
        _
      // Predicated region
      $region45: #{spd_forward.6} parent=39 // pred_check
        %p496 = pneg %p190
      $region46: #{spd_forward.6} parent=39 // pred_check_branch
        %498 = sbr.rel (%p496) target = $region48
      $region47: #{spd_forward.6} parent=39 // pred_region
        _
      $region48: #{spd_forward.6} parent=39 // pred_fallthru
        _
    $region40: #{spd_forward.6} parent=5 // pred_fallthru
      _
    %p499 = scmp.le.s32.totalorder 2, %s13
    // Predicated region
    $region49: #{spd_forward.6} parent=5 // pred_check
      %p500 = pneg %p499
    $region50: #{spd_forward.6} parent=5 // pred_check_branch
      %502 = sbr.rel (%p500) target = $region52
    $region51: #{spd_forward.6} parent=5 // pred_region
      %s503 = ssub.s32 %s13, 2
      // Predicated region
      $region53: #{spd_forward.6} parent=51 // pred_check
        %p504 = pneg %p168
      $region54: #{spd_forward.6} parent=51 // pred_check_branch
        %506 = sbr.rel (%p504) target = $region56
      $region55: #{spd_forward.6} parent=51 // pred_region
        %s507 = smul.u32 2, %s25
        %p508 = scmp.lt.s32.totalorder %s24, 1
        %s509 = scalar_select %p508, %s24, 1
        %p510 = scmp.lt.s32.totalorder %s507, 1
        %s511 = scalar_select %p510, %s507, 1
        %s512 = smul.addr %s509, 2
        %s513 = sadd.s32 %s511, %s512
        %s514 = smul.addr %s513, 4
        %s515 = scalar_lea.vmem %s5, %s514
      $region56: #{spd_forward.6} parent=51 // pred_fallthru
        _
      // Predicated region
      $region57: #{spd_forward.6} parent=51 // pred_check
        %p516 = pneg %p196
      $region58: #{spd_forward.6} parent=51 // pred_check_branch
        %518 = sbr.rel (%p516) target = $region60
      $region59: #{spd_forward.6} parent=51 // pred_region
        %p519 = scmp.lt.s32.totalorder %s24, 1
        %s520 = scalar_select %p519, %s24, 1
        %p521 = scmp.lt.s32.totalorder %s25, 0
        %s522 = scalar_select %p521, %s25, 0
        %s523 = sadd.s32 %s522, %s520
        %s524 = scalar_lea.vmem %s6, %s523
      $region60: #{spd_forward.6} parent=51 // pred_fallthru
        _
    $region52: #{spd_forward.6} parent=5 // pred_fallthru
      _
  $region6: #{spd_forward.6} parent=0 // loop_footer
    %s17 = sadd.s32 1, %s13
  $region7: #{spd_forward.6} parent=0 // loop_footer_branch
    %12 = sbr.rel target = $region3
  $region8: #{spd_forward.6} parent=0 // loop_exit
    _

// kernel: spd_forward.7
$region0: #{spd_forward.7}
  #allocation0 [shape = 'u32[]', space=smem, size = 0x4, offset = 0x4, fixed_abs, tag = 'smem constant byte address 0x4 - core index']
  #allocation1 [shape = 'u32[144,128]{1,0:T(1,128)}', space=vmem, size = 0x12000, scoped, tag = 'internal scratch']
  %s0 = inlined_call_operand.vmem [shape: bf16[2,16,128], index: 0, kind: input, shape index: {}]
  %s1 = inlined_call_operand.vmem [shape: f32[2,1,256], index: 1, kind: input, shape index: {}]
  %s2 = inlined_call_operand.vmem [shape: bf16[128,256], index: 2, kind: input, shape index: {}]
  %s3 = inlined_call_operand.vmem [shape: bf16[256,128], index: 3, kind: input, shape index: {}]
  %s4 = inlined_call_operand.vmem [shape: f32[1,128], index: 4, kind: input, shape index: {}]
  %s5 = inlined_call_operand.vmem [shape: bf16[2,16,128], index: 5, kind: output, shape index: {}]
  %s6 = sld [smem:[#allocation0]]
  $region53: #{spd_forward.7} parent=0
    _
  %s8 = ssub.s32 1, %s6
  %s9 = scalar_select 0, %s8, %s6
  loop: start=0, step=1, limit=4
  $region2: #{spd_forward.7} parent=0 // loop_pre_header
    _
  $region3: #{spd_forward.7} parent=0 // loop_header
    %s11 = sphi 0, %s15
    %p12 = scmp.ge.s32.totalorder %s11, 4
    %s18 = sphi 0, %s30
    %s19 = sphi 0, %s26
    %s20 = sphi 0, %s18
    %s21 = sphi 0, %s19
    %s22 = sphi 0, %s20
    %s23 = sphi 0, %s21
    %s35 = sphi 0, %s37
    %s38 = sphi 0, %s35
    %s39 = sphi 0, %s38
    %s55 = sphi 0, %s39
    %s61 = sphi 0, %s63
    %s64 = sphi 0, %s61
    %s65 = sphi 0, %s64
    %s81 = sphi 0, %s65
    %s85 = sphi 0, %s85
    %s87 = sphi 0, %s85
    %s88 = sphi 0, %s87
    %s102 = sphi 0, %s88
    %s106 = sphi 0, %s106
    %s108 = sphi 0, %s106
    %s109 = sphi 0, %s108
    %s123 = sphi 0, %s109
    %s127 = sphi 0, %s127
    %s129 = sphi 0, %s127
    %s130 = sphi 0, %s129
    %s144 = sphi 0, %s130
    %s152 = sphi 0, %s154
    %s155 = sphi 0, %s152
    %s156 = sphi 0, %s155
    %s172 = sphi 0, %s156
  $region4: #{spd_forward.7} parent=0 // loop_header_branch
    %14 = sbr.rel (%p12) target = $region8
  $region5: #{spd_forward.7} parent=0 // loop_body
    %s16 = ssub.s32 %s11, 1
    %s17 = ssub.s32 %s11, 2
    %s24 = sadd.s32 1, %s19
    %p25 = scmp.ge.s32.totalorder %s24, 1
    %s26 = scalar_select %p25, 0, %s24
    %s27 = sadd.s32 1, %s18
    %s28 = scalar_select %p25, %s27, %s18
    %p29 = scmp.ge.s32.totalorder %s28, 2
    %s30 = scalar_select %p29, 0, %s28
    %s31 = ssub.s32 %s18, %s30
    %s32 = ssub.s32 %s19, %s26
    %s33 = sor.u32 %s31, %s32
    %p34 = scmp.eq.s32.totalorder %s33, 0
    %s36 = sadd.s32 %s35, 1
    %s37 = scalar_select %p34, %s35, %s36
    %p40 = pneg %p34
    %p41 = scmp.eq.s32.totalorder %s11, 1
    %p42 = por %p40, %p41
    %p43 = scmp.ne.s32.totalorder %s35, %s38
    %p44 = scmp.eq.s32.totalorder %s11, 0
    %p45 = por %p43, %p44
    %p46 = scmp.ne.s32.totalorder %s35, %s38
    %p47 = scmp.eq.s32.totalorder %s16, 1
    %p48 = por %p46, %p47
    %p49 = scmp.ne.s32.totalorder %s38, %s39
    %p50 = scmp.eq.s32.totalorder %s16, 0
    %p51 = por %p49, %p50
    %p52 = scmp.ne.s32.totalorder %s38, %s39
    %p53 = scmp.eq.s32.totalorder %s17, 1
    %p54 = por %p52, %p53
    %p56 = scmp.ne.s32.totalorder %s39, %s55
    %p57 = scmp.eq.s32.totalorder %s17, 0
    %p58 = por %p56, %p57
    %s59 = ssub.s32 %s18, %s30
    %p60 = scmp.eq.s32.totalorder %s59, 0
    %s62 = sadd.s32 %s61, 1
    %s63 = scalar_select %p60, %s61, %s62
    %p66 = pneg %p60
    %p67 = scmp.eq.s32.totalorder %s11, 1
    %p68 = por %p66, %p67
    %p69 = scmp.ne.s32.totalorder %s61, %s64
    %p70 = scmp.eq.s32.totalorder %s11, 0
    %p71 = por %p69, %p70
    %p72 = scmp.ne.s32.totalorder %s61, %s64
    %p73 = scmp.eq.s32.totalorder %s16, 1
    %p74 = por %p72, %p73
    %p75 = scmp.ne.s32.totalorder %s64, %s65
    %p76 = scmp.eq.s32.totalorder %s16, 0
    %p77 = por %p75, %p76
    %p78 = scmp.ne.s32.totalorder %s64, %s65
    %p79 = scmp.eq.s32.totalorder %s17, 1
    %p80 = por %p78, %p79
    %p82 = scmp.ne.s32.totalorder %s65, %s81
    %p83 = scmp.eq.s32.totalorder %s17, 0
    %p84 = por %p82, %p83
    %s86 = sadd.s32 %s85, 1
    %p89 = scmp.eq.s32.totalorder %s11, 1
    %p90 = scmp.ne.s32.totalorder %s85, %s87
    %p91 = scmp.eq.s32.totalorder %s11, 0
    %p92 = por %p90, %p91
    %p93 = scmp.ne.s32.totalorder %s85, %s87
    %p94 = scmp.eq.s32.totalorder %s16, 1
    %p95 = por %p93, %p94
    %p96 = scmp.ne.s32.totalorder %s87, %s88
    %p97 = scmp.eq.s32.totalorder %s16, 0
    %p98 = por %p96, %p97
    %p99 = scmp.ne.s32.totalorder %s87, %s88
    %p100 = scmp.eq.s32.totalorder %s17, 1
    %p101 = por %p99, %p100
    %p103 = scmp.ne.s32.totalorder %s88, %s102
    %p104 = scmp.eq.s32.totalorder %s17, 0
    %p105 = por %p103, %p104
    %s107 = sadd.s32 %s106, 1
    %p110 = scmp.eq.s32.totalorder %s11, 1
    %p111 = scmp.ne.s32.totalorder %s106, %s108
    %p112 = scmp.eq.s32.totalorder %s11, 0
    %p113 = por %p111, %p112
    %p114 = scmp.ne.s32.totalorder %s106, %s108
    %p115 = scmp.eq.s32.totalorder %s16, 1
    %p116 = por %p114, %p115
    %p117 = scmp.ne.s32.totalorder %s108, %s109
    %p118 = scmp.eq.s32.totalorder %s16, 0
    %p119 = por %p117, %p118
    %p120 = scmp.ne.s32.totalorder %s108, %s109
    %p121 = scmp.eq.s32.totalorder %s17, 1
    %p122 = por %p120, %p121
    %p124 = scmp.ne.s32.totalorder %s109, %s123
    %p125 = scmp.eq.s32.totalorder %s17, 0
    %p126 = por %p124, %p125
    %s128 = sadd.s32 %s127, 1
    %p131 = scmp.eq.s32.totalorder %s11, 1
    %p132 = scmp.ne.s32.totalorder %s127, %s129
    %p133 = scmp.eq.s32.totalorder %s11, 0
    %p134 = por %p132, %p133
    %p135 = scmp.ne.s32.totalorder %s127, %s129
    %p136 = scmp.eq.s32.totalorder %s16, 1
    %p137 = por %p135, %p136
    %p138 = scmp.ne.s32.totalorder %s129, %s130
    %p139 = scmp.eq.s32.totalorder %s16, 0
    %p140 = por %p138, %p139
    %p141 = scmp.ne.s32.totalorder %s129, %s130
    %p142 = scmp.eq.s32.totalorder %s17, 1
    %p143 = por %p141, %p142
    %p145 = scmp.ne.s32.totalorder %s130, %s144
    %p146 = scmp.eq.s32.totalorder %s17, 0
    %p147 = por %p145, %p146
    %s148 = ssub.s32 %s18, %s30
    %s149 = ssub.s32 %s19, %s26
    %s150 = sor.u32 %s148, %s149
    %p151 = scmp.eq.s32.totalorder %s150, 0
    %s153 = sadd.s32 %s152, 1
    %s154 = scalar_select %p151, %s152, %s153
    %p157 = pneg %p151
    %p158 = scmp.eq.s32.totalorder %s11, 1
    %p159 = por %p157, %p158
    %p160 = scmp.ne.s32.totalorder %s152, %s155
    %p161 = scmp.eq.s32.totalorder %s11, 0
    %p162 = por %p160, %p161
    %p163 = scmp.ne.s32.totalorder %s152, %s155
    %p164 = scmp.eq.s32.totalorder %s16, 1
    %p165 = por %p163, %p164
    %p166 = scmp.ne.s32.totalorder %s155, %s156
    %p167 = scmp.eq.s32.totalorder %s16, 0
    %p168 = por %p166, %p167
    %p169 = scmp.ne.s32.totalorder %s155, %s156
    %p170 = scmp.eq.s32.totalorder %s17, 1
    %p171 = por %p169, %p170
    %p173 = scmp.ne.s32.totalorder %s156, %s172
    %p174 = scmp.eq.s32.totalorder %s17, 0
    %p175 = por %p173, %p174
    %p176 = scmp.le.s32.totalorder 1, %s11
    %p177 = scmp.lt.s32.totalorder %s11, 3
    %p178 = pnand %p176, %p177
    %p179 = pneg %p178
    // Predicated region
    $region9: #{spd_forward.7} parent=5 // pred_check
      _
    $region10: #{spd_forward.7} parent=5 // pred_check_branch
      %181 = sbr.rel (%p178) target = $region12
    $region11: #{spd_forward.7} parent=5 // pred_region
      %s182 = ssub.s32 %s11, 1
      // Predicated region
      $region13: #{spd_forward.7} parent=11 // pred_check
        %p183 = pneg %p98
      $region14: #{spd_forward.7} parent=11 // pred_check_branch
        %185 = sbr.rel (%p183) target = $region16
      $region15: #{spd_forward.7} parent=11 // pred_region
        _
      $region16: #{spd_forward.7} parent=11 // pred_fallthru
        _
      // Predicated region
      $region17: #{spd_forward.7} parent=11 // pred_check
        %p186 = pneg %p119
      $region18: #{spd_forward.7} parent=11 // pred_check_branch
        %188 = sbr.rel (%p186) target = $region20
      $region19: #{spd_forward.7} parent=11 // pred_region
        _
      $region20: #{spd_forward.7} parent=11 // pred_fallthru
        _
      // Predicated region
      $region21: #{spd_forward.7} parent=11 // pred_check
        %p189 = pneg %p140
      $region22: #{spd_forward.7} parent=11 // pred_check_branch
        %191 = sbr.rel (%p189) target = $region24
      $region23: #{spd_forward.7} parent=11 // pred_region
        _
      $region24: #{spd_forward.7} parent=11 // pred_fallthru
        _
    $region12: #{spd_forward.7} parent=5 // pred_fallthru
      _
    %p192 = scmp.lt.s32.totalorder %s11, 2
    // Predicated region
    $region25: #{spd_forward.7} parent=5 // pred_check
      %p193 = pneg %p192
    $region26: #{spd_forward.7} parent=5 // pred_check_branch
      %195 = sbr.rel (%p193) target = $region28
    $region27: #{spd_forward.7} parent=5 // pred_region
      // Predicated region
      $region29: #{spd_forward.7} parent=27 // pred_check
        %p196 = pneg %p45
      $region30: #{spd_forward.7} parent=27 // pred_check_branch
        %198 = sbr.rel (%p196) target = $region32
      $region31: #{spd_forward.7} parent=27 // pred_region
        %s199 = smul.u32 2, %s19
        %p200 = scmp.lt.s32.totalorder %s18, 1
        %s201 = scalar_select %p200, %s18, 1
        %p202 = scmp.lt.s32.totalorder %s199, 1
        %s203 = scalar_select %p202, %s199, 1
        %s204 = smul.addr %s201, 2
        %s205 = sadd.s32 %s203, %s204
        %s206 = smul.addr %s205, 4
        %s207 = scalar_lea.vmem %s0, %s206
        %s208 = smul.u32 2, %s19
      $region32: #{spd_forward.7} parent=27 // pred_fallthru
        _
      // Predicated region
      $region33: #{spd_forward.7} parent=27 // pred_check
        %p209 = pneg %p71
      $region34: #{spd_forward.7} parent=27 // pred_check_branch
        %211 = sbr.rel (%p209) target = $region36
      $region35: #{spd_forward.7} parent=27 // pred_region
        %p212 = scmp.lt.s32.totalorder %s18, 1
        %s213 = scalar_select %p212, %s18, 1
        %s214 = smul.addr %s213, 2
        %s215 = scalar_lea.vmem %s1, %s214
      $region36: #{spd_forward.7} parent=27 // pred_fallthru
        _
    $region28: #{spd_forward.7} parent=5 // pred_fallthru
      _
    %p216 = scmp.le.s32.totalorder 1, %s11
    %p217 = scmp.lt.s32.totalorder %s11, 3
    %p218 = pnand %p216, %p217
    %p219 = pneg %p218
    // Predicated region
    $region37: #{spd_forward.7} parent=5 // pred_check
      _
    $region38: #{spd_forward.7} parent=5 // pred_check_branch
      %221 = sbr.rel (%p218) target = $region40
    $region39: #{spd_forward.7} parent=5 // pred_region
      %s222 = ssub.s32 %s11, 1
      %s223 = smul.u32 2, %s21
      %p224 = scmp.lt.s32.totalorder %s20, 1
      %s225 = scalar_select %p224, %s20, 1
      %p226 = scmp.lt.s32.totalorder %s223, 1
      %s227 = scalar_select %p226, %s223, 1
      %s228 = smul.addr %s225, 2
      %s229 = sadd.s32 %s227, %s228
      %s230 = smul.addr %s229, 4
      %s231 = scalar_lea.vmem %s0, %s230
      %p232 = pneg %p51
      %p233 = pneg %p48
      %p234 = scmp.lt.s32.totalorder %s20, 1
      %s235 = scalar_select %p234, %s20, 1
      %s236 = smul.addr %s235, 2
      %s237 = scalar_lea.vmem %s1, %s236
      %p238 = pneg %p77
      %p239 = pneg %p74
      %p240 = pneg %p98
      %p241 = pneg %p95
      %p242 = pneg %p119
      %p243 = pneg %p116
      %p244 = pneg %p140
      %p245 = pneg %p137
      %p246 = pneg %p168
      %p247 = pneg %p165
      %s248 = smul.u32 2, %s21
      %p249 = scmp.lt.s32.totalorder %s20, 1
      %s250 = scalar_select %p249, %s20, 1
      %p251 = scmp.lt.s32.totalorder %s248, 1
      %s252 = scalar_select %p251, %s248, 1
      %s253 = smul.addr %s250, 2
      %s254 = sadd.s32 %s252, %s253
      %s255 = smul.addr %s254, 4
      %s256 = scalar_lea.vmem %s5, %s255
      %s257 = smul.u32 2, %s21
      %p258 = scmp.lt.s32.totalorder %s20, 1
      %s259 = scalar_select %p258, %s20, 1
      %p260 = scmp.lt.s32.totalorder %s257, 1
      %s261 = scalar_select %p260, %s257, 1
      %s262 = smul.addr %s259, 2
      %s263 = sadd.s32 %s261, %s262
      %s264 = smul.addr %s263, 4
      %s265 = scalar_lea.vmem %s0, %s264
      %s266 = smul.u32 2, %s21
      %p267 = scmp.lt.s32.totalorder %s20, 1
      %s268 = scalar_select %p267, %s20, 1
      %s269 = smul.addr %s268, 2
      %s270 = scalar_lea.vmem %s1, %s269
      %s271 = smul.u32 2, %s21
      %p272 = scmp.lt.s32.totalorder %s20, 1
      %s273 = scalar_select %p272, %s20, 1
      %p274 = scmp.lt.s32.totalorder %s271, 1
      %s275 = scalar_select %p274, %s271, 1
      %s276 = smul.addr %s273, 2
      %s277 = sadd.s32 %s275, %s276
      %s278 = smul.addr %s277, 4
      %s279 = scalar_lea.vmem %s5, %s278
      %s280 = smul.u32 2, %s21
      %v282 = vld [vmem:[%s265] sm:$0xf]
      %v283 = vld [vmem:[%s265 + $0x4] sm:$0xf]
      %v284 = vld [vmem:[%s2] sm:$0xff]
      %v285 = vld [vmem:[%s2 + $0x8] sm:$0xff]
      %v286 = vld [vmem:[%s2 + $0x10] sm:$0xff]
      %v287 = vld [vmem:[%s2 + $0x18] sm:$0xff]
      %v288 = vld [vmem:[%s2 + $0x20] sm:$0xff]
      %v289 = vld [vmem:[%s2 + $0x28] sm:$0xff]
      %v290 = vld [vmem:[%s2 + $0x30] sm:$0xff]
      %v291 = vld [vmem:[%s2 + $0x38] sm:$0xff]
      %v292 = vld [vmem:[%s2 + $0x40] sm:$0xff]
      %v293 = vld [vmem:[%s2 + $0x48] sm:$0xff]
      %v294 = vld [vmem:[%s2 + $0x50] sm:$0xff]
      %v295 = vld [vmem:[%s2 + $0x58] sm:$0xff]
      %v296 = vld [vmem:[%s2 + $0x60] sm:$0xff]
      %v297 = vld [vmem:[%s2 + $0x68] sm:$0xff]
      %v298 = vld [vmem:[%s2 + $0x70] sm:$0xff]
      %v299 = vld [vmem:[%s2 + $0x78] sm:$0xff]
      %v300 = vld [vmem:[%s270] sm:$0x3]
      %v302 = vlaneseq
      %v303 = vshrl.u32 %v302, 7
      %v304 = vsub.s32 0, %v303
      %v305 = vrot.slane %v300, %v304
      %v306 = vlaneseq
      %v307 = vshrl.u32 %v306, 7
      %v308 = vsub.s32 1, %v307
      %v309 = vrot.slane %v300, %v308
      %v314 = vunpack.c.l.b16 %v282
      %v315 = vunpack.c.l.b16 %v283
      %v316 = vpack.c.b16 %v315, %v314
      %v334 = vunpack.c.l.b16 %v284
      %v335 = vunpack.c.h.b16 %v284
      %v336 = vunpack.c.l.b16 %v285
      %v337 = vunpack.c.h.b16 %v285
      %v338 = vunpack.c.l.b16 %v286
      %v339 = vunpack.c.h.b16 %v286
      %v340 = vunpack.c.l.b16 %v287
      %v341 = vunpack.c.h.b16 %v287
      %v342 = vunpack.c.l.b16 %v288
      %v343 = vunpack.c.h.b16 %v288
      %v344 = vunpack.c.l.b16 %v289
      %v345 = vunpack.c.h.b16 %v289
      %v346 = vunpack.c.l.b16 %v290
      %v347 = vunpack.c.h.b16 %v290
      %v348 = vunpack.c.l.b16 %v291
      %v349 = vunpack.c.h.b16 %v291
      %v350 = vunpack.c.l.b16 %v292
      %v351 = vunpack.c.h.b16 %v292
      %v352 = vunpack.c.l.b16 %v293
      %v353 = vunpack.c.h.b16 %v293
      %v354 = vunpack.c.l.b16 %v294
      %v355 = vunpack.c.h.b16 %v294
      %v356 = vunpack.c.l.b16 %v295
      %v357 = vunpack.c.h.b16 %v295
      %v358 = vunpack.c.l.b16 %v296
      %v359 = vunpack.c.h.b16 %v296
      %v360 = vunpack.c.l.b16 %v297
      %v361 = vunpack.c.h.b16 %v297
      %v362 = vunpack.c.l.b16 %v298
      %v363 = vunpack.c.h.b16 %v298
      %v364 = vunpack.c.l.b16 %v299
      %v365 = vunpack.c.h.b16 %v299
      %v366 = vpack.c.b16 %v336, %v334
      %v367 = vpack.c.b16 %v337, %v335
      %v368 = vpack.c.b16 %v340, %v338
      %v369 = vpack.c.b16 %v341, %v339
      %v370 = vpack.c.b16 %v344, %v342
      %v371 = vpack.c.b16 %v345, %v343
      %v372 = vpack.c.b16 %v348, %v346
      %v373 = vpack.c.b16 %v349, %v347
      %v374 = vpack.c.b16 %v352, %v350
      %v375 = vpack.c.b16 %v353, %v351
      %v376 = vpack.c.b16 %v356, %v354
      %v377 = vpack.c.b16 %v357, %v355
      %v378 = vpack.c.b16 %v360, %v358
      %v379 = vpack.c.b16 %v361, %v359
      %v380 = vpack.c.b16 %v364, %v362
      %v381 = vpack.c.b16 %v365, %v363
      %398 = vmatprep.subr.bf16.mxu0 %v381
      %399 = vmatpush1.bf16.msra.mxu0 %v380
      %400 = vmatprep.subr.bf16.mxu0 %v379
      %401 = vmatpush1.bf16.msra.mxu0 %v378
      %402 = vmatprep.subr.bf16.mxu0 %v377
      %403 = vmatpush1.bf16.msra.mxu0 %v376
      %404 = vmatprep.subr.bf16.mxu0 %v375
      %405 = vmatpush1.bf16.msra.mxu0 %v374
      %406 = vmatprep.subr.bf16.mxu0 %v373
      %407 = vmatpush1.bf16.msra.mxu0 %v372
      %408 = vmatprep.subr.bf16.mxu0 %v371
      %409 = vmatpush1.bf16.msra.mxu0 %v370
      %410 = vmatprep.subr.bf16.mxu0 %v369
      %411 = vmatpush1.bf16.msra.mxu0 %v368
      %412 = vmatprep.subr.bf16.mxu0 %v367
      %413 = vmatpush1.bf16.msra.mxu0 %v366
      %414 = vmatprep.subr.bf16.mxu0 0
      %415 = vmatpush2.bf16.msra.mxu0 0
      %416 = vmatprep.subr.bf16.mxu0 0
      %417 = vmatpush2.bf16.msra.mxu0 0
      %418 = vmatprep.subr.bf16.mxu0 0
      %419 = vmatpush2.bf16.msra.mxu0 0
      %420 = vmatprep.subr.bf16.mxu0 0
      %421 = vmatpush2.bf16.msra.mxu0 0
      %422 = vmatprep.subr.bf16.mxu0 0
      %423 = vmatpush2.bf16.msra.mxu0 0
      %424 = vmatprep.subr.bf16.mxu0 0
      %425 = vmatpush2.bf16.msra.mxu0 0
      %426 = vmatprep.subr.bf16.mxu0 0
      %427 = vmatpush2.bf16.msra.mxu0 0
      %428 = vmatprep.subr.bf16.mxu0 0
      %429 = vmatpush2.bf16.msra.mxu0 0
      %430 = vmatprep.mubr.bf16.mxu0 0
      %431 = vmatmul.mubr.bf16.gmra.mxu0 %v316
      %v432 = vpop.f32.mrf.mxu0
      %v433 = vadd.f32 %v305, %v432
      %v434 = vpop.f32.mrf.mxu0
      %v435 = vadd.f32 %v309, %v434
      %v436 = vpop.f32.mrf.mxu0
      %v437 = vadd.f32 %v305, %v436
      %v438 = vpop.f32.mrf.mxu0
      %v439 = vadd.f32 %v309, %v438
      %440 = vdwg.mxu0
      %v441 = vmax.f32 %v433, 0.0
      %v442 = vmax.f32 %v435, 0.0
      %v443 = vmax.f32 %v437, 0.0
      %v444 = vmax.f32 %v439, 0.0
      %v445 = vld [vmem:[%s3] sm:$0xf]
      %v446 = vld [vmem:[%s3 + $0x4] sm:$0xf]
      %v447 = vld [vmem:[%s3 + $0x8] sm:$0xf]
      %v448 = vld [vmem:[%s3 + $0xc] sm:$0xf]
      %v449 = vld [vmem:[%s3 + $0x10] sm:$0xf]
      %v450 = vld [vmem:[%s3 + $0x14] sm:$0xf]
      %v451 = vld [vmem:[%s3 + $0x18] sm:$0xf]
      %v452 = vld [vmem:[%s3 + $0x1c] sm:$0xf]
      %v453 = vld [vmem:[%s3 + $0x20] sm:$0xf]
      %v454 = vld [vmem:[%s3 + $0x24] sm:$0xf]
      %v455 = vld [vmem:[%s3 + $0x28] sm:$0xf]
      %v456 = vld [vmem:[%s3 + $0x2c] sm:$0xf]
      %v457 = vld [vmem:[%s3 + $0x30] sm:$0xf]
      %v458 = vld [vmem:[%s3 + $0x34] sm:$0xf]
      %v459 = vld [vmem:[%s3 + $0x38] sm:$0xf]
      %v460 = vld [vmem:[%s3 + $0x3c] sm:$0xf]
      %v461 = vld [vmem:[%s3 + $0x40] sm:$0xf]
      %v462 = vld [vmem:[%s3 + $0x44] sm:$0xf]
      %v463 = vld [vmem:[%s3 + $0x48] sm:$0xf]
      %v464 = vld [vmem:[%s3 + $0x4c] sm:$0xf]
      %v465 = vld [vmem:[%s3 + $0x50] sm:$0xf]
      %v466 = vld [vmem:[%s3 + $0x54] sm:$0xf]
      %v467 = vld [vmem:[%s3 + $0x58] sm:$0xf]
      %v468 = vld [vmem:[%s3 + $0x5c] sm:$0xf]
      %v469 = vld [vmem:[%s3 + $0x60] sm:$0xf]
      %v470 = vld [vmem:[%s3 + $0x64] sm:$0xf]
      %v471 = vld [vmem:[%s3 + $0x68] sm:$0xf]
      %v472 = vld [vmem:[%s3 + $0x6c] sm:$0xf]
      %v473 = vld [vmem:[%s3 + $0x70] sm:$0xf]
      %v474 = vld [vmem:[%s3 + $0x74] sm:$0xf]
      %v475 = vld [vmem:[%s3 + $0x78] sm:$0xf]
      %v476 = vld [vmem:[%s3 + $0x7c] sm:$0xf]
      %v477 = vpack.c.bf16 %v443, %v441
      %v478 = vpack.c.bf16 %v444, %v442
      %v479 = vld [vmem:[%s4] sm:$0x1]
      %v481 = vlaneseq
      %v482 = vshrl.u32 %v481, 7
      %v483 = vsub.s32 0, %v482
      %v484 = vrot.slane %v479, %v483
      %v518 = vunpack.c.l.b16 %v445
      %v519 = vunpack.c.l.b16 %v446
      %v520 = vunpack.c.l.b16 %v447
      %v521 = vunpack.c.l.b16 %v448
      %v522 = vunpack.c.l.b16 %v449
      %v523 = vunpack.c.l.b16 %v450
      %v524 = vunpack.c.l.b16 %v451
      %v525 = vunpack.c.l.b16 %v452
      %v526 = vunpack.c.l.b16 %v453
      %v527 = vunpack.c.l.b16 %v454
      %v528 = vunpack.c.l.b16 %v455
      %v529 = vunpack.c.l.b16 %v456
      %v530 = vunpack.c.l.b16 %v457
      %v531 = vunpack.c.l.b16 %v458
      %v532 = vunpack.c.l.b16 %v459
      %v533 = vunpack.c.l.b16 %v460
      %v534 = vunpack.c.l.b16 %v461
      %v535 = vunpack.c.l.b16 %v462
      %v536 = vunpack.c.l.b16 %v463
      %v537 = vunpack.c.l.b16 %v464
      %v538 = vunpack.c.l.b16 %v465
      %v539 = vunpack.c.l.b16 %v466
      %v540 = vunpack.c.l.b16 %v467
      %v541 = vunpack.c.l.b16 %v468
      %v542 = vunpack.c.l.b16 %v469
      %v543 = vunpack.c.l.b16 %v470
      %v544 = vunpack.c.l.b16 %v471
      %v545 = vunpack.c.l.b16 %v472
      %v546 = vunpack.c.l.b16 %v473
      %v547 = vunpack.c.l.b16 %v474
      %v548 = vunpack.c.l.b16 %v475
      %v549 = vunpack.c.l.b16 %v476
      %v550 = vpack.c.b16 %v519, %v518
      %v551 = vpack.c.b16 %v521, %v520
      %v552 = vpack.c.b16 %v523, %v522
      %v553 = vpack.c.b16 %v525, %v524
      %v554 = vpack.c.b16 %v527, %v526
      %v555 = vpack.c.b16 %v529, %v528
      %v556 = vpack.c.b16 %v531, %v530
      %v557 = vpack.c.b16 %v533, %v532
      %v558 = vpack.c.b16 %v535, %v534
      %v559 = vpack.c.b16 %v537, %v536
      %v560 = vpack.c.b16 %v539, %v538
      %v561 = vpack.c.b16 %v541, %v540
      %v562 = vpack.c.b16 %v543, %v542
      %v563 = vpack.c.b16 %v545, %v544
      %v564 = vpack.c.b16 %v547, %v546
      %v565 = vpack.c.b16 %v549, %v548
      %582 = vmatprep.subr.bf16.mxu0 0
      %583 = vmatpush1.bf16.msra.mxu0 %v557
      %584 = vmatprep.subr.bf16.mxu0 0
      %585 = vmatpush1.bf16.msra.mxu0 %v556
      %586 = vmatprep.subr.bf16.mxu0 0
      %587 = vmatpush1.bf16.msra.mxu0 %v555
      %588 = vmatprep.subr.bf16.mxu0 0
      %589 = vmatpush1.bf16.msra.mxu0 %v554
      %590 = vmatprep.subr.bf16.mxu0 0
      %591 = vmatpush1.bf16.msra.mxu0 %v553
      %592 = vmatprep.subr.bf16.mxu0 0
      %593 = vmatpush1.bf16.msra.mxu0 %v552
      %594 = vmatprep.subr.bf16.mxu0 0
      %595 = vmatpush1.bf16.msra.mxu0 %v551
      %596 = vmatprep.subr.bf16.mxu0 0
      %597 = vmatpush1.bf16.msra.mxu0 %v550
      %598 = vmatprep.subr.bf16.mxu0 0
      %599 = vmatpush2.bf16.msra.mxu0 %v565
      %600 = vmatprep.subr.bf16.mxu0 0
      %601 = vmatpush2.bf16.msra.mxu0 %v564
      %602 = vmatprep.subr.bf16.mxu0 0
      %603 = vmatpush2.bf16.msra.mxu0 %v563
      %604 = vmatprep.subr.bf16.mxu0 0
      %605 = vmatpush2.bf16.msra.mxu0 %v562
      %606 = vmatprep.subr.bf16.mxu0 0
      %607 = vmatpush2.bf16.msra.mxu0 %v561
      %608 = vmatprep.subr.bf16.mxu0 0
      %609 = vmatpush2.bf16.msra.mxu0 %v560
      %610 = vmatprep.subr.bf16.mxu0 0
      %611 = vmatpush2.bf16.msra.mxu0 %v559
      %612 = vmatprep.subr.bf16.mxu0 0
      %613 = vmatpush2.bf16.msra.mxu0 %v558
      %614 = vmatprep.mubr.bf16.mxu0 %v478
      %615 = vmatmul.mubr.bf16.gmra.mxu0 %v477
      %v616 = vpop.f32.mrf.mxu0
      %v617 = vadd.f32 %v484, %v616
      %v618 = vpop.f32.mrf.mxu0
      %v619 = vpop.f32.mrf.mxu0
      %v620 = vadd.f32 %v484, %v619
      %v621 = vpop.f32.mrf.mxu0
      %622 = vdwg.mxu0
      %v623 = vpack.c.bf16 %v620, %v617
      %v625 = vunpack.c.l.b16 %v623
      %v626 = vunpack.c.h.b16 %v623
      %v627 = vpack.c.b16 %v625, %v625
      %v628 = vpack.c.b16 %v626, %v626
      %631 = vst [vmem:[%s279] sm:$0xf] %v627
      %632 = vst [vmem:[%s279 + $0x4] sm:$0xf] %v628
      %s633 = smul.u32 2, %s21
      %p634 = scmp.lt.s32.totalorder %s20, 1
      %s635 = scalar_select %p634, %s20, 1
      %p636 = scmp.lt.s32.totalorder %s633, 1
      %s637 = scalar_select %p636, %s633, 1
      %s638 = smul.addr %s635, 2
      %s639 = sadd.s32 %s637, %s638
      %s640 = smul.addr %s639, 4
      %s641 = scalar_lea.vmem %s5, %s640
      // Predicated region
      $region41: #{spd_forward.7} parent=39 // pred_check
        %p642 = pneg %p165
      $region42: #{spd_forward.7} parent=39 // pred_check_branch
        %644 = sbr.rel (%p642) target = $region44
      $region43: #{spd_forward.7} parent=39 // pred_region
        %s645 = smul.u32 2, %s21
      $region44: #{spd_forward.7} parent=39 // pred_fallthru
        _
    $region40: #{spd_forward.7} parent=5 // pred_fallthru
      _
    %p646 = scmp.le.s32.totalorder 2, %s11
    // Predicated region
    $region45: #{spd_forward.7} parent=5 // pred_check
      %p647 = pneg %p646
    $region46: #{spd_forward.7} parent=5 // pred_check_branch
      %649 = sbr.rel (%p647) target = $region48
    $region47: #{spd_forward.7} parent=5 // pred_region
      %s650 = ssub.s32 %s11, 2
      // Predicated region
      $region49: #{spd_forward.7} parent=47 // pred_check
        %p651 = pneg %p171
      $region50: #{spd_forward.7} parent=47 // pred_check_branch
        %653 = sbr.rel (%p651) target = $region52
      $region51: #{spd_forward.7} parent=47 // pred_region
        %s654 = smul.u32 2, %s23
        %p655 = scmp.lt.s32.totalorder %s22, 1
        %s656 = scalar_select %p655, %s22, 1
        %p657 = scmp.lt.s32.totalorder %s654, 1
        %s658 = scalar_select %p657, %s654, 1
        %s659 = smul.addr %s656, 2
        %s660 = sadd.s32 %s658, %s659
        %s661 = smul.addr %s660, 4
        %s662 = scalar_lea.vmem %s5, %s661
      $region52: #{spd_forward.7} parent=47 // pred_fallthru
        _
    $region48: #{spd_forward.7} parent=5 // pred_fallthru
      _
  $region6: #{spd_forward.7} parent=0 // loop_footer
    %s15 = sadd.s32 1, %s11
  $region7: #{spd_forward.7} parent=0 // loop_footer_branch
    %10 = sbr.rel target = $region3
  $region8: #{spd_forward.7} parent=0 // loop_exit
    _

// kernel: neg.1
$region0: #{neg.1}
  #allocation0 [shape = 's32[1]{0}', space=sflag, size = 0x4, scoped, tag = 'scoped memory for neg.1']
  %s0 = inlined_call_operand.vmem [shape: bf16[2,16,16], index: 0, kind: input, shape index: {}]
  %s1 = inlined_call_operand.vmem [shape: bf16[2,16,16], index: 1, kind: output, shape index: {}]
  %v2 = vld [vmem:[%s0] sm:$0xf]
  %v3 = vunpack.c.l.bf16 %v2
  %v4 = vunpack.c.h.bf16 %v2
  %5 = xla_tuple %v3
  %6 = xla_tuple %5
  %v7 = vxor.u32 %v3, 2147483648
  %8 = xla_tuple %v7
  %v9 = vpack.c.bf16 0.0, %v7
  %10 = vst [vmem:[%s1] sm:$0xf] %v9
  %s11 = scalar_lea.vmem %s0, 8
  %v12 = vld [vmem:[%s11] sm:$0xf]
  %v13 = vunpack.c.l.bf16 %v12
  %v14 = vunpack.c.h.bf16 %v12
  %15 = xla_tuple %v13
  %16 = xla_tuple %15
  %v17 = vxor.u32 %v13, 2147483648
  %18 = xla_tuple %v17
  %s19 = scalar_lea.vmem %s1, 8
  %v20 = vpack.c.bf16 0.0, %v17
  %21 = vst [vmem:[%s19] sm:$0xf] %v20
  %s22 = scalar_lea.vmem %s0, 4
  %v23 = vld [vmem:[%s22] sm:$0xf]
  %v24 = vunpack.c.l.bf16 %v23
  %v25 = vunpack.c.h.bf16 %v23
  %26 = xla_tuple %v24
  %27 = xla_tuple %26
  %v28 = vxor.u32 %v24, 2147483648
  %29 = xla_tuple %v28
  %s30 = scalar_lea.vmem %s1, 4
  %v31 = vpack.c.bf16 0.0, %v28
  %32 = vst [vmem:[%s30] sm:$0xf] %v31
  %s33 = scalar_lea.vmem %s0, 12
  %v34 = vld [vmem:[%s33] sm:$0xf]
  %v35 = vunpack.c.l.bf16 %v34
  %v36 = vunpack.c.h.bf16 %v34
  %37 = xla_tuple %v35
  %38 = xla_tuple %37
  %v39 = vxor.u32 %v35, 2147483648
  %40 = xla_tuple %v39
  %s41 = scalar_lea.vmem %s1, 12
  %v42 = vpack.c.bf16 0.0, %v39
  %43 = vst [vmem:[%s41] sm:$0xf] %v42

// kernel: spd_forward.8
$region0: #{spd_forward.8}
  #allocation0 [shape = 'u32[]', space=smem, size = 0x4, offset = 0x4, fixed_abs, tag = 'smem constant byte address 0x4 - core index']
  #allocation1 [shape = 'u32[144,128]{1,0:T(1,128)}', space=vmem, size = 0x12000, scoped, tag = 'internal scratch']
  %s0 = inlined_call_operand.vmem [shape: bf16[2,16,128], index: 0, kind: input, shape index: {}]
  %s1 = inlined_call_operand.vmem [shape: bf16[2,16,128], index: 1, kind: input, shape index: {}]
  %s2 = inlined_call_operand.vmem [shape: bf16[128,320], index: 2, kind: input, shape index: {}]
  %s3 = inlined_call_operand.vmem [shape: bf16[128,320], index: 3, kind: input, shape index: {}]
  %s4 = inlined_call_operand.vmem [shape: f32[1,128], index: 4, kind: input, shape index: {}]
  %s5 = inlined_call_operand.vmem [shape: f32[1,128], index: 5, kind: input, shape index: {}]
  %s6 = inlined_call_operand.vmem [shape: f32[1,64], index: 6, kind: input, shape index: {}]
  %s7 = inlined_call_operand.vmem [shape: f32[1,64], index: 7, kind: input, shape index: {}]
  %s8 = inlined_call_operand.vmem [shape: bf16[128,128], index: 8, kind: input, shape index: {}]
  %s9 = inlined_call_operand.vmem [shape: f32[1,128], index: 9, kind: input, shape index: {}]
  %s10 = inlined_call_operand.vmem [shape: bf16[128,64], index: 10, kind: input, shape index: {}]
  %s11 = inlined_call_operand.vmem [shape: f32[1,64], index: 11, kind: input, shape index: {}]
  %s12 = inlined_call_operand.vmem [shape: bf16[2,16,64], index: 12, kind: output, shape index: {0}]
  %s13 = inlined_call_operand.vmem [shape: bf16[2,16,256], index: 13, kind: output, shape index: {1}]
  %14 = xla_tuple %s12, %s13
  %s15 = sld [smem:[#allocation0]]
  $region89: #{spd_forward.8} parent=0
    _
  %s17 = ssub.s32 1, %s15
  %s18 = scalar_select 0, %s17, %s15
  loop: start=0, step=1, limit=4
  $region2: #{spd_forward.8} parent=0 // loop_pre_header
    _
  $region3: #{spd_forward.8} parent=0 // loop_header
    %s20 = sphi 0, %s24
    %p21 = scmp.ge.s32.totalorder %s20, 4
    %s27 = sphi 0, %s39
    %s28 = sphi 0, %s35
    %s29 = sphi 0, %s27
    %s30 = sphi 0, %s28
    %s31 = sphi 0, %s29
    %s32 = sphi 0, %s30
    %s44 = sphi 0, %s46
    %s47 = sphi 0, %s44
    %s48 = sphi 0, %s47
    %s64 = sphi 0, %s48
    %s72 = sphi 0, %s74
    %s75 = sphi 0, %s72
    %s76 = sphi 0, %s75
    %s92 = sphi 0, %s76
    %s96 = sphi 0, %s96
    %s98 = sphi 0, %s96
    %s99 = sphi 0, %s98
    %s113 = sphi 0, %s99
    %s117 = sphi 0, %s117
    %s119 = sphi 0, %s117
    %s120 = sphi 0, %s119
    %s134 = sphi 0, %s120
    %s138 = sphi 0, %s138
    %s140 = sphi 0, %s138
    %s141 = sphi 0, %s140
    %s155 = sphi 0, %s141
    %s159 = sphi 0, %s159
    %s161 = sphi 0, %s159
    %s162 = sphi 0, %s161
    %s176 = sphi 0, %s162
    %s180 = sphi 0, %s180
    %s182 = sphi 0, %s180
    %s183 = sphi 0, %s182
    %s197 = sphi 0, %s183
    %s201 = sphi 0, %s201
    %s203 = sphi 0, %s201
    %s204 = sphi 0, %s203
    %s218 = sphi 0, %s204
    %s222 = sphi 0, %s222
    %s224 = sphi 0, %s222
    %s225 = sphi 0, %s224
    %s239 = sphi 0, %s225
    %s243 = sphi 0, %s243
    %s245 = sphi 0, %s243
    %s246 = sphi 0, %s245
    %s260 = sphi 0, %s246
    %s264 = sphi 0, %s264
    %s266 = sphi 0, %s264
    %s267 = sphi 0, %s266
    %s281 = sphi 0, %s267
    %s285 = sphi 0, %s285
    %s287 = sphi 0, %s285
    %s288 = sphi 0, %s287
    %s302 = sphi 0, %s288
    %s310 = sphi 0, %s312
    %s313 = sphi 0, %s310
    %s314 = sphi 0, %s313
    %s330 = sphi 0, %s314
    %s338 = sphi 0, %s340
    %s341 = sphi 0, %s338
    %s342 = sphi 0, %s341
    %s358 = sphi 0, %s342
  $region4: #{spd_forward.8} parent=0 // loop_header_branch
    %23 = sbr.rel (%p21) target = $region8
  $region5: #{spd_forward.8} parent=0 // loop_body
    %s25 = ssub.s32 %s20, 1
    %s26 = ssub.s32 %s20, 2
    %s33 = sadd.s32 1, %s28
    %p34 = scmp.ge.s32.totalorder %s33, 1
    %s35 = scalar_select %p34, 0, %s33
    %s36 = sadd.s32 1, %s27
    %s37 = scalar_select %p34, %s36, %s27
    %p38 = scmp.ge.s32.totalorder %s37, 2
    %s39 = scalar_select %p38, 0, %s37
    %s40 = ssub.s32 %s27, %s39
    %s41 = ssub.s32 %s28, %s35
    %s42 = sor.u32 %s40, %s41
    %p43 = scmp.eq.s32.totalorder %s42, 0
    %s45 = sadd.s32 %s44, 1
    %s46 = scalar_select %p43, %s44, %s45
    %p49 = pneg %p43
    %p50 = scmp.eq.s32.totalorder %s20, 1
    %p51 = por %p49, %p50
    %p52 = scmp.ne.s32.totalorder %s44, %s47
    %p53 = scmp.eq.s32.totalorder %s20, 0
    %p54 = por %p52, %p53
    %p55 = scmp.ne.s32.totalorder %s44, %s47
    %p56 = scmp.eq.s32.totalorder %s25, 1
    %p57 = por %p55, %p56
    %p58 = scmp.ne.s32.totalorder %s47, %s48
    %p59 = scmp.eq.s32.totalorder %s25, 0
    %p60 = por %p58, %p59
    %p61 = scmp.ne.s32.totalorder %s47, %s48
    %p62 = scmp.eq.s32.totalorder %s26, 1
    %p63 = por %p61, %p62
    %p65 = scmp.ne.s32.totalorder %s48, %s64
    %p66 = scmp.eq.s32.totalorder %s26, 0
    %p67 = por %p65, %p66
    %s68 = ssub.s32 %s27, %s39
    %s69 = ssub.s32 %s28, %s35
    %s70 = sor.u32 %s68, %s69
    %p71 = scmp.eq.s32.totalorder %s70, 0
    %s73 = sadd.s32 %s72, 1
    %s74 = scalar_select %p71, %s72, %s73
    %p77 = pneg %p71
    %p78 = scmp.eq.s32.totalorder %s20, 1
    %p79 = por %p77, %p78
    %p80 = scmp.ne.s32.totalorder %s72, %s75
    %p81 = scmp.eq.s32.totalorder %s20, 0
    %p82 = por %p80, %p81
    %p83 = scmp.ne.s32.totalorder %s72, %s75
    %p84 = scmp.eq.s32.totalorder %s25, 1
    %p85 = por %p83, %p84
    %p86 = scmp.ne.s32.totalorder %s75, %s76
    %p87 = scmp.eq.s32.totalorder %s25, 0
    %p88 = por %p86, %p87
    %p89 = scmp.ne.s32.totalorder %s75, %s76
    %p90 = scmp.eq.s32.totalorder %s26, 1
    %p91 = por %p89, %p90
    %p93 = scmp.ne.s32.totalorder %s76, %s92
    %p94 = scmp.eq.s32.totalorder %s26, 0
    %p95 = por %p93, %p94
    %s97 = sadd.s32 %s96, 1
    %p100 = scmp.eq.s32.totalorder %s20, 1
    %p101 = scmp.ne.s32.totalorder %s96, %s98
    %p102 = scmp.eq.s32.totalorder %s20, 0
    %p103 = por %p101, %p102
    %p104 = scmp.ne.s32.totalorder %s96, %s98
    %p105 = scmp.eq.s32.totalorder %s25, 1
    %p106 = por %p104, %p105
    %p107 = scmp.ne.s32.totalorder %s98, %s99
    %p108 = scmp.eq.s32.totalorder %s25, 0
    %p109 = por %p107, %p108
    %p110 = scmp.ne.s32.totalorder %s98, %s99
    %p111 = scmp.eq.s32.totalorder %s26, 1
    %p112 = por %p110, %p111
    %p114 = scmp.ne.s32.totalorder %s99, %s113
    %p115 = scmp.eq.s32.totalorder %s26, 0
    %p116 = por %p114, %p115
    %s118 = sadd.s32 %s117, 1
    %p121 = scmp.eq.s32.totalorder %s20, 1
    %p122 = scmp.ne.s32.totalorder %s117, %s119
    %p123 = scmp.eq.s32.totalorder %s20, 0
    %p124 = por %p122, %p123
    %p125 = scmp.ne.s32.totalorder %s117, %s119
    %p126 = scmp.eq.s32.totalorder %s25, 1
    %p127 = por %p125, %p126
    %p128 = scmp.ne.s32.totalorder %s119, %s120
    %p129 = scmp.eq.s32.totalorder %s25, 0
    %p130 = por %p128, %p129
    %p131 = scmp.ne.s32.totalorder %s119, %s120
    %p132 = scmp.eq.s32.totalorder %s26, 1
    %p133 = por %p131, %p132
    %p135 = scmp.ne.s32.totalorder %s120, %s134
    %p136 = scmp.eq.s32.totalorder %s26, 0
    %p137 = por %p135, %p136
    %s139 = sadd.s32 %s138, 1
    %p142 = scmp.eq.s32.totalorder %s20, 1
    %p143 = scmp.ne.s32.totalorder %s138, %s140
    %p144 = scmp.eq.s32.totalorder %s20, 0
    %p145 = por %p143, %p144
    %p146 = scmp.ne.s32.totalorder %s138, %s140
    %p147 = scmp.eq.s32.totalorder %s25, 1
    %p148 = por %p146, %p147
    %p149 = scmp.ne.s32.totalorder %s140, %s141
    %p150 = scmp.eq.s32.totalorder %s25, 0
    %p151 = por %p149, %p150
    %p152 = scmp.ne.s32.totalorder %s140, %s141
    %p153 = scmp.eq.s32.totalorder %s26, 1
    %p154 = por %p152, %p153
    %p156 = scmp.ne.s32.totalorder %s141, %s155
    %p157 = scmp.eq.s32.totalorder %s26, 0
    %p158 = por %p156, %p157
    %s160 = sadd.s32 %s159, 1
    %p163 = scmp.eq.s32.totalorder %s20, 1
    %p164 = scmp.ne.s32.totalorder %s159, %s161
    %p165 = scmp.eq.s32.totalorder %s20, 0
    %p166 = por %p164, %p165
    %p167 = scmp.ne.s32.totalorder %s159, %s161
    %p168 = scmp.eq.s32.totalorder %s25, 1
    %p169 = por %p167, %p168
    %p170 = scmp.ne.s32.totalorder %s161, %s162
    %p171 = scmp.eq.s32.totalorder %s25, 0
    %p172 = por %p170, %p171
    %p173 = scmp.ne.s32.totalorder %s161, %s162
    %p174 = scmp.eq.s32.totalorder %s26, 1
    %p175 = por %p173, %p174
    %p177 = scmp.ne.s32.totalorder %s162, %s176
    %p178 = scmp.eq.s32.totalorder %s26, 0
    %p179 = por %p177, %p178
    %s181 = sadd.s32 %s180, 1
    %p184 = scmp.eq.s32.totalorder %s20, 1
    %p185 = scmp.ne.s32.totalorder %s180, %s182
    %p186 = scmp.eq.s32.totalorder %s20, 0
    %p187 = por %p185, %p186
    %p188 = scmp.ne.s32.totalorder %s180, %s182
    %p189 = scmp.eq.s32.totalorder %s25, 1
    %p190 = por %p188, %p189
    %p191 = scmp.ne.s32.totalorder %s182, %s183
    %p192 = scmp.eq.s32.totalorder %s25, 0
    %p193 = por %p191, %p192
    %p194 = scmp.ne.s32.totalorder %s182, %s183
    %p195 = scmp.eq.s32.totalorder %s26, 1
    %p196 = por %p194, %p195
    %p198 = scmp.ne.s32.totalorder %s183, %s197
    %p199 = scmp.eq.s32.totalorder %s26, 0
    %p200 = por %p198, %p199
    %s202 = sadd.s32 %s201, 1
    %p205 = scmp.eq.s32.totalorder %s20, 1
    %p206 = scmp.ne.s32.totalorder %s201, %s203
    %p207 = scmp.eq.s32.totalorder %s20, 0
    %p208 = por %p206, %p207
    %p209 = scmp.ne.s32.totalorder %s201, %s203
    %p210 = scmp.eq.s32.totalorder %s25, 1
    %p211 = por %p209, %p210
    %p212 = scmp.ne.s32.totalorder %s203, %s204
    %p213 = scmp.eq.s32.totalorder %s25, 0
    %p214 = por %p212, %p213
    %p215 = scmp.ne.s32.totalorder %s203, %s204
    %p216 = scmp.eq.s32.totalorder %s26, 1
    %p217 = por %p215, %p216
    %p219 = scmp.ne.s32.totalorder %s204, %s218
    %p220 = scmp.eq.s32.totalorder %s26, 0
    %p221 = por %p219, %p220
    %s223 = sadd.s32 %s222, 1
    %p226 = scmp.eq.s32.totalorder %s20, 1
    %p227 = scmp.ne.s32.totalorder %s222, %s224
    %p228 = scmp.eq.s32.totalorder %s20, 0
    %p229 = por %p227, %p228
    %p230 = scmp.ne.s32.totalorder %s222, %s224
    %p231 = scmp.eq.s32.totalorder %s25, 1
    %p232 = por %p230, %p231
    %p233 = scmp.ne.s32.totalorder %s224, %s225
    %p234 = scmp.eq.s32.totalorder %s25, 0
    %p235 = por %p233, %p234
    %p236 = scmp.ne.s32.totalorder %s224, %s225
    %p237 = scmp.eq.s32.totalorder %s26, 1
    %p238 = por %p236, %p237
    %p240 = scmp.ne.s32.totalorder %s225, %s239
    %p241 = scmp.eq.s32.totalorder %s26, 0
    %p242 = por %p240, %p241
    %s244 = sadd.s32 %s243, 1
    %p247 = scmp.eq.s32.totalorder %s20, 1
    %p248 = scmp.ne.s32.totalorder %s243, %s245
    %p249 = scmp.eq.s32.totalorder %s20, 0
    %p250 = por %p248, %p249
    %p251 = scmp.ne.s32.totalorder %s243, %s245
    %p252 = scmp.eq.s32.totalorder %s25, 1
    %p253 = por %p251, %p252
    %p254 = scmp.ne.s32.totalorder %s245, %s246
    %p255 = scmp.eq.s32.totalorder %s25, 0
    %p256 = por %p254, %p255
    %p257 = scmp.ne.s32.totalorder %s245, %s246
    %p258 = scmp.eq.s32.totalorder %s26, 1
    %p259 = por %p257, %p258
    %p261 = scmp.ne.s32.totalorder %s246, %s260
    %p262 = scmp.eq.s32.totalorder %s26, 0
    %p263 = por %p261, %p262
    %s265 = sadd.s32 %s264, 1
    %p268 = scmp.eq.s32.totalorder %s20, 1
    %p269 = scmp.ne.s32.totalorder %s264, %s266
    %p270 = scmp.eq.s32.totalorder %s20, 0
    %p271 = por %p269, %p270
    %p272 = scmp.ne.s32.totalorder %s264, %s266
    %p273 = scmp.eq.s32.totalorder %s25, 1
    %p274 = por %p272, %p273
    %p275 = scmp.ne.s32.totalorder %s266, %s267
    %p276 = scmp.eq.s32.totalorder %s25, 0
    %p277 = por %p275, %p276
    %p278 = scmp.ne.s32.totalorder %s266, %s267
    %p279 = scmp.eq.s32.totalorder %s26, 1
    %p280 = por %p278, %p279
    %p282 = scmp.ne.s32.totalorder %s267, %s281
    %p283 = scmp.eq.s32.totalorder %s26, 0
    %p284 = por %p282, %p283
    %s286 = sadd.s32 %s285, 1
    %p289 = scmp.eq.s32.totalorder %s20, 1
    %p290 = scmp.ne.s32.totalorder %s285, %s287
    %p291 = scmp.eq.s32.totalorder %s20, 0
    %p292 = por %p290, %p291
    %p293 = scmp.ne.s32.totalorder %s285, %s287
    %p294 = scmp.eq.s32.totalorder %s25, 1
    %p295 = por %p293, %p294
    %p296 = scmp.ne.s32.totalorder %s287, %s288
    %p297 = scmp.eq.s32.totalorder %s25, 0
    %p298 = por %p296, %p297
    %p299 = scmp.ne.s32.totalorder %s287, %s288
    %p300 = scmp.eq.s32.totalorder %s26, 1
    %p301 = por %p299, %p300
    %p303 = scmp.ne.s32.totalorder %s288, %s302
    %p304 = scmp.eq.s32.totalorder %s26, 0
    %p305 = por %p303, %p304
    %s306 = ssub.s32 %s27, %s39
    %s307 = ssub.s32 %s28, %s35
    %s308 = sor.u32 %s306, %s307
    %p309 = scmp.eq.s32.totalorder %s308, 0
    %s311 = sadd.s32 %s310, 1
    %s312 = scalar_select %p309, %s310, %s311
    %p315 = pneg %p309
    %p316 = scmp.eq.s32.totalorder %s20, 1
    %p317 = por %p315, %p316
    %p318 = scmp.ne.s32.totalorder %s310, %s313
    %p319 = scmp.eq.s32.totalorder %s20, 0
    %p320 = por %p318, %p319
    %p321 = scmp.ne.s32.totalorder %s310, %s313
    %p322 = scmp.eq.s32.totalorder %s25, 1
    %p323 = por %p321, %p322
    %p324 = scmp.ne.s32.totalorder %s313, %s314
    %p325 = scmp.eq.s32.totalorder %s25, 0
    %p326 = por %p324, %p325
    %p327 = scmp.ne.s32.totalorder %s313, %s314
    %p328 = scmp.eq.s32.totalorder %s26, 1
    %p329 = por %p327, %p328
    %p331 = scmp.ne.s32.totalorder %s314, %s330
    %p332 = scmp.eq.s32.totalorder %s26, 0
    %p333 = por %p331, %p332
    %s334 = ssub.s32 %s27, %s39
    %s335 = ssub.s32 %s28, %s35
    %s336 = sor.u32 %s334, %s335
    %p337 = scmp.eq.s32.totalorder %s336, 0
    %s339 = sadd.s32 %s338, 1
    %s340 = scalar_select %p337, %s338, %s339
    %p343 = pneg %p337
    %p344 = scmp.eq.s32.totalorder %s20, 1
    %p345 = por %p343, %p344
    %p346 = scmp.ne.s32.totalorder %s338, %s341
    %p347 = scmp.eq.s32.totalorder %s20, 0
    %p348 = por %p346, %p347
    %p349 = scmp.ne.s32.totalorder %s338, %s341
    %p350 = scmp.eq.s32.totalorder %s25, 1
    %p351 = por %p349, %p350
    %p352 = scmp.ne.s32.totalorder %s341, %s342
    %p353 = scmp.eq.s32.totalorder %s25, 0
    %p354 = por %p352, %p353
    %p355 = scmp.ne.s32.totalorder %s341, %s342
    %p356 = scmp.eq.s32.totalorder %s26, 1
    %p357 = por %p355, %p356
    %p359 = scmp.ne.s32.totalorder %s342, %s358
    %p360 = scmp.eq.s32.totalorder %s26, 0
    %p361 = por %p359, %p360
    %p362 = scmp.le.s32.totalorder 1, %s20
    %p363 = scmp.lt.s32.totalorder %s20, 3
    %p364 = pnand %p362, %p363
    %p365 = pneg %p364
    // Predicated region
    $region9: #{spd_forward.8} parent=5 // pred_check
      _
    $region10: #{spd_forward.8} parent=5 // pred_check_branch
      %367 = sbr.rel (%p364) target = $region12
    $region11: #{spd_forward.8} parent=5 // pred_region
      %s368 = ssub.s32 %s20, 1
      // Predicated region
      $region13: #{spd_forward.8} parent=11 // pred_check
        %p369 = pneg %p109
      $region14: #{spd_forward.8} parent=11 // pred_check_branch
        %371 = sbr.rel (%p369) target = $region16
      $region15: #{spd_forward.8} parent=11 // pred_region
        _
      $region16: #{spd_forward.8} parent=11 // pred_fallthru
        _
      // Predicated region
      $region17: #{spd_forward.8} parent=11 // pred_check
        %p372 = pneg %p130
      $region18: #{spd_forward.8} parent=11 // pred_check_branch
        %374 = sbr.rel (%p372) target = $region20
      $region19: #{spd_forward.8} parent=11 // pred_region
        _
      $region20: #{spd_forward.8} parent=11 // pred_fallthru
        _
      // Predicated region
      $region21: #{spd_forward.8} parent=11 // pred_check
        %p375 = pneg %p151
      $region22: #{spd_forward.8} parent=11 // pred_check_branch
        %377 = sbr.rel (%p375) target = $region24
      $region23: #{spd_forward.8} parent=11 // pred_region
        _
      $region24: #{spd_forward.8} parent=11 // pred_fallthru
        _
      // Predicated region
      $region25: #{spd_forward.8} parent=11 // pred_check
        %p378 = pneg %p172
      $region26: #{spd_forward.8} parent=11 // pred_check_branch
        %380 = sbr.rel (%p378) target = $region28
      $region27: #{spd_forward.8} parent=11 // pred_region
        _
      $region28: #{spd_forward.8} parent=11 // pred_fallthru
        _
      // Predicated region
      $region29: #{spd_forward.8} parent=11 // pred_check
        %p381 = pneg %p193
      $region30: #{spd_forward.8} parent=11 // pred_check_branch
        %383 = sbr.rel (%p381) target = $region32
      $region31: #{spd_forward.8} parent=11 // pred_region
        _
      $region32: #{spd_forward.8} parent=11 // pred_fallthru
        _
      // Predicated region
      $region33: #{spd_forward.8} parent=11 // pred_check
        %p384 = pneg %p214
      $region34: #{spd_forward.8} parent=11 // pred_check_branch
        %386 = sbr.rel (%p384) target = $region36
      $region35: #{spd_forward.8} parent=11 // pred_region
        _
      $region36: #{spd_forward.8} parent=11 // pred_fallthru
        _
      // Predicated region
      $region37: #{spd_forward.8} parent=11 // pred_check
        %p387 = pneg %p235
      $region38: #{spd_forward.8} parent=11 // pred_check_branch
        %389 = sbr.rel (%p387) target = $region40
      $region39: #{spd_forward.8} parent=11 // pred_region
        _
      $region40: #{spd_forward.8} parent=11 // pred_fallthru
        _
      // Predicated region
      $region41: #{spd_forward.8} parent=11 // pred_check
        %p390 = pneg %p256
      $region42: #{spd_forward.8} parent=11 // pred_check_branch
        %392 = sbr.rel (%p390) target = $region44
      $region43: #{spd_forward.8} parent=11 // pred_region
        _
      $region44: #{spd_forward.8} parent=11 // pred_fallthru
        _
      // Predicated region
      $region45: #{spd_forward.8} parent=11 // pred_check
        %p393 = pneg %p277
      $region46: #{spd_forward.8} parent=11 // pred_check_branch
        %395 = sbr.rel (%p393) target = $region48
      $region47: #{spd_forward.8} parent=11 // pred_region
        _
      $region48: #{spd_forward.8} parent=11 // pred_fallthru
        _
      // Predicated region
      $region49: #{spd_forward.8} parent=11 // pred_check
        %p396 = pneg %p298
      $region50: #{spd_forward.8} parent=11 // pred_check_branch
        %398 = sbr.rel (%p396) target = $region52
      $region51: #{spd_forward.8} parent=11 // pred_region
        _
      $region52: #{spd_forward.8} parent=11 // pred_fallthru
        _
    $region12: #{spd_forward.8} parent=5 // pred_fallthru
      _
    %p399 = scmp.lt.s32.totalorder %s20, 2
    // Predicated region
    $region53: #{spd_forward.8} parent=5 // pred_check
      %p400 = pneg %p399
    $region54: #{spd_forward.8} parent=5 // pred_check_branch
      %402 = sbr.rel (%p400) target = $region56
    $region55: #{spd_forward.8} parent=5 // pred_region
      // Predicated region
      $region57: #{spd_forward.8} parent=55 // pred_check
        %p403 = pneg %p54
      $region58: #{spd_forward.8} parent=55 // pred_check_branch
        %405 = sbr.rel (%p403) target = $region60
      $region59: #{spd_forward.8} parent=55 // pred_region
        %s406 = smul.u32 2, %s28
        %p407 = scmp.lt.s32.totalorder %s27, 1
        %s408 = scalar_select %p407, %s27, 1
        %p409 = scmp.lt.s32.totalorder %s406, 1
        %s410 = scalar_select %p409, %s406, 1
        %s411 = smul.addr %s408, 2
        %s412 = sadd.s32 %s410, %s411
        %s413 = smul.addr %s412, 4
        %s414 = scalar_lea.vmem %s0, %s413
        %s415 = smul.u32 2, %s28
      $region60: #{spd_forward.8} parent=55 // pred_fallthru
        _
      // Predicated region
      $region61: #{spd_forward.8} parent=55 // pred_check
        %p416 = pneg %p82
      $region62: #{spd_forward.8} parent=55 // pred_check_branch
        %418 = sbr.rel (%p416) target = $region64
      $region63: #{spd_forward.8} parent=55 // pred_region
        %s419 = smul.u32 2, %s28
        %p420 = scmp.lt.s32.totalorder %s27, 1
        %s421 = scalar_select %p420, %s27, 1
        %p422 = scmp.lt.s32.totalorder %s419, 1
        %s423 = scalar_select %p422, %s419, 1
        %s424 = smul.addr %s421, 2
        %s425 = sadd.s32 %s423, %s424
        %s426 = smul.addr %s425, 4
        %s427 = scalar_lea.vmem %s1, %s426
        %s428 = smul.u32 2, %s28
      $region64: #{spd_forward.8} parent=55 // pred_fallthru
        _
    $region56: #{spd_forward.8} parent=5 // pred_fallthru
      _
    %p429 = scmp.le.s32.totalorder 1, %s20
    %p430 = scmp.lt.s32.totalorder %s20, 3
    %p431 = pnand %p429, %p430
    %p432 = pneg %p431
    // Predicated region
    $region65: #{spd_forward.8} parent=5 // pred_check
      _
    $region66: #{spd_forward.8} parent=5 // pred_check_branch
      %434 = sbr.rel (%p431) target = $region68
    $region67: #{spd_forward.8} parent=5 // pred_region
      %s435 = ssub.s32 %s20, 1
      %s436 = smul.u32 2, %s30
      %p437 = scmp.lt.s32.totalorder %s29, 1
      %s438 = scalar_select %p437, %s29, 1
      %p439 = scmp.lt.s32.totalorder %s436, 1
      %s440 = scalar_select %p439, %s436, 1
      %s441 = smul.addr %s438, 2
      %s442 = sadd.s32 %s440, %s441
      %s443 = smul.addr %s442, 4
      %s444 = scalar_lea.vmem %s0, %s443
      %p445 = pneg %p60
      %p446 = pneg %p57
      %s447 = smul.u32 2, %s30
      %p448 = scmp.lt.s32.totalorder %s29, 1
      %s449 = scalar_select %p448, %s29, 1
      %p450 = scmp.lt.s32.totalorder %s447, 1
      %s451 = scalar_select %p450, %s447, 1
      %s452 = smul.addr %s449, 2
      %s453 = sadd.s32 %s451, %s452
      %s454 = smul.addr %s453, 4
      %s455 = scalar_lea.vmem %s1, %s454
      %p456 = pneg %p88
      %p457 = pneg %p85
      %p458 = pneg %p109
      %p459 = pneg %p106
      %p460 = pneg %p130
      %p461 = pneg %p127
      %p462 = pneg %p151
      %p463 = pneg %p148
      %p464 = pneg %p172
      %p465 = pneg %p169
      %p466 = pneg %p193
      %p467 = pneg %p190
      %p468 = pneg %p214
      %p469 = pneg %p211
      %p470 = pneg %p235
      %p471 = pneg %p232
      %p472 = pneg %p256
      %p473 = pneg %p253
      %p474 = pneg %p277
      %p475 = pneg %p274
      %p476 = pneg %p298
      %p477 = pneg %p295
      %p478 = pneg %p326
      %p479 = pneg %p323
      %s480 = smul.u32 2, %s30
      %p481 = scmp.lt.s32.totalorder %s29, 1
      %s482 = scalar_select %p481, %s29, 1
      %p483 = scmp.lt.s32.totalorder %s480, 1
      %s484 = scalar_select %p483, %s480, 1
      %s485 = smul.addr %s482, 2
      %s486 = sadd.s32 %s484, %s485
      %s487 = smul.addr %s486, 4
      %s488 = scalar_lea.vmem %s12, %s487
      %p489 = pneg %p354
      %p490 = pneg %p351
      %s491 = smul.u32 2, %s30
      %p492 = scmp.lt.s32.totalorder %s29, 1
      %s493 = scalar_select %p492, %s29, 1
      %p494 = scmp.lt.s32.totalorder %s491, 1
      %s495 = scalar_select %p494, %s491, 1
      %s496 = smul.addr %s495, 2
      %s497 = smul.addr %s493, 4
      %s498 = sadd.s32 %s496, %s497
      %s499 = smul.addr %s498, 4
      %s500 = scalar_lea.vmem %s13, %s499
      %s501 = smul.u32 2, %s30
      %p502 = scmp.lt.s32.totalorder %s29, 1
      %s503 = scalar_select %p502, %s29, 1
      %p504 = scmp.lt.s32.totalorder %s501, 1
      %s505 = scalar_select %p504, %s501, 1
      %s506 = smul.addr %s503, 2
      %s507 = sadd.s32 %s505, %s506
      %s508 = smul.addr %s507, 4
      %s509 = scalar_lea.vmem %s0, %s508
      %s510 = smul.u32 2, %s30
      %s511 = smul.u32 2, %s30
      %p512 = scmp.lt.s32.totalorder %s29, 1
      %s513 = scalar_select %p512, %s29, 1
      %p514 = scmp.lt.s32.totalorder %s511, 1
      %s515 = scalar_select %p514, %s511, 1
      %s516 = smul.addr %s513, 2
      %s517 = sadd.s32 %s515, %s516
      %s518 = smul.addr %s517, 4
      %s519 = scalar_lea.vmem %s1, %s518
      %s520 = smul.u32 2, %s30
      %s521 = smul.u32 2, %s30
      %p522 = scmp.lt.s32.totalorder %s29, 1
      %s523 = scalar_select %p522, %s29, 1
      %p524 = scmp.lt.s32.totalorder %s521, 1
      %s525 = scalar_select %p524, %s521, 1
      %s526 = smul.addr %s523, 2
      %s527 = sadd.s32 %s525, %s526
      %s528 = smul.addr %s527, 4
      %s529 = scalar_lea.vmem %s12, %s528
      %s530 = smul.u32 2, %s30
      %s531 = smul.u32 2, %s30
      %p532 = scmp.lt.s32.totalorder %s29, 1
      %s533 = scalar_select %p532, %s29, 1
      %p534 = scmp.lt.s32.totalorder %s531, 1
      %s535 = scalar_select %p534, %s531, 1
      %s536 = smul.addr %s535, 2
      %s537 = smul.addr %s533, 4
      %s538 = sadd.s32 %s536, %s537
      %s539 = smul.addr %s538, 4
      %s540 = scalar_lea.vmem %s13, %s539
      %s541 = smul.u32 2, %s30
      %v543 = vld [vmem:[%s509] sm:$0xf]
      %v544 = vld [vmem:[%s509 + $0x4] sm:$0xf]
      %v545 = vld [vmem:[%s519] sm:$0xf]
      %v546 = vld [vmem:[%s519 + $0x4] sm:$0xf]
      %v547 = vld [vmem:[%s2] sm:$0xff]
      %v548 = vld [vmem:[%s2 + $0x8] sm:$0xf]
      %v549 = vld [vmem:[%s2 + $0xc] sm:$0xff]
      %v550 = vld [vmem:[%s2 + $0x14] sm:$0xf]
      %v551 = vld [vmem:[%s2 + $0x18] sm:$0xff]
      %v552 = vld [vmem:[%s2 + $0x20] sm:$0xf]
      %v553 = vld [vmem:[%s2 + $0x24] sm:$0xff]
      %v554 = vld [vmem:[%s2 + $0x2c] sm:$0xf]
      %v555 = vld [vmem:[%s2 + $0x30] sm:$0xff]
      %v556 = vld [vmem:[%s2 + $0x38] sm:$0xf]
      %v557 = vld [vmem:[%s2 + $0x3c] sm:$0xff]
      %v558 = vld [vmem:[%s2 + $0x44] sm:$0xf]
      %v559 = vld [vmem:[%s2 + $0x48] sm:$0xff]
      %v560 = vld [vmem:[%s2 + $0x50] sm:$0xf]
      %v561 = vld [vmem:[%s2 + $0x54] sm:$0xff]
      %v562 = vld [vmem:[%s2 + $0x5c] sm:$0xf]
      %v563 = vld [vmem:[%s2 + $0x60] sm:$0xff]
      %v564 = vld [vmem:[%s2 + $0x68] sm:$0xf]
      %v565 = vld [vmem:[%s2 + $0x6c] sm:$0xff]
      %v566 = vld [vmem:[%s2 + $0x74] sm:$0xf]
      %v567 = vld [vmem:[%s2 + $0x78] sm:$0xff]
      %v568 = vld [vmem:[%s2 + $0x80] sm:$0xf]
      %v569 = vld [vmem:[%s2 + $0x84] sm:$0xff]
      %v570 = vld [vmem:[%s2 + $0x8c] sm:$0xf]
      %v571 = vld [vmem:[%s2 + $0x90] sm:$0xff]
      %v572 = vld [vmem:[%s2 + $0x98] sm:$0xf]
      %v573 = vld [vmem:[%s2 + $0x9c] sm:$0xff]
      %v574 = vld [vmem:[%s2 + $0xa4] sm:$0xf]
      %v575 = vld [vmem:[%s2 + $0xa8] sm:$0xff]
      %v576 = vld [vmem:[%s2 + $0xb0] sm:$0xf]
      %v577 = vld [vmem:[%s2 + $0xb4] sm:$0xff]
      %v578 = vld [vmem:[%s2 + $0xbc] sm:$0xf]
      %v581 = vunpack.c.l.b16 %v543
      %v582 = vunpack.c.l.b16 %v544
      %v583 = vpack.c.b16 %v582, %v581
      %v617 = vunpack.c.l.b16 %v547
      %v618 = vunpack.c.h.b16 %v547
      %v619 = vunpack.c.l.b16 %v548
      %v620 = vunpack.c.l.b16 %v549
      %v621 = vunpack.c.h.b16 %v549
      %v622 = vunpack.c.l.b16 %v550
      %v623 = vunpack.c.l.b16 %v551
      %v624 = vunpack.c.h.b16 %v551
      %v625 = vunpack.c.l.b16 %v552
      %v626 = vunpack.c.l.b16 %v553
      %v627 = vunpack.c.h.b16 %v553
      %v628 = vunpack.c.l.b16 %v554
      %v629 = vunpack.c.l.b16 %v555
      %v630 = vunpack.c.h.b16 %v555
      %v631 = vunpack.c.l.b16 %v556
      %v632 = vunpack.c.l.b16 %v557
      %v633 = vunpack.c.h.b16 %v557
      %v634 = vunpack.c.l.b16 %v558
      %v635 = vunpack.c.l.b16 %v559
      %v636 = vunpack.c.h.b16 %v559
      %v637 = vunpack.c.l.b16 %v560
      %v638 = vunpack.c.l.b16 %v561
      %v639 = vunpack.c.h.b16 %v561
      %v640 = vunpack.c.l.b16 %v562
      %v641 = vunpack.c.l.b16 %v563
      %v642 = vunpack.c.h.b16 %v563
      %v643 = vunpack.c.l.b16 %v564
      %v644 = vunpack.c.l.b16 %v565
      %v645 = vunpack.c.h.b16 %v565
      %v646 = vunpack.c.l.b16 %v566
      %v647 = vunpack.c.l.b16 %v567
      %v648 = vunpack.c.h.b16 %v567
      %v649 = vunpack.c.l.b16 %v568
      %v650 = vunpack.c.l.b16 %v569
      %v651 = vunpack.c.h.b16 %v569
      %v652 = vunpack.c.l.b16 %v570
      %v653 = vunpack.c.l.b16 %v571
      %v654 = vunpack.c.h.b16 %v571
      %v655 = vunpack.c.l.b16 %v572
      %v656 = vunpack.c.l.b16 %v573
      %v657 = vunpack.c.h.b16 %v573
      %v658 = vunpack.c.l.b16 %v574
      %v659 = vunpack.c.l.b16 %v575
      %v660 = vunpack.c.h.b16 %v575
      %v661 = vunpack.c.l.b16 %v576
      %v662 = vunpack.c.l.b16 %v577
      %v663 = vunpack.c.h.b16 %v577
      %v664 = vunpack.c.l.b16 %v578
      %v665 = vpack.c.b16 %v620, %v617
      %v666 = vpack.c.b16 %v621, %v618
      %v667 = vpack.c.b16 %v622, %v619
      %v668 = vpack.c.b16 %v626, %v623
      %v669 = vpack.c.b16 %v627, %v624
      %v670 = vpack.c.b16 %v628, %v625
      %v671 = vpack.c.b16 %v632, %v629
      %v672 = vpack.c.b16 %v633, %v630
      %v673 = vpack.c.b16 %v634, %v631
      %v674 = vpack.c.b16 %v638, %v635
      %v675 = vpack.c.b16 %v639, %v636
      %v676 = vpack.c.b16 %v640, %v637
      %v677 = vpack.c.b16 %v644, %v641
      %v678 = vpack.c.b16 %v645, %v642
      %v679 = vpack.c.b16 %v646, %v643
      %v680 = vpack.c.b16 %v650, %v647
      %v681 = vpack.c.b16 %v651, %v648
      %v682 = vpack.c.b16 %v652, %v649
      %v683 = vpack.c.b16 %v656, %v653
      %v684 = vpack.c.b16 %v657, %v654
      %v685 = vpack.c.b16 %v658, %v655
      %v686 = vpack.c.b16 %v662, %v659
      %v687 = vpack.c.b16 %v663, %v660
      %v688 = vpack.c.b16 %v664, %v661
      %713 = vmatprep.subr.bf16.mxu0 %v687
      %714 = vmatpush1.bf16.msra.mxu0 %v686
      %715 = vmatprep.subr.bf16.mxu0 %v684
      %716 = vmatpush1.bf16.msra.mxu0 %v683
      %717 = vmatprep.subr.bf16.mxu0 %v681
      %718 = vmatpush1.bf16.msra.mxu0 %v680
      %719 = vmatprep.subr.bf16.mxu0 %v678
      %720 = vmatpush1.bf16.msra.mxu0 %v677
      %721 = vmatprep.subr.bf16.mxu0 %v675
      %722 = vmatpush1.bf16.msra.mxu0 %v674
      %723 = vmatprep.subr.bf16.mxu0 %v672
      %724 = vmatpush1.bf16.msra.mxu0 %v671
      %725 = vmatprep.subr.bf16.mxu0 %v669
      %726 = vmatpush1.bf16.msra.mxu0 %v668
      %727 = vmatprep.subr.bf16.mxu0 %v666
      %728 = vmatpush1.bf16.msra.mxu0 %v665
      %729 = vmatprep.subr.bf16.mxu0 0
      %730 = vmatpush2.bf16.msra.mxu0 0
      %731 = vmatprep.subr.bf16.mxu0 0
      %732 = vmatpush2.bf16.msra.mxu0 0
      %733 = vmatprep.subr.bf16.mxu0 0
      %734 = vmatpush2.bf16.msra.mxu0 0
      %735 = vmatprep.subr.bf16.mxu0 0
      %736 = vmatpush2.bf16.msra.mxu0 0
      %737 = vmatprep.subr.bf16.mxu0 0
      %738 = vmatpush2.bf16.msra.mxu0 0
      %739 = vmatprep.subr.bf16.mxu0 0
      %740 = vmatpush2.bf16.msra.mxu0 0
      %741 = vmatprep.subr.bf16.mxu0 0
      %742 = vmatpush2.bf16.msra.mxu0 0
      %743 = vmatprep.subr.bf16.mxu0 0
      %744 = vmatpush2.bf16.msra.mxu0 0
      %745 = vmatprep.mubr.bf16.mxu0 0
      %746 = vmatmul.mubr.bf16.gmra.mxu0 %v583
      %v747 = vpop.f32.mrf.mxu0
      %v748 = vadd.f32 0.0, %v747
      %v749 = vpop.f32.mrf.mxu0
      %v750 = vadd.f32 0.0, %v749
      %v751 = vpop.f32.mrf.mxu0
      %v752 = vadd.f32 0.0, %v751
      %v753 = vpop.f32.mrf.mxu0
      %v754 = vadd.f32 0.0, %v753
      %755 = vdwg.mxu0
      %756 = vmatprep.subr.bf16.mxu0 0
      %757 = vmatpush1.bf16.msra.mxu0 %v688
      %758 = vmatprep.subr.bf16.mxu0 0
      %759 = vmatpush1.bf16.msra.mxu0 %v685
      %760 = vmatprep.subr.bf16.mxu0 0
      %761 = vmatpush1.bf16.msra.mxu0 %v682
      %762 = vmatprep.subr.bf16.mxu0 0
      %763 = vmatpush1.bf16.msra.mxu0 %v679
      %764 = vmatprep.subr.bf16.mxu0 0
      %765 = vmatpush1.bf16.msra.mxu0 %v676
      %766 = vmatprep.subr.bf16.mxu0 0
      %767 = vmatpush1.bf16.msra.mxu0 %v673
      %768 = vmatprep.subr.bf16.mxu0 0
      %769 = vmatpush1.bf16.msra.mxu0 %v670
      %770 = vmatprep.subr.bf16.mxu0 0
      %771 = vmatpush1.bf16.msra.mxu0 %v667
      %772 = vmatprep.subr.bf16.mxu0 0
      %773 = vmatpush2.bf16.msra.mxu0 0
      %774 = vmatprep.subr.bf16.mxu0 0
      %775 = vmatpush2.bf16.msra.mxu0 0
      %776 = vmatprep.subr.bf16.mxu0 0
      %777 = vmatpush2.bf16.msra.mxu0 0
      %778 = vmatprep.subr.bf16.mxu0 0
      %779 = vmatpush2.bf16.msra.mxu0 0
      %780 = vmatprep.subr.bf16.mxu0 0
      %781 = vmatpush2.bf16.msra.mxu0 0
      %782 = vmatprep.subr.bf16.mxu0 0
      %783 = vmatpush2.bf16.msra.mxu0 0
      %784 = vmatprep.subr.bf16.mxu0 0
      %785 = vmatpush2.bf16.msra.mxu0 0
      %786 = vmatprep.subr.bf16.mxu0 0
      %787 = vmatpush2.bf16.msra.mxu0 0
      %788 = vmatprep.mubr.bf16.mxu0 0
      %789 = vmatmul.mubr.bf16.gmra.mxu0 %v583
      %v790 = vpop.f32.mrf.mxu0
      %v791 = vadd.f32 0.0, %v790
      %v792 = vpop.f32.mrf.mxu0
      %v793 = vpop.f32.mrf.mxu0
      %v794 = vadd.f32 0.0, %v793
      %v795 = vpop.f32.mrf.mxu0
      %796 = vdwg.mxu0
      %v797 = vld [vmem:[%s3] sm:$0xff]
      %v798 = vld [vmem:[%s3 + $0x8] sm:$0xf]
      %v799 = vld [vmem:[%s3 + $0xc] sm:$0xff]
      %v800 = vld [vmem:[%s3 + $0x14] sm:$0xf]
      %v801 = vld [vmem:[%s3 + $0x18] sm:$0xff]
      %v802 = vld [vmem:[%s3 + $0x20] sm:$0xf]
      %v803 = vld [vmem:[%s3 + $0x24] sm:$0xff]
      %v804 = vld [vmem:[%s3 + $0x2c] sm:$0xf]
      %v805 = vld [vmem:[%s3 + $0x30] sm:$0xff]
      %v806 = vld [vmem:[%s3 + $0x38] sm:$0xf]
      %v807 = vld [vmem:[%s3 + $0x3c] sm:$0xff]
      %v808 = vld [vmem:[%s3 + $0x44] sm:$0xf]
      %v809 = vld [vmem:[%s3 + $0x48] sm:$0xff]
      %v810 = vld [vmem:[%s3 + $0x50] sm:$0xf]
      %v811 = vld [vmem:[%s3 + $0x54] sm:$0xff]
      %v812 = vld [vmem:[%s3 + $0x5c] sm:$0xf]
      %v813 = vld [vmem:[%s3 + $0x60] sm:$0xff]
      %v814 = vld [vmem:[%s3 + $0x68] sm:$0xf]
      %v815 = vld [vmem:[%s3 + $0x6c] sm:$0xff]
      %v816 = vld [vmem:[%s3 + $0x74] sm:$0xf]
      %v817 = vld [vmem:[%s3 + $0x78] sm:$0xff]
      %v818 = vld [vmem:[%s3 + $0x80] sm:$0xf]
      %v819 = vld [vmem:[%s3 + $0x84] sm:$0xff]
      %v820 = vld [vmem:[%s3 + $0x8c] sm:$0xf]
      %v821 = vld [vmem:[%s3 + $0x90] sm:$0xff]
      %v822 = vld [vmem:[%s3 + $0x98] sm:$0xf]
      %v823 = vld [vmem:[%s3 + $0x9c] sm:$0xff]
      %v824 = vld [vmem:[%s3 + $0xa4] sm:$0xf]
      %v825 = vld [vmem:[%s3 + $0xa8] sm:$0xff]
      %v826 = vld [vmem:[%s3 + $0xb0] sm:$0xf]
      %v827 = vld [vmem:[%s3 + $0xb4] sm:$0xff]
      %v828 = vld [vmem:[%s3 + $0xbc] sm:$0xf]
      %v831 = vunpack.c.l.b16 %v545
      %v832 = vunpack.c.l.b16 %v546
      %v833 = vpack.c.b16 %v832, %v831
      %v867 = vunpack.c.l.b16 %v797
      %v868 = vunpack.c.h.b16 %v797
      %v869 = vunpack.c.l.b16 %v798
      %v870 = vunpack.c.l.b16 %v799
      %v871 = vunpack.c.h.b16 %v799
      %v872 = vunpack.c.l.b16 %v800
      %v873 = vunpack.c.l.b16 %v801
      %v874 = vunpack.c.h.b16 %v801
      %v875 = vunpack.c.l.b16 %v802
      %v876 = vunpack.c.l.b16 %v803
      %v877 = vunpack.c.h.b16 %v803
      %v878 = vunpack.c.l.b16 %v804
      %v879 = vunpack.c.l.b16 %v805
      %v880 = vunpack.c.h.b16 %v805
      %v881 = vunpack.c.l.b16 %v806
      %v882 = vunpack.c.l.b16 %v807
      %v883 = vunpack.c.h.b16 %v807
      %v884 = vunpack.c.l.b16 %v808
      %v885 = vunpack.c.l.b16 %v809
      %v886 = vunpack.c.h.b16 %v809
      %v887 = vunpack.c.l.b16 %v810
      %v888 = vunpack.c.l.b16 %v811
      %v889 = vunpack.c.h.b16 %v811
      %v890 = vunpack.c.l.b16 %v812
      %v891 = vunpack.c.l.b16 %v813
      %v892 = vunpack.c.h.b16 %v813
      %v893 = vunpack.c.l.b16 %v814
      %v894 = vunpack.c.l.b16 %v815
      %v895 = vunpack.c.h.b16 %v815
      %v896 = vunpack.c.l.b16 %v816
      %v897 = vunpack.c.l.b16 %v817
      %v898 = vunpack.c.h.b16 %v817
      %v899 = vunpack.c.l.b16 %v818
      %v900 = vunpack.c.l.b16 %v819
      %v901 = vunpack.c.h.b16 %v819
      %v902 = vunpack.c.l.b16 %v820
      %v903 = vunpack.c.l.b16 %v821
      %v904 = vunpack.c.h.b16 %v821
      %v905 = vunpack.c.l.b16 %v822
      %v906 = vunpack.c.l.b16 %v823
      %v907 = vunpack.c.h.b16 %v823
      %v908 = vunpack.c.l.b16 %v824
      %v909 = vunpack.c.l.b16 %v825
      %v910 = vunpack.c.h.b16 %v825
      %v911 = vunpack.c.l.b16 %v826
      %v912 = vunpack.c.l.b16 %v827
      %v913 = vunpack.c.h.b16 %v827
      %v914 = vunpack.c.l.b16 %v828
      %v915 = vpack.c.b16 %v870, %v867
      %v916 = vpack.c.b16 %v871, %v868
      %v917 = vpack.c.b16 %v872, %v869
      %v918 = vpack.c.b16 %v876, %v873
      %v919 = vpack.c.b16 %v877, %v874
      %v920 = vpack.c.b16 %v878, %v875
      %v921 = vpack.c.b16 %v882, %v879
      %v922 = vpack.c.b16 %v883, %v880
      %v923 = vpack.c.b16 %v884, %v881
      %v924 = vpack.c.b16 %v888, %v885
      %v925 = vpack.c.b16 %v889, %v886
      %v926 = vpack.c.b16 %v890, %v887
      %v927 = vpack.c.b16 %v894, %v891
      %v928 = vpack.c.b16 %v895, %v892
      %v929 = vpack.c.b16 %v896, %v893
      %v930 = vpack.c.b16 %v900, %v897
      %v931 = vpack.c.b16 %v901, %v898
      %v932 = vpack.c.b16 %v902, %v899
      %v933 = vpack.c.b16 %v906, %v903
      %v934 = vpack.c.b16 %v907, %v904
      %v935 = vpack.c.b16 %v908, %v905
      %v936 = vpack.c.b16 %v912, %v909
      %v937 = vpack.c.b16 %v913, %v910
      %v938 = vpack.c.b16 %v914, %v911
      %963 = vmatprep.subr.bf16.mxu0 %v937
      %964 = vmatpush1.bf16.msra.mxu0 %v936
      %965 = vmatprep.subr.bf16.mxu0 %v934
      %966 = vmatpush1.bf16.msra.mxu0 %v933
      %967 = vmatprep.subr.bf16.mxu0 %v931
      %968 = vmatpush1.bf16.msra.mxu0 %v930
      %969 = vmatprep.subr.bf16.mxu0 %v928
      %970 = vmatpush1.bf16.msra.mxu0 %v927
      %971 = vmatprep.subr.bf16.mxu0 %v925
      %972 = vmatpush1.bf16.msra.mxu0 %v924
      %973 = vmatprep.subr.bf16.mxu0 %v922
      %974 = vmatpush1.bf16.msra.mxu0 %v921
      %975 = vmatprep.subr.bf16.mxu0 %v919
      %976 = vmatpush1.bf16.msra.mxu0 %v918
      %977 = vmatprep.subr.bf16.mxu0 %v916
      %978 = vmatpush1.bf16.msra.mxu0 %v915
      %979 = vmatprep.subr.bf16.mxu0 0
      %980 = vmatpush2.bf16.msra.mxu0 0
      %981 = vmatprep.subr.bf16.mxu0 0
      %982 = vmatpush2.bf16.msra.mxu0 0
      %983 = vmatprep.subr.bf16.mxu0 0
      %984 = vmatpush2.bf16.msra.mxu0 0
      %985 = vmatprep.subr.bf16.mxu0 0
      %986 = vmatpush2.bf16.msra.mxu0 0
      %987 = vmatprep.subr.bf16.mxu0 0
      %988 = vmatpush2.bf16.msra.mxu0 0
      %989 = vmatprep.subr.bf16.mxu0 0
      %990 = vmatpush2.bf16.msra.mxu0 0
      %991 = vmatprep.subr.bf16.mxu0 0
      %992 = vmatpush2.bf16.msra.mxu0 0
      %993 = vmatprep.subr.bf16.mxu0 0
      %994 = vmatpush2.bf16.msra.mxu0 0
      %995 = vmatprep.mubr.bf16.mxu0 0
      %996 = vmatmul.mubr.bf16.gmra.mxu0 %v833
      %v997 = vpop.f32.mrf.mxu0
      %v998 = vadd.f32 0.0, %v997
      %v999 = vpop.f32.mrf.mxu0
      %v1000 = vadd.f32 0.0, %v999
      %v1001 = vpop.f32.mrf.mxu0
      %v1002 = vadd.f32 0.0, %v1001
      %v1003 = vpop.f32.mrf.mxu0
      %v1004 = vadd.f32 0.0, %v1003
      %1005 = vdwg.mxu0
      %1006 = vmatprep.subr.bf16.mxu0 0
      %1007 = vmatpush1.bf16.msra.mxu0 %v938
      %1008 = vmatprep.subr.bf16.mxu0 0
      %1009 = vmatpush1.bf16.msra.mxu0 %v935
      %1010 = vmatprep.subr.bf16.mxu0 0
      %1011 = vmatpush1.bf16.msra.mxu0 %v932
      %1012 = vmatprep.subr.bf16.mxu0 0
      %1013 = vmatpush1.bf16.msra.mxu0 %v929
      %1014 = vmatprep.subr.bf16.mxu0 0
      %1015 = vmatpush1.bf16.msra.mxu0 %v926
      %1016 = vmatprep.subr.bf16.mxu0 0
      %1017 = vmatpush1.bf16.msra.mxu0 %v923
      %1018 = vmatprep.subr.bf16.mxu0 0
      %1019 = vmatpush1.bf16.msra.mxu0 %v920
      %1020 = vmatprep.subr.bf16.mxu0 0
      %1021 = vmatpush1.bf16.msra.mxu0 %v917
      %1022 = vmatprep.subr.bf16.mxu0 0
      %1023 = vmatpush2.bf16.msra.mxu0 0
      %1024 = vmatprep.subr.bf16.mxu0 0
      %1025 = vmatpush2.bf16.msra.mxu0 0
      %1026 = vmatprep.subr.bf16.mxu0 0
      %1027 = vmatpush2.bf16.msra.mxu0 0
      %1028 = vmatprep.subr.bf16.mxu0 0
      %1029 = vmatpush2.bf16.msra.mxu0 0
      %1030 = vmatprep.subr.bf16.mxu0 0
      %1031 = vmatpush2.bf16.msra.mxu0 0
      %1032 = vmatprep.subr.bf16.mxu0 0
      %1033 = vmatpush2.bf16.msra.mxu0 0
      %1034 = vmatprep.subr.bf16.mxu0 0
      %1035 = vmatpush2.bf16.msra.mxu0 0
      %1036 = vmatprep.subr.bf16.mxu0 0
      %1037 = vmatpush2.bf16.msra.mxu0 0
      %1038 = vmatprep.mubr.bf16.mxu0 0
      %1039 = vmatmul.mubr.bf16.gmra.mxu0 %v833
      %v1040 = vpop.f32.mrf.mxu0
      %v1041 = vadd.f32 0.0, %v1040
      %v1042 = vpop.f32.mrf.mxu0
      %v1043 = vpop.f32.mrf.mxu0
      %v1044 = vadd.f32 0.0, %v1043
      %v1045 = vpop.f32.mrf.mxu0
      %1046 = vdwg.mxu0
      %v1047 = vadd.f32 %v748, %v998
      %v1048 = vadd.f32 %v752, %v1002
      %v1049 = vld [vmem:[%s4] sm:$0x1]
      %v1051 = vlaneseq
      %v1052 = vshrl.u32 %v1051, 7
      %v1053 = vsub.s32 0, %v1052
      %v1054 = vrot.slane %v1049, %v1053
      %v1056 = vadd.f32 %v1047, %v1054
      %v1057 = vadd.f32 %v1048, %v1054
      %v1058 = vmax.f32 %v1056, 0.0
      %v1059 = vmax.f32 %v1057, 0.0
      %v1060 = vadd.f32 %v750, %v1000
      %v1061 = vadd.f32 %v754, %v1004
      %v1062 = vld [vmem:[%s5] sm:$0x1]
      %v1064 = vlaneseq
      %v1065 = vshrl.u32 %v1064, 7
      %v1066 = vsub.s32 0, %v1065
      %v1067 = vrot.slane %v1062, %v1066
      %v1069 = vadd.f32 %v1060, %v1067
      %v1070 = vadd.f32 %v1061, %v1067
      %v1071 = vld [vmem:[%s8] sm:$0xf]
      %v1072 = vld [vmem:[%s8 + $0x4] sm:$0xf]
      %v1073 = vld [vmem:[%s8 + $0x8] sm:$0xf]
      %v1074 = vld [vmem:[%s8 + $0xc] sm:$0xf]
      %v1075 = vld [vmem:[%s8 + $0x10] sm:$0xf]
      %v1076 = vld [vmem:[%s8 + $0x14] sm:$0xf]
      %v1077 = vld [vmem:[%s8 + $0x18] sm:$0xf]
      %v1078 = vld [vmem:[%s8 + $0x1c] sm:$0xf]
      %v1079 = vld [vmem:[%s8 + $0x20] sm:$0xf]
      %v1080 = vld [vmem:[%s8 + $0x24] sm:$0xf]
      %v1081 = vld [vmem:[%s8 + $0x28] sm:$0xf]
      %v1082 = vld [vmem:[%s8 + $0x2c] sm:$0xf]
      %v1083 = vld [vmem:[%s8 + $0x30] sm:$0xf]
      %v1084 = vld [vmem:[%s8 + $0x34] sm:$0xf]
      %v1085 = vld [vmem:[%s8 + $0x38] sm:$0xf]
      %v1086 = vld [vmem:[%s8 + $0x3c] sm:$0xf]
      %v1087 = vpack.c.bf16 %v1059, %v1058
      %v1088 = vld [vmem:[%s9] sm:$0x1]
      %v1090 = vlaneseq
      %v1091 = vshrl.u32 %v1090, 7
      %v1092 = vsub.s32 0, %v1091
      %v1093 = vrot.slane %v1088, %v1092
      %v1111 = vunpack.c.l.b16 %v1071
      %v1112 = vunpack.c.l.b16 %v1072
      %v1113 = vunpack.c.l.b16 %v1073
      %v1114 = vunpack.c.l.b16 %v1074
      %v1115 = vunpack.c.l.b16 %v1075
      %v1116 = vunpack.c.l.b16 %v1076
      %v1117 = vunpack.c.l.b16 %v1077
      %v1118 = vunpack.c.l.b16 %v1078
      %v1119 = vunpack.c.l.b16 %v1079
      %v1120 = vunpack.c.l.b16 %v1080
      %v1121 = vunpack.c.l.b16 %v1081
      %v1122 = vunpack.c.l.b16 %v1082
      %v1123 = vunpack.c.l.b16 %v1083
      %v1124 = vunpack.c.l.b16 %v1084
      %v1125 = vunpack.c.l.b16 %v1085
      %v1126 = vunpack.c.l.b16 %v1086
      %v1127 = vpack.c.b16 %v1112, %v1111
      %v1128 = vpack.c.b16 %v1114, %v1113
      %v1129 = vpack.c.b16 %v1116, %v1115
      %v1130 = vpack.c.b16 %v1118, %v1117
      %v1131 = vpack.c.b16 %v1120, %v1119
      %v1132 = vpack.c.b16 %v1122, %v1121
      %v1133 = vpack.c.b16 %v1124, %v1123
      %v1134 = vpack.c.b16 %v1126, %v1125
      %1143 = vmatprep.subr.bf16.mxu0 0
      %1144 = vmatpush1.bf16.msra.mxu0 %v1134
      %1145 = vmatprep.subr.bf16.mxu0 0
      %1146 = vmatpush1.bf16.msra.mxu0 %v1133
      %1147 = vmatprep.subr.bf16.mxu0 0
      %1148 = vmatpush1.bf16.msra.mxu0 %v1132
      %1149 = vmatprep.subr.bf16.mxu0 0
      %1150 = vmatpush1.bf16.msra.mxu0 %v1131
      %1151 = vmatprep.subr.bf16.mxu0 0
      %1152 = vmatpush1.bf16.msra.mxu0 %v1130
      %1153 = vmatprep.subr.bf16.mxu0 0
      %1154 = vmatpush1.bf16.msra.mxu0 %v1129
      %1155 = vmatprep.subr.bf16.mxu0 0
      %1156 = vmatpush1.bf16.msra.mxu0 %v1128
      %1157 = vmatprep.subr.bf16.mxu0 0
      %1158 = vmatpush1.bf16.msra.mxu0 %v1127
      %1159 = vmatprep.subr.bf16.mxu0 0
      %1160 = vmatpush2.bf16.msra.mxu0 0
      %1161 = vmatprep.subr.bf16.mxu0 0
      %1162 = vmatpush2.bf16.msra.mxu0 0
      %1163 = vmatprep.subr.bf16.mxu0 0
      %1164 = vmatpush2.bf16.msra.mxu0 0
      %1165 = vmatprep.subr.bf16.mxu0 0
      %1166 = vmatpush2.bf16.msra.mxu0 0
      %1167 = vmatprep.subr.bf16.mxu0 0
      %1168 = vmatpush2.bf16.msra.mxu0 0
      %1169 = vmatprep.subr.bf16.mxu0 0
      %1170 = vmatpush2.bf16.msra.mxu0 0
      %1171 = vmatprep.subr.bf16.mxu0 0
      %1172 = vmatpush2.bf16.msra.mxu0 0
      %1173 = vmatprep.subr.bf16.mxu0 0
      %1174 = vmatpush2.bf16.msra.mxu0 0
      %1175 = vmatprep.mubr.bf16.mxu0 0
      %1176 = vmatmul.mubr.bf16.gmra.mxu0 %v1087
      %v1177 = vpop.f32.mrf.mxu0
      %v1178 = vadd.f32 %v1093, %v1177
      %v1179 = vpop.f32.mrf.mxu0
      %v1180 = vpop.f32.mrf.mxu0
      %v1181 = vadd.f32 %v1093, %v1180
      %v1182 = vpop.f32.mrf.mxu0
      %1183 = vdwg.mxu0
      %v1184 = vadd.f32 %v1178, %v1069
      %v1185 = vadd.f32 %v1181, %v1070
      %v1186 = vld [vmem:[%s6] sm:$0x1]
      %v1188 = vlaneseq
      %v1189 = vshrl.u32 %v1188, 7
      %v1190 = vsub.s32 0, %v1189
      %v1191 = vrot.slane %v1186, %v1190
      %v1193 = vadd.f32 %v791, %v1191
      %v1194 = vadd.f32 %v794, %v1191
      %v1195 = vld [vmem:[%s7] sm:$0x1]
      %v1197 = vlaneseq
      %v1198 = vshrl.u32 %v1197, 7
      %v1199 = vsub.s32 0, %v1198
      %v1200 = vrot.slane %v1195, %v1199
      %v1202 = vadd.f32 %v1041, %v1200
      %v1203 = vadd.f32 %v1044, %v1200
      %v1204 = vld [vmem:[%s10] sm:$0xf]
      %v1205 = vld [vmem:[%s10 + $0x4] sm:$0xf]
      %v1206 = vld [vmem:[%s10 + $0x8] sm:$0xf]
      %v1207 = vld [vmem:[%s10 + $0xc] sm:$0xf]
      %v1208 = vld [vmem:[%s10 + $0x10] sm:$0xf]
      %v1209 = vld [vmem:[%s10 + $0x14] sm:$0xf]
      %v1210 = vld [vmem:[%s10 + $0x18] sm:$0xf]
      %v1211 = vld [vmem:[%s10 + $0x1c] sm:$0xf]
      %v1212 = vld [vmem:[%s10 + $0x20] sm:$0xf]
      %v1213 = vld [vmem:[%s10 + $0x24] sm:$0xf]
      %v1214 = vld [vmem:[%s10 + $0x28] sm:$0xf]
      %v1215 = vld [vmem:[%s10 + $0x2c] sm:$0xf]
      %v1216 = vld [vmem:[%s10 + $0x30] sm:$0xf]
      %v1217 = vld [vmem:[%s10 + $0x34] sm:$0xf]
      %v1218 = vld [vmem:[%s10 + $0x38] sm:$0xf]
      %v1219 = vld [vmem:[%s10 + $0x3c] sm:$0xf]
      %v1220 = vpack.c.bf16 %v1185, %v1184
      %v1221 = vld [vmem:[%s11] sm:$0x1]
      %v1223 = vlaneseq
      %v1224 = vshrl.u32 %v1223, 7
      %v1225 = vsub.s32 0, %v1224
      %v1226 = vrot.slane %v1221, %v1225
      %v1244 = vunpack.c.l.b16 %v1204
      %v1245 = vunpack.c.l.b16 %v1205
      %v1246 = vunpack.c.l.b16 %v1206
      %v1247 = vunpack.c.l.b16 %v1207
      %v1248 = vunpack.c.l.b16 %v1208
      %v1249 = vunpack.c.l.b16 %v1209
      %v1250 = vunpack.c.l.b16 %v1210
      %v1251 = vunpack.c.l.b16 %v1211
      %v1252 = vunpack.c.l.b16 %v1212
      %v1253 = vunpack.c.l.b16 %v1213
      %v1254 = vunpack.c.l.b16 %v1214
      %v1255 = vunpack.c.l.b16 %v1215
      %v1256 = vunpack.c.l.b16 %v1216
      %v1257 = vunpack.c.l.b16 %v1217
      %v1258 = vunpack.c.l.b16 %v1218
      %v1259 = vunpack.c.l.b16 %v1219
      %v1260 = vpack.c.b16 %v1245, %v1244
      %v1261 = vpack.c.b16 %v1247, %v1246
      %v1262 = vpack.c.b16 %v1249, %v1248
      %v1263 = vpack.c.b16 %v1251, %v1250
      %v1264 = vpack.c.b16 %v1253, %v1252
      %v1265 = vpack.c.b16 %v1255, %v1254
      %v1266 = vpack.c.b16 %v1257, %v1256
      %v1267 = vpack.c.b16 %v1259, %v1258
      %1276 = vmatprep.subr.bf16.mxu0 0
      %1277 = vmatpush1.bf16.msra.mxu0 %v1267
      %1278 = vmatprep.subr.bf16.mxu0 0
      %1279 = vmatpush1.bf16.msra.mxu0 %v1266
      %1280 = vmatprep.subr.bf16.mxu0 0
      %1281 = vmatpush1.bf16.msra.mxu0 %v1265
      %1282 = vmatprep.subr.bf16.mxu0 0
      %1283 = vmatpush1.bf16.msra.mxu0 %v1264
      %1284 = vmatprep.subr.bf16.mxu0 0
      %1285 = vmatpush1.bf16.msra.mxu0 %v1263
      %1286 = vmatprep.subr.bf16.mxu0 0
      %1287 = vmatpush1.bf16.msra.mxu0 %v1262
      %1288 = vmatprep.subr.bf16.mxu0 0
      %1289 = vmatpush1.bf16.msra.mxu0 %v1261
      %1290 = vmatprep.subr.bf16.mxu0 0
      %1291 = vmatpush1.bf16.msra.mxu0 %v1260
      %1292 = vmatprep.subr.bf16.mxu0 0
      %1293 = vmatpush2.bf16.msra.mxu0 0
      %1294 = vmatprep.subr.bf16.mxu0 0
      %1295 = vmatpush2.bf16.msra.mxu0 0
      %1296 = vmatprep.subr.bf16.mxu0 0
      %1297 = vmatpush2.bf16.msra.mxu0 0
      %1298 = vmatprep.subr.bf16.mxu0 0
      %1299 = vmatpush2.bf16.msra.mxu0 0
      %1300 = vmatprep.subr.bf16.mxu0 0
      %1301 = vmatpush2.bf16.msra.mxu0 0
      %1302 = vmatprep.subr.bf16.mxu0 0
      %1303 = vmatpush2.bf16.msra.mxu0 0
      %1304 = vmatprep.subr.bf16.mxu0 0
      %1305 = vmatpush2.bf16.msra.mxu0 0
      %1306 = vmatprep.subr.bf16.mxu0 0
      %1307 = vmatpush2.bf16.msra.mxu0 0
      %1308 = vmatprep.mubr.bf16.mxu0 0
      %1309 = vmatmul.mubr.bf16.gmra.mxu0 %v1220
      %v1310 = vpop.f32.mrf.mxu0
      %v1311 = vadd.f32 %v1226, %v1310
      %v1312 = vpop.f32.mrf.mxu0
      %v1313 = vpop.f32.mrf.mxu0
      %v1314 = vadd.f32 %v1226, %v1313
      %v1315 = vpop.f32.mrf.mxu0
      %1316 = vdwg.mxu0
      %v1317 = vpack.c.bf16 %v1194, %v1193
      %v1319 = vunpack.c.l.b16 %v1317
      %v1320 = vunpack.c.h.b16 %v1317
      %v1321 = vpack.c.b16 %v1319, %v1319
      %v1322 = vpack.c.b16 %v1320, %v1320
      %vm1325 = vcmask 519168
      %1326 = vst.msk [vmem:[%s529] sm:$0xf] %vm1325, %v1321
      %1327 = vst.msk [vmem:[%s529 + $0x4] sm:$0xf] %vm1325, %v1322
      %1330 = vrot.lane.b32.xlu0 %v1311, 64
      %v1331 = vpop.permute.xlu0 %1330
      %1332 = vrot.lane.b32.xlu0 %v1314, 64
      %v1333 = vpop.permute.xlu0 %1332
      %vm1336 = vcmask 523264
      %v1337 = vsel %vm1336, %v1202, %v1331
      %v1338 = vsel %vm1336, %v1203, %v1333
      %v1339 = vpack.c.bf16 %v1338, %v1337
      %v1342 = vunpack.c.l.b16 %v1339
      %v1343 = vunpack.c.l.b16 %v1220
      %v1344 = vunpack.c.h.b16 %v1339
      %v1345 = vunpack.c.h.b16 %v1220
      %v1346 = vpack.c.b16 %v1343, %v1342
      %v1347 = vpack.c.b16 %v1345, %v1344
      %1350 = vst [vmem:[%s540] sm:$0xff] %v1346
      %1351 = vst [vmem:[%s540 + $0x8] sm:$0xff] %v1347
      %s1352 = smul.u32 2, %s30
      %p1353 = scmp.lt.s32.totalorder %s29, 1
      %s1354 = scalar_select %p1353, %s29, 1
      %p1355 = scmp.lt.s32.totalorder %s1352, 1
      %s1356 = scalar_select %p1355, %s1352, 1
      %s1357 = smul.addr %s1354, 2
      %s1358 = sadd.s32 %s1356, %s1357
      %s1359 = smul.addr %s1358, 4
      %s1360 = scalar_lea.vmem %s12, %s1359
      %s1361 = smul.u32 2, %s30
      %p1362 = scmp.lt.s32.totalorder %s29, 1
      %s1363 = scalar_select %p1362, %s29, 1
      %p1364 = scmp.lt.s32.totalorder %s1361, 1
      %s1365 = scalar_select %p1364, %s1361, 1
      %s1366 = smul.addr %s1365, 2
      %s1367 = smul.addr %s1363, 4
      %s1368 = sadd.s32 %s1366, %s1367
      %s1369 = smul.addr %s1368, 4
      %s1370 = scalar_lea.vmem %s13, %s1369
      // Predicated region
      $region69: #{spd_forward.8} parent=67 // pred_check
        %p1371 = pneg %p323
      $region70: #{spd_forward.8} parent=67 // pred_check_branch
        %1373 = sbr.rel (%p1371) target = $region72
      $region71: #{spd_forward.8} parent=67 // pred_region
        %s1374 = smul.u32 2, %s30
      $region72: #{spd_forward.8} parent=67 // pred_fallthru
        _
      // Predicated region
      $region73: #{spd_forward.8} parent=67 // pred_check
        %p1375 = pneg %p351
      $region74: #{spd_forward.8} parent=67 // pred_check_branch
        %1377 = sbr.rel (%p1375) target = $region76
      $region75: #{spd_forward.8} parent=67 // pred_region
        %s1378 = smul.u32 2, %s30
      $region76: #{spd_forward.8} parent=67 // pred_fallthru
        _
    $region68: #{spd_forward.8} parent=5 // pred_fallthru
      _
    %p1379 = scmp.le.s32.totalorder 2, %s20
    // Predicated region
    $region77: #{spd_forward.8} parent=5 // pred_check
      %p1380 = pneg %p1379
    $region78: #{spd_forward.8} parent=5 // pred_check_branch
      %1382 = sbr.rel (%p1380) target = $region80
    $region79: #{spd_forward.8} parent=5 // pred_region
      %s1383 = ssub.s32 %s20, 2
      // Predicated region
      $region81: #{spd_forward.8} parent=79 // pred_check
        %p1384 = pneg %p329
      $region82: #{spd_forward.8} parent=79 // pred_check_branch
        %1386 = sbr.rel (%p1384) target = $region84
      $region83: #{spd_forward.8} parent=79 // pred_region
        %s1387 = smul.u32 2, %s32
        %p1388 = scmp.lt.s32.totalorder %s31, 1
        %s1389 = scalar_select %p1388, %s31, 1
        %p1390 = scmp.lt.s32.totalorder %s1387, 1
        %s1391 = scalar_select %p1390, %s1387, 1
        %s1392 = smul.addr %s1389, 2
        %s1393 = sadd.s32 %s1391, %s1392
        %s1394 = smul.addr %s1393, 4
        %s1395 = scalar_lea.vmem %s12, %s1394
      $region84: #{spd_forward.8} parent=79 // pred_fallthru
        _
      // Predicated region
      $region85: #{spd_forward.8} parent=79 // pred_check
        %p1396 = pneg %p357
      $region86: #{spd_forward.8} parent=79 // pred_check_branch
        %1398 = sbr.rel (%p1396) target = $region88
      $region87: #{spd_forward.8} parent=79 // pred_region
        %s1399 = smul.u32 2, %s32
        %p1400 = scmp.lt.s32.totalorder %s31, 1
        %s1401 = scalar_select %p1400, %s31, 1
        %p1402 = scmp.lt.s32.totalorder %s1399, 1
        %s1403 = scalar_select %p1402, %s1399, 1
        %s1404 = smul.addr %s1403, 2
        %s1405 = smul.addr %s1401, 4
        %s1406 = sadd.s32 %s1404, %s1405
        %s1407 = smul.addr %s1406, 4
        %s1408 = scalar_lea.vmem %s13, %s1407
      $region88: #{spd_forward.8} parent=79 // pred_fallthru
        _
    $region80: #{spd_forward.8} parent=5 // pred_fallthru
      _
  $region6: #{spd_forward.8} parent=0 // loop_footer
    %s24 = sadd.s32 1, %s20
  $region7: #{spd_forward.8} parent=0 // loop_footer_branch
    %19 = sbr.rel target = $region3
  $region8: #{spd_forward.8} parent=0 // loop_exit
    _

// kernel: spd_forward.11
$region0: #{spd_forward.11}
  #allocation0 [shape = 'u32[]', space=smem, size = 0x4, offset = 0x4, fixed_abs, tag = 'smem constant byte address 0x4 - core index']
  #allocation1 [shape = 'u32[144,128]{1,0:T(1,128)}', space=vmem, size = 0x12000, scoped, tag = 'internal scratch']
  %s0 = inlined_call_operand.vmem [shape: bf16[2,16,128], index: 0, kind: input, shape index: {}]
  %s1 = inlined_call_operand.vmem [shape: f32[2,16,3], index: 1, kind: input, shape index: {}]
  %s2 = inlined_call_operand.vmem [shape: bf16[128,64], index: 2, kind: input, shape index: {}]
  %s3 = inlined_call_operand.vmem [shape: f32[1,64], index: 3, kind: input, shape index: {}]
  %s4 = inlined_call_operand.vmem [shape: bf16[64,32], index: 4, kind: input, shape index: {}]
  %s5 = inlined_call_operand.vmem [shape: f32[1,32], index: 5, kind: input, shape index: {}]
  %s6 = inlined_call_operand.vmem [shape: bf16[32,256], index: 6, kind: input, shape index: {}]
  %s7 = inlined_call_operand.vmem [shape: bf16[128,256], index: 7, kind: input, shape index: {}]
  %s8 = inlined_call_operand.vmem [shape: bf16[128,256], index: 8, kind: input, shape index: {}]
  %s9 = inlined_call_operand.vmem [shape: f32[1,128], index: 9, kind: input, shape index: {}]
  %s10 = inlined_call_operand.vmem [shape: f32[1,128], index: 10, kind: input, shape index: {}]
  %s11 = inlined_call_operand.vmem [shape: bf16[128,128], index: 11, kind: input, shape index: {}]
  %s12 = inlined_call_operand.vmem [shape: f32[1,128], index: 12, kind: input, shape index: {}]
  %s13 = inlined_call_operand.vmem [shape: bf16[128,64], index: 13, kind: input, shape index: {}]
  %s14 = inlined_call_operand.vmem [shape: f32[1,64], index: 14, kind: input, shape index: {}]
  %s15 = inlined_call_operand.vmem [shape: bf16[64,3], index: 15, kind: input, shape index: {}]
  %s16 = inlined_call_operand.vmem [shape: f32[1,3], index: 16, kind: input, shape index: {}]
  %s17 = inlined_call_operand.vmem [shape: bf16[2,16,256], index: 17, kind: output, shape index: {0}]
  %s18 = inlined_call_operand.vmem [shape: f32[2,16,6], index: 18, kind: output, shape index: {1}]
  %19 = xla_tuple %s17, %s18
  %s20 = sld [smem:[#allocation0]]
  $region109: #{spd_forward.11} parent=0
    _
  %s22 = ssub.s32 1, %s20
  %s23 = scalar_select 0, %s22, %s20
  loop: start=0, step=1, limit=4
  $region2: #{spd_forward.11} parent=0 // loop_pre_header
    _
  $region3: #{spd_forward.11} parent=0 // loop_header
    %s25 = sphi 0, %s29
    %p26 = scmp.ge.s32.totalorder %s25, 4
    %s32 = sphi 0, %s44
    %s33 = sphi 0, %s40
    %s34 = sphi 0, %s32
    %s35 = sphi 0, %s33
    %s36 = sphi 0, %s34
    %s37 = sphi 0, %s35
    %s49 = sphi 0, %s51
    %s52 = sphi 0, %s49
    %s53 = sphi 0, %s52
    %s69 = sphi 0, %s53
    %s77 = sphi 0, %s79
    %s80 = sphi 0, %s77
    %s81 = sphi 0, %s80
    %s97 = sphi 0, %s81
    %s101 = sphi 0, %s101
    %s103 = sphi 0, %s101
    %s104 = sphi 0, %s103
    %s118 = sphi 0, %s104
    %s122 = sphi 0, %s122
    %s124 = sphi 0, %s122
    %s125 = sphi 0, %s124
    %s139 = sphi 0, %s125
    %s143 = sphi 0, %s143
    %s145 = sphi 0, %s143
    %s146 = sphi 0, %s145
    %s160 = sphi 0, %s146
    %s164 = sphi 0, %s164
    %s166 = sphi 0, %s164
    %s167 = sphi 0, %s166
    %s181 = sphi 0, %s167
    %s185 = sphi 0, %s185
    %s187 = sphi 0, %s185
    %s188 = sphi 0, %s187
    %s202 = sphi 0, %s188
    %s206 = sphi 0, %s206
    %s208 = sphi 0, %s206
    %s209 = sphi 0, %s208
    %s223 = sphi 0, %s209
    %s227 = sphi 0, %s227
    %s229 = sphi 0, %s227
    %s230 = sphi 0, %s229
    %s244 = sphi 0, %s230
    %s248 = sphi 0, %s248
    %s250 = sphi 0, %s248
    %s251 = sphi 0, %s250
    %s265 = sphi 0, %s251
    %s269 = sphi 0, %s269
    %s271 = sphi 0, %s269
    %s272 = sphi 0, %s271
    %s286 = sphi 0, %s272
    %s290 = sphi 0, %s290
    %s292 = sphi 0, %s290
    %s293 = sphi 0, %s292
    %s307 = sphi 0, %s293
    %s311 = sphi 0, %s311
    %s313 = sphi 0, %s311
    %s314 = sphi 0, %s313
    %s328 = sphi 0, %s314
    %s332 = sphi 0, %s332
    %s334 = sphi 0, %s332
    %s335 = sphi 0, %s334
    %s349 = sphi 0, %s335
    %s353 = sphi 0, %s353
    %s355 = sphi 0, %s353
    %s356 = sphi 0, %s355
    %s370 = sphi 0, %s356
    %s374 = sphi 0, %s374
    %s376 = sphi 0, %s374
    %s377 = sphi 0, %s376
    %s391 = sphi 0, %s377
    %s395 = sphi 0, %s395
    %s397 = sphi 0, %s395
    %s398 = sphi 0, %s397
    %s412 = sphi 0, %s398
    %s420 = sphi 0, %s422
    %s423 = sphi 0, %s420
    %s424 = sphi 0, %s423
    %s440 = sphi 0, %s424
    %s448 = sphi 0, %s450
    %s451 = sphi 0, %s448
    %s452 = sphi 0, %s451
    %s468 = sphi 0, %s452
  $region4: #{spd_forward.11} parent=0 // loop_header_branch
    %28 = sbr.rel (%p26) target = $region8
  $region5: #{spd_forward.11} parent=0 // loop_body
    %s30 = ssub.s32 %s25, 1
    %s31 = ssub.s32 %s25, 2
    %s38 = sadd.s32 1, %s33
    %p39 = scmp.ge.s32.totalorder %s38, 1
    %s40 = scalar_select %p39, 0, %s38
    %s41 = sadd.s32 1, %s32
    %s42 = scalar_select %p39, %s41, %s32
    %p43 = scmp.ge.s32.totalorder %s42, 2
    %s44 = scalar_select %p43, 0, %s42
    %s45 = ssub.s32 %s32, %s44
    %s46 = ssub.s32 %s33, %s40
    %s47 = sor.u32 %s45, %s46
    %p48 = scmp.eq.s32.totalorder %s47, 0
    %s50 = sadd.s32 %s49, 1
    %s51 = scalar_select %p48, %s49, %s50
    %p54 = pneg %p48
    %p55 = scmp.eq.s32.totalorder %s25, 1
    %p56 = por %p54, %p55
    %p57 = scmp.ne.s32.totalorder %s49, %s52
    %p58 = scmp.eq.s32.totalorder %s25, 0
    %p59 = por %p57, %p58
    %p60 = scmp.ne.s32.totalorder %s49, %s52
    %p61 = scmp.eq.s32.totalorder %s30, 1
    %p62 = por %p60, %p61
    %p63 = scmp.ne.s32.totalorder %s52, %s53
    %p64 = scmp.eq.s32.totalorder %s30, 0
    %p65 = por %p63, %p64
    %p66 = scmp.ne.s32.totalorder %s52, %s53
    %p67 = scmp.eq.s32.totalorder %s31, 1
    %p68 = por %p66, %p67
    %p70 = scmp.ne.s32.totalorder %s53, %s69
    %p71 = scmp.eq.s32.totalorder %s31, 0
    %p72 = por %p70, %p71
    %s73 = ssub.s32 %s32, %s44
    %s74 = ssub.s32 %s33, %s40
    %s75 = sor.u32 %s73, %s74
    %p76 = scmp.eq.s32.totalorder %s75, 0
    %s78 = sadd.s32 %s77, 1
    %s79 = scalar_select %p76, %s77, %s78
    %p82 = pneg %p76
    %p83 = scmp.eq.s32.totalorder %s25, 1
    %p84 = por %p82, %p83
    %p85 = scmp.ne.s32.totalorder %s77, %s80
    %p86 = scmp.eq.s32.totalorder %s25, 0
    %p87 = por %p85, %p86
    %p88 = scmp.ne.s32.totalorder %s77, %s80
    %p89 = scmp.eq.s32.totalorder %s30, 1
    %p90 = por %p88, %p89
    %p91 = scmp.ne.s32.totalorder %s80, %s81
    %p92 = scmp.eq.s32.totalorder %s30, 0
    %p93 = por %p91, %p92
    %p94 = scmp.ne.s32.totalorder %s80, %s81
    %p95 = scmp.eq.s32.totalorder %s31, 1
    %p96 = por %p94, %p95
    %p98 = scmp.ne.s32.totalorder %s81, %s97
    %p99 = scmp.eq.s32.totalorder %s31, 0
    %p100 = por %p98, %p99
    %s102 = sadd.s32 %s101, 1
    %p105 = scmp.eq.s32.totalorder %s25, 1
    %p106 = scmp.ne.s32.totalorder %s101, %s103
    %p107 = scmp.eq.s32.totalorder %s25, 0
    %p108 = por %p106, %p107
    %p109 = scmp.ne.s32.totalorder %s101, %s103
    %p110 = scmp.eq.s32.totalorder %s30, 1
    %p111 = por %p109, %p110
    %p112 = scmp.ne.s32.totalorder %s103, %s104
    %p113 = scmp.eq.s32.totalorder %s30, 0
    %p114 = por %p112, %p113
    %p115 = scmp.ne.s32.totalorder %s103, %s104
    %p116 = scmp.eq.s32.totalorder %s31, 1
    %p117 = por %p115, %p116
    %p119 = scmp.ne.s32.totalorder %s104, %s118
    %p120 = scmp.eq.s32.totalorder %s31, 0
    %p121 = por %p119, %p120
    %s123 = sadd.s32 %s122, 1
    %p126 = scmp.eq.s32.totalorder %s25, 1
    %p127 = scmp.ne.s32.totalorder %s122, %s124
    %p128 = scmp.eq.s32.totalorder %s25, 0
    %p129 = por %p127, %p128
    %p130 = scmp.ne.s32.totalorder %s122, %s124
    %p131 = scmp.eq.s32.totalorder %s30, 1
    %p132 = por %p130, %p131
    %p133 = scmp.ne.s32.totalorder %s124, %s125
    %p134 = scmp.eq.s32.totalorder %s30, 0
    %p135 = por %p133, %p134
    %p136 = scmp.ne.s32.totalorder %s124, %s125
    %p137 = scmp.eq.s32.totalorder %s31, 1
    %p138 = por %p136, %p137
    %p140 = scmp.ne.s32.totalorder %s125, %s139
    %p141 = scmp.eq.s32.totalorder %s31, 0
    %p142 = por %p140, %p141
    %s144 = sadd.s32 %s143, 1
    %p147 = scmp.eq.s32.totalorder %s25, 1
    %p148 = scmp.ne.s32.totalorder %s143, %s145
    %p149 = scmp.eq.s32.totalorder %s25, 0
    %p150 = por %p148, %p149
    %p151 = scmp.ne.s32.totalorder %s143, %s145
    %p152 = scmp.eq.s32.totalorder %s30, 1
    %p153 = por %p151, %p152
    %p154 = scmp.ne.s32.totalorder %s145, %s146
    %p155 = scmp.eq.s32.totalorder %s30, 0
    %p156 = por %p154, %p155
    %p157 = scmp.ne.s32.totalorder %s145, %s146
    %p158 = scmp.eq.s32.totalorder %s31, 1
    %p159 = por %p157, %p158
    %p161 = scmp.ne.s32.totalorder %s146, %s160
    %p162 = scmp.eq.s32.totalorder %s31, 0
    %p163 = por %p161, %p162
    %s165 = sadd.s32 %s164, 1
    %p168 = scmp.eq.s32.totalorder %s25, 1
    %p169 = scmp.ne.s32.totalorder %s164, %s166
    %p170 = scmp.eq.s32.totalorder %s25, 0
    %p171 = por %p169, %p170
    %p172 = scmp.ne.s32.totalorder %s164, %s166
    %p173 = scmp.eq.s32.totalorder %s30, 1
    %p174 = por %p172, %p173
    %p175 = scmp.ne.s32.totalorder %s166, %s167
    %p176 = scmp.eq.s32.totalorder %s30, 0
    %p177 = por %p175, %p176
    %p178 = scmp.ne.s32.totalorder %s166, %s167
    %p179 = scmp.eq.s32.totalorder %s31, 1
    %p180 = por %p178, %p179
    %p182 = scmp.ne.s32.totalorder %s167, %s181
    %p183 = scmp.eq.s32.totalorder %s31, 0
    %p184 = por %p182, %p183
    %s186 = sadd.s32 %s185, 1
    %p189 = scmp.eq.s32.totalorder %s25, 1
    %p190 = scmp.ne.s32.totalorder %s185, %s187
    %p191 = scmp.eq.s32.totalorder %s25, 0
    %p192 = por %p190, %p191
    %p193 = scmp.ne.s32.totalorder %s185, %s187
    %p194 = scmp.eq.s32.totalorder %s30, 1
    %p195 = por %p193, %p194
    %p196 = scmp.ne.s32.totalorder %s187, %s188
    %p197 = scmp.eq.s32.totalorder %s30, 0
    %p198 = por %p196, %p197
    %p199 = scmp.ne.s32.totalorder %s187, %s188
    %p200 = scmp.eq.s32.totalorder %s31, 1
    %p201 = por %p199, %p200
    %p203 = scmp.ne.s32.totalorder %s188, %s202
    %p204 = scmp.eq.s32.totalorder %s31, 0
    %p205 = por %p203, %p204
    %s207 = sadd.s32 %s206, 1
    %p210 = scmp.eq.s32.totalorder %s25, 1
    %p211 = scmp.ne.s32.totalorder %s206, %s208
    %p212 = scmp.eq.s32.totalorder %s25, 0
    %p213 = por %p211, %p212
    %p214 = scmp.ne.s32.totalorder %s206, %s208
    %p215 = scmp.eq.s32.totalorder %s30, 1
    %p216 = por %p214, %p215
    %p217 = scmp.ne.s32.totalorder %s208, %s209
    %p218 = scmp.eq.s32.totalorder %s30, 0
    %p219 = por %p217, %p218
    %p220 = scmp.ne.s32.totalorder %s208, %s209
    %p221 = scmp.eq.s32.totalorder %s31, 1
    %p222 = por %p220, %p221
    %p224 = scmp.ne.s32.totalorder %s209, %s223
    %p225 = scmp.eq.s32.totalorder %s31, 0
    %p226 = por %p224, %p225
    %s228 = sadd.s32 %s227, 1
    %p231 = scmp.eq.s32.totalorder %s25, 1
    %p232 = scmp.ne.s32.totalorder %s227, %s229
    %p233 = scmp.eq.s32.totalorder %s25, 0
    %p234 = por %p232, %p233
    %p235 = scmp.ne.s32.totalorder %s227, %s229
    %p236 = scmp.eq.s32.totalorder %s30, 1
    %p237 = por %p235, %p236
    %p238 = scmp.ne.s32.totalorder %s229, %s230
    %p239 = scmp.eq.s32.totalorder %s30, 0
    %p240 = por %p238, %p239
    %p241 = scmp.ne.s32.totalorder %s229, %s230
    %p242 = scmp.eq.s32.totalorder %s31, 1
    %p243 = por %p241, %p242
    %p245 = scmp.ne.s32.totalorder %s230, %s244
    %p246 = scmp.eq.s32.totalorder %s31, 0
    %p247 = por %p245, %p246
    %s249 = sadd.s32 %s248, 1
    %p252 = scmp.eq.s32.totalorder %s25, 1
    %p253 = scmp.ne.s32.totalorder %s248, %s250
    %p254 = scmp.eq.s32.totalorder %s25, 0
    %p255 = por %p253, %p254
    %p256 = scmp.ne.s32.totalorder %s248, %s250
    %p257 = scmp.eq.s32.totalorder %s30, 1
    %p258 = por %p256, %p257
    %p259 = scmp.ne.s32.totalorder %s250, %s251
    %p260 = scmp.eq.s32.totalorder %s30, 0
    %p261 = por %p259, %p260
    %p262 = scmp.ne.s32.totalorder %s250, %s251
    %p263 = scmp.eq.s32.totalorder %s31, 1
    %p264 = por %p262, %p263
    %p266 = scmp.ne.s32.totalorder %s251, %s265
    %p267 = scmp.eq.s32.totalorder %s31, 0
    %p268 = por %p266, %p267
    %s270 = sadd.s32 %s269, 1
    %p273 = scmp.eq.s32.totalorder %s25, 1
    %p274 = scmp.ne.s32.totalorder %s269, %s271
    %p275 = scmp.eq.s32.totalorder %s25, 0
    %p276 = por %p274, %p275
    %p277 = scmp.ne.s32.totalorder %s269, %s271
    %p278 = scmp.eq.s32.totalorder %s30, 1
    %p279 = por %p277, %p278
    %p280 = scmp.ne.s32.totalorder %s271, %s272
    %p281 = scmp.eq.s32.totalorder %s30, 0
    %p282 = por %p280, %p281
    %p283 = scmp.ne.s32.totalorder %s271, %s272
    %p284 = scmp.eq.s32.totalorder %s31, 1
    %p285 = por %p283, %p284
    %p287 = scmp.ne.s32.totalorder %s272, %s286
    %p288 = scmp.eq.s32.totalorder %s31, 0
    %p289 = por %p287, %p288
    %s291 = sadd.s32 %s290, 1
    %p294 = scmp.eq.s32.totalorder %s25, 1
    %p295 = scmp.ne.s32.totalorder %s290, %s292
    %p296 = scmp.eq.s32.totalorder %s25, 0
    %p297 = por %p295, %p296
    %p298 = scmp.ne.s32.totalorder %s290, %s292
    %p299 = scmp.eq.s32.totalorder %s30, 1
    %p300 = por %p298, %p299
    %p301 = scmp.ne.s32.totalorder %s292, %s293
    %p302 = scmp.eq.s32.totalorder %s30, 0
    %p303 = por %p301, %p302
    %p304 = scmp.ne.s32.totalorder %s292, %s293
    %p305 = scmp.eq.s32.totalorder %s31, 1
    %p306 = por %p304, %p305
    %p308 = scmp.ne.s32.totalorder %s293, %s307
    %p309 = scmp.eq.s32.totalorder %s31, 0
    %p310 = por %p308, %p309
    %s312 = sadd.s32 %s311, 1
    %p315 = scmp.eq.s32.totalorder %s25, 1
    %p316 = scmp.ne.s32.totalorder %s311, %s313
    %p317 = scmp.eq.s32.totalorder %s25, 0
    %p318 = por %p316, %p317
    %p319 = scmp.ne.s32.totalorder %s311, %s313
    %p320 = scmp.eq.s32.totalorder %s30, 1
    %p321 = por %p319, %p320
    %p322 = scmp.ne.s32.totalorder %s313, %s314
    %p323 = scmp.eq.s32.totalorder %s30, 0
    %p324 = por %p322, %p323
    %p325 = scmp.ne.s32.totalorder %s313, %s314
    %p326 = scmp.eq.s32.totalorder %s31, 1
    %p327 = por %p325, %p326
    %p329 = scmp.ne.s32.totalorder %s314, %s328
    %p330 = scmp.eq.s32.totalorder %s31, 0
    %p331 = por %p329, %p330
    %s333 = sadd.s32 %s332, 1
    %p336 = scmp.eq.s32.totalorder %s25, 1
    %p337 = scmp.ne.s32.totalorder %s332, %s334
    %p338 = scmp.eq.s32.totalorder %s25, 0
    %p339 = por %p337, %p338
    %p340 = scmp.ne.s32.totalorder %s332, %s334
    %p341 = scmp.eq.s32.totalorder %s30, 1
    %p342 = por %p340, %p341
    %p343 = scmp.ne.s32.totalorder %s334, %s335
    %p344 = scmp.eq.s32.totalorder %s30, 0
    %p345 = por %p343, %p344
    %p346 = scmp.ne.s32.totalorder %s334, %s335
    %p347 = scmp.eq.s32.totalorder %s31, 1
    %p348 = por %p346, %p347
    %p350 = scmp.ne.s32.totalorder %s335, %s349
    %p351 = scmp.eq.s32.totalorder %s31, 0
    %p352 = por %p350, %p351
    %s354 = sadd.s32 %s353, 1
    %p357 = scmp.eq.s32.totalorder %s25, 1
    %p358 = scmp.ne.s32.totalorder %s353, %s355
    %p359 = scmp.eq.s32.totalorder %s25, 0
    %p360 = por %p358, %p359
    %p361 = scmp.ne.s32.totalorder %s353, %s355
    %p362 = scmp.eq.s32.totalorder %s30, 1
    %p363 = por %p361, %p362
    %p364 = scmp.ne.s32.totalorder %s355, %s356
    %p365 = scmp.eq.s32.totalorder %s30, 0
    %p366 = por %p364, %p365
    %p367 = scmp.ne.s32.totalorder %s355, %s356
    %p368 = scmp.eq.s32.totalorder %s31, 1
    %p369 = por %p367, %p368
    %p371 = scmp.ne.s32.totalorder %s356, %s370
    %p372 = scmp.eq.s32.totalorder %s31, 0
    %p373 = por %p371, %p372
    %s375 = sadd.s32 %s374, 1
    %p378 = scmp.eq.s32.totalorder %s25, 1
    %p379 = scmp.ne.s32.totalorder %s374, %s376
    %p380 = scmp.eq.s32.totalorder %s25, 0
    %p381 = por %p379, %p380
    %p382 = scmp.ne.s32.totalorder %s374, %s376
    %p383 = scmp.eq.s32.totalorder %s30, 1
    %p384 = por %p382, %p383
    %p385 = scmp.ne.s32.totalorder %s376, %s377
    %p386 = scmp.eq.s32.totalorder %s30, 0
    %p387 = por %p385, %p386
    %p388 = scmp.ne.s32.totalorder %s376, %s377
    %p389 = scmp.eq.s32.totalorder %s31, 1
    %p390 = por %p388, %p389
    %p392 = scmp.ne.s32.totalorder %s377, %s391
    %p393 = scmp.eq.s32.totalorder %s31, 0
    %p394 = por %p392, %p393
    %s396 = sadd.s32 %s395, 1
    %p399 = scmp.eq.s32.totalorder %s25, 1
    %p400 = scmp.ne.s32.totalorder %s395, %s397
    %p401 = scmp.eq.s32.totalorder %s25, 0
    %p402 = por %p400, %p401
    %p403 = scmp.ne.s32.totalorder %s395, %s397
    %p404 = scmp.eq.s32.totalorder %s30, 1
    %p405 = por %p403, %p404
    %p406 = scmp.ne.s32.totalorder %s397, %s398
    %p407 = scmp.eq.s32.totalorder %s30, 0
    %p408 = por %p406, %p407
    %p409 = scmp.ne.s32.totalorder %s397, %s398
    %p410 = scmp.eq.s32.totalorder %s31, 1
    %p411 = por %p409, %p410
    %p413 = scmp.ne.s32.totalorder %s398, %s412
    %p414 = scmp.eq.s32.totalorder %s31, 0
    %p415 = por %p413, %p414
    %s416 = ssub.s32 %s32, %s44
    %s417 = ssub.s32 %s33, %s40
    %s418 = sor.u32 %s416, %s417
    %p419 = scmp.eq.s32.totalorder %s418, 0
    %s421 = sadd.s32 %s420, 1
    %s422 = scalar_select %p419, %s420, %s421
    %p425 = pneg %p419
    %p426 = scmp.eq.s32.totalorder %s25, 1
    %p427 = por %p425, %p426
    %p428 = scmp.ne.s32.totalorder %s420, %s423
    %p429 = scmp.eq.s32.totalorder %s25, 0
    %p430 = por %p428, %p429
    %p431 = scmp.ne.s32.totalorder %s420, %s423
    %p432 = scmp.eq.s32.totalorder %s30, 1
    %p433 = por %p431, %p432
    %p434 = scmp.ne.s32.totalorder %s423, %s424
    %p435 = scmp.eq.s32.totalorder %s30, 0
    %p436 = por %p434, %p435
    %p437 = scmp.ne.s32.totalorder %s423, %s424
    %p438 = scmp.eq.s32.totalorder %s31, 1
    %p439 = por %p437, %p438
    %p441 = scmp.ne.s32.totalorder %s424, %s440
    %p442 = scmp.eq.s32.totalorder %s31, 0
    %p443 = por %p441, %p442
    %s444 = ssub.s32 %s32, %s44
    %s445 = ssub.s32 %s33, %s40
    %s446 = sor.u32 %s444, %s445
    %p447 = scmp.eq.s32.totalorder %s446, 0
    %s449 = sadd.s32 %s448, 1
    %s450 = scalar_select %p447, %s448, %s449
    %p453 = pneg %p447
    %p454 = scmp.eq.s32.totalorder %s25, 1
    %p455 = por %p453, %p454
    %p456 = scmp.ne.s32.totalorder %s448, %s451
    %p457 = scmp.eq.s32.totalorder %s25, 0
    %p458 = por %p456, %p457
    %p459 = scmp.ne.s32.totalorder %s448, %s451
    %p460 = scmp.eq.s32.totalorder %s30, 1
    %p461 = por %p459, %p460
    %p462 = scmp.ne.s32.totalorder %s451, %s452
    %p463 = scmp.eq.s32.totalorder %s30, 0
    %p464 = por %p462, %p463
    %p465 = scmp.ne.s32.totalorder %s451, %s452
    %p466 = scmp.eq.s32.totalorder %s31, 1
    %p467 = por %p465, %p466
    %p469 = scmp.ne.s32.totalorder %s452, %s468
    %p470 = scmp.eq.s32.totalorder %s31, 0
    %p471 = por %p469, %p470
    %p472 = scmp.le.s32.totalorder 1, %s25
    %p473 = scmp.lt.s32.totalorder %s25, 3
    %p474 = pnand %p472, %p473
    %p475 = pneg %p474
    // Predicated region
    $region9: #{spd_forward.11} parent=5 // pred_check
      _
    $region10: #{spd_forward.11} parent=5 // pred_check_branch
      %477 = sbr.rel (%p474) target = $region12
    $region11: #{spd_forward.11} parent=5 // pred_region
      %s478 = ssub.s32 %s25, 1
      // Predicated region
      $region13: #{spd_forward.11} parent=11 // pred_check
        %p479 = pneg %p114
      $region14: #{spd_forward.11} parent=11 // pred_check_branch
        %481 = sbr.rel (%p479) target = $region16
      $region15: #{spd_forward.11} parent=11 // pred_region
        _
      $region16: #{spd_forward.11} parent=11 // pred_fallthru
        _
      // Predicated region
      $region17: #{spd_forward.11} parent=11 // pred_check
        %p482 = pneg %p135
      $region18: #{spd_forward.11} parent=11 // pred_check_branch
        %484 = sbr.rel (%p482) target = $region20
      $region19: #{spd_forward.11} parent=11 // pred_region
        _
      $region20: #{spd_forward.11} parent=11 // pred_fallthru
        _
      // Predicated region
      $region21: #{spd_forward.11} parent=11 // pred_check
        %p485 = pneg %p156
      $region22: #{spd_forward.11} parent=11 // pred_check_branch
        %487 = sbr.rel (%p485) target = $region24
      $region23: #{spd_forward.11} parent=11 // pred_region
        _
      $region24: #{spd_forward.11} parent=11 // pred_fallthru
        _
      // Predicated region
      $region25: #{spd_forward.11} parent=11 // pred_check
        %p488 = pneg %p177
      $region26: #{spd_forward.11} parent=11 // pred_check_branch
        %490 = sbr.rel (%p488) target = $region28
      $region27: #{spd_forward.11} parent=11 // pred_region
        _
      $region28: #{spd_forward.11} parent=11 // pred_fallthru
        _
      // Predicated region
      $region29: #{spd_forward.11} parent=11 // pred_check
        %p491 = pneg %p198
      $region30: #{spd_forward.11} parent=11 // pred_check_branch
        %493 = sbr.rel (%p491) target = $region32
      $region31: #{spd_forward.11} parent=11 // pred_region
        _
      $region32: #{spd_forward.11} parent=11 // pred_fallthru
        _
      // Predicated region
      $region33: #{spd_forward.11} parent=11 // pred_check
        %p494 = pneg %p219
      $region34: #{spd_forward.11} parent=11 // pred_check_branch
        %496 = sbr.rel (%p494) target = $region36
      $region35: #{spd_forward.11} parent=11 // pred_region
        _
      $region36: #{spd_forward.11} parent=11 // pred_fallthru
        _
      // Predicated region
      $region37: #{spd_forward.11} parent=11 // pred_check
        %p497 = pneg %p240
      $region38: #{spd_forward.11} parent=11 // pred_check_branch
        %499 = sbr.rel (%p497) target = $region40
      $region39: #{spd_forward.11} parent=11 // pred_region
        _
      $region40: #{spd_forward.11} parent=11 // pred_fallthru
        _
      // Predicated region
      $region41: #{spd_forward.11} parent=11 // pred_check
        %p500 = pneg %p261
      $region42: #{spd_forward.11} parent=11 // pred_check_branch
        %502 = sbr.rel (%p500) target = $region44
      $region43: #{spd_forward.11} parent=11 // pred_region
        _
      $region44: #{spd_forward.11} parent=11 // pred_fallthru
        _
      // Predicated region
      $region45: #{spd_forward.11} parent=11 // pred_check
        %p503 = pneg %p282
      $region46: #{spd_forward.11} parent=11 // pred_check_branch
        %505 = sbr.rel (%p503) target = $region48
      $region47: #{spd_forward.11} parent=11 // pred_region
        _
      $region48: #{spd_forward.11} parent=11 // pred_fallthru
        _
      // Predicated region
      $region49: #{spd_forward.11} parent=11 // pred_check
        %p506 = pneg %p303
      $region50: #{spd_forward.11} parent=11 // pred_check_branch
        %508 = sbr.rel (%p506) target = $region52
      $region51: #{spd_forward.11} parent=11 // pred_region
        _
      $region52: #{spd_forward.11} parent=11 // pred_fallthru
        _
      // Predicated region
      $region53: #{spd_forward.11} parent=11 // pred_check
        %p509 = pneg %p324
      $region54: #{spd_forward.11} parent=11 // pred_check_branch
        %511 = sbr.rel (%p509) target = $region56
      $region55: #{spd_forward.11} parent=11 // pred_region
        _
      $region56: #{spd_forward.11} parent=11 // pred_fallthru
        _
      // Predicated region
      $region57: #{spd_forward.11} parent=11 // pred_check
        %p512 = pneg %p345
      $region58: #{spd_forward.11} parent=11 // pred_check_branch
        %514 = sbr.rel (%p512) target = $region60
      $region59: #{spd_forward.11} parent=11 // pred_region
        _
      $region60: #{spd_forward.11} parent=11 // pred_fallthru
        _
      // Predicated region
      $region61: #{spd_forward.11} parent=11 // pred_check
        %p515 = pneg %p366
      $region62: #{spd_forward.11} parent=11 // pred_check_branch
        %517 = sbr.rel (%p515) target = $region64
      $region63: #{spd_forward.11} parent=11 // pred_region
        _
      $region64: #{spd_forward.11} parent=11 // pred_fallthru
        _
      // Predicated region
      $region65: #{spd_forward.11} parent=11 // pred_check
        %p518 = pneg %p387
      $region66: #{spd_forward.11} parent=11 // pred_check_branch
        %520 = sbr.rel (%p518) target = $region68
      $region67: #{spd_forward.11} parent=11 // pred_region
        _
      $region68: #{spd_forward.11} parent=11 // pred_fallthru
        _
      // Predicated region
      $region69: #{spd_forward.11} parent=11 // pred_check
        %p521 = pneg %p408
      $region70: #{spd_forward.11} parent=11 // pred_check_branch
        %523 = sbr.rel (%p521) target = $region72
      $region71: #{spd_forward.11} parent=11 // pred_region
        _
      $region72: #{spd_forward.11} parent=11 // pred_fallthru
        _
    $region12: #{spd_forward.11} parent=5 // pred_fallthru
      _
    %p524 = scmp.lt.s32.totalorder %s25, 2
    // Predicated region
    $region73: #{spd_forward.11} parent=5 // pred_check
      %p525 = pneg %p524
    $region74: #{spd_forward.11} parent=5 // pred_check_branch
      %527 = sbr.rel (%p525) target = $region76
    $region75: #{spd_forward.11} parent=5 // pred_region
      // Predicated region
      $region77: #{spd_forward.11} parent=75 // pred_check
        %p528 = pneg %p59
      $region78: #{spd_forward.11} parent=75 // pred_check_branch
        %530 = sbr.rel (%p528) target = $region80
      $region79: #{spd_forward.11} parent=75 // pred_region
        %s531 = smul.u32 2, %s33
        %p532 = scmp.lt.s32.totalorder %s32, 1
        %s533 = scalar_select %p532, %s32, 1
        %p534 = scmp.lt.s32.totalorder %s531, 1
        %s535 = scalar_select %p534, %s531, 1
        %s536 = smul.addr %s533, 2
        %s537 = sadd.s32 %s535, %s536
        %s538 = smul.addr %s537, 4
        %s539 = scalar_lea.vmem %s0, %s538
        %s540 = smul.u32 2, %s33
      $region80: #{spd_forward.11} parent=75 // pred_fallthru
        _
      // Predicated region
      $region81: #{spd_forward.11} parent=75 // pred_check
        %p541 = pneg %p87
      $region82: #{spd_forward.11} parent=75 // pred_check_branch
        %543 = sbr.rel (%p541) target = $region84
      $region83: #{spd_forward.11} parent=75 // pred_region
        %s544 = smul.u32 2, %s33
        %p545 = scmp.lt.s32.totalorder %s32, 1
        %s546 = scalar_select %p545, %s32, 1
        %p547 = scmp.lt.s32.totalorder %s544, 1
        %s548 = scalar_select %p547, %s544, 1
        %s549 = smul.addr %s546, 2
        %s550 = sadd.s32 %s548, %s549
        %s551 = smul.addr %s550, 8
        %s552 = scalar_lea.vmem %s1, %s551
        %s553 = smul.u32 2, %s33
      $region84: #{spd_forward.11} parent=75 // pred_fallthru
        _
    $region76: #{spd_forward.11} parent=5 // pred_fallthru
      _
    %p554 = scmp.le.s32.totalorder 1, %s25
    %p555 = scmp.lt.s32.totalorder %s25, 3
    %p556 = pnand %p554, %p555
    %p557 = pneg %p556
    // Predicated region
    $region85: #{spd_forward.11} parent=5 // pred_check
      _
    $region86: #{spd_forward.11} parent=5 // pred_check_branch
      %559 = sbr.rel (%p556) target = $region88
    $region87: #{spd_forward.11} parent=5 // pred_region
      %s560 = ssub.s32 %s25, 1
      %s561 = smul.u32 2, %s35
      %p562 = scmp.lt.s32.totalorder %s34, 1
      %s563 = scalar_select %p562, %s34, 1
      %p564 = scmp.lt.s32.totalorder %s561, 1
      %s565 = scalar_select %p564, %s561, 1
      %s566 = smul.addr %s563, 2
      %s567 = sadd.s32 %s565, %s566
      %s568 = smul.addr %s567, 4
      %s569 = scalar_lea.vmem %s0, %s568
      %p570 = pneg %p65
      %p571 = pneg %p62
      %s572 = smul.u32 2, %s35
      %p573 = scmp.lt.s32.totalorder %s34, 1
      %s574 = scalar_select %p573, %s34, 1
      %p575 = scmp.lt.s32.totalorder %s572, 1
      %s576 = scalar_select %p575, %s572, 1
      %s577 = smul.addr %s574, 2
      %s578 = sadd.s32 %s576, %s577
      %s579 = smul.addr %s578, 8
      %s580 = scalar_lea.vmem %s1, %s579
      %p581 = pneg %p93
      %p582 = pneg %p90
      %p583 = pneg %p114
      %p584 = pneg %p111
      %p585 = pneg %p135
      %p586 = pneg %p132
      %p587 = pneg %p156
      %p588 = pneg %p153
      %p589 = pneg %p177
      %p590 = pneg %p174
      %p591 = pneg %p198
      %p592 = pneg %p195
      %p593 = pneg %p219
      %p594 = pneg %p216
      %p595 = pneg %p240
      %p596 = pneg %p237
      %p597 = pneg %p261
      %p598 = pneg %p258
      %p599 = pneg %p282
      %p600 = pneg %p279
      %p601 = pneg %p303
      %p602 = pneg %p300
      %p603 = pneg %p324
      %p604 = pneg %p321
      %p605 = pneg %p345
      %p606 = pneg %p342
      %p607 = pneg %p366
      %p608 = pneg %p363
      %p609 = pneg %p387
      %p610 = pneg %p384
      %p611 = pneg %p408
      %p612 = pneg %p405
      %p613 = pneg %p436
      %p614 = pneg %p433
      %s615 = smul.u32 2, %s35
      %p616 = scmp.lt.s32.totalorder %s34, 1
      %s617 = scalar_select %p616, %s34, 1
      %p618 = scmp.lt.s32.totalorder %s615, 1
      %s619 = scalar_select %p618, %s615, 1
      %s620 = smul.addr %s619, 2
      %s621 = smul.addr %s617, 4
      %s622 = sadd.s32 %s620, %s621
      %s623 = smul.addr %s622, 4
      %s624 = scalar_lea.vmem %s17, %s623
      %p625 = pneg %p464
      %p626 = pneg %p461
      %s627 = smul.u32 2, %s35
      %p628 = scmp.lt.s32.totalorder %s34, 1
      %s629 = scalar_select %p628, %s34, 1
      %p630 = scmp.lt.s32.totalorder %s627, 1
      %s631 = scalar_select %p630, %s627, 1
      %s632 = smul.addr %s629, 2
      %s633 = sadd.s32 %s631, %s632
      %s634 = smul.addr %s633, 8
      %s635 = scalar_lea.vmem %s18, %s634
      %s636 = smul.u32 2, %s35
      %p637 = scmp.lt.s32.totalorder %s34, 1
      %s638 = scalar_select %p637, %s34, 1
      %p639 = scmp.lt.s32.totalorder %s636, 1
      %s640 = scalar_select %p639, %s636, 1
      %s641 = smul.addr %s638, 2
      %s642 = sadd.s32 %s640, %s641
      %s643 = smul.addr %s642, 4
      %s644 = scalar_lea.vmem %s0, %s643
      %s645 = smul.u32 2, %s35
      %s646 = smul.u32 2, %s35
      %p647 = scmp.lt.s32.totalorder %s34, 1
      %s648 = scalar_select %p647, %s34, 1
      %p649 = scmp.lt.s32.totalorder %s646, 1
      %s650 = scalar_select %p649, %s646, 1
      %s651 = smul.addr %s648, 2
      %s652 = sadd.s32 %s650, %s651
      %s653 = smul.addr %s652, 8
      %s654 = scalar_lea.vmem %s1, %s653
      %s655 = smul.u32 2, %s35
      %s656 = smul.u32 2, %s35
      %p657 = scmp.lt.s32.totalorder %s34, 1
      %s658 = scalar_select %p657, %s34, 1
      %p659 = scmp.lt.s32.totalorder %s656, 1
      %s660 = scalar_select %p659, %s656, 1
      %s661 = smul.addr %s660, 2
      %s662 = smul.addr %s658, 4
      %s663 = sadd.s32 %s661, %s662
      %s664 = smul.addr %s663, 4
      %s665 = scalar_lea.vmem %s17, %s664
      %s666 = smul.u32 2, %s35
      %s667 = smul.u32 2, %s35
      %p668 = scmp.lt.s32.totalorder %s34, 1
      %s669 = scalar_select %p668, %s34, 1
      %p670 = scmp.lt.s32.totalorder %s667, 1
      %s671 = scalar_select %p670, %s667, 1
      %s672 = smul.addr %s669, 2
      %s673 = sadd.s32 %s671, %s672
      %s674 = smul.addr %s673, 8
      %s675 = scalar_lea.vmem %s18, %s674
      %s676 = smul.u32 2, %s35
      %v678 = vld [vmem:[%s644] sm:$0xf]
      %v679 = vld [vmem:[%s644 + $0x4] sm:$0xf]
      %v680 = vld [vmem:[%s654] sm:$0xff]
      %v681 = vld [vmem:[%s654 + $0x8] sm:$0xff]
      %v682 = vld [vmem:[%s2] sm:$0xf]
      %v683 = vld [vmem:[%s2 + $0x4] sm:$0xf]
      %v684 = vld [vmem:[%s2 + $0x8] sm:$0xf]
      %v685 = vld [vmem:[%s2 + $0xc] sm:$0xf]
      %v686 = vld [vmem:[%s2 + $0x10] sm:$0xf]
      %v687 = vld [vmem:[%s2 + $0x14] sm:$0xf]
      %v688 = vld [vmem:[%s2 + $0x18] sm:$0xf]
      %v689 = vld [vmem:[%s2 + $0x1c] sm:$0xf]
      %v690 = vld [vmem:[%s2 + $0x20] sm:$0xf]
      %v691 = vld [vmem:[%s2 + $0x24] sm:$0xf]
      %v692 = vld [vmem:[%s2 + $0x28] sm:$0xf]
      %v693 = vld [vmem:[%s2 + $0x2c] sm:$0xf]
      %v694 = vld [vmem:[%s2 + $0x30] sm:$0xf]
      %v695 = vld [vmem:[%s2 + $0x34] sm:$0xf]
      %v696 = vld [vmem:[%s2 + $0x38] sm:$0xf]
      %v697 = vld [vmem:[%s2 + $0x3c] sm:$0xf]
      %v698 = vld [vmem:[%s3] sm:$0x1]
      %v700 = vlaneseq
      %v701 = vshrl.u32 %v700, 7
      %v702 = vsub.s32 0, %v701
      %v703 = vrot.slane %v698, %v702
      %v707 = vunpack.c.l.b16 %v678
      %v708 = vunpack.c.l.b16 %v679
      %v709 = vpack.c.b16 %v708, %v707
      %v727 = vunpack.c.l.b16 %v682
      %v728 = vunpack.c.l.b16 %v683
      %v729 = vunpack.c.l.b16 %v684
      %v730 = vunpack.c.l.b16 %v685
      %v731 = vunpack.c.l.b16 %v686
      %v732 = vunpack.c.l.b16 %v687
      %v733 = vunpack.c.l.b16 %v688
      %v734 = vunpack.c.l.b16 %v689
      %v735 = vunpack.c.l.b16 %v690
      %v736 = vunpack.c.l.b16 %v691
      %v737 = vunpack.c.l.b16 %v692
      %v738 = vunpack.c.l.b16 %v693
      %v739 = vunpack.c.l.b16 %v694
      %v740 = vunpack.c.l.b16 %v695
      %v741 = vunpack.c.l.b16 %v696
      %v742 = vunpack.c.l.b16 %v697
      %v743 = vpack.c.b16 %v728, %v727
      %v744 = vpack.c.b16 %v730, %v729
      %v745 = vpack.c.b16 %v732, %v731
      %v746 = vpack.c.b16 %v734, %v733
      %v747 = vpack.c.b16 %v736, %v735
      %v748 = vpack.c.b16 %v738, %v737
      %v749 = vpack.c.b16 %v740, %v739
      %v750 = vpack.c.b16 %v742, %v741
      %759 = vmatprep.subr.bf16.mxu0 0
      %760 = vmatpush1.bf16.msra.mxu0 %v750
      %761 = vmatprep.subr.bf16.mxu0 0
      %762 = vmatpush1.bf16.msra.mxu0 %v749
      %763 = vmatprep.subr.bf16.mxu0 0
      %764 = vmatpush1.bf16.msra.mxu0 %v748
      %765 = vmatprep.subr.bf16.mxu0 0
      %766 = vmatpush1.bf16.msra.mxu0 %v747
      %767 = vmatprep.subr.bf16.mxu0 0
      %768 = vmatpush1.bf16.msra.mxu0 %v746
      %769 = vmatprep.subr.bf16.mxu0 0
      %770 = vmatpush1.bf16.msra.mxu0 %v745
      %771 = vmatprep.subr.bf16.mxu0 0
      %772 = vmatpush1.bf16.msra.mxu0 %v744
      %773 = vmatprep.subr.bf16.mxu0 0
      %774 = vmatpush1.bf16.msra.mxu0 %v743
      %775 = vmatprep.subr.bf16.mxu0 0
      %776 = vmatpush2.bf16.msra.mxu0 0
      %777 = vmatprep.subr.bf16.mxu0 0
      %778 = vmatpush2.bf16.msra.mxu0 0
      %779 = vmatprep.subr.bf16.mxu0 0
      %780 = vmatpush2.bf16.msra.mxu0 0
      %781 = vmatprep.subr.bf16.mxu0 0
      %782 = vmatpush2.bf16.msra.mxu0 0
      %783 = vmatprep.subr.bf16.mxu0 0
      %784 = vmatpush2.bf16.msra.mxu0 0
      %785 = vmatprep.subr.bf16.mxu0 0
      %786 = vmatpush2.bf16.msra.mxu0 0
      %787 = vmatprep.subr.bf16.mxu0 0
      %788 = vmatpush2.bf16.msra.mxu0 0
      %789 = vmatprep.subr.bf16.mxu0 0
      %790 = vmatpush2.bf16.msra.mxu0 0
      %791 = vmatprep.mubr.bf16.mxu0 0
      %792 = vmatmul.mubr.bf16.gmra.mxu0 %v709
      %v793 = vpop.f32.mrf.mxu0
      %v794 = vadd.f32 %v703, %v793
      %v795 = vpop.f32.mrf.mxu0
      %v796 = vpop.f32.mrf.mxu0
      %v797 = vadd.f32 %v703, %v796
      %v798 = vpop.f32.mrf.mxu0
      %799 = vdwg.mxu0
      %v800 = vmax.f32 %v794, 0.0
      %v801 = vmax.f32 %v797, 0.0
      %v802 = vld [vmem:[%s4] sm:$0xf]
      %v803 = vld [vmem:[%s4 + $0x4] sm:$0xf]
      %v804 = vld [vmem:[%s4 + $0x8] sm:$0xf]
      %v805 = vld [vmem:[%s4 + $0xc] sm:$0xf]
      %v806 = vld [vmem:[%s4 + $0x10] sm:$0xf]
      %v807 = vld [vmem:[%s4 + $0x14] sm:$0xf]
      %v808 = vld [vmem:[%s4 + $0x18] sm:$0xf]
      %v809 = vld [vmem:[%s4 + $0x1c] sm:$0xf]
      %v810 = vpack.c.bf16 %v801, %v800
      %v811 = vld [vmem:[%s5] sm:$0x1]
      %v813 = vlaneseq
      %v814 = vshrl.u32 %v813, 7
      %v815 = vsub.s32 0, %v814
      %v816 = vrot.slane %v811, %v815
      %v826 = vunpack.c.l.b16 %v802
      %v827 = vunpack.c.l.b16 %v803
      %v828 = vunpack.c.l.b16 %v804
      %v829 = vunpack.c.l.b16 %v805
      %v830 = vunpack.c.l.b16 %v806
      %v831 = vunpack.c.l.b16 %v807
      %v832 = vunpack.c.l.b16 %v808
      %v833 = vunpack.c.l.b16 %v809
      %v834 = vpack.c.b16 %v827, %v826
      %v835 = vpack.c.b16 %v829, %v828
      %v836 = vpack.c.b16 %v831, %v830
      %v837 = vpack.c.b16 %v833, %v832
      %vm842 = vcmask 523264
      %v844 = vsel %vm842, %v810, 0
      %846 = vmatprep.subr.bf16.mxu0 0
      %847 = vmatpush1.bf16.msra.mxu0 0
      %848 = vmatprep.subr.bf16.mxu0 0
      %849 = vmatpush1.bf16.msra.mxu0 0
      %850 = vmatprep.subr.bf16.mxu0 0
      %851 = vmatpush1.bf16.msra.mxu0 0
      %852 = vmatprep.subr.bf16.mxu0 0
      %853 = vmatpush1.bf16.msra.mxu0 0
      %854 = vmatprep.subr.bf16.mxu0 0
      %855 = vmatpush1.bf16.msra.mxu0 %v837
      %856 = vmatprep.subr.bf16.mxu0 0
      %857 = vmatpush1.bf16.msra.mxu0 %v836
      %858 = vmatprep.subr.bf16.mxu0 0
      %859 = vmatpush1.bf16.msra.mxu0 %v835
      %860 = vmatprep.subr.bf16.mxu0 0
      %861 = vmatpush1.bf16.msra.mxu0 %v834
      %862 = vmatprep.subr.bf16.mxu0 0
      %863 = vmatpush2.bf16.msra.mxu0 0
      %864 = vmatprep.subr.bf16.mxu0 0
      %865 = vmatpush2.bf16.msra.mxu0 0
      %866 = vmatprep.subr.bf16.mxu0 0
      %867 = vmatpush2.bf16.msra.mxu0 0
      %868 = vmatprep.subr.bf16.mxu0 0
      %869 = vmatpush2.bf16.msra.mxu0 0
      %870 = vmatprep.subr.bf16.mxu0 0
      %871 = vmatpush2.bf16.msra.mxu0 0
      %872 = vmatprep.subr.bf16.mxu0 0
      %873 = vmatpush2.bf16.msra.mxu0 0
      %874 = vmatprep.subr.bf16.mxu0 0
      %875 = vmatpush2.bf16.msra.mxu0 0
      %876 = vmatprep.subr.bf16.mxu0 0
      %877 = vmatpush2.bf16.msra.mxu0 0
      %878 = vmatprep.mubr.bf16.mxu0 0
      %879 = vmatmul.mubr.bf16.gmra.mxu0 %v844
      %v880 = vpop.f32.mrf.mxu0
      %v881 = vadd.f32 %v816, %v880
      %v882 = vpop.f32.mrf.mxu0
      %v883 = vpop.f32.mrf.mxu0
      %v884 = vadd.f32 %v816, %v883
      %v885 = vpop.f32.mrf.mxu0
      %886 = vdwg.mxu0
      %v887 = vld [vmem:[%s6] sm:$0xff]
      %v888 = vld [vmem:[%s6 + $0x8] sm:$0xff]
      %v889 = vld [vmem:[%s6 + $0x10] sm:$0xff]
      %v890 = vld [vmem:[%s6 + $0x18] sm:$0xff]
      %v891 = vpack.c.bf16 %v884, %v881
      %v896 = vunpack.c.l.b16 %v887
      %v897 = vunpack.c.h.b16 %v887
      %v898 = vunpack.c.l.b16 %v888
      %v899 = vunpack.c.h.b16 %v888
      %v900 = vunpack.c.l.b16 %v889
      %v901 = vunpack.c.h.b16 %v889
      %v902 = vunpack.c.l.b16 %v890
      %v903 = vunpack.c.h.b16 %v890
      %v904 = vpack.c.b16 %v898, %v896
      %v905 = vpack.c.b16 %v899, %v897
      %v906 = vpack.c.b16 %v902, %v900
      %v907 = vpack.c.b16 %v903, %v901
      %vm912 = vcmask 261120
      %v914 = vsel %vm912, %v891, 0
      %916 = vmatprep.subr.bf16.mxu0 0
      %917 = vmatpush1.bf16.msra.mxu0 0
      %918 = vmatprep.subr.bf16.mxu0 0
      %919 = vmatpush1.bf16.msra.mxu0 0
      %920 = vmatprep.subr.bf16.mxu0 0
      %921 = vmatpush1.bf16.msra.mxu0 0
      %922 = vmatprep.subr.bf16.mxu0 0
      %923 = vmatpush1.bf16.msra.mxu0 0
      %924 = vmatprep.subr.bf16.mxu0 0
      %925 = vmatpush1.bf16.msra.mxu0 0
      %926 = vmatprep.subr.bf16.mxu0 0
      %927 = vmatpush1.bf16.msra.mxu0 0
      %928 = vmatprep.subr.bf16.mxu0 %v907
      %929 = vmatpush1.bf16.msra.mxu0 %v906
      %930 = vmatprep.subr.bf16.mxu0 %v905
      %931 = vmatpush1.bf16.msra.mxu0 %v904
      %932 = vmatprep.subr.bf16.mxu0 0
      %933 = vmatpush2.bf16.msra.mxu0 0
      %934 = vmatprep.subr.bf16.mxu0 0
      %935 = vmatpush2.bf16.msra.mxu0 0
      %936 = vmatprep.subr.bf16.mxu0 0
      %937 = vmatpush2.bf16.msra.mxu0 0
      %938 = vmatprep.subr.bf16.mxu0 0
      %939 = vmatpush2.bf16.msra.mxu0 0
      %940 = vmatprep.subr.bf16.mxu0 0
      %941 = vmatpush2.bf16.msra.mxu0 0
      %942 = vmatprep.subr.bf16.mxu0 0
      %943 = vmatpush2.bf16.msra.mxu0 0
      %944 = vmatprep.subr.bf16.mxu0 0
      %945 = vmatpush2.bf16.msra.mxu0 0
      %946 = vmatprep.subr.bf16.mxu0 0
      %947 = vmatpush2.bf16.msra.mxu0 0
      %948 = vmatprep.mubr.bf16.mxu0 0
      %949 = vmatmul.mubr.bf16.gmra.mxu0 %v914
      %v950 = vpop.f32.mrf.mxu0
      %v951 = vadd.f32 0.0, %v950
      %v952 = vpop.f32.mrf.mxu0
      %v953 = vadd.f32 0.0, %v952
      %v954 = vpop.f32.mrf.mxu0
      %v955 = vadd.f32 0.0, %v954
      %v956 = vpop.f32.mrf.mxu0
      %v957 = vadd.f32 0.0, %v956
      %958 = vdwg.mxu0
      %v959 = vld [vmem:[%s8] sm:$0xff]
      %v960 = vld [vmem:[%s8 + $0x8] sm:$0xff]
      %v961 = vld [vmem:[%s8 + $0x10] sm:$0xff]
      %v962 = vld [vmem:[%s8 + $0x18] sm:$0xff]
      %v963 = vld [vmem:[%s8 + $0x20] sm:$0xff]
      %v964 = vld [vmem:[%s8 + $0x28] sm:$0xff]
      %v965 = vld [vmem:[%s8 + $0x30] sm:$0xff]
      %v966 = vld [vmem:[%s8 + $0x38] sm:$0xff]
      %v967 = vld [vmem:[%s8 + $0x40] sm:$0xff]
      %v968 = vld [vmem:[%s8 + $0x48] sm:$0xff]
      %v969 = vld [vmem:[%s8 + $0x50] sm:$0xff]
      %v970 = vld [vmem:[%s8 + $0x58] sm:$0xff]
      %v971 = vld [vmem:[%s8 + $0x60] sm:$0xff]
      %v972 = vld [vmem:[%s8 + $0x68] sm:$0xff]
      %v973 = vld [vmem:[%s8 + $0x70] sm:$0xff]
      %v974 = vld [vmem:[%s8 + $0x78] sm:$0xff]
      %v991 = vunpack.c.l.b16 %v959
      %v992 = vunpack.c.h.b16 %v959
      %v993 = vunpack.c.l.b16 %v960
      %v994 = vunpack.c.h.b16 %v960
      %v995 = vunpack.c.l.b16 %v961
      %v996 = vunpack.c.h.b16 %v961
      %v997 = vunpack.c.l.b16 %v962
      %v998 = vunpack.c.h.b16 %v962
      %v999 = vunpack.c.l.b16 %v963
      %v1000 = vunpack.c.h.b16 %v963
      %v1001 = vunpack.c.l.b16 %v964
      %v1002 = vunpack.c.h.b16 %v964
      %v1003 = vunpack.c.l.b16 %v965
      %v1004 = vunpack.c.h.b16 %v965
      %v1005 = vunpack.c.l.b16 %v966
      %v1006 = vunpack.c.h.b16 %v966
      %v1007 = vunpack.c.l.b16 %v967
      %v1008 = vunpack.c.h.b16 %v967
      %v1009 = vunpack.c.l.b16 %v968
      %v1010 = vunpack.c.h.b16 %v968
      %v1011 = vunpack.c.l.b16 %v969
      %v1012 = vunpack.c.h.b16 %v969
      %v1013 = vunpack.c.l.b16 %v970
      %v1014 = vunpack.c.h.b16 %v970
      %v1015 = vunpack.c.l.b16 %v971
      %v1016 = vunpack.c.h.b16 %v971
      %v1017 = vunpack.c.l.b16 %v972
      %v1018 = vunpack.c.h.b16 %v972
      %v1019 = vunpack.c.l.b16 %v973
      %v1020 = vunpack.c.h.b16 %v973
      %v1021 = vunpack.c.l.b16 %v974
      %v1022 = vunpack.c.h.b16 %v974
      %v1023 = vpack.c.b16 %v993, %v991
      %v1024 = vpack.c.b16 %v994, %v992
      %v1025 = vpack.c.b16 %v997, %v995
      %v1026 = vpack.c.b16 %v998, %v996
      %v1027 = vpack.c.b16 %v1001, %v999
      %v1028 = vpack.c.b16 %v1002, %v1000
      %v1029 = vpack.c.b16 %v1005, %v1003
      %v1030 = vpack.c.b16 %v1006, %v1004
      %v1031 = vpack.c.b16 %v1009, %v1007
      %v1032 = vpack.c.b16 %v1010, %v1008
      %v1033 = vpack.c.b16 %v1013, %v1011
      %v1034 = vpack.c.b16 %v1014, %v1012
      %v1035 = vpack.c.b16 %v1017, %v1015
      %v1036 = vpack.c.b16 %v1018, %v1016
      %v1037 = vpack.c.b16 %v1021, %v1019
      %v1038 = vpack.c.b16 %v1022, %v1020
      %1055 = vmatprep.subr.bf16.mxu0 %v1038
      %1056 = vmatpush1.bf16.msra.mxu0 %v1037
      %1057 = vmatprep.subr.bf16.mxu0 %v1036
      %1058 = vmatpush1.bf16.msra.mxu0 %v1035
      %1059 = vmatprep.subr.bf16.mxu0 %v1034
      %1060 = vmatpush1.bf16.msra.mxu0 %v1033
      %1061 = vmatprep.subr.bf16.mxu0 %v1032
      %1062 = vmatpush1.bf16.msra.mxu0 %v1031
      %1063 = vmatprep.subr.bf16.mxu0 %v1030
      %1064 = vmatpush1.bf16.msra.mxu0 %v1029
      %1065 = vmatprep.subr.bf16.mxu0 %v1028
      %1066 = vmatpush1.bf16.msra.mxu0 %v1027
      %1067 = vmatprep.subr.bf16.mxu0 %v1026
      %1068 = vmatpush1.bf16.msra.mxu0 %v1025
      %1069 = vmatprep.subr.bf16.mxu0 %v1024
      %1070 = vmatpush1.bf16.msra.mxu0 %v1023
      %1071 = vmatprep.subr.bf16.mxu0 0
      %1072 = vmatpush2.bf16.msra.mxu0 0
      %1073 = vmatprep.subr.bf16.mxu0 0
      %1074 = vmatpush2.bf16.msra.mxu0 0
      %1075 = vmatprep.subr.bf16.mxu0 0
      %1076 = vmatpush2.bf16.msra.mxu0 0
      %1077 = vmatprep.subr.bf16.mxu0 0
      %1078 = vmatpush2.bf16.msra.mxu0 0
      %1079 = vmatprep.subr.bf16.mxu0 0
      %1080 = vmatpush2.bf16.msra.mxu0 0
      %1081 = vmatprep.subr.bf16.mxu0 0
      %1082 = vmatpush2.bf16.msra.mxu0 0
      %1083 = vmatprep.subr.bf16.mxu0 0
      %1084 = vmatpush2.bf16.msra.mxu0 0
      %1085 = vmatprep.subr.bf16.mxu0 0
      %1086 = vmatpush2.bf16.msra.mxu0 0
      %1087 = vmatprep.mubr.bf16.mxu0 0
      %1088 = vmatmul.mubr.bf16.gmra.mxu0 %v709
      %v1089 = vpop.f32.mrf.mxu0
      %v1090 = vadd.f32 0.0, %v1089
      %v1091 = vpop.f32.mrf.mxu0
      %v1092 = vadd.f32 0.0, %v1091
      %v1093 = vpop.f32.mrf.mxu0
      %v1094 = vadd.f32 0.0, %v1093
      %v1095 = vpop.f32.mrf.mxu0
      %v1096 = vadd.f32 0.0, %v1095
      %1097 = vdwg.mxu0
      %v1098 = vld [vmem:[%s7] sm:$0xff]
      %v1099 = vld [vmem:[%s7 + $0x8] sm:$0xff]
      %v1100 = vld [vmem:[%s7 + $0x10] sm:$0xff]
      %v1101 = vld [vmem:[%s7 + $0x18] sm:$0xff]
      %v1102 = vld [vmem:[%s7 + $0x20] sm:$0xff]
      %v1103 = vld [vmem:[%s7 + $0x28] sm:$0xff]
      %v1104 = vld [vmem:[%s7 + $0x30] sm:$0xff]
      %v1105 = vld [vmem:[%s7 + $0x38] sm:$0xff]
      %v1106 = vld [vmem:[%s7 + $0x40] sm:$0xff]
      %v1107 = vld [vmem:[%s7 + $0x48] sm:$0xff]
      %v1108 = vld [vmem:[%s7 + $0x50] sm:$0xff]
      %v1109 = vld [vmem:[%s7 + $0x58] sm:$0xff]
      %v1110 = vld [vmem:[%s7 + $0x60] sm:$0xff]
      %v1111 = vld [vmem:[%s7 + $0x68] sm:$0xff]
      %v1112 = vld [vmem:[%s7 + $0x70] sm:$0xff]
      %v1113 = vld [vmem:[%s7 + $0x78] sm:$0xff]
      %v1114 = vpack.c.bf16 %v955, %v951
      %v1131 = vunpack.c.l.b16 %v1098
      %v1132 = vunpack.c.h.b16 %v1098
      %v1133 = vunpack.c.l.b16 %v1099
      %v1134 = vunpack.c.h.b16 %v1099
      %v1135 = vunpack.c.l.b16 %v1100
      %v1136 = vunpack.c.h.b16 %v1100
      %v1137 = vunpack.c.l.b16 %v1101
      %v1138 = vunpack.c.h.b16 %v1101
      %v1139 = vunpack.c.l.b16 %v1102
      %v1140 = vunpack.c.h.b16 %v1102
      %v1141 = vunpack.c.l.b16 %v1103
      %v1142 = vunpack.c.h.b16 %v1103
      %v1143 = vunpack.c.l.b16 %v1104
      %v1144 = vunpack.c.h.b16 %v1104
      %v1145 = vunpack.c.l.b16 %v1105
      %v1146 = vunpack.c.h.b16 %v1105
      %v1147 = vunpack.c.l.b16 %v1106
      %v1148 = vunpack.c.h.b16 %v1106
      %v1149 = vunpack.c.l.b16 %v1107
      %v1150 = vunpack.c.h.b16 %v1107
      %v1151 = vunpack.c.l.b16 %v1108
      %v1152 = vunpack.c.h.b16 %v1108
      %v1153 = vunpack.c.l.b16 %v1109
      %v1154 = vunpack.c.h.b16 %v1109
      %v1155 = vunpack.c.l.b16 %v1110
      %v1156 = vunpack.c.h.b16 %v1110
      %v1157 = vunpack.c.l.b16 %v1111
      %v1158 = vunpack.c.h.b16 %v1111
      %v1159 = vunpack.c.l.b16 %v1112
      %v1160 = vunpack.c.h.b16 %v1112
      %v1161 = vunpack.c.l.b16 %v1113
      %v1162 = vunpack.c.h.b16 %v1113
      %v1163 = vpack.c.b16 %v1133, %v1131
      %v1164 = vpack.c.b16 %v1134, %v1132
      %v1165 = vpack.c.b16 %v1137, %v1135
      %v1166 = vpack.c.b16 %v1138, %v1136
      %v1167 = vpack.c.b16 %v1141, %v1139
      %v1168 = vpack.c.b16 %v1142, %v1140
      %v1169 = vpack.c.b16 %v1145, %v1143
      %v1170 = vpack.c.b16 %v1146, %v1144
      %v1171 = vpack.c.b16 %v1149, %v1147
      %v1172 = vpack.c.b16 %v1150, %v1148
      %v1173 = vpack.c.b16 %v1153, %v1151
      %v1174 = vpack.c.b16 %v1154, %v1152
      %v1175 = vpack.c.b16 %v1157, %v1155
      %v1176 = vpack.c.b16 %v1158, %v1156
      %v1177 = vpack.c.b16 %v1161, %v1159
      %v1178 = vpack.c.b16 %v1162, %v1160
      %1195 = vmatprep.subr.bf16.mxu0 %v1178
      %1196 = vmatpush1.bf16.msra.mxu0 %v1177
      %1197 = vmatprep.subr.bf16.mxu0 %v1176
      %1198 = vmatpush1.bf16.msra.mxu0 %v1175
      %1199 = vmatprep.subr.bf16.mxu0 %v1174
      %1200 = vmatpush1.bf16.msra.mxu0 %v1173
      %1201 = vmatprep.subr.bf16.mxu0 %v1172
      %1202 = vmatpush1.bf16.msra.mxu0 %v1171
      %1203 = vmatprep.subr.bf16.mxu0 %v1170
      %1204 = vmatpush1.bf16.msra.mxu0 %v1169
      %1205 = vmatprep.subr.bf16.mxu0 %v1168
      %1206 = vmatpush1.bf16.msra.mxu0 %v1167
      %1207 = vmatprep.subr.bf16.mxu0 %v1166
      %1208 = vmatpush1.bf16.msra.mxu0 %v1165
      %1209 = vmatprep.subr.bf16.mxu0 %v1164
      %1210 = vmatpush1.bf16.msra.mxu0 %v1163
      %1211 = vmatprep.subr.bf16.mxu0 0
      %1212 = vmatpush2.bf16.msra.mxu0 0
      %1213 = vmatprep.subr.bf16.mxu0 0
      %1214 = vmatpush2.bf16.msra.mxu0 0
      %1215 = vmatprep.subr.bf16.mxu0 0
      %1216 = vmatpush2.bf16.msra.mxu0 0
      %1217 = vmatprep.subr.bf16.mxu0 0
      %1218 = vmatpush2.bf16.msra.mxu0 0
      %1219 = vmatprep.subr.bf16.mxu0 0
      %1220 = vmatpush2.bf16.msra.mxu0 0
      %1221 = vmatprep.subr.bf16.mxu0 0
      %1222 = vmatpush2.bf16.msra.mxu0 0
      %1223 = vmatprep.subr.bf16.mxu0 0
      %1224 = vmatpush2.bf16.msra.mxu0 0
      %1225 = vmatprep.subr.bf16.mxu0 0
      %1226 = vmatpush2.bf16.msra.mxu0 0
      %1227 = vmatprep.mubr.bf16.mxu0 0
      %1228 = vmatmul.mubr.bf16.gmra.mxu0 %v1114
      %v1229 = vpop.f32.mrf.mxu0
      %v1230 = vadd.f32 0.0, %v1229
      %v1231 = vpop.f32.mrf.mxu0
      %v1232 = vadd.f32 0.0, %v1231
      %v1233 = vpop.f32.mrf.mxu0
      %v1234 = vadd.f32 0.0, %v1233
      %v1235 = vpop.f32.mrf.mxu0
      %v1236 = vadd.f32 0.0, %v1235
      %1237 = vdwg.mxu0
      %v1238 = vadd.f32 %v1230, %v1090
      %v1239 = vadd.f32 %v1234, %v1094
      %v1240 = vld [vmem:[%s9] sm:$0x1]
      %v1242 = vlaneseq
      %v1243 = vshrl.u32 %v1242, 7
      %v1244 = vsub.s32 0, %v1243
      %v1245 = vrot.slane %v1240, %v1244
      %v1247 = vadd.f32 %v1238, %v1245
      %v1248 = vadd.f32 %v1239, %v1245
      %v1249 = vmax.f32 %v1247, 0.0
      %v1250 = vmax.f32 %v1248, 0.0
      %v1251 = vadd.f32 %v1232, %v1092
      %v1252 = vadd.f32 %v1236, %v1096
      %v1253 = vld [vmem:[%s10] sm:$0x1]
      %v1255 = vlaneseq
      %v1256 = vshrl.u32 %v1255, 7
      %v1257 = vsub.s32 0, %v1256
      %v1258 = vrot.slane %v1253, %v1257
      %v1260 = vadd.f32 %v1251, %v1258
      %v1261 = vadd.f32 %v1252, %v1258
      %v1262 = vld [vmem:[%s11] sm:$0xf]
      %v1263 = vld [vmem:[%s11 + $0x4] sm:$0xf]
      %v1264 = vld [vmem:[%s11 + $0x8] sm:$0xf]
      %v1265 = vld [vmem:[%s11 + $0xc] sm:$0xf]
      %v1266 = vld [vmem:[%s11 + $0x10] sm:$0xf]
      %v1267 = vld [vmem:[%s11 + $0x14] sm:$0xf]
      %v1268 = vld [vmem:[%s11 + $0x18] sm:$0xf]
      %v1269 = vld [vmem:[%s11 + $0x1c] sm:$0xf]
      %v1270 = vld [vmem:[%s11 + $0x20] sm:$0xf]
      %v1271 = vld [vmem:[%s11 + $0x24] sm:$0xf]
      %v1272 = vld [vmem:[%s11 + $0x28] sm:$0xf]
      %v1273 = vld [vmem:[%s11 + $0x2c] sm:$0xf]
      %v1274 = vld [vmem:[%s11 + $0x30] sm:$0xf]
      %v1275 = vld [vmem:[%s11 + $0x34] sm:$0xf]
      %v1276 = vld [vmem:[%s11 + $0x38] sm:$0xf]
      %v1277 = vld [vmem:[%s11 + $0x3c] sm:$0xf]
      %v1278 = vpack.c.bf16 %v1250, %v1249
      %v1279 = vld [vmem:[%s12] sm:$0x1]
      %v1281 = vlaneseq
      %v1282 = vshrl.u32 %v1281, 7
      %v1283 = vsub.s32 0, %v1282
      %v1284 = vrot.slane %v1279, %v1283
      %v1302 = vunpack.c.l.b16 %v1262
      %v1303 = vunpack.c.l.b16 %v1263
      %v1304 = vunpack.c.l.b16 %v1264
      %v1305 = vunpack.c.l.b16 %v1265
      %v1306 = vunpack.c.l.b16 %v1266
      %v1307 = vunpack.c.l.b16 %v1267
      %v1308 = vunpack.c.l.b16 %v1268
      %v1309 = vunpack.c.l.b16 %v1269
      %v1310 = vunpack.c.l.b16 %v1270
      %v1311 = vunpack.c.l.b16 %v1271
      %v1312 = vunpack.c.l.b16 %v1272
      %v1313 = vunpack.c.l.b16 %v1273
      %v1314 = vunpack.c.l.b16 %v1274
      %v1315 = vunpack.c.l.b16 %v1275
      %v1316 = vunpack.c.l.b16 %v1276
      %v1317 = vunpack.c.l.b16 %v1277
      %v1318 = vpack.c.b16 %v1303, %v1302
      %v1319 = vpack.c.b16 %v1305, %v1304
      %v1320 = vpack.c.b16 %v1307, %v1306
      %v1321 = vpack.c.b16 %v1309, %v1308
      %v1322 = vpack.c.b16 %v1311, %v1310
      %v1323 = vpack.c.b16 %v1313, %v1312
      %v1324 = vpack.c.b16 %v1315, %v1314
      %v1325 = vpack.c.b16 %v1317, %v1316
      %1334 = vmatprep.subr.bf16.mxu0 0
      %1335 = vmatpush1.bf16.msra.mxu0 %v1325
      %1336 = vmatprep.subr.bf16.mxu0 0
      %1337 = vmatpush1.bf16.msra.mxu0 %v1324
      %1338 = vmatprep.subr.bf16.mxu0 0
      %1339 = vmatpush1.bf16.msra.mxu0 %v1323
      %1340 = vmatprep.subr.bf16.mxu0 0
      %1341 = vmatpush1.bf16.msra.mxu0 %v1322
      %1342 = vmatprep.subr.bf16.mxu0 0
      %1343 = vmatpush1.bf16.msra.mxu0 %v1321
      %1344 = vmatprep.subr.bf16.mxu0 0
      %1345 = vmatpush1.bf16.msra.mxu0 %v1320
      %1346 = vmatprep.subr.bf16.mxu0 0
      %1347 = vmatpush1.bf16.msra.mxu0 %v1319
      %1348 = vmatprep.subr.bf16.mxu0 0
      %1349 = vmatpush1.bf16.msra.mxu0 %v1318
      %1350 = vmatprep.subr.bf16.mxu0 0
      %1351 = vmatpush2.bf16.msra.mxu0 0
      %1352 = vmatprep.subr.bf16.mxu0 0
      %1353 = vmatpush2.bf16.msra.mxu0 0
      %1354 = vmatprep.subr.bf16.mxu0 0
      %1355 = vmatpush2.bf16.msra.mxu0 0
      %1356 = vmatprep.subr.bf16.mxu0 0
      %1357 = vmatpush2.bf16.msra.mxu0 0
      %1358 = vmatprep.subr.bf16.mxu0 0
      %1359 = vmatpush2.bf16.msra.mxu0 0
      %1360 = vmatprep.subr.bf16.mxu0 0
      %1361 = vmatpush2.bf16.msra.mxu0 0
      %1362 = vmatprep.subr.bf16.mxu0 0
      %1363 = vmatpush2.bf16.msra.mxu0 0
      %1364 = vmatprep.subr.bf16.mxu0 0
      %1365 = vmatpush2.bf16.msra.mxu0 0
      %1366 = vmatprep.mubr.bf16.mxu0 0
      %1367 = vmatmul.mubr.bf16.gmra.mxu0 %v1278
      %v1368 = vpop.f32.mrf.mxu0
      %v1369 = vadd.f32 %v1284, %v1368
      %v1370 = vpop.f32.mrf.mxu0
      %v1371 = vpop.f32.mrf.mxu0
      %v1372 = vadd.f32 %v1284, %v1371
      %v1373 = vpop.f32.mrf.mxu0
      %1374 = vdwg.mxu0
      %v1375 = vadd.f32 %v1369, %v1260
      %v1376 = vadd.f32 %v1372, %v1261
      %v1377 = vmax.f32 %v1375, 0.0
      %v1378 = vmax.f32 %v1376, 0.0
      %v1379 = vld [vmem:[%s13] sm:$0xf]
      %v1380 = vld [vmem:[%s13 + $0x4] sm:$0xf]
      %v1381 = vld [vmem:[%s13 + $0x8] sm:$0xf]
      %v1382 = vld [vmem:[%s13 + $0xc] sm:$0xf]
      %v1383 = vld [vmem:[%s13 + $0x10] sm:$0xf]
      %v1384 = vld [vmem:[%s13 + $0x14] sm:$0xf]
      %v1385 = vld [vmem:[%s13 + $0x18] sm:$0xf]
      %v1386 = vld [vmem:[%s13 + $0x1c] sm:$0xf]
      %v1387 = vld [vmem:[%s13 + $0x20] sm:$0xf]
      %v1388 = vld [vmem:[%s13 + $0x24] sm:$0xf]
      %v1389 = vld [vmem:[%s13 + $0x28] sm:$0xf]
      %v1390 = vld [vmem:[%s13 + $0x2c] sm:$0xf]
      %v1391 = vld [vmem:[%s13 + $0x30] sm:$0xf]
      %v1392 = vld [vmem:[%s13 + $0x34] sm:$0xf]
      %v1393 = vld [vmem:[%s13 + $0x38] sm:$0xf]
      %v1394 = vld [vmem:[%s13 + $0x3c] sm:$0xf]
      %v1395 = vpack.c.bf16 %v1378, %v1377
      %v1396 = vld [vmem:[%s14] sm:$0x1]
      %v1398 = vlaneseq
      %v1399 = vshrl.u32 %v1398, 7
      %v1400 = vsub.s32 0, %v1399
      %v1401 = vrot.slane %v1396, %v1400
      %v1419 = vunpack.c.l.b16 %v1379
      %v1420 = vunpack.c.l.b16 %v1380
      %v1421 = vunpack.c.l.b16 %v1381
      %v1422 = vunpack.c.l.b16 %v1382
      %v1423 = vunpack.c.l.b16 %v1383
      %v1424 = vunpack.c.l.b16 %v1384
      %v1425 = vunpack.c.l.b16 %v1385
      %v1426 = vunpack.c.l.b16 %v1386
      %v1427 = vunpack.c.l.b16 %v1387
      %v1428 = vunpack.c.l.b16 %v1388
      %v1429 = vunpack.c.l.b16 %v1389
      %v1430 = vunpack.c.l.b16 %v1390
      %v1431 = vunpack.c.l.b16 %v1391
      %v1432 = vunpack.c.l.b16 %v1392
      %v1433 = vunpack.c.l.b16 %v1393
      %v1434 = vunpack.c.l.b16 %v1394
      %v1435 = vpack.c.b16 %v1420, %v1419
      %v1436 = vpack.c.b16 %v1422, %v1421
      %v1437 = vpack.c.b16 %v1424, %v1423
      %v1438 = vpack.c.b16 %v1426, %v1425
      %v1439 = vpack.c.b16 %v1428, %v1427
      %v1440 = vpack.c.b16 %v1430, %v1429
      %v1441 = vpack.c.b16 %v1432, %v1431
      %v1442 = vpack.c.b16 %v1434, %v1433
      %1451 = vmatprep.subr.bf16.mxu0 0
      %1452 = vmatpush1.bf16.msra.mxu0 %v1442
      %1453 = vmatprep.subr.bf16.mxu0 0
      %1454 = vmatpush1.bf16.msra.mxu0 %v1441
      %1455 = vmatprep.subr.bf16.mxu0 0
      %1456 = vmatpush1.bf16.msra.mxu0 %v1440
      %1457 = vmatprep.subr.bf16.mxu0 0
      %1458 = vmatpush1.bf16.msra.mxu0 %v1439
      %1459 = vmatprep.subr.bf16.mxu0 0
      %1460 = vmatpush1.bf16.msra.mxu0 %v1438
      %1461 = vmatprep.subr.bf16.mxu0 0
      %1462 = vmatpush1.bf16.msra.mxu0 %v1437
      %1463 = vmatprep.subr.bf16.mxu0 0
      %1464 = vmatpush1.bf16.msra.mxu0 %v1436
      %1465 = vmatprep.subr.bf16.mxu0 0
      %1466 = vmatpush1.bf16.msra.mxu0 %v1435
      %1467 = vmatprep.subr.bf16.mxu0 0
      %1468 = vmatpush2.bf16.msra.mxu0 0
      %1469 = vmatprep.subr.bf16.mxu0 0
      %1470 = vmatpush2.bf16.msra.mxu0 0
      %1471 = vmatprep.subr.bf16.mxu0 0
      %1472 = vmatpush2.bf16.msra.mxu0 0
      %1473 = vmatprep.subr.bf16.mxu0 0
      %1474 = vmatpush2.bf16.msra.mxu0 0
      %1475 = vmatprep.subr.bf16.mxu0 0
      %1476 = vmatpush2.bf16.msra.mxu0 0
      %1477 = vmatprep.subr.bf16.mxu0 0
      %1478 = vmatpush2.bf16.msra.mxu0 0
      %1479 = vmatprep.subr.bf16.mxu0 0
      %1480 = vmatpush2.bf16.msra.mxu0 0
      %1481 = vmatprep.subr.bf16.mxu0 0
      %1482 = vmatpush2.bf16.msra.mxu0 0
      %1483 = vmatprep.mubr.bf16.mxu0 0
      %1484 = vmatmul.mubr.bf16.gmra.mxu0 %v1395
      %v1485 = vpop.f32.mrf.mxu0
      %v1486 = vadd.f32 %v1401, %v1485
      %v1487 = vpop.f32.mrf.mxu0
      %v1488 = vpop.f32.mrf.mxu0
      %v1489 = vadd.f32 %v1401, %v1488
      %v1490 = vpop.f32.mrf.mxu0
      %1491 = vdwg.mxu0
      %v1492 = vmax.f32 %v1486, 0.0
      %v1493 = vmax.f32 %v1489, 0.0
      %v1494 = vld [vmem:[%s15] sm:$0xf]
      %v1495 = vld [vmem:[%s15 + $0x4] sm:$0xf]
      %v1496 = vld [vmem:[%s15 + $0x8] sm:$0xf]
      %v1497 = vld [vmem:[%s15 + $0xc] sm:$0xf]
      %v1498 = vld [vmem:[%s15 + $0x10] sm:$0xf]
      %v1499 = vld [vmem:[%s15 + $0x14] sm:$0xf]
      %v1500 = vld [vmem:[%s15 + $0x18] sm:$0xf]
      %v1501 = vld [vmem:[%s15 + $0x1c] sm:$0xf]
      %v1502 = vpack.c.bf16 %v1493, %v1492
      %v1503 = vld [vmem:[%s16] sm:$0x1]
      %v1505 = vlaneseq
      %v1506 = vshrl.u32 %v1505, 7
      %v1507 = vsub.s32 0, %v1506
      %v1508 = vrot.slane %v1503, %v1507
      %v1518 = vunpack.c.l.b16 %v1494
      %v1519 = vunpack.c.l.b16 %v1495
      %v1520 = vunpack.c.l.b16 %v1496
      %v1521 = vunpack.c.l.b16 %v1497
      %v1522 = vunpack.c.l.b16 %v1498
      %v1523 = vunpack.c.l.b16 %v1499
      %v1524 = vunpack.c.l.b16 %v1500
      %v1525 = vunpack.c.l.b16 %v1501
      %v1526 = vpack.c.b16 %v1519, %v1518
      %v1527 = vpack.c.b16 %v1521, %v1520
      %v1528 = vpack.c.b16 %v1523, %v1522
      %v1529 = vpack.c.b16 %v1525, %v1524
      %v1535 = vsel %vm842, %v1502, 0
      %1537 = vmatprep.subr.bf16.mxu0 0
      %1538 = vmatpush1.bf16.msra.mxu0 0
      %1539 = vmatprep.subr.bf16.mxu0 0
      %1540 = vmatpush1.bf16.msra.mxu0 0
      %1541 = vmatprep.subr.bf16.mxu0 0
      %1542 = vmatpush1.bf16.msra.mxu0 0
      %1543 = vmatprep.subr.bf16.mxu0 0
      %1544 = vmatpush1.bf16.msra.mxu0 0
      %1545 = vmatprep.subr.bf16.mxu0 0
      %1546 = vmatpush1.bf16.msra.mxu0 %v1529
      %1547 = vmatprep.subr.bf16.mxu0 0
      %1548 = vmatpush1.bf16.msra.mxu0 %v1528
      %1549 = vmatprep.subr.bf16.mxu0 0
      %1550 = vmatpush1.bf16.msra.mxu0 %v1527
      %1551 = vmatprep.subr.bf16.mxu0 0
      %1552 = vmatpush1.bf16.msra.mxu0 %v1526
      %1553 = vmatprep.subr.bf16.mxu0 0
      %1554 = vmatpush2.bf16.msra.mxu0 0
      %1555 = vmatprep.subr.bf16.mxu0 0
      %1556 = vmatpush2.bf16.msra.mxu0 0
      %1557 = vmatprep.subr.bf16.mxu0 0
      %1558 = vmatpush2.bf16.msra.mxu0 0
      %1559 = vmatprep.subr.bf16.mxu0 0
      %1560 = vmatpush2.bf16.msra.mxu0 0
      %1561 = vmatprep.subr.bf16.mxu0 0
      %1562 = vmatpush2.bf16.msra.mxu0 0
      %1563 = vmatprep.subr.bf16.mxu0 0
      %1564 = vmatpush2.bf16.msra.mxu0 0
      %1565 = vmatprep.subr.bf16.mxu0 0
      %1566 = vmatpush2.bf16.msra.mxu0 0
      %1567 = vmatprep.subr.bf16.mxu0 0
      %1568 = vmatpush2.bf16.msra.mxu0 0
      %1569 = vmatprep.mubr.bf16.mxu0 0
      %1570 = vmatmul.mubr.bf16.gmra.mxu0 %v1535
      %v1571 = vpop.f32.mrf.mxu0
      %v1572 = vadd.f32 %v1508, %v1571
      %v1573 = vpop.f32.mrf.mxu0
      %v1574 = vpop.f32.mrf.mxu0
      %v1575 = vadd.f32 %v1508, %v1574
      %v1576 = vpop.f32.mrf.mxu0
      %1577 = vdwg.mxu0
      %v1578 = vtanh.pop %v1572
      %v1579 = vtanh.pop %v1575
      %v1580 = vpack.c.bf16 %v1376, %v1375
      %v1581 = vadd.f32 %v680, %v1578
      %v1582 = vadd.f32 %v681, %v1579
      %v1583 = vpack.c.bf16 %v957, %v953
      %1584 = vmatprep.subr.bf16.mxu0 %v1178
      %1585 = vmatpush1.bf16.msra.mxu0 %v1177
      %1586 = vmatprep.subr.bf16.mxu0 %v1176
      %1587 = vmatpush1.bf16.msra.mxu0 %v1175
      %1588 = vmatprep.subr.bf16.mxu0 %v1174
      %1589 = vmatpush1.bf16.msra.mxu0 %v1173
      %1590 = vmatprep.subr.bf16.mxu0 %v1172
      %1591 = vmatpush1.bf16.msra.mxu0 %v1171
      %1592 = vmatprep.subr.bf16.mxu0 %v1170
      %1593 = vmatpush1.bf16.msra.mxu0 %v1169
      %1594 = vmatprep.subr.bf16.mxu0 %v1168
      %1595 = vmatpush1.bf16.msra.mxu0 %v1167
      %1596 = vmatprep.subr.bf16.mxu0 %v1166
      %1597 = vmatpush1.bf16.msra.mxu0 %v1165
      %1598 = vmatprep.subr.bf16.mxu0 %v1164
      %1599 = vmatpush1.bf16.msra.mxu0 %v1163
      %1600 = vmatprep.subr.bf16.mxu0 0
      %1601 = vmatpush2.bf16.msra.mxu0 0
      %1602 = vmatprep.subr.bf16.mxu0 0
      %1603 = vmatpush2.bf16.msra.mxu0 0
      %1604 = vmatprep.subr.bf16.mxu0 0
      %1605 = vmatpush2.bf16.msra.mxu0 0
      %1606 = vmatprep.subr.bf16.mxu0 0
      %1607 = vmatpush2.bf16.msra.mxu0 0
      %1608 = vmatprep.subr.bf16.mxu0 0
      %1609 = vmatpush2.bf16.msra.mxu0 0
      %1610 = vmatprep.subr.bf16.mxu0 0
      %1611 = vmatpush2.bf16.msra.mxu0 0
      %1612 = vmatprep.subr.bf16.mxu0 0
      %1613 = vmatpush2.bf16.msra.mxu0 0
      %1614 = vmatprep.subr.bf16.mxu0 0
      %1615 = vmatpush2.bf16.msra.mxu0 0
      %1616 = vmatprep.mubr.bf16.mxu0 0
      %1617 = vmatmul.mubr.bf16.gmra.mxu0 %v1583
      %v1618 = vpop.f32.mrf.mxu0
      %v1619 = vadd.f32 0.0, %v1618
      %v1620 = vpop.f32.mrf.mxu0
      %v1621 = vadd.f32 0.0, %v1620
      %v1622 = vpop.f32.mrf.mxu0
      %v1623 = vadd.f32 0.0, %v1622
      %v1624 = vpop.f32.mrf.mxu0
      %v1625 = vadd.f32 0.0, %v1624
      %1626 = vdwg.mxu0
      %v1627 = vadd.f32 %v1619, %v1090
      %v1628 = vadd.f32 %v1623, %v1094
      %v1629 = vadd.f32 %v1627, %v1245
      %v1630 = vadd.f32 %v1628, %v1245
      %v1631 = vmax.f32 %v1629, 0.0
      %v1632 = vmax.f32 %v1630, 0.0
      %v1633 = vadd.f32 %v1621, %v1092
      %v1634 = vadd.f32 %v1625, %v1096
      %v1635 = vadd.f32 %v1633, %v1258
      %v1636 = vadd.f32 %v1634, %v1258
      %v1637 = vpack.c.bf16 %v1632, %v1631
      %1638 = vmatprep.subr.bf16.mxu0 0
      %1639 = vmatpush1.bf16.msra.mxu0 %v1325
      %1640 = vmatprep.subr.bf16.mxu0 0
      %1641 = vmatpush1.bf16.msra.mxu0 %v1324
      %1642 = vmatprep.subr.bf16.mxu0 0
      %1643 = vmatpush1.bf16.msra.mxu0 %v1323
      %1644 = vmatprep.subr.bf16.mxu0 0
      %1645 = vmatpush1.bf16.msra.mxu0 %v1322
      %1646 = vmatprep.subr.bf16.mxu0 0
      %1647 = vmatpush1.bf16.msra.mxu0 %v1321
      %1648 = vmatprep.subr.bf16.mxu0 0
      %1649 = vmatpush1.bf16.msra.mxu0 %v1320
      %1650 = vmatprep.subr.bf16.mxu0 0
      %1651 = vmatpush1.bf16.msra.mxu0 %v1319
      %1652 = vmatprep.subr.bf16.mxu0 0
      %1653 = vmatpush1.bf16.msra.mxu0 %v1318
      %1654 = vmatprep.subr.bf16.mxu0 0
      %1655 = vmatpush2.bf16.msra.mxu0 0
      %1656 = vmatprep.subr.bf16.mxu0 0
      %1657 = vmatpush2.bf16.msra.mxu0 0
      %1658 = vmatprep.subr.bf16.mxu0 0
      %1659 = vmatpush2.bf16.msra.mxu0 0
      %1660 = vmatprep.subr.bf16.mxu0 0
      %1661 = vmatpush2.bf16.msra.mxu0 0
      %1662 = vmatprep.subr.bf16.mxu0 0
      %1663 = vmatpush2.bf16.msra.mxu0 0
      %1664 = vmatprep.subr.bf16.mxu0 0
      %1665 = vmatpush2.bf16.msra.mxu0 0
      %1666 = vmatprep.subr.bf16.mxu0 0
      %1667 = vmatpush2.bf16.msra.mxu0 0
      %1668 = vmatprep.subr.bf16.mxu0 0
      %1669 = vmatpush2.bf16.msra.mxu0 0
      %1670 = vmatprep.mubr.bf16.mxu0 0
      %1671 = vmatmul.mubr.bf16.gmra.mxu0 %v1637
      %v1672 = vpop.f32.mrf.mxu0
      %v1673 = vadd.f32 %v1284, %v1672
      %v1674 = vpop.f32.mrf.mxu0
      %v1675 = vpop.f32.mrf.mxu0
      %v1676 = vadd.f32 %v1284, %v1675
      %v1677 = vpop.f32.mrf.mxu0
      %1678 = vdwg.mxu0
      %v1679 = vadd.f32 %v1673, %v1635
      %v1680 = vadd.f32 %v1676, %v1636
      %v1681 = vmax.f32 %v1679, 0.0
      %v1682 = vmax.f32 %v1680, 0.0
      %v1683 = vpack.c.bf16 %v1682, %v1681
      %1684 = vmatprep.subr.bf16.mxu0 0
      %1685 = vmatpush1.bf16.msra.mxu0 %v1442
      %1686 = vmatprep.subr.bf16.mxu0 0
      %1687 = vmatpush1.bf16.msra.mxu0 %v1441
      %1688 = vmatprep.subr.bf16.mxu0 0
      %1689 = vmatpush1.bf16.msra.mxu0 %v1440
      %1690 = vmatprep.subr.bf16.mxu0 0
      %1691 = vmatpush1.bf16.msra.mxu0 %v1439
      %1692 = vmatprep.subr.bf16.mxu0 0
      %1693 = vmatpush1.bf16.msra.mxu0 %v1438
      %1694 = vmatprep.subr.bf16.mxu0 0
      %1695 = vmatpush1.bf16.msra.mxu0 %v1437
      %1696 = vmatprep.subr.bf16.mxu0 0
      %1697 = vmatpush1.bf16.msra.mxu0 %v1436
      %1698 = vmatprep.subr.bf16.mxu0 0
      %1699 = vmatpush1.bf16.msra.mxu0 %v1435
      %1700 = vmatprep.subr.bf16.mxu0 0
      %1701 = vmatpush2.bf16.msra.mxu0 0
      %1702 = vmatprep.subr.bf16.mxu0 0
      %1703 = vmatpush2.bf16.msra.mxu0 0
      %1704 = vmatprep.subr.bf16.mxu0 0
      %1705 = vmatpush2.bf16.msra.mxu0 0
      %1706 = vmatprep.subr.bf16.mxu0 0
      %1707 = vmatpush2.bf16.msra.mxu0 0
      %1708 = vmatprep.subr.bf16.mxu0 0
      %1709 = vmatpush2.bf16.msra.mxu0 0
      %1710 = vmatprep.subr.bf16.mxu0 0
      %1711 = vmatpush2.bf16.msra.mxu0 0
      %1712 = vmatprep.subr.bf16.mxu0 0
      %1713 = vmatpush2.bf16.msra.mxu0 0
      %1714 = vmatprep.subr.bf16.mxu0 0
      %1715 = vmatpush2.bf16.msra.mxu0 0
      %1716 = vmatprep.mubr.bf16.mxu0 0
      %1717 = vmatmul.mubr.bf16.gmra.mxu0 %v1683
      %v1718 = vpop.f32.mrf.mxu0
      %v1719 = vadd.f32 %v1401, %v1718
      %v1720 = vpop.f32.mrf.mxu0
      %v1721 = vpop.f32.mrf.mxu0
      %v1722 = vadd.f32 %v1401, %v1721
      %v1723 = vpop.f32.mrf.mxu0
      %1724 = vdwg.mxu0
      %v1725 = vmax.f32 %v1719, 0.0
      %v1726 = vmax.f32 %v1722, 0.0
      %v1727 = vpack.c.bf16 %v1726, %v1725
      %v1729 = vsel %vm842, %v1727, 0
      %1731 = vmatprep.subr.bf16.mxu0 0
      %1732 = vmatpush1.bf16.msra.mxu0 0
      %1733 = vmatprep.subr.bf16.mxu0 0
      %1734 = vmatpush1.bf16.msra.mxu0 0
      %1735 = vmatprep.subr.bf16.mxu0 0
      %1736 = vmatpush1.bf16.msra.mxu0 0
      %1737 = vmatprep.subr.bf16.mxu0 0
      %1738 = vmatpush1.bf16.msra.mxu0 0
      %1739 = vmatprep.subr.bf16.mxu0 0
      %1740 = vmatpush1.bf16.msra.mxu0 %v1529
      %1741 = vmatprep.subr.bf16.mxu0 0
      %1742 = vmatpush1.bf16.msra.mxu0 %v1528
      %1743 = vmatprep.subr.bf16.mxu0 0
      %1744 = vmatpush1.bf16.msra.mxu0 %v1527
      %1745 = vmatprep.subr.bf16.mxu0 0
      %1746 = vmatpush1.bf16.msra.mxu0 %v1526
      %1747 = vmatprep.subr.bf16.mxu0 0
      %1748 = vmatpush2.bf16.msra.mxu0 0
      %1749 = vmatprep.subr.bf16.mxu0 0
      %1750 = vmatpush2.bf16.msra.mxu0 0
      %1751 = vmatprep.subr.bf16.mxu0 0
      %1752 = vmatpush2.bf16.msra.mxu0 0
      %1753 = vmatprep.subr.bf16.mxu0 0
      %1754 = vmatpush2.bf16.msra.mxu0 0
      %1755 = vmatprep.subr.bf16.mxu0 0
      %1756 = vmatpush2.bf16.msra.mxu0 0
      %1757 = vmatprep.subr.bf16.mxu0 0
      %1758 = vmatpush2.bf16.msra.mxu0 0
      %1759 = vmatprep.subr.bf16.mxu0 0
      %1760 = vmatpush2.bf16.msra.mxu0 0
      %1761 = vmatprep.subr.bf16.mxu0 0
      %1762 = vmatpush2.bf16.msra.mxu0 0
      %1763 = vmatprep.mubr.bf16.mxu0 0
      %1764 = vmatmul.mubr.bf16.gmra.mxu0 %v1729
      %v1765 = vpop.f32.mrf.mxu0
      %v1766 = vadd.f32 %v1508, %v1765
      %v1767 = vpop.f32.mrf.mxu0
      %v1768 = vpop.f32.mrf.mxu0
      %v1769 = vadd.f32 %v1508, %v1768
      %v1770 = vpop.f32.mrf.mxu0
      %1771 = vdwg.mxu0
      %v1772 = vtanh.pop %v1766
      %v1773 = vtanh.pop %v1769
      %v1774 = vpack.c.bf16 %v1680, %v1679
      %v1775 = vadd.f32 %v680, %v1772
      %v1776 = vadd.f32 %v681, %v1773
      %v1779 = vunpack.c.l.b16 %v1580
      %v1780 = vunpack.c.l.b16 %v1774
      %v1781 = vunpack.c.h.b16 %v1580
      %v1782 = vunpack.c.h.b16 %v1774
      %v1783 = vpack.c.b16 %v1780, %v1779
      %v1784 = vpack.c.b16 %v1782, %v1781
      %1787 = vst [vmem:[%s665] sm:$0xff] %v1783
      %1788 = vst [vmem:[%s665 + $0x8] sm:$0xff] %v1784
      %1791 = vrot.lane.b32.xlu0 %v1775, 3
      %v1792 = vpop.permute.xlu0 %1791
      %1793 = vrot.lane.b32.xlu0 %v1776, 3
      %v1794 = vpop.permute.xlu0 %1793
      %vm1797 = vcmask 23552
      %v1798 = vsel %vm1797, %v1581, %v1792
      %v1799 = vsel %vm1797, %v1582, %v1794
      %vm1800 = vcmask 48128
      %1801 = vst.msk [vmem:[%s675] sm:$0xff] %vm1800, %v1798
      %1802 = vst.msk [vmem:[%s675 + $0x8] sm:$0xff] %vm1800, %v1799
      %s1803 = smul.u32 2, %s35
      %p1804 = scmp.lt.s32.totalorder %s34, 1
      %s1805 = scalar_select %p1804, %s34, 1
      %p1806 = scmp.lt.s32.totalorder %s1803, 1
      %s1807 = scalar_select %p1806, %s1803, 1
      %s1808 = smul.addr %s1807, 2
      %s1809 = smul.addr %s1805, 4
      %s1810 = sadd.s32 %s1808, %s1809
      %s1811 = smul.addr %s1810, 4
      %s1812 = scalar_lea.vmem %s17, %s1811
      %s1813 = smul.u32 2, %s35
      %p1814 = scmp.lt.s32.totalorder %s34, 1
      %s1815 = scalar_select %p1814, %s34, 1
      %p1816 = scmp.lt.s32.totalorder %s1813, 1
      %s1817 = scalar_select %p1816, %s1813, 1
      %s1818 = smul.addr %s1815, 2
      %s1819 = sadd.s32 %s1817, %s1818
      %s1820 = smul.addr %s1819, 8
      %s1821 = scalar_lea.vmem %s18, %s1820
      // Predicated region
      $region89: #{spd_forward.11} parent=87 // pred_check
        %p1822 = pneg %p433
      $region90: #{spd_forward.11} parent=87 // pred_check_branch
        %1824 = sbr.rel (%p1822) target = $region92
      $region91: #{spd_forward.11} parent=87 // pred_region
        %s1825 = smul.u32 2, %s35
      $region92: #{spd_forward.11} parent=87 // pred_fallthru
        _
      // Predicated region
      $region93: #{spd_forward.11} parent=87 // pred_check
        %p1826 = pneg %p461
      $region94: #{spd_forward.11} parent=87 // pred_check_branch
        %1828 = sbr.rel (%p1826) target = $region96
      $region95: #{spd_forward.11} parent=87 // pred_region
        %s1829 = smul.u32 2, %s35
      $region96: #{spd_forward.11} parent=87 // pred_fallthru
        _
    $region88: #{spd_forward.11} parent=5 // pred_fallthru
      _
    %p1830 = scmp.le.s32.totalorder 2, %s25
    // Predicated region
    $region97: #{spd_forward.11} parent=5 // pred_check
      %p1831 = pneg %p1830
    $region98: #{spd_forward.11} parent=5 // pred_check_branch
      %1833 = sbr.rel (%p1831) target = $region100
    $region99: #{spd_forward.11} parent=5 // pred_region
      %s1834 = ssub.s32 %s25, 2
      // Predicated region
      $region101: #{spd_forward.11} parent=99 // pred_check
        %p1835 = pneg %p439
      $region102: #{spd_forward.11} parent=99 // pred_check_branch
        %1837 = sbr.rel (%p1835) target = $region104
      $region103: #{spd_forward.11} parent=99 // pred_region
        %s1838 = smul.u32 2, %s37
        %p1839 = scmp.lt.s32.totalorder %s36, 1
        %s1840 = scalar_select %p1839, %s36, 1
        %p1841 = scmp.lt.s32.totalorder %s1838, 1
        %s1842 = scalar_select %p1841, %s1838, 1
        %s1843 = smul.addr %s1842, 2
        %s1844 = smul.addr %s1840, 4
        %s1845 = sadd.s32 %s1843, %s1844
        %s1846 = smul.addr %s1845, 4
        %s1847 = scalar_lea.vmem %s17, %s1846
      $region104: #{spd_forward.11} parent=99 // pred_fallthru
        _
      // Predicated region
      $region105: #{spd_forward.11} parent=99 // pred_check
        %p1848 = pneg %p467
      $region106: #{spd_forward.11} parent=99 // pred_check_branch
        %1850 = sbr.rel (%p1848) target = $region108
      $region107: #{spd_forward.11} parent=99 // pred_region
        %s1851 = smul.u32 2, %s37
        %p1852 = scmp.lt.s32.totalorder %s36, 1
        %s1853 = scalar_select %p1852, %s36, 1
        %p1854 = scmp.lt.s32.totalorder %s1851, 1
        %s1855 = scalar_select %p1854, %s1851, 1
        %s1856 = smul.addr %s1853, 2
        %s1857 = sadd.s32 %s1855, %s1856
        %s1858 = smul.addr %s1857, 8
        %s1859 = scalar_lea.vmem %s18, %s1858
      $region108: #{spd_forward.11} parent=99 // pred_fallthru
        _
    $region100: #{spd_forward.11} parent=5 // pred_fallthru
      _
  $region6: #{spd_forward.11} parent=0 // loop_footer
    %s29 = sadd.s32 1, %s25
  $region7: #{spd_forward.11} parent=0 // loop_footer_branch
    %24 = sbr.rel target = $region3
  $region8: #{spd_forward.11} parent=0 // loop_exit
    _

// kernel: spd_forward.10
$region0: #{spd_forward.10}
  #allocation0 [shape = 'u32[]', space=smem, size = 0x4, offset = 0x4, fixed_abs, tag = 'smem constant byte address 0x4 - core index']
  #allocation1 [shape = 'u32[144,128]{1,0:T(1,128)}', space=vmem, size = 0x12000, scoped, tag = 'internal scratch']
  %s0 = inlined_call_operand.vmem [shape: bf16[2,16,256], index: 0, kind: input, shape index: {}]
  %s1 = inlined_call_operand.vmem [shape: bf16[2,16,1024], index: 1, kind: input, shape index: {}]
  %s2 = inlined_call_operand.vmem [shape: f32[2,16,3], index: 2, kind: input, shape index: {}]
  %s3 = inlined_call_operand.vmem [shape: f32[2,16,48], index: 3, kind: input, shape index: {}]
  %s4 = inlined_call_operand.vmem [shape: bf16[3,64], index: 4, kind: input, shape index: {}]
  %s5 = inlined_call_operand.vmem [shape: f32[1,64], index: 5, kind: input, shape index: {}]
  %s6 = inlined_call_operand.vmem [shape: bf16[64,64], index: 6, kind: input, shape index: {}]
  %s7 = inlined_call_operand.vmem [shape: f32[1,64], index: 7, kind: input, shape index: {}]
  %s8 = inlined_call_operand.vmem [shape: bf16[64,256], index: 8, kind: input, shape index: {}]
  %s9 = inlined_call_operand.vmem [shape: f32[1,256], index: 9, kind: input, shape index: {}]
  %s10 = inlined_call_operand.vmem [shape: bf16[256,64], index: 10, kind: input, shape index: {}]
  %s11 = inlined_call_operand.vmem [shape: f32[1,64], index: 11, kind: input, shape index: {}]
  %s12 = inlined_call_operand.vmem [shape: bf16[64,128], index: 12, kind: input, shape index: {}]
  %s13 = inlined_call_operand.vmem [shape: f32[1,128], index: 13, kind: input, shape index: {}]
  %s14 = inlined_call_operand.vmem [shape: bf16[2,16,128], index: 14, kind: output, shape index: {}]
  %s15 = sld [smem:[#allocation0]]
  $region89: #{spd_forward.10} parent=0
    _
  %s17 = ssub.s32 1, %s15
  %s18 = scalar_select 0, %s17, %s15
  loop: start=0, step=1, limit=4
  $region2: #{spd_forward.10} parent=0 // loop_pre_header
    _
  $region3: #{spd_forward.10} parent=0 // loop_header
    %s20 = sphi 0, %s24
    %p21 = scmp.ge.s32.totalorder %s20, 4
    %s27 = sphi 0, %s39
    %s28 = sphi 0, %s35
    %s29 = sphi 0, %s27
    %s30 = sphi 0, %s28
    %s31 = sphi 0, %s29
    %s32 = sphi 0, %s30
    %s44 = sphi 0, %s46
    %s47 = sphi 0, %s44
    %s48 = sphi 0, %s47
    %s64 = sphi 0, %s48
    %s72 = sphi 0, %s74
    %s75 = sphi 0, %s72
    %s76 = sphi 0, %s75
    %s92 = sphi 0, %s76
    %s100 = sphi 0, %s102
    %s103 = sphi 0, %s100
    %s104 = sphi 0, %s103
    %s120 = sphi 0, %s104
    %s128 = sphi 0, %s130
    %s131 = sphi 0, %s128
    %s132 = sphi 0, %s131
    %s148 = sphi 0, %s132
    %s152 = sphi 0, %s152
    %s154 = sphi 0, %s152
    %s155 = sphi 0, %s154
    %s169 = sphi 0, %s155
    %s173 = sphi 0, %s173
    %s175 = sphi 0, %s173
    %s176 = sphi 0, %s175
    %s190 = sphi 0, %s176
    %s194 = sphi 0, %s194
    %s196 = sphi 0, %s194
    %s197 = sphi 0, %s196
    %s211 = sphi 0, %s197
    %s215 = sphi 0, %s215
    %s217 = sphi 0, %s215
    %s218 = sphi 0, %s217
    %s232 = sphi 0, %s218
    %s236 = sphi 0, %s236
    %s238 = sphi 0, %s236
    %s239 = sphi 0, %s238
    %s253 = sphi 0, %s239
    %s257 = sphi 0, %s257
    %s259 = sphi 0, %s257
    %s260 = sphi 0, %s259
    %s274 = sphi 0, %s260
    %s278 = sphi 0, %s278
    %s280 = sphi 0, %s278
    %s281 = sphi 0, %s280
    %s295 = sphi 0, %s281
    %s299 = sphi 0, %s299
    %s301 = sphi 0, %s299
    %s302 = sphi 0, %s301
    %s316 = sphi 0, %s302
    %s320 = sphi 0, %s320
    %s322 = sphi 0, %s320
    %s323 = sphi 0, %s322
    %s337 = sphi 0, %s323
    %s341 = sphi 0, %s341
    %s343 = sphi 0, %s341
    %s344 = sphi 0, %s343
    %s358 = sphi 0, %s344
    %s366 = sphi 0, %s368
    %s369 = sphi 0, %s366
    %s370 = sphi 0, %s369
    %s386 = sphi 0, %s370
  $region4: #{spd_forward.10} parent=0 // loop_header_branch
    %23 = sbr.rel (%p21) target = $region8
  $region5: #{spd_forward.10} parent=0 // loop_body
    %s25 = ssub.s32 %s20, 1
    %s26 = ssub.s32 %s20, 2
    %s33 = sadd.s32 1, %s28
    %p34 = scmp.ge.s32.totalorder %s33, 1
    %s35 = scalar_select %p34, 0, %s33
    %s36 = sadd.s32 1, %s27
    %s37 = scalar_select %p34, %s36, %s27
    %p38 = scmp.ge.s32.totalorder %s37, 2
    %s39 = scalar_select %p38, 0, %s37
    %s40 = ssub.s32 %s27, %s39
    %s41 = ssub.s32 %s28, %s35
    %s42 = sor.u32 %s40, %s41
    %p43 = scmp.eq.s32.totalorder %s42, 0
    %s45 = sadd.s32 %s44, 1
    %s46 = scalar_select %p43, %s44, %s45
    %p49 = pneg %p43
    %p50 = scmp.eq.s32.totalorder %s20, 1
    %p51 = por %p49, %p50
    %p52 = scmp.ne.s32.totalorder %s44, %s47
    %p53 = scmp.eq.s32.totalorder %s20, 0
    %p54 = por %p52, %p53
    %p55 = scmp.ne.s32.totalorder %s44, %s47
    %p56 = scmp.eq.s32.totalorder %s25, 1
    %p57 = por %p55, %p56
    %p58 = scmp.ne.s32.totalorder %s47, %s48
    %p59 = scmp.eq.s32.totalorder %s25, 0
    %p60 = por %p58, %p59
    %p61 = scmp.ne.s32.totalorder %s47, %s48
    %p62 = scmp.eq.s32.totalorder %s26, 1
    %p63 = por %p61, %p62
    %p65 = scmp.ne.s32.totalorder %s48, %s64
    %p66 = scmp.eq.s32.totalorder %s26, 0
    %p67 = por %p65, %p66
    %s68 = ssub.s32 %s27, %s39
    %s69 = ssub.s32 %s28, %s35
    %s70 = sor.u32 %s68, %s69
    %p71 = scmp.eq.s32.totalorder %s70, 0
    %s73 = sadd.s32 %s72, 1
    %s74 = scalar_select %p71, %s72, %s73
    %p77 = pneg %p71
    %p78 = scmp.eq.s32.totalorder %s20, 1
    %p79 = por %p77, %p78
    %p80 = scmp.ne.s32.totalorder %s72, %s75
    %p81 = scmp.eq.s32.totalorder %s20, 0
    %p82 = por %p80, %p81
    %p83 = scmp.ne.s32.totalorder %s72, %s75
    %p84 = scmp.eq.s32.totalorder %s25, 1
    %p85 = por %p83, %p84
    %p86 = scmp.ne.s32.totalorder %s75, %s76
    %p87 = scmp.eq.s32.totalorder %s25, 0
    %p88 = por %p86, %p87
    %p89 = scmp.ne.s32.totalorder %s75, %s76
    %p90 = scmp.eq.s32.totalorder %s26, 1
    %p91 = por %p89, %p90
    %p93 = scmp.ne.s32.totalorder %s76, %s92
    %p94 = scmp.eq.s32.totalorder %s26, 0
    %p95 = por %p93, %p94
    %s96 = ssub.s32 %s27, %s39
    %s97 = ssub.s32 %s28, %s35
    %s98 = sor.u32 %s96, %s97
    %p99 = scmp.eq.s32.totalorder %s98, 0
    %s101 = sadd.s32 %s100, 1
    %s102 = scalar_select %p99, %s100, %s101
    %p105 = pneg %p99
    %p106 = scmp.eq.s32.totalorder %s20, 1
    %p107 = por %p105, %p106
    %p108 = scmp.ne.s32.totalorder %s100, %s103
    %p109 = scmp.eq.s32.totalorder %s20, 0
    %p110 = por %p108, %p109
    %p111 = scmp.ne.s32.totalorder %s100, %s103
    %p112 = scmp.eq.s32.totalorder %s25, 1
    %p113 = por %p111, %p112
    %p114 = scmp.ne.s32.totalorder %s103, %s104
    %p115 = scmp.eq.s32.totalorder %s25, 0
    %p116 = por %p114, %p115
    %p117 = scmp.ne.s32.totalorder %s103, %s104
    %p118 = scmp.eq.s32.totalorder %s26, 1
    %p119 = por %p117, %p118
    %p121 = scmp.ne.s32.totalorder %s104, %s120
    %p122 = scmp.eq.s32.totalorder %s26, 0
    %p123 = por %p121, %p122
    %s124 = ssub.s32 %s27, %s39
    %s125 = ssub.s32 %s28, %s35
    %s126 = sor.u32 %s124, %s125
    %p127 = scmp.eq.s32.totalorder %s126, 0
    %s129 = sadd.s32 %s128, 1
    %s130 = scalar_select %p127, %s128, %s129
    %p133 = pneg %p127
    %p134 = scmp.eq.s32.totalorder %s20, 1
    %p135 = por %p133, %p134
    %p136 = scmp.ne.s32.totalorder %s128, %s131
    %p137 = scmp.eq.s32.totalorder %s20, 0
    %p138 = por %p136, %p137
    %p139 = scmp.ne.s32.totalorder %s128, %s131
    %p140 = scmp.eq.s32.totalorder %s25, 1
    %p141 = por %p139, %p140
    %p142 = scmp.ne.s32.totalorder %s131, %s132
    %p143 = scmp.eq.s32.totalorder %s25, 0
    %p144 = por %p142, %p143
    %p145 = scmp.ne.s32.totalorder %s131, %s132
    %p146 = scmp.eq.s32.totalorder %s26, 1
    %p147 = por %p145, %p146
    %p149 = scmp.ne.s32.totalorder %s132, %s148
    %p150 = scmp.eq.s32.totalorder %s26, 0
    %p151 = por %p149, %p150
    %s153 = sadd.s32 %s152, 1
    %p156 = scmp.eq.s32.totalorder %s20, 1
    %p157 = scmp.ne.s32.totalorder %s152, %s154
    %p158 = scmp.eq.s32.totalorder %s20, 0
    %p159 = por %p157, %p158
    %p160 = scmp.ne.s32.totalorder %s152, %s154
    %p161 = scmp.eq.s32.totalorder %s25, 1
    %p162 = por %p160, %p161
    %p163 = scmp.ne.s32.totalorder %s154, %s155
    %p164 = scmp.eq.s32.totalorder %s25, 0
    %p165 = por %p163, %p164
    %p166 = scmp.ne.s32.totalorder %s154, %s155
    %p167 = scmp.eq.s32.totalorder %s26, 1
    %p168 = por %p166, %p167
    %p170 = scmp.ne.s32.totalorder %s155, %s169
    %p171 = scmp.eq.s32.totalorder %s26, 0
    %p172 = por %p170, %p171
    %s174 = sadd.s32 %s173, 1
    %p177 = scmp.eq.s32.totalorder %s20, 1
    %p178 = scmp.ne.s32.totalorder %s173, %s175
    %p179 = scmp.eq.s32.totalorder %s20, 0
    %p180 = por %p178, %p179
    %p181 = scmp.ne.s32.totalorder %s173, %s175
    %p182 = scmp.eq.s32.totalorder %s25, 1
    %p183 = por %p181, %p182
    %p184 = scmp.ne.s32.totalorder %s175, %s176
    %p185 = scmp.eq.s32.totalorder %s25, 0
    %p186 = por %p184, %p185
    %p187 = scmp.ne.s32.totalorder %s175, %s176
    %p188 = scmp.eq.s32.totalorder %s26, 1
    %p189 = por %p187, %p188
    %p191 = scmp.ne.s32.totalorder %s176, %s190
    %p192 = scmp.eq.s32.totalorder %s26, 0
    %p193 = por %p191, %p192
    %s195 = sadd.s32 %s194, 1
    %p198 = scmp.eq.s32.totalorder %s20, 1
    %p199 = scmp.ne.s32.totalorder %s194, %s196
    %p200 = scmp.eq.s32.totalorder %s20, 0
    %p201 = por %p199, %p200
    %p202 = scmp.ne.s32.totalorder %s194, %s196
    %p203 = scmp.eq.s32.totalorder %s25, 1
    %p204 = por %p202, %p203
    %p205 = scmp.ne.s32.totalorder %s196, %s197
    %p206 = scmp.eq.s32.totalorder %s25, 0
    %p207 = por %p205, %p206
    %p208 = scmp.ne.s32.totalorder %s196, %s197
    %p209 = scmp.eq.s32.totalorder %s26, 1
    %p210 = por %p208, %p209
    %p212 = scmp.ne.s32.totalorder %s197, %s211
    %p213 = scmp.eq.s32.totalorder %s26, 0
    %p214 = por %p212, %p213
    %s216 = sadd.s32 %s215, 1
    %p219 = scmp.eq.s32.totalorder %s20, 1
    %p220 = scmp.ne.s32.totalorder %s215, %s217
    %p221 = scmp.eq.s32.totalorder %s20, 0
    %p222 = por %p220, %p221
    %p223 = scmp.ne.s32.totalorder %s215, %s217
    %p224 = scmp.eq.s32.totalorder %s25, 1
    %p225 = por %p223, %p224
    %p226 = scmp.ne.s32.totalorder %s217, %s218
    %p227 = scmp.eq.s32.totalorder %s25, 0
    %p228 = por %p226, %p227
    %p229 = scmp.ne.s32.totalorder %s217, %s218
    %p230 = scmp.eq.s32.totalorder %s26, 1
    %p231 = por %p229, %p230
    %p233 = scmp.ne.s32.totalorder %s218, %s232
    %p234 = scmp.eq.s32.totalorder %s26, 0
    %p235 = por %p233, %p234
    %s237 = sadd.s32 %s236, 1
    %p240 = scmp.eq.s32.totalorder %s20, 1
    %p241 = scmp.ne.s32.totalorder %s236, %s238
    %p242 = scmp.eq.s32.totalorder %s20, 0
    %p243 = por %p241, %p242
    %p244 = scmp.ne.s32.totalorder %s236, %s238
    %p245 = scmp.eq.s32.totalorder %s25, 1
    %p246 = por %p244, %p245
    %p247 = scmp.ne.s32.totalorder %s238, %s239
    %p248 = scmp.eq.s32.totalorder %s25, 0
    %p249 = por %p247, %p248
    %p250 = scmp.ne.s32.totalorder %s238, %s239
    %p251 = scmp.eq.s32.totalorder %s26, 1
    %p252 = por %p250, %p251
    %p254 = scmp.ne.s32.totalorder %s239, %s253
    %p255 = scmp.eq.s32.totalorder %s26, 0
    %p256 = por %p254, %p255
    %s258 = sadd.s32 %s257, 1
    %p261 = scmp.eq.s32.totalorder %s20, 1
    %p262 = scmp.ne.s32.totalorder %s257, %s259
    %p263 = scmp.eq.s32.totalorder %s20, 0
    %p264 = por %p262, %p263
    %p265 = scmp.ne.s32.totalorder %s257, %s259
    %p266 = scmp.eq.s32.totalorder %s25, 1
    %p267 = por %p265, %p266
    %p268 = scmp.ne.s32.totalorder %s259, %s260
    %p269 = scmp.eq.s32.totalorder %s25, 0
    %p270 = por %p268, %p269
    %p271 = scmp.ne.s32.totalorder %s259, %s260
    %p272 = scmp.eq.s32.totalorder %s26, 1
    %p273 = por %p271, %p272
    %p275 = scmp.ne.s32.totalorder %s260, %s274
    %p276 = scmp.eq.s32.totalorder %s26, 0
    %p277 = por %p275, %p276
    %s279 = sadd.s32 %s278, 1
    %p282 = scmp.eq.s32.totalorder %s20, 1
    %p283 = scmp.ne.s32.totalorder %s278, %s280
    %p284 = scmp.eq.s32.totalorder %s20, 0
    %p285 = por %p283, %p284
    %p286 = scmp.ne.s32.totalorder %s278, %s280
    %p287 = scmp.eq.s32.totalorder %s25, 1
    %p288 = por %p286, %p287
    %p289 = scmp.ne.s32.totalorder %s280, %s281
    %p290 = scmp.eq.s32.totalorder %s25, 0
    %p291 = por %p289, %p290
    %p292 = scmp.ne.s32.totalorder %s280, %s281
    %p293 = scmp.eq.s32.totalorder %s26, 1
    %p294 = por %p292, %p293
    %p296 = scmp.ne.s32.totalorder %s281, %s295
    %p297 = scmp.eq.s32.totalorder %s26, 0
    %p298 = por %p296, %p297
    %s300 = sadd.s32 %s299, 1
    %p303 = scmp.eq.s32.totalorder %s20, 1
    %p304 = scmp.ne.s32.totalorder %s299, %s301
    %p305 = scmp.eq.s32.totalorder %s20, 0
    %p306 = por %p304, %p305
    %p307 = scmp.ne.s32.totalorder %s299, %s301
    %p308 = scmp.eq.s32.totalorder %s25, 1
    %p309 = por %p307, %p308
    %p310 = scmp.ne.s32.totalorder %s301, %s302
    %p311 = scmp.eq.s32.totalorder %s25, 0
    %p312 = por %p310, %p311
    %p313 = scmp.ne.s32.totalorder %s301, %s302
    %p314 = scmp.eq.s32.totalorder %s26, 1
    %p315 = por %p313, %p314
    %p317 = scmp.ne.s32.totalorder %s302, %s316
    %p318 = scmp.eq.s32.totalorder %s26, 0
    %p319 = por %p317, %p318
    %s321 = sadd.s32 %s320, 1
    %p324 = scmp.eq.s32.totalorder %s20, 1
    %p325 = scmp.ne.s32.totalorder %s320, %s322
    %p326 = scmp.eq.s32.totalorder %s20, 0
    %p327 = por %p325, %p326
    %p328 = scmp.ne.s32.totalorder %s320, %s322
    %p329 = scmp.eq.s32.totalorder %s25, 1
    %p330 = por %p328, %p329
    %p331 = scmp.ne.s32.totalorder %s322, %s323
    %p332 = scmp.eq.s32.totalorder %s25, 0
    %p333 = por %p331, %p332
    %p334 = scmp.ne.s32.totalorder %s322, %s323
    %p335 = scmp.eq.s32.totalorder %s26, 1
    %p336 = por %p334, %p335
    %p338 = scmp.ne.s32.totalorder %s323, %s337
    %p339 = scmp.eq.s32.totalorder %s26, 0
    %p340 = por %p338, %p339
    %s342 = sadd.s32 %s341, 1
    %p345 = scmp.eq.s32.totalorder %s20, 1
    %p346 = scmp.ne.s32.totalorder %s341, %s343
    %p347 = scmp.eq.s32.totalorder %s20, 0
    %p348 = por %p346, %p347
    %p349 = scmp.ne.s32.totalorder %s341, %s343
    %p350 = scmp.eq.s32.totalorder %s25, 1
    %p351 = por %p349, %p350
    %p352 = scmp.ne.s32.totalorder %s343, %s344
    %p353 = scmp.eq.s32.totalorder %s25, 0
    %p354 = por %p352, %p353
    %p355 = scmp.ne.s32.totalorder %s343, %s344
    %p356 = scmp.eq.s32.totalorder %s26, 1
    %p357 = por %p355, %p356
    %p359 = scmp.ne.s32.totalorder %s344, %s358
    %p360 = scmp.eq.s32.totalorder %s26, 0
    %p361 = por %p359, %p360
    %s362 = ssub.s32 %s27, %s39
    %s363 = ssub.s32 %s28, %s35
    %s364 = sor.u32 %s362, %s363
    %p365 = scmp.eq.s32.totalorder %s364, 0
    %s367 = sadd.s32 %s366, 1
    %s368 = scalar_select %p365, %s366, %s367
    %p371 = pneg %p365
    %p372 = scmp.eq.s32.totalorder %s20, 1
    %p373 = por %p371, %p372
    %p374 = scmp.ne.s32.totalorder %s366, %s369
    %p375 = scmp.eq.s32.totalorder %s20, 0
    %p376 = por %p374, %p375
    %p377 = scmp.ne.s32.totalorder %s366, %s369
    %p378 = scmp.eq.s32.totalorder %s25, 1
    %p379 = por %p377, %p378
    %p380 = scmp.ne.s32.totalorder %s369, %s370
    %p381 = scmp.eq.s32.totalorder %s25, 0
    %p382 = por %p380, %p381
    %p383 = scmp.ne.s32.totalorder %s369, %s370
    %p384 = scmp.eq.s32.totalorder %s26, 1
    %p385 = por %p383, %p384
    %p387 = scmp.ne.s32.totalorder %s370, %s386
    %p388 = scmp.eq.s32.totalorder %s26, 0
    %p389 = por %p387, %p388
    %p390 = scmp.le.s32.totalorder 1, %s20
    %p391 = scmp.lt.s32.totalorder %s20, 3
    %p392 = pnand %p390, %p391
    %p393 = pneg %p392
    // Predicated region
    $region9: #{spd_forward.10} parent=5 // pred_check
      _
    $region10: #{spd_forward.10} parent=5 // pred_check_branch
      %395 = sbr.rel (%p392) target = $region12
    $region11: #{spd_forward.10} parent=5 // pred_region
      %s396 = ssub.s32 %s20, 1
      // Predicated region
      $region13: #{spd_forward.10} parent=11 // pred_check
        %p397 = pneg %p165
      $region14: #{spd_forward.10} parent=11 // pred_check_branch
        %399 = sbr.rel (%p397) target = $region16
      $region15: #{spd_forward.10} parent=11 // pred_region
        _
      $region16: #{spd_forward.10} parent=11 // pred_fallthru
        _
      // Predicated region
      $region17: #{spd_forward.10} parent=11 // pred_check
        %p400 = pneg %p186
      $region18: #{spd_forward.10} parent=11 // pred_check_branch
        %402 = sbr.rel (%p400) target = $region20
      $region19: #{spd_forward.10} parent=11 // pred_region
        _
      $region20: #{spd_forward.10} parent=11 // pred_fallthru
        _
      // Predicated region
      $region21: #{spd_forward.10} parent=11 // pred_check
        %p403 = pneg %p207
      $region22: #{spd_forward.10} parent=11 // pred_check_branch
        %405 = sbr.rel (%p403) target = $region24
      $region23: #{spd_forward.10} parent=11 // pred_region
        _
      $region24: #{spd_forward.10} parent=11 // pred_fallthru
        _
      // Predicated region
      $region25: #{spd_forward.10} parent=11 // pred_check
        %p406 = pneg %p228
      $region26: #{spd_forward.10} parent=11 // pred_check_branch
        %408 = sbr.rel (%p406) target = $region28
      $region27: #{spd_forward.10} parent=11 // pred_region
        _
      $region28: #{spd_forward.10} parent=11 // pred_fallthru
        _
      // Predicated region
      $region29: #{spd_forward.10} parent=11 // pred_check
        %p409 = pneg %p249
      $region30: #{spd_forward.10} parent=11 // pred_check_branch
        %411 = sbr.rel (%p409) target = $region32
      $region31: #{spd_forward.10} parent=11 // pred_region
        _
      $region32: #{spd_forward.10} parent=11 // pred_fallthru
        _
      // Predicated region
      $region33: #{spd_forward.10} parent=11 // pred_check
        %p412 = pneg %p270
      $region34: #{spd_forward.10} parent=11 // pred_check_branch
        %414 = sbr.rel (%p412) target = $region36
      $region35: #{spd_forward.10} parent=11 // pred_region
        _
      $region36: #{spd_forward.10} parent=11 // pred_fallthru
        _
      // Predicated region
      $region37: #{spd_forward.10} parent=11 // pred_check
        %p415 = pneg %p291
      $region38: #{spd_forward.10} parent=11 // pred_check_branch
        %417 = sbr.rel (%p415) target = $region40
      $region39: #{spd_forward.10} parent=11 // pred_region
        _
      $region40: #{spd_forward.10} parent=11 // pred_fallthru
        _
      // Predicated region
      $region41: #{spd_forward.10} parent=11 // pred_check
        %p418 = pneg %p312
      $region42: #{spd_forward.10} parent=11 // pred_check_branch
        %420 = sbr.rel (%p418) target = $region44
      $region43: #{spd_forward.10} parent=11 // pred_region
        _
      $region44: #{spd_forward.10} parent=11 // pred_fallthru
        _
      // Predicated region
      $region45: #{spd_forward.10} parent=11 // pred_check
        %p421 = pneg %p333
      $region46: #{spd_forward.10} parent=11 // pred_check_branch
        %423 = sbr.rel (%p421) target = $region48
      $region47: #{spd_forward.10} parent=11 // pred_region
        _
      $region48: #{spd_forward.10} parent=11 // pred_fallthru
        _
      // Predicated region
      $region49: #{spd_forward.10} parent=11 // pred_check
        %p424 = pneg %p354
      $region50: #{spd_forward.10} parent=11 // pred_check_branch
        %426 = sbr.rel (%p424) target = $region52
      $region51: #{spd_forward.10} parent=11 // pred_region
        _
      $region52: #{spd_forward.10} parent=11 // pred_fallthru
        _
    $region12: #{spd_forward.10} parent=5 // pred_fallthru
      _
    %p427 = scmp.lt.s32.totalorder %s20, 2
    // Predicated region
    $region53: #{spd_forward.10} parent=5 // pred_check
      %p428 = pneg %p427
    $region54: #{spd_forward.10} parent=5 // pred_check_branch
      %430 = sbr.rel (%p428) target = $region56
    $region55: #{spd_forward.10} parent=5 // pred_region
      // Predicated region
      $region57: #{spd_forward.10} parent=55 // pred_check
        %p431 = pneg %p54
      $region58: #{spd_forward.10} parent=55 // pred_check_branch
        %433 = sbr.rel (%p431) target = $region60
      $region59: #{spd_forward.10} parent=55 // pred_region
        %s434 = smul.u32 2, %s28
        %p435 = scmp.lt.s32.totalorder %s27, 1
        %s436 = scalar_select %p435, %s27, 1
        %p437 = scmp.lt.s32.totalorder %s434, 1
        %s438 = scalar_select %p437, %s434, 1
        %s439 = smul.addr %s438, 2
        %s440 = smul.addr %s436, 4
        %s441 = sadd.s32 %s439, %s440
        %s442 = smul.addr %s441, 4
        %s443 = scalar_lea.vmem %s0, %s442
        %s444 = smul.u32 2, %s28
      $region60: #{spd_forward.10} parent=55 // pred_fallthru
        _
      // Predicated region
      $region61: #{spd_forward.10} parent=55 // pred_check
        %p445 = pneg %p82
      $region62: #{spd_forward.10} parent=55 // pred_check_branch
        %447 = sbr.rel (%p445) target = $region64
      $region63: #{spd_forward.10} parent=55 // pred_region
        %s448 = smul.u32 2, %s28
        %p449 = scmp.lt.s32.totalorder %s27, 1
        %s450 = scalar_select %p449, %s27, 1
        %p451 = scmp.lt.s32.totalorder %s448, 1
        %s452 = scalar_select %p451, %s448, 1
        %s453 = smul.addr %s452, 8
        %s454 = smul.addr %s450, 16
        %s455 = sadd.s32 %s453, %s454
        %s456 = smul.addr %s455, 4
        %s457 = scalar_lea.vmem %s1, %s456
        %s458 = smul.u32 2, %s28
      $region64: #{spd_forward.10} parent=55 // pred_fallthru
        _
      // Predicated region
      $region65: #{spd_forward.10} parent=55 // pred_check
        %p459 = pneg %p110
      $region66: #{spd_forward.10} parent=55 // pred_check_branch
        %461 = sbr.rel (%p459) target = $region68
      $region67: #{spd_forward.10} parent=55 // pred_region
        %s462 = smul.u32 2, %s28
        %p463 = scmp.lt.s32.totalorder %s27, 1
        %s464 = scalar_select %p463, %s27, 1
        %p465 = scmp.lt.s32.totalorder %s462, 1
        %s466 = scalar_select %p465, %s462, 1
        %s467 = smul.addr %s464, 2
        %s468 = sadd.s32 %s466, %s467
        %s469 = smul.addr %s468, 8
        %s470 = scalar_lea.vmem %s2, %s469
        %s471 = smul.u32 2, %s28
      $region68: #{spd_forward.10} parent=55 // pred_fallthru
        _
      // Predicated region
      $region69: #{spd_forward.10} parent=55 // pred_check
        %p472 = pneg %p138
      $region70: #{spd_forward.10} parent=55 // pred_check_branch
        %474 = sbr.rel (%p472) target = $region72
      $region71: #{spd_forward.10} parent=55 // pred_region
        %s475 = smul.u32 2, %s28
        %p476 = scmp.lt.s32.totalorder %s27, 1
        %s477 = scalar_select %p476, %s27, 1
        %p478 = scmp.lt.s32.totalorder %s475, 1
        %s479 = scalar_select %p478, %s475, 1
        %s480 = smul.addr %s477, 2
        %s481 = sadd.s32 %s479, %s480
        %s482 = smul.addr %s481, 8
        %s483 = scalar_lea.vmem %s3, %s482
        %s484 = smul.u32 2, %s28
      $region72: #{spd_forward.10} parent=55 // pred_fallthru
        _
    $region56: #{spd_forward.10} parent=5 // pred_fallthru
      _
    %p485 = scmp.le.s32.totalorder 1, %s20
    %p486 = scmp.lt.s32.totalorder %s20, 3
    %p487 = pnand %p485, %p486
    %p488 = pneg %p487
    // Predicated region
    $region73: #{spd_forward.10} parent=5 // pred_check
      _
    $region74: #{spd_forward.10} parent=5 // pred_check_branch
      %490 = sbr.rel (%p487) target = $region76
    $region75: #{spd_forward.10} parent=5 // pred_region
      %s491 = ssub.s32 %s20, 1
      %s492 = smul.u32 2, %s30
      %p493 = scmp.lt.s32.totalorder %s29, 1
      %s494 = scalar_select %p493, %s29, 1
      %p495 = scmp.lt.s32.totalorder %s492, 1
      %s496 = scalar_select %p495, %s492, 1
      %s497 = smul.addr %s496, 2
      %s498 = smul.addr %s494, 4
      %s499 = sadd.s32 %s497, %s498
      %s500 = smul.addr %s499, 4
      %s501 = scalar_lea.vmem %s0, %s500
      %p502 = pneg %p60
      %p503 = pneg %p57
      %s504 = smul.u32 2, %s30
      %p505 = scmp.lt.s32.totalorder %s29, 1
      %s506 = scalar_select %p505, %s29, 1
      %p507 = scmp.lt.s32.totalorder %s504, 1
      %s508 = scalar_select %p507, %s504, 1
      %s509 = smul.addr %s508, 8
      %s510 = smul.addr %s506, 16
      %s511 = sadd.s32 %s509, %s510
      %s512 = smul.addr %s511, 4
      %s513 = scalar_lea.vmem %s1, %s512
      %p514 = pneg %p88
      %p515 = pneg %p85
      %s516 = smul.u32 2, %s30
      %p517 = scmp.lt.s32.totalorder %s29, 1
      %s518 = scalar_select %p517, %s29, 1
      %p519 = scmp.lt.s32.totalorder %s516, 1
      %s520 = scalar_select %p519, %s516, 1
      %s521 = smul.addr %s518, 2
      %s522 = sadd.s32 %s520, %s521
      %s523 = smul.addr %s522, 8
      %s524 = scalar_lea.vmem %s2, %s523
      %p525 = pneg %p116
      %p526 = pneg %p113
      %s527 = smul.u32 2, %s30
      %p528 = scmp.lt.s32.totalorder %s29, 1
      %s529 = scalar_select %p528, %s29, 1
      %p530 = scmp.lt.s32.totalorder %s527, 1
      %s531 = scalar_select %p530, %s527, 1
      %s532 = smul.addr %s529, 2
      %s533 = sadd.s32 %s531, %s532
      %s534 = smul.addr %s533, 8
      %s535 = scalar_lea.vmem %s3, %s534
      %p536 = pneg %p144
      %p537 = pneg %p141
      %p538 = pneg %p165
      %p539 = pneg %p162
      %p540 = pneg %p186
      %p541 = pneg %p183
      %p542 = pneg %p207
      %p543 = pneg %p204
      %p544 = pneg %p228
      %p545 = pneg %p225
      %p546 = pneg %p249
      %p547 = pneg %p246
      %p548 = pneg %p270
      %p549 = pneg %p267
      %p550 = pneg %p291
      %p551 = pneg %p288
      %p552 = pneg %p312
      %p553 = pneg %p309
      %p554 = pneg %p333
      %p555 = pneg %p330
      %p556 = pneg %p354
      %p557 = pneg %p351
      %p558 = pneg %p382
      %p559 = pneg %p379
      %s560 = smul.u32 2, %s30
      %p561 = scmp.lt.s32.totalorder %s29, 1
      %s562 = scalar_select %p561, %s29, 1
      %p563 = scmp.lt.s32.totalorder %s560, 1
      %s564 = scalar_select %p563, %s560, 1
      %s565 = smul.addr %s562, 2
      %s566 = sadd.s32 %s564, %s565
      %s567 = smul.addr %s566, 4
      %s568 = scalar_lea.vmem %s14, %s567
      %s569 = smul.u32 2, %s30
      %p570 = scmp.lt.s32.totalorder %s29, 1
      %s571 = scalar_select %p570, %s29, 1
      %p572 = scmp.lt.s32.totalorder %s569, 1
      %s573 = scalar_select %p572, %s569, 1
      %s574 = smul.addr %s573, 2
      %s575 = smul.addr %s571, 4
      %s576 = sadd.s32 %s574, %s575
      %s577 = smul.addr %s576, 4
      %s578 = scalar_lea.vmem %s0, %s577
      %s579 = smul.u32 2, %s30
      %s580 = smul.u32 2, %s30
      %p581 = scmp.lt.s32.totalorder %s29, 1
      %s582 = scalar_select %p581, %s29, 1
      %p583 = scmp.lt.s32.totalorder %s580, 1
      %s584 = scalar_select %p583, %s580, 1
      %s585 = smul.addr %s584, 8
      %s586 = smul.addr %s582, 16
      %s587 = sadd.s32 %s585, %s586
      %s588 = smul.addr %s587, 4
      %s589 = scalar_lea.vmem %s1, %s588
      %s590 = smul.u32 2, %s30
      %s591 = smul.u32 2, %s30
      %p592 = scmp.lt.s32.totalorder %s29, 1
      %s593 = scalar_select %p592, %s29, 1
      %p594 = scmp.lt.s32.totalorder %s591, 1
      %s595 = scalar_select %p594, %s591, 1
      %s596 = smul.addr %s593, 2
      %s597 = sadd.s32 %s595, %s596
      %s598 = smul.addr %s597, 8
      %s599 = scalar_lea.vmem %s2, %s598
      %s600 = smul.u32 2, %s30
      %s601 = smul.u32 2, %s30
      %p602 = scmp.lt.s32.totalorder %s29, 1
      %s603 = scalar_select %p602, %s29, 1
      %p604 = scmp.lt.s32.totalorder %s601, 1
      %s605 = scalar_select %p604, %s601, 1
      %s606 = smul.addr %s603, 2
      %s607 = sadd.s32 %s605, %s606
      %s608 = smul.addr %s607, 8
      %s609 = scalar_lea.vmem %s3, %s608
      %s610 = smul.u32 2, %s30
      %s611 = smul.u32 2, %s30
      %p612 = scmp.lt.s32.totalorder %s29, 1
      %s613 = scalar_select %p612, %s29, 1
      %p614 = scmp.lt.s32.totalorder %s611, 1
      %s615 = scalar_select %p614, %s611, 1
      %s616 = smul.addr %s613, 2
      %s617 = sadd.s32 %s615, %s616
      %s618 = smul.addr %s617, 4
      %s619 = scalar_lea.vmem %s14, %s618
      %s620 = smul.u32 2, %s30
      %v622 = vld [vmem:[%s578] sm:$0xff]
      %v623 = vld [vmem:[%s578 + $0x8] sm:$0xff]
      %v624 = vunpack.c.l.bf16 %v622
      %v625 = vunpack.c.l.bf16 %v623
      %v628 = vrot.slane %v622, 4
      %v629 = vrot.slane %v623, 4
      %v632 = vunpack.c.l.bf16 %v628
      %v633 = vunpack.c.l.bf16 %v629
      %v634 = vld [vmem:[%s589] sm:$0xff]
      %v635 = vld [vmem:[%s589 + $0x8] sm:$0xff]
      %v636 = vld [vmem:[%s589 + $0x10] sm:$0xff]
      %v637 = vld [vmem:[%s589 + $0x18] sm:$0xff]
      %v638 = vld [vmem:[%s589 + $0x20] sm:$0xff]
      %v639 = vld [vmem:[%s589 + $0x28] sm:$0xff]
      %v640 = vld [vmem:[%s589 + $0x30] sm:$0xff]
      %v641 = vld [vmem:[%s589 + $0x38] sm:$0xff]
      %v644 = vrot.slane %v634, 4
      %v645 = vrot.slane %v638, 4
      %648 = vrot.lane.b32.xlu0 %v634, 64
      %v649 = vpop.permute.xlu0 %648
      %650 = vrot.lane.b32.xlu0 %v638, 64
      %v651 = vpop.permute.xlu0 %650
      %v652 = vrot.slane %v649, 4
      %v653 = vrot.slane %v651, 4
      %v658 = vrot.slane %v635, 4
      %v659 = vrot.slane %v639, 4
      %662 = vrot.lane.b32.xlu0 %v635, 64
      %v663 = vpop.permute.xlu0 %662
      %664 = vrot.lane.b32.xlu0 %v639, 64
      %v665 = vpop.permute.xlu0 %664
      %v666 = vrot.slane %v663, 4
      %v667 = vrot.slane %v665, 4
      %v672 = vrot.slane %v636, 4
      %v673 = vrot.slane %v640, 4
      %676 = vrot.lane.b32.xlu0 %v636, 64
      %v677 = vpop.permute.xlu0 %676
      %678 = vrot.lane.b32.xlu0 %v640, 64
      %v679 = vpop.permute.xlu0 %678
      %v680 = vrot.slane %v677, 4
      %v681 = vrot.slane %v679, 4
      %v686 = vrot.slane %v637, 4
      %v687 = vrot.slane %v641, 4
      %690 = vrot.lane.b32.xlu0 %v637, 64
      %v691 = vpop.permute.xlu0 %690
      %692 = vrot.lane.b32.xlu0 %v641, 64
      %v693 = vpop.permute.xlu0 %692
      %v694 = vrot.slane %v691, 4
      %v695 = vrot.slane %v693, 4
      %v706 = vcombine.low %v634, %v635
      %v708 = vunpack.c.l.s4 1983009808
      %v709 = vunpack.c.0.s8 %v708
      %v710 = vlaneseq
      %v711 = vshrl.u32 %v710, 7
      %v712 = vsub.s32 %v709, %v711
      %v713 = vrot.slane %v706, %v712
      %v714 = vcombine.low %v644, %v658
      %v716 = vunpack.c.l.s4 1983009808
      %v717 = vunpack.c.0.s8 %v716
      %v718 = vlaneseq
      %v719 = vshrl.u32 %v718, 7
      %v720 = vsub.s32 %v717, %v719
      %v721 = vrot.slane %v714, %v720
      %v722 = vcombine.low %v713, %v721
      %v723 = vcombine.high %v713, %v721
      %v725 = vunpack.c.l.s4 1934713408
      %v726 = vunpack.c.0.s8 %v725
      %v727 = vlaneseq
      %v728 = vshrl.u32 %v727, 7
      %v729 = vsub.s32 %v726, %v728
      %v730 = vrot.slane %v722, %v729
      %v732 = vunpack.c.l.s4 1934713408
      %v733 = vunpack.c.0.s8 %v732
      %v734 = vlaneseq
      %v735 = vshrl.u32 %v734, 7
      %v736 = vsub.s32 %v733, %v735
      %v737 = vrot.slane %v723, %v736
      %v738 = vcombine.high %v730, 0
      %v739 = vcombine.high %v737, 0
      %v740 = vcombine.low %v649, %v663
      %v742 = vunpack.c.l.s4 1983009808
      %v743 = vunpack.c.0.s8 %v742
      %v744 = vlaneseq
      %v745 = vshrl.u32 %v744, 7
      %v746 = vsub.s32 %v743, %v745
      %v747 = vrot.slane %v740, %v746
      %v748 = vcombine.low %v652, %v666
      %v750 = vunpack.c.l.s4 1983009808
      %v751 = vunpack.c.0.s8 %v750
      %v752 = vlaneseq
      %v753 = vshrl.u32 %v752, 7
      %v754 = vsub.s32 %v751, %v753
      %v755 = vrot.slane %v748, %v754
      %v756 = vcombine.low %v747, %v755
      %v757 = vcombine.high %v747, %v755
      %v759 = vunpack.c.l.s4 1934713408
      %v760 = vunpack.c.0.s8 %v759
      %v761 = vlaneseq
      %v762 = vshrl.u32 %v761, 7
      %v763 = vsub.s32 %v760, %v762
      %v764 = vrot.slane %v756, %v763
      %v766 = vunpack.c.l.s4 1934713408
      %v767 = vunpack.c.0.s8 %v766
      %v768 = vlaneseq
      %v769 = vshrl.u32 %v768, 7
      %v770 = vsub.s32 %v767, %v769
      %v771 = vrot.slane %v757, %v770
      %v772 = vcombine.high %v764, 0
      %v773 = vcombine.high %v771, 0
      %v774 = vcombine.low %v636, %v637
      %v776 = vunpack.c.l.s4 1983009808
      %v777 = vunpack.c.0.s8 %v776
      %v778 = vlaneseq
      %v779 = vshrl.u32 %v778, 7
      %v780 = vsub.s32 %v777, %v779
      %v781 = vrot.slane %v774, %v780
      %v782 = vcombine.low %v672, %v686
      %v784 = vunpack.c.l.s4 1983009808
      %v785 = vunpack.c.0.s8 %v784
      %v786 = vlaneseq
      %v787 = vshrl.u32 %v786, 7
      %v788 = vsub.s32 %v785, %v787
      %v789 = vrot.slane %v782, %v788
      %v790 = vcombine.low %v781, %v789
      %v791 = vcombine.high %v781, %v789
      %v793 = vunpack.c.l.s4 1934713408
      %v794 = vunpack.c.0.s8 %v793
      %v795 = vlaneseq
      %v796 = vshrl.u32 %v795, 7
      %v797 = vsub.s32 %v794, %v796
      %v798 = vrot.slane %v790, %v797
      %v800 = vunpack.c.l.s4 1934713408
      %v801 = vunpack.c.0.s8 %v800
      %v802 = vlaneseq
      %v803 = vshrl.u32 %v802, 7
      %v804 = vsub.s32 %v801, %v803
      %v805 = vrot.slane %v791, %v804
      %v806 = vcombine.high %v798, 0
      %v807 = vcombine.high %v805, 0
      %v808 = vcombine.low %v677, %v691
      %v810 = vunpack.c.l.s4 1983009808
      %v811 = vunpack.c.0.s8 %v810
      %v812 = vlaneseq
      %v813 = vshrl.u32 %v812, 7
      %v814 = vsub.s32 %v811, %v813
      %v815 = vrot.slane %v808, %v814
      %v816 = vcombine.low %v680, %v694
      %v818 = vunpack.c.l.s4 1983009808
      %v819 = vunpack.c.0.s8 %v818
      %v820 = vlaneseq
      %v821 = vshrl.u32 %v820, 7
      %v822 = vsub.s32 %v819, %v821
      %v823 = vrot.slane %v816, %v822
      %v824 = vcombine.low %v815, %v823
      %v825 = vcombine.high %v815, %v823
      %v827 = vunpack.c.l.s4 1934713408
      %v828 = vunpack.c.0.s8 %v827
      %v829 = vlaneseq
      %v830 = vshrl.u32 %v829, 7
      %v831 = vsub.s32 %v828, %v830
      %v832 = vrot.slane %v824, %v831
      %v834 = vunpack.c.l.s4 1934713408
      %v835 = vunpack.c.0.s8 %v834
      %v836 = vlaneseq
      %v837 = vshrl.u32 %v836, 7
      %v838 = vsub.s32 %v835, %v837
      %v839 = vrot.slane %v825, %v838
      %v840 = vcombine.high %v832, 0
      %v841 = vcombine.high %v839, 0
      %v842 = vcombine.low %v638, %v639
      %v844 = vunpack.c.l.s4 1983009808
      %v845 = vunpack.c.0.s8 %v844
      %v846 = vlaneseq
      %v847 = vshrl.u32 %v846, 7
      %v848 = vsub.s32 %v845, %v847
      %v849 = vrot.slane %v842, %v848
      %v850 = vcombine.low %v645, %v659
      %v852 = vunpack.c.l.s4 1983009808
      %v853 = vunpack.c.0.s8 %v852
      %v854 = vlaneseq
      %v855 = vshrl.u32 %v854, 7
      %v856 = vsub.s32 %v853, %v855
      %v857 = vrot.slane %v850, %v856
      %v858 = vcombine.low %v849, %v857
      %v859 = vcombine.high %v849, %v857
      %v861 = vunpack.c.l.s4 1934713408
      %v862 = vunpack.c.0.s8 %v861
      %v863 = vlaneseq
      %v864 = vshrl.u32 %v863, 7
      %v865 = vsub.s32 %v862, %v864
      %v866 = vrot.slane %v858, %v865
      %v868 = vunpack.c.l.s4 1934713408
      %v869 = vunpack.c.0.s8 %v868
      %v870 = vlaneseq
      %v871 = vshrl.u32 %v870, 7
      %v872 = vsub.s32 %v869, %v871
      %v873 = vrot.slane %v859, %v872
      %v874 = vcombine.high %v866, 0
      %v875 = vcombine.high %v873, 0
      %v876 = vcombine.low %v651, %v665
      %v878 = vunpack.c.l.s4 1983009808
      %v879 = vunpack.c.0.s8 %v878
      %v880 = vlaneseq
      %v881 = vshrl.u32 %v880, 7
      %v882 = vsub.s32 %v879, %v881
      %v883 = vrot.slane %v876, %v882
      %v884 = vcombine.low %v653, %v667
      %v886 = vunpack.c.l.s4 1983009808
      %v887 = vunpack.c.0.s8 %v886
      %v888 = vlaneseq
      %v889 = vshrl.u32 %v888, 7
      %v890 = vsub.s32 %v887, %v889
      %v891 = vrot.slane %v884, %v890
      %v892 = vcombine.low %v883, %v891
      %v893 = vcombine.high %v883, %v891
      %v895 = vunpack.c.l.s4 1934713408
      %v896 = vunpack.c.0.s8 %v895
      %v897 = vlaneseq
      %v898 = vshrl.u32 %v897, 7
      %v899 = vsub.s32 %v896, %v898
      %v900 = vrot.slane %v892, %v899
      %v902 = vunpack.c.l.s4 1934713408
      %v903 = vunpack.c.0.s8 %v902
      %v904 = vlaneseq
      %v905 = vshrl.u32 %v904, 7
      %v906 = vsub.s32 %v903, %v905
      %v907 = vrot.slane %v893, %v906
      %v908 = vcombine.high %v900, 0
      %v909 = vcombine.high %v907, 0
      %v910 = vcombine.low %v640, %v641
      %v912 = vunpack.c.l.s4 1983009808
      %v913 = vunpack.c.0.s8 %v912
      %v914 = vlaneseq
      %v915 = vshrl.u32 %v914, 7
      %v916 = vsub.s32 %v913, %v915
      %v917 = vrot.slane %v910, %v916
      %v918 = vcombine.low %v673, %v687
      %v920 = vunpack.c.l.s4 1983009808
      %v921 = vunpack.c.0.s8 %v920
      %v922 = vlaneseq
      %v923 = vshrl.u32 %v922, 7
      %v924 = vsub.s32 %v921, %v923
      %v925 = vrot.slane %v918, %v924
      %v926 = vcombine.low %v917, %v925
      %v927 = vcombine.high %v917, %v925
      %v929 = vunpack.c.l.s4 1934713408
      %v930 = vunpack.c.0.s8 %v929
      %v931 = vlaneseq
      %v932 = vshrl.u32 %v931, 7
      %v933 = vsub.s32 %v930, %v932
      %v934 = vrot.slane %v926, %v933
      %v936 = vunpack.c.l.s4 1934713408
      %v937 = vunpack.c.0.s8 %v936
      %v938 = vlaneseq
      %v939 = vshrl.u32 %v938, 7
      %v940 = vsub.s32 %v937, %v939
      %v941 = vrot.slane %v927, %v940
      %v942 = vcombine.high %v934, 0
      %v943 = vcombine.high %v941, 0
      %v944 = vcombine.low %v679, %v693
      %v946 = vunpack.c.l.s4 1983009808
      %v947 = vunpack.c.0.s8 %v946
      %v948 = vlaneseq
      %v949 = vshrl.u32 %v948, 7
      %v950 = vsub.s32 %v947, %v949
      %v951 = vrot.slane %v944, %v950
      %v952 = vcombine.low %v681, %v695
      %v954 = vunpack.c.l.s4 1983009808
      %v955 = vunpack.c.0.s8 %v954
      %v956 = vlaneseq
      %v957 = vshrl.u32 %v956, 7
      %v958 = vsub.s32 %v955, %v957
      %v959 = vrot.slane %v952, %v958
      %v960 = vcombine.low %v951, %v959
      %v961 = vcombine.high %v951, %v959
      %v963 = vunpack.c.l.s4 1934713408
      %v964 = vunpack.c.0.s8 %v963
      %v965 = vlaneseq
      %v966 = vshrl.u32 %v965, 7
      %v967 = vsub.s32 %v964, %v966
      %v968 = vrot.slane %v960, %v967
      %v970 = vunpack.c.l.s4 1934713408
      %v971 = vunpack.c.0.s8 %v970
      %v972 = vlaneseq
      %v973 = vshrl.u32 %v972, 7
      %v974 = vsub.s32 %v971, %v973
      %v975 = vrot.slane %v961, %v974
      %v976 = vcombine.high %v968, 0
      %v977 = vcombine.high %v975, 0
      %v980 = vpack.i.b16 %v764, %v730
      %v981 = vshrl.u32 %v730, 16
      %v982 = vshrl.u32 %v764, 16
      %v983 = vpack.i.b16 %v982, %v981
      %v986 = vpack.i.b16 %v772, %v738
      %v987 = vshrl.u32 %v738, 16
      %v988 = vshrl.u32 %v772, 16
      %v989 = vpack.i.b16 %v988, %v987
      %v992 = vpack.i.b16 %v771, %v737
      %v993 = vshrl.u32 %v737, 16
      %v994 = vshrl.u32 %v771, 16
      %v995 = vpack.i.b16 %v994, %v993
      %v998 = vpack.i.b16 %v773, %v739
      %v999 = vshrl.u32 %v739, 16
      %v1000 = vshrl.u32 %v773, 16
      %v1001 = vpack.i.b16 %v1000, %v999
      %v1004 = vpack.i.b16 %v900, %v866
      %v1005 = vshrl.u32 %v866, 16
      %v1006 = vshrl.u32 %v900, 16
      %v1007 = vpack.i.b16 %v1006, %v1005
      %v1010 = vpack.i.b16 %v908, %v874
      %v1011 = vshrl.u32 %v874, 16
      %v1012 = vshrl.u32 %v908, 16
      %v1013 = vpack.i.b16 %v1012, %v1011
      %v1016 = vpack.i.b16 %v907, %v873
      %v1017 = vshrl.u32 %v873, 16
      %v1018 = vshrl.u32 %v907, 16
      %v1019 = vpack.i.b16 %v1018, %v1017
      %v1022 = vpack.i.b16 %v909, %v875
      %v1023 = vshrl.u32 %v875, 16
      %v1024 = vshrl.u32 %v909, 16
      %v1025 = vpack.i.b16 %v1024, %v1023
      %v1028 = vpack.i.b16 %v832, %v798
      %v1029 = vshrl.u32 %v798, 16
      %v1030 = vshrl.u32 %v832, 16
      %v1031 = vpack.i.b16 %v1030, %v1029
      %v1034 = vpack.i.b16 %v840, %v806
      %v1035 = vshrl.u32 %v806, 16
      %v1036 = vshrl.u32 %v840, 16
      %v1037 = vpack.i.b16 %v1036, %v1035
      %v1040 = vpack.i.b16 %v839, %v805
      %v1041 = vshrl.u32 %v805, 16
      %v1042 = vshrl.u32 %v839, 16
      %v1043 = vpack.i.b16 %v1042, %v1041
      %v1046 = vpack.i.b16 %v841, %v807
      %v1047 = vshrl.u32 %v807, 16
      %v1048 = vshrl.u32 %v841, 16
      %v1049 = vpack.i.b16 %v1048, %v1047
      %v1052 = vpack.i.b16 %v968, %v934
      %v1053 = vshrl.u32 %v934, 16
      %v1054 = vshrl.u32 %v968, 16
      %v1055 = vpack.i.b16 %v1054, %v1053
      %v1058 = vpack.i.b16 %v976, %v942
      %v1059 = vshrl.u32 %v942, 16
      %v1060 = vshrl.u32 %v976, 16
      %v1061 = vpack.i.b16 %v1060, %v1059
      %v1064 = vpack.i.b16 %v975, %v941
      %v1065 = vshrl.u32 %v941, 16
      %v1066 = vshrl.u32 %v975, 16
      %v1067 = vpack.i.b16 %v1066, %v1065
      %v1070 = vpack.i.b16 %v977, %v943
      %v1071 = vshrl.u32 %v943, 16
      %v1072 = vshrl.u32 %v977, 16
      %v1073 = vpack.i.b16 %v1072, %v1071
      %v1074 = vld [vmem:[%s599] sm:$0xff]
      %v1075 = vld [vmem:[%s599 + $0x8] sm:$0xff]
      %v1076 = vld [vmem:[%s609] sm:$0xff]
      %v1077 = vld [vmem:[%s609 + $0x8] sm:$0xff]
      %1080 = vrot.lane.b32.xlu0 %v1076, 125
      %v1081 = vpop.permute.xlu0 %1080
      %1082 = vrot.lane.b32.xlu0 %v1077, 125
      %v1083 = vpop.permute.xlu0 %1082
      %1086 = vrot.lane.b32.xlu0 %v1076, 122
      %v1087 = vpop.permute.xlu0 %1086
      %1088 = vrot.lane.b32.xlu0 %v1077, 122
      %v1089 = vpop.permute.xlu0 %1088
      %1092 = vrot.lane.b32.xlu0 %v1076, 119
      %v1093 = vpop.permute.xlu0 %1092
      %1094 = vrot.lane.b32.xlu0 %v1077, 119
      %v1095 = vpop.permute.xlu0 %1094
      %1098 = vrot.lane.b32.xlu0 %v1076, 116
      %v1099 = vpop.permute.xlu0 %1098
      %1100 = vrot.lane.b32.xlu0 %v1077, 116
      %v1101 = vpop.permute.xlu0 %1100
      %1104 = vrot.lane.b32.xlu0 %v1076, 113
      %v1105 = vpop.permute.xlu0 %1104
      %1106 = vrot.lane.b32.xlu0 %v1077, 113
      %v1107 = vpop.permute.xlu0 %1106
      %1110 = vrot.lane.b32.xlu0 %v1076, 110
      %v1111 = vpop.permute.xlu0 %1110
      %1112 = vrot.lane.b32.xlu0 %v1077, 110
      %v1113 = vpop.permute.xlu0 %1112
      %1116 = vrot.lane.b32.xlu0 %v1076, 107
      %v1117 = vpop.permute.xlu0 %1116
      %1118 = vrot.lane.b32.xlu0 %v1077, 107
      %v1119 = vpop.permute.xlu0 %1118
      %1122 = vrot.lane.b32.xlu0 %v1076, 104
      %v1123 = vpop.permute.xlu0 %1122
      %1124 = vrot.lane.b32.xlu0 %v1077, 104
      %v1125 = vpop.permute.xlu0 %1124
      %1128 = vrot.lane.b32.xlu0 %v1076, 101
      %v1129 = vpop.permute.xlu0 %1128
      %1130 = vrot.lane.b32.xlu0 %v1077, 101
      %v1131 = vpop.permute.xlu0 %1130
      %1134 = vrot.lane.b32.xlu0 %v1076, 98
      %v1135 = vpop.permute.xlu0 %1134
      %1136 = vrot.lane.b32.xlu0 %v1077, 98
      %v1137 = vpop.permute.xlu0 %1136
      %1140 = vrot.lane.b32.xlu0 %v1076, 95
      %v1141 = vpop.permute.xlu0 %1140
      %1142 = vrot.lane.b32.xlu0 %v1077, 95
      %v1143 = vpop.permute.xlu0 %1142
      %1146 = vrot.lane.b32.xlu0 %v1076, 92
      %v1147 = vpop.permute.xlu0 %1146
      %1148 = vrot.lane.b32.xlu0 %v1077, 92
      %v1149 = vpop.permute.xlu0 %1148
      %1152 = vrot.lane.b32.xlu0 %v1076, 89
      %v1153 = vpop.permute.xlu0 %1152
      %1154 = vrot.lane.b32.xlu0 %v1077, 89
      %v1155 = vpop.permute.xlu0 %1154
      %1158 = vrot.lane.b32.xlu0 %v1076, 86
      %v1159 = vpop.permute.xlu0 %1158
      %1160 = vrot.lane.b32.xlu0 %v1077, 86
      %v1161 = vpop.permute.xlu0 %1160
      %1164 = vrot.lane.b32.xlu0 %v1076, 83
      %v1165 = vpop.permute.xlu0 %1164
      %1166 = vrot.lane.b32.xlu0 %v1077, 83
      %v1167 = vpop.permute.xlu0 %1166
      %v1170 = vcombine.low %v1076, %v1087
      %v1171 = vcombine.high %v1076, %v1087
      %v1173 = vunpack.c.l.s4 1983009808
      %v1174 = vunpack.c.0.s8 %v1173
      %v1175 = vlaneseq
      %v1176 = vshrl.u32 %v1175, 7
      %v1177 = vsub.s32 %v1174, %v1176
      %v1178 = vrot.slane %v1170, %v1177
      %v1180 = vunpack.c.l.s4 1983009808
      %v1181 = vunpack.c.0.s8 %v1180
      %v1182 = vlaneseq
      %v1183 = vshrl.u32 %v1182, 7
      %v1184 = vsub.s32 %v1181, %v1183
      %v1185 = vrot.slane %v1171, %v1184
      %v1186 = vcombine.low %v1081, %v1093
      %v1187 = vcombine.high %v1081, %v1093
      %v1189 = vunpack.c.l.s4 1983009808
      %v1190 = vunpack.c.0.s8 %v1189
      %v1191 = vlaneseq
      %v1192 = vshrl.u32 %v1191, 7
      %v1193 = vsub.s32 %v1190, %v1192
      %v1194 = vrot.slane %v1186, %v1193
      %v1196 = vunpack.c.l.s4 1983009808
      %v1197 = vunpack.c.0.s8 %v1196
      %v1198 = vlaneseq
      %v1199 = vshrl.u32 %v1198, 7
      %v1200 = vsub.s32 %v1197, %v1199
      %v1201 = vrot.slane %v1187, %v1200
      %v1202 = vcombine.low %v1099, %v1111
      %v1203 = vcombine.high %v1099, %v1111
      %v1205 = vunpack.c.l.s4 1983009808
      %v1206 = vunpack.c.0.s8 %v1205
      %v1207 = vlaneseq
      %v1208 = vshrl.u32 %v1207, 7
      %v1209 = vsub.s32 %v1206, %v1208
      %v1210 = vrot.slane %v1202, %v1209
      %v1212 = vunpack.c.l.s4 1983009808
      %v1213 = vunpack.c.0.s8 %v1212
      %v1214 = vlaneseq
      %v1215 = vshrl.u32 %v1214, 7
      %v1216 = vsub.s32 %v1213, %v1215
      %v1217 = vrot.slane %v1203, %v1216
      %v1218 = vcombine.low %v1105, %v1117
      %v1219 = vcombine.high %v1105, %v1117
      %v1221 = vunpack.c.l.s4 1983009808
      %v1222 = vunpack.c.0.s8 %v1221
      %v1223 = vlaneseq
      %v1224 = vshrl.u32 %v1223, 7
      %v1225 = vsub.s32 %v1222, %v1224
      %v1226 = vrot.slane %v1218, %v1225
      %v1228 = vunpack.c.l.s4 1983009808
      %v1229 = vunpack.c.0.s8 %v1228
      %v1230 = vlaneseq
      %v1231 = vshrl.u32 %v1230, 7
      %v1232 = vsub.s32 %v1229, %v1231
      %v1233 = vrot.slane %v1219, %v1232
      %v1234 = vcombine.low %v1178, %v1194
      %v1235 = vcombine.high %v1178, %v1194
      %v1237 = vunpack.c.l.s4 1934713408
      %v1238 = vunpack.c.0.s8 %v1237
      %v1239 = vlaneseq
      %v1240 = vshrl.u32 %v1239, 7
      %v1241 = vsub.s32 %v1238, %v1240
      %v1242 = vrot.slane %v1234, %v1241
      %v1244 = vunpack.c.l.s4 1934713408
      %v1245 = vunpack.c.0.s8 %v1244
      %v1246 = vlaneseq
      %v1247 = vshrl.u32 %v1246, 7
      %v1248 = vsub.s32 %v1245, %v1247
      %v1249 = vrot.slane %v1235, %v1248
      %v1250 = vcombine.low %v1185, %v1201
      %v1251 = vcombine.high %v1185, %v1201
      %v1253 = vunpack.c.l.s4 1934713408
      %v1254 = vunpack.c.0.s8 %v1253
      %v1255 = vlaneseq
      %v1256 = vshrl.u32 %v1255, 7
      %v1257 = vsub.s32 %v1254, %v1256
      %v1258 = vrot.slane %v1250, %v1257
      %v1260 = vunpack.c.l.s4 1934713408
      %v1261 = vunpack.c.0.s8 %v1260
      %v1262 = vlaneseq
      %v1263 = vshrl.u32 %v1262, 7
      %v1264 = vsub.s32 %v1261, %v1263
      %v1265 = vrot.slane %v1251, %v1264
      %v1266 = vcombine.low %v1210, %v1226
      %v1267 = vcombine.high %v1210, %v1226
      %v1269 = vunpack.c.l.s4 1934713408
      %v1270 = vunpack.c.0.s8 %v1269
      %v1271 = vlaneseq
      %v1272 = vshrl.u32 %v1271, 7
      %v1273 = vsub.s32 %v1270, %v1272
      %v1274 = vrot.slane %v1266, %v1273
      %v1276 = vunpack.c.l.s4 1934713408
      %v1277 = vunpack.c.0.s8 %v1276
      %v1278 = vlaneseq
      %v1279 = vshrl.u32 %v1278, 7
      %v1280 = vsub.s32 %v1277, %v1279
      %v1281 = vrot.slane %v1267, %v1280
      %v1282 = vcombine.low %v1217, %v1233
      %v1283 = vcombine.high %v1217, %v1233
      %v1285 = vunpack.c.l.s4 1934713408
      %v1286 = vunpack.c.0.s8 %v1285
      %v1287 = vlaneseq
      %v1288 = vshrl.u32 %v1287, 7
      %v1289 = vsub.s32 %v1286, %v1288
      %v1290 = vrot.slane %v1282, %v1289
      %v1292 = vunpack.c.l.s4 1934713408
      %v1293 = vunpack.c.0.s8 %v1292
      %v1294 = vlaneseq
      %v1295 = vshrl.u32 %v1294, 7
      %v1296 = vsub.s32 %v1293, %v1295
      %v1297 = vrot.slane %v1283, %v1296
      %v1298 = vcombine.low %v1242, %v1274
      %v1299 = vcombine.high %v1242, %v1274
      %v1300 = vcombine.low %v1249, %v1281
      %v1301 = vcombine.high %v1249, %v1281
      %v1302 = vcombine.low %v1258, %v1290
      %v1303 = vcombine.high %v1258, %v1290
      %v1304 = vcombine.low %v1265, %v1297
      %v1305 = vcombine.high %v1265, %v1297
      %v1306 = vcombine.low %v1123, %v1135
      %v1307 = vcombine.high %v1123, %v1135
      %v1309 = vunpack.c.l.s4 1983009808
      %v1310 = vunpack.c.0.s8 %v1309
      %v1311 = vlaneseq
      %v1312 = vshrl.u32 %v1311, 7
      %v1313 = vsub.s32 %v1310, %v1312
      %v1314 = vrot.slane %v1306, %v1313
      %v1316 = vunpack.c.l.s4 1983009808
      %v1317 = vunpack.c.0.s8 %v1316
      %v1318 = vlaneseq
      %v1319 = vshrl.u32 %v1318, 7
      %v1320 = vsub.s32 %v1317, %v1319
      %v1321 = vrot.slane %v1307, %v1320
      %v1322 = vcombine.low %v1129, %v1141
      %v1323 = vcombine.high %v1129, %v1141
      %v1325 = vunpack.c.l.s4 1983009808
      %v1326 = vunpack.c.0.s8 %v1325
      %v1327 = vlaneseq
      %v1328 = vshrl.u32 %v1327, 7
      %v1329 = vsub.s32 %v1326, %v1328
      %v1330 = vrot.slane %v1322, %v1329
      %v1332 = vunpack.c.l.s4 1983009808
      %v1333 = vunpack.c.0.s8 %v1332
      %v1334 = vlaneseq
      %v1335 = vshrl.u32 %v1334, 7
      %v1336 = vsub.s32 %v1333, %v1335
      %v1337 = vrot.slane %v1323, %v1336
      %v1338 = vcombine.low %v1147, %v1159
      %v1339 = vcombine.high %v1147, %v1159
      %v1341 = vunpack.c.l.s4 1983009808
      %v1342 = vunpack.c.0.s8 %v1341
      %v1343 = vlaneseq
      %v1344 = vshrl.u32 %v1343, 7
      %v1345 = vsub.s32 %v1342, %v1344
      %v1346 = vrot.slane %v1338, %v1345
      %v1348 = vunpack.c.l.s4 1983009808
      %v1349 = vunpack.c.0.s8 %v1348
      %v1350 = vlaneseq
      %v1351 = vshrl.u32 %v1350, 7
      %v1352 = vsub.s32 %v1349, %v1351
      %v1353 = vrot.slane %v1339, %v1352
      %v1354 = vcombine.low %v1153, %v1165
      %v1355 = vcombine.high %v1153, %v1165
      %v1357 = vunpack.c.l.s4 1983009808
      %v1358 = vunpack.c.0.s8 %v1357
      %v1359 = vlaneseq
      %v1360 = vshrl.u32 %v1359, 7
      %v1361 = vsub.s32 %v1358, %v1360
      %v1362 = vrot.slane %v1354, %v1361
      %v1364 = vunpack.c.l.s4 1983009808
      %v1365 = vunpack.c.0.s8 %v1364
      %v1366 = vlaneseq
      %v1367 = vshrl.u32 %v1366, 7
      %v1368 = vsub.s32 %v1365, %v1367
      %v1369 = vrot.slane %v1355, %v1368
      %v1370 = vcombine.low %v1314, %v1330
      %v1371 = vcombine.high %v1314, %v1330
      %v1373 = vunpack.c.l.s4 1934713408
      %v1374 = vunpack.c.0.s8 %v1373
      %v1375 = vlaneseq
      %v1376 = vshrl.u32 %v1375, 7
      %v1377 = vsub.s32 %v1374, %v1376
      %v1378 = vrot.slane %v1370, %v1377
      %v1380 = vunpack.c.l.s4 1934713408
      %v1381 = vunpack.c.0.s8 %v1380
      %v1382 = vlaneseq
      %v1383 = vshrl.u32 %v1382, 7
      %v1384 = vsub.s32 %v1381, %v1383
      %v1385 = vrot.slane %v1371, %v1384
      %v1386 = vcombine.low %v1321, %v1337
      %v1387 = vcombine.high %v1321, %v1337
      %v1389 = vunpack.c.l.s4 1934713408
      %v1390 = vunpack.c.0.s8 %v1389
      %v1391 = vlaneseq
      %v1392 = vshrl.u32 %v1391, 7
      %v1393 = vsub.s32 %v1390, %v1392
      %v1394 = vrot.slane %v1386, %v1393
      %v1396 = vunpack.c.l.s4 1934713408
      %v1397 = vunpack.c.0.s8 %v1396
      %v1398 = vlaneseq
      %v1399 = vshrl.u32 %v1398, 7
      %v1400 = vsub.s32 %v1397, %v1399
      %v1401 = vrot.slane %v1387, %v1400
      %v1402 = vcombine.low %v1346, %v1362
      %v1403 = vcombine.high %v1346, %v1362
      %v1405 = vunpack.c.l.s4 1934713408
      %v1406 = vunpack.c.0.s8 %v1405
      %v1407 = vlaneseq
      %v1408 = vshrl.u32 %v1407, 7
      %v1409 = vsub.s32 %v1406, %v1408
      %v1410 = vrot.slane %v1402, %v1409
      %v1412 = vunpack.c.l.s4 1934713408
      %v1413 = vunpack.c.0.s8 %v1412
      %v1414 = vlaneseq
      %v1415 = vshrl.u32 %v1414, 7
      %v1416 = vsub.s32 %v1413, %v1415
      %v1417 = vrot.slane %v1403, %v1416
      %v1418 = vcombine.low %v1353, %v1369
      %v1419 = vcombine.high %v1353, %v1369
      %v1421 = vunpack.c.l.s4 1934713408
      %v1422 = vunpack.c.0.s8 %v1421
      %v1423 = vlaneseq
      %v1424 = vshrl.u32 %v1423, 7
      %v1425 = vsub.s32 %v1422, %v1424
      %v1426 = vrot.slane %v1418, %v1425
      %v1428 = vunpack.c.l.s4 1934713408
      %v1429 = vunpack.c.0.s8 %v1428
      %v1430 = vlaneseq
      %v1431 = vshrl.u32 %v1430, 7
      %v1432 = vsub.s32 %v1429, %v1431
      %v1433 = vrot.slane %v1419, %v1432
      %v1434 = vcombine.low %v1378, %v1410
      %v1435 = vcombine.high %v1378, %v1410
      %v1436 = vcombine.low %v1385, %v1417
      %v1437 = vcombine.high %v1385, %v1417
      %v1438 = vcombine.low %v1394, %v1426
      %v1439 = vcombine.high %v1394, %v1426
      %v1440 = vcombine.low %v1401, %v1433
      %v1441 = vcombine.high %v1401, %v1433
      %v1442 = vcombine.low %v1077, %v1089
      %v1443 = vcombine.high %v1077, %v1089
      %v1445 = vunpack.c.l.s4 1983009808
      %v1446 = vunpack.c.0.s8 %v1445
      %v1447 = vlaneseq
      %v1448 = vshrl.u32 %v1447, 7
      %v1449 = vsub.s32 %v1446, %v1448
      %v1450 = vrot.slane %v1442, %v1449
      %v1452 = vunpack.c.l.s4 1983009808
      %v1453 = vunpack.c.0.s8 %v1452
      %v1454 = vlaneseq
      %v1455 = vshrl.u32 %v1454, 7
      %v1456 = vsub.s32 %v1453, %v1455
      %v1457 = vrot.slane %v1443, %v1456
      %v1458 = vcombine.low %v1083, %v1095
      %v1459 = vcombine.high %v1083, %v1095
      %v1461 = vunpack.c.l.s4 1983009808
      %v1462 = vunpack.c.0.s8 %v1461
      %v1463 = vlaneseq
      %v1464 = vshrl.u32 %v1463, 7
      %v1465 = vsub.s32 %v1462, %v1464
      %v1466 = vrot.slane %v1458, %v1465
      %v1468 = vunpack.c.l.s4 1983009808
      %v1469 = vunpack.c.0.s8 %v1468
      %v1470 = vlaneseq
      %v1471 = vshrl.u32 %v1470, 7
      %v1472 = vsub.s32 %v1469, %v1471
      %v1473 = vrot.slane %v1459, %v1472
      %v1474 = vcombine.low %v1101, %v1113
      %v1475 = vcombine.high %v1101, %v1113
      %v1477 = vunpack.c.l.s4 1983009808
      %v1478 = vunpack.c.0.s8 %v1477
      %v1479 = vlaneseq
      %v1480 = vshrl.u32 %v1479, 7
      %v1481 = vsub.s32 %v1478, %v1480
      %v1482 = vrot.slane %v1474, %v1481
      %v1484 = vunpack.c.l.s4 1983009808
      %v1485 = vunpack.c.0.s8 %v1484
      %v1486 = vlaneseq
      %v1487 = vshrl.u32 %v1486, 7
      %v1488 = vsub.s32 %v1485, %v1487
      %v1489 = vrot.slane %v1475, %v1488
      %v1490 = vcombine.low %v1107, %v1119
      %v1491 = vcombine.high %v1107, %v1119
      %v1493 = vunpack.c.l.s4 1983009808
      %v1494 = vunpack.c.0.s8 %v1493
      %v1495 = vlaneseq
      %v1496 = vshrl.u32 %v1495, 7
      %v1497 = vsub.s32 %v1494, %v1496
      %v1498 = vrot.slane %v1490, %v1497
      %v1500 = vunpack.c.l.s4 1983009808
      %v1501 = vunpack.c.0.s8 %v1500
      %v1502 = vlaneseq
      %v1503 = vshrl.u32 %v1502, 7
      %v1504 = vsub.s32 %v1501, %v1503
      %v1505 = vrot.slane %v1491, %v1504
      %v1506 = vcombine.low %v1450, %v1466
      %v1507 = vcombine.high %v1450, %v1466
      %v1509 = vunpack.c.l.s4 1934713408
      %v1510 = vunpack.c.0.s8 %v1509
      %v1511 = vlaneseq
      %v1512 = vshrl.u32 %v1511, 7
      %v1513 = vsub.s32 %v1510, %v1512
      %v1514 = vrot.slane %v1506, %v1513
      %v1516 = vunpack.c.l.s4 1934713408
      %v1517 = vunpack.c.0.s8 %v1516
      %v1518 = vlaneseq
      %v1519 = vshrl.u32 %v1518, 7
      %v1520 = vsub.s32 %v1517, %v1519
      %v1521 = vrot.slane %v1507, %v1520
      %v1522 = vcombine.low %v1457, %v1473
      %v1523 = vcombine.high %v1457, %v1473
      %v1525 = vunpack.c.l.s4 1934713408
      %v1526 = vunpack.c.0.s8 %v1525
      %v1527 = vlaneseq
      %v1528 = vshrl.u32 %v1527, 7
      %v1529 = vsub.s32 %v1526, %v1528
      %v1530 = vrot.slane %v1522, %v1529
      %v1532 = vunpack.c.l.s4 1934713408
      %v1533 = vunpack.c.0.s8 %v1532
      %v1534 = vlaneseq
      %v1535 = vshrl.u32 %v1534, 7
      %v1536 = vsub.s32 %v1533, %v1535
      %v1537 = vrot.slane %v1523, %v1536
      %v1538 = vcombine.low %v1482, %v1498
      %v1539 = vcombine.high %v1482, %v1498
      %v1541 = vunpack.c.l.s4 1934713408
      %v1542 = vunpack.c.0.s8 %v1541
      %v1543 = vlaneseq
      %v1544 = vshrl.u32 %v1543, 7
      %v1545 = vsub.s32 %v1542, %v1544
      %v1546 = vrot.slane %v1538, %v1545
      %v1548 = vunpack.c.l.s4 1934713408
      %v1549 = vunpack.c.0.s8 %v1548
      %v1550 = vlaneseq
      %v1551 = vshrl.u32 %v1550, 7
      %v1552 = vsub.s32 %v1549, %v1551
      %v1553 = vrot.slane %v1539, %v1552
      %v1554 = vcombine.low %v1489, %v1505
      %v1555 = vcombine.high %v1489, %v1505
      %v1557 = vunpack.c.l.s4 1934713408
      %v1558 = vunpack.c.0.s8 %v1557
      %v1559 = vlaneseq
      %v1560 = vshrl.u32 %v1559, 7
      %v1561 = vsub.s32 %v1558, %v1560
      %v1562 = vrot.slane %v1554, %v1561
      %v1564 = vunpack.c.l.s4 1934713408
      %v1565 = vunpack.c.0.s8 %v1564
      %v1566 = vlaneseq
      %v1567 = vshrl.u32 %v1566, 7
      %v1568 = vsub.s32 %v1565, %v1567
      %v1569 = vrot.slane %v1555, %v1568
      %v1570 = vcombine.low %v1514, %v1546
      %v1571 = vcombine.high %v1514, %v1546
      %v1572 = vcombine.low %v1521, %v1553
      %v1573 = vcombine.high %v1521, %v1553
      %v1574 = vcombine.low %v1530, %v1562
      %v1575 = vcombine.high %v1530, %v1562
      %v1576 = vcombine.low %v1537, %v1569
      %v1577 = vcombine.high %v1537, %v1569
      %v1578 = vcombine.low %v1125, %v1137
      %v1579 = vcombine.high %v1125, %v1137
      %v1581 = vunpack.c.l.s4 1983009808
      %v1582 = vunpack.c.0.s8 %v1581
      %v1583 = vlaneseq
      %v1584 = vshrl.u32 %v1583, 7
      %v1585 = vsub.s32 %v1582, %v1584
      %v1586 = vrot.slane %v1578, %v1585
      %v1588 = vunpack.c.l.s4 1983009808
      %v1589 = vunpack.c.0.s8 %v1588
      %v1590 = vlaneseq
      %v1591 = vshrl.u32 %v1590, 7
      %v1592 = vsub.s32 %v1589, %v1591
      %v1593 = vrot.slane %v1579, %v1592
      %v1594 = vcombine.low %v1131, %v1143
      %v1595 = vcombine.high %v1131, %v1143
      %v1597 = vunpack.c.l.s4 1983009808
      %v1598 = vunpack.c.0.s8 %v1597
      %v1599 = vlaneseq
      %v1600 = vshrl.u32 %v1599, 7
      %v1601 = vsub.s32 %v1598, %v1600
      %v1602 = vrot.slane %v1594, %v1601
      %v1604 = vunpack.c.l.s4 1983009808
      %v1605 = vunpack.c.0.s8 %v1604
      %v1606 = vlaneseq
      %v1607 = vshrl.u32 %v1606, 7
      %v1608 = vsub.s32 %v1605, %v1607
      %v1609 = vrot.slane %v1595, %v1608
      %v1610 = vcombine.low %v1149, %v1161
      %v1611 = vcombine.high %v1149, %v1161
      %v1613 = vunpack.c.l.s4 1983009808
      %v1614 = vunpack.c.0.s8 %v1613
      %v1615 = vlaneseq
      %v1616 = vshrl.u32 %v1615, 7
      %v1617 = vsub.s32 %v1614, %v1616
      %v1618 = vrot.slane %v1610, %v1617
      %v1620 = vunpack.c.l.s4 1983009808
      %v1621 = vunpack.c.0.s8 %v1620
      %v1622 = vlaneseq
      %v1623 = vshrl.u32 %v1622, 7
      %v1624 = vsub.s32 %v1621, %v1623
      %v1625 = vrot.slane %v1611, %v1624
      %v1626 = vcombine.low %v1155, %v1167
      %v1627 = vcombine.high %v1155, %v1167
      %v1629 = vunpack.c.l.s4 1983009808
      %v1630 = vunpack.c.0.s8 %v1629
      %v1631 = vlaneseq
      %v1632 = vshrl.u32 %v1631, 7
      %v1633 = vsub.s32 %v1630, %v1632
      %v1634 = vrot.slane %v1626, %v1633
      %v1636 = vunpack.c.l.s4 1983009808
      %v1637 = vunpack.c.0.s8 %v1636
      %v1638 = vlaneseq
      %v1639 = vshrl.u32 %v1638, 7
      %v1640 = vsub.s32 %v1637, %v1639
      %v1641 = vrot.slane %v1627, %v1640
      %v1642 = vcombine.low %v1586, %v1602
      %v1643 = vcombine.high %v1586, %v1602
      %v1645 = vunpack.c.l.s4 1934713408
      %v1646 = vunpack.c.0.s8 %v1645
      %v1647 = vlaneseq
      %v1648 = vshrl.u32 %v1647, 7
      %v1649 = vsub.s32 %v1646, %v1648
      %v1650 = vrot.slane %v1642, %v1649
      %v1652 = vunpack.c.l.s4 1934713408
      %v1653 = vunpack.c.0.s8 %v1652
      %v1654 = vlaneseq
      %v1655 = vshrl.u32 %v1654, 7
      %v1656 = vsub.s32 %v1653, %v1655
      %v1657 = vrot.slane %v1643, %v1656
      %v1658 = vcombine.low %v1593, %v1609
      %v1659 = vcombine.high %v1593, %v1609
      %v1661 = vunpack.c.l.s4 1934713408
      %v1662 = vunpack.c.0.s8 %v1661
      %v1663 = vlaneseq
      %v1664 = vshrl.u32 %v1663, 7
      %v1665 = vsub.s32 %v1662, %v1664
      %v1666 = vrot.slane %v1658, %v1665
      %v1668 = vunpack.c.l.s4 1934713408
      %v1669 = vunpack.c.0.s8 %v1668
      %v1670 = vlaneseq
      %v1671 = vshrl.u32 %v1670, 7
      %v1672 = vsub.s32 %v1669, %v1671
      %v1673 = vrot.slane %v1659, %v1672
      %v1674 = vcombine.low %v1618, %v1634
      %v1675 = vcombine.high %v1618, %v1634
      %v1677 = vunpack.c.l.s4 1934713408
      %v1678 = vunpack.c.0.s8 %v1677
      %v1679 = vlaneseq
      %v1680 = vshrl.u32 %v1679, 7
      %v1681 = vsub.s32 %v1678, %v1680
      %v1682 = vrot.slane %v1674, %v1681
      %v1684 = vunpack.c.l.s4 1934713408
      %v1685 = vunpack.c.0.s8 %v1684
      %v1686 = vlaneseq
      %v1687 = vshrl.u32 %v1686, 7
      %v1688 = vsub.s32 %v1685, %v1687
      %v1689 = vrot.slane %v1675, %v1688
      %v1690 = vcombine.low %v1625, %v1641
      %v1691 = vcombine.high %v1625, %v1641
      %v1693 = vunpack.c.l.s4 1934713408
      %v1694 = vunpack.c.0.s8 %v1693
      %v1695 = vlaneseq
      %v1696 = vshrl.u32 %v1695, 7
      %v1697 = vsub.s32 %v1694, %v1696
      %v1698 = vrot.slane %v1690, %v1697
      %v1700 = vunpack.c.l.s4 1934713408
      %v1701 = vunpack.c.0.s8 %v1700
      %v1702 = vlaneseq
      %v1703 = vshrl.u32 %v1702, 7
      %v1704 = vsub.s32 %v1701, %v1703
      %v1705 = vrot.slane %v1691, %v1704
      %v1706 = vcombine.low %v1650, %v1682
      %v1707 = vcombine.high %v1650, %v1682
      %v1708 = vcombine.low %v1657, %v1689
      %v1709 = vcombine.high %v1657, %v1689
      %v1710 = vcombine.low %v1666, %v1698
      %v1711 = vcombine.high %v1666, %v1698
      %v1712 = vcombine.low %v1673, %v1705
      %v1713 = vcombine.high %v1673, %v1705
      %v1716 = vcombine.high %v1074, %v1074
      %v1718 = vunpack.c.l.s4 1966171168
      %v1719 = vunpack.c.0.s8 %v1718
      %v1720 = vlaneseq
      %v1721 = vshrl.u32 %v1720, 7
      %v1722 = vsub.s32 %v1719, %v1721
      %v1723 = vrot.slane %v1074, %v1722
      %v1725 = vunpack.c.l.s4 1966171168
      %v1726 = vunpack.c.0.s8 %v1725
      %v1727 = vlaneseq
      %v1728 = vshrl.u32 %v1727, 7
      %v1729 = vsub.s32 %v1726, %v1728
      %v1730 = vrot.slane %v1716, %v1729
      %v1731 = vcombine.high %v1723, %v1723
      %v1732 = vcombine.high %v1730, %v1730
      %v1734 = vunpack.c.l.s4 1966171168
      %v1735 = vunpack.c.0.s8 %v1734
      %v1736 = vlaneseq
      %v1737 = vshrl.u32 %v1736, 7
      %v1738 = vsub.s32 %v1735, %v1737
      %v1739 = vrot.slane %v1723, %v1738
      %v1741 = vunpack.c.l.s4 1966171168
      %v1742 = vunpack.c.0.s8 %v1741
      %v1743 = vlaneseq
      %v1744 = vshrl.u32 %v1743, 7
      %v1745 = vsub.s32 %v1742, %v1744
      %v1746 = vrot.slane %v1730, %v1745
      %v1748 = vunpack.c.l.s4 1966171168
      %v1749 = vunpack.c.0.s8 %v1748
      %v1750 = vlaneseq
      %v1751 = vshrl.u32 %v1750, 7
      %v1752 = vsub.s32 %v1749, %v1751
      %v1753 = vrot.slane %v1731, %v1752
      %v1755 = vunpack.c.l.s4 1966171168
      %v1756 = vunpack.c.0.s8 %v1755
      %v1757 = vlaneseq
      %v1758 = vshrl.u32 %v1757, 7
      %v1759 = vsub.s32 %v1756, %v1758
      %v1760 = vrot.slane %v1732, %v1759
      %v1761 = vcombine.high %v1739, %v1739
      %v1762 = vcombine.high %v1746, %v1746
      %v1763 = vcombine.high %v1753, %v1753
      %v1764 = vcombine.high %v1760, %v1760
      %v1765 = vcombine.high %v1075, %v1075
      %v1767 = vunpack.c.l.s4 1966171168
      %v1768 = vunpack.c.0.s8 %v1767
      %v1769 = vlaneseq
      %v1770 = vshrl.u32 %v1769, 7
      %v1771 = vsub.s32 %v1768, %v1770
      %v1772 = vrot.slane %v1075, %v1771
      %v1774 = vunpack.c.l.s4 1966171168
      %v1775 = vunpack.c.0.s8 %v1774
      %v1776 = vlaneseq
      %v1777 = vshrl.u32 %v1776, 7
      %v1778 = vsub.s32 %v1775, %v1777
      %v1779 = vrot.slane %v1765, %v1778
      %v1780 = vcombine.high %v1772, %v1772
      %v1781 = vcombine.high %v1779, %v1779
      %v1783 = vunpack.c.l.s4 1966171168
      %v1784 = vunpack.c.0.s8 %v1783
      %v1785 = vlaneseq
      %v1786 = vshrl.u32 %v1785, 7
      %v1787 = vsub.s32 %v1784, %v1786
      %v1788 = vrot.slane %v1772, %v1787
      %v1790 = vunpack.c.l.s4 1966171168
      %v1791 = vunpack.c.0.s8 %v1790
      %v1792 = vlaneseq
      %v1793 = vshrl.u32 %v1792, 7
      %v1794 = vsub.s32 %v1791, %v1793
      %v1795 = vrot.slane %v1779, %v1794
      %v1797 = vunpack.c.l.s4 1966171168
      %v1798 = vunpack.c.0.s8 %v1797
      %v1799 = vlaneseq
      %v1800 = vshrl.u32 %v1799, 7
      %v1801 = vsub.s32 %v1798, %v1800
      %v1802 = vrot.slane %v1780, %v1801
      %v1804 = vunpack.c.l.s4 1966171168
      %v1805 = vunpack.c.0.s8 %v1804
      %v1806 = vlaneseq
      %v1807 = vshrl.u32 %v1806, 7
      %v1808 = vsub.s32 %v1805, %v1807
      %v1809 = vrot.slane %v1781, %v1808
      %v1810 = vcombine.high %v1788, %v1788
      %v1811 = vcombine.high %v1795, %v1795
      %v1812 = vcombine.high %v1802, %v1802
      %v1813 = vcombine.high %v1809, %v1809
      %v1814 = vlaneseq
      %v1815 = vshrl.u32 %v1814, 7
      %v1816 = vsub.s32 0, %v1815
      %v1817 = vrot.slane %v1739, %v1816
      %v1818 = vlaneseq
      %v1819 = vshrl.u32 %v1818, 7
      %v1820 = vsub.s32 0, %v1819
      %v1821 = vrot.slane %v1753, %v1820
      %v1822 = vlaneseq
      %v1823 = vshrl.u32 %v1822, 7
      %v1824 = vsub.s32 0, %v1823
      %v1825 = vrot.slane %v1761, %v1824
      %v1826 = vlaneseq
      %v1827 = vshrl.u32 %v1826, 7
      %v1828 = vsub.s32 0, %v1827
      %v1829 = vrot.slane %v1763, %v1828
      %v1830 = vlaneseq
      %v1831 = vshrl.u32 %v1830, 7
      %v1832 = vsub.s32 0, %v1831
      %v1833 = vrot.slane %v1746, %v1832
      %v1834 = vlaneseq
      %v1835 = vshrl.u32 %v1834, 7
      %v1836 = vsub.s32 0, %v1835
      %v1837 = vrot.slane %v1760, %v1836
      %v1838 = vlaneseq
      %v1839 = vshrl.u32 %v1838, 7
      %v1840 = vsub.s32 0, %v1839
      %v1841 = vrot.slane %v1762, %v1840
      %v1842 = vlaneseq
      %v1843 = vshrl.u32 %v1842, 7
      %v1844 = vsub.s32 0, %v1843
      %v1845 = vrot.slane %v1764, %v1844
      %v1846 = vlaneseq
      %v1847 = vshrl.u32 %v1846, 7
      %v1848 = vsub.s32 0, %v1847
      %v1849 = vrot.slane %v1788, %v1848
      %v1850 = vlaneseq
      %v1851 = vshrl.u32 %v1850, 7
      %v1852 = vsub.s32 0, %v1851
      %v1853 = vrot.slane %v1802, %v1852
      %v1854 = vlaneseq
      %v1855 = vshrl.u32 %v1854, 7
      %v1856 = vsub.s32 0, %v1855
      %v1857 = vrot.slane %v1810, %v1856
      %v1858 = vlaneseq
      %v1859 = vshrl.u32 %v1858, 7
      %v1860 = vsub.s32 0, %v1859
      %v1861 = vrot.slane %v1812, %v1860
      %v1862 = vlaneseq
      %v1863 = vshrl.u32 %v1862, 7
      %v1864 = vsub.s32 0, %v1863
      %v1865 = vrot.slane %v1795, %v1864
      %v1866 = vlaneseq
      %v1867 = vshrl.u32 %v1866, 7
      %v1868 = vsub.s32 0, %v1867
      %v1869 = vrot.slane %v1809, %v1868
      %v1870 = vlaneseq
      %v1871 = vshrl.u32 %v1870, 7
      %v1872 = vsub.s32 0, %v1871
      %v1873 = vrot.slane %v1811, %v1872
      %v1874 = vlaneseq
      %v1875 = vshrl.u32 %v1874, 7
      %v1876 = vsub.s32 0, %v1875
      %v1877 = vrot.slane %v1813, %v1876
      %v1894 = vsub.f32 %v1817, %v1298
      %v1895 = vsub.f32 %v1817, %v1434
      %v1896 = vsub.f32 %v1821, %v1299
      %v1897 = vsub.f32 %v1821, %v1435
      %v1898 = vsub.f32 %v1825, %v1300
      %v1899 = vsub.f32 %v1825, %v1436
      %v1900 = vsub.f32 %v1829, %v1301
      %v1901 = vsub.f32 %v1829, %v1437
      %v1902 = vsub.f32 %v1833, %v1302
      %v1903 = vsub.f32 %v1833, %v1438
      %v1904 = vsub.f32 %v1837, %v1303
      %v1905 = vsub.f32 %v1837, %v1439
      %v1906 = vsub.f32 %v1841, %v1304
      %v1907 = vsub.f32 %v1841, %v1440
      %v1908 = vsub.f32 %v1845, %v1305
      %v1909 = vsub.f32 %v1845, %v1441
      %v1910 = vsub.f32 %v1849, %v1570
      %v1911 = vsub.f32 %v1849, %v1706
      %v1912 = vsub.f32 %v1853, %v1571
      %v1913 = vsub.f32 %v1853, %v1707
      %v1914 = vsub.f32 %v1857, %v1572
      %v1915 = vsub.f32 %v1857, %v1708
      %v1916 = vsub.f32 %v1861, %v1573
      %v1917 = vsub.f32 %v1861, %v1709
      %v1918 = vsub.f32 %v1865, %v1574
      %v1919 = vsub.f32 %v1865, %v1710
      %v1920 = vsub.f32 %v1869, %v1575
      %v1921 = vsub.f32 %v1869, %v1711
      %v1922 = vsub.f32 %v1873, %v1576
      %v1923 = vsub.f32 %v1873, %v1712
      %v1924 = vsub.f32 %v1877, %v1577
      %v1925 = vsub.f32 %v1877, %v1713
      %v1926 = vld [vmem:[%s4] sm:$0x3]
      %v1927 = vpack.c.bf16 %v1895, %v1894
      %v1928 = vpack.c.bf16 %v1897, %v1896
      %v1929 = vpack.c.bf16 %v1899, %v1898
      %v1930 = vpack.c.bf16 %v1901, %v1900
      %v1931 = vpack.c.bf16 %v1903, %v1902
      %v1932 = vpack.c.bf16 %v1905, %v1904
      %v1933 = vpack.c.bf16 %v1907, %v1906
      %v1934 = vpack.c.bf16 %v1909, %v1908
      %v1935 = vpack.c.bf16 %v1911, %v1910
      %v1936 = vpack.c.bf16 %v1913, %v1912
      %v1937 = vpack.c.bf16 %v1915, %v1914
      %v1938 = vpack.c.bf16 %v1917, %v1916
      %v1939 = vpack.c.bf16 %v1919, %v1918
      %v1940 = vpack.c.bf16 %v1921, %v1920
      %v1941 = vpack.c.bf16 %v1923, %v1922
      %v1942 = vpack.c.bf16 %v1925, %v1924
      %v1943 = vld [vmem:[%s5] sm:$0x1]
      %v1945 = vlaneseq
      %v1946 = vshrl.u32 %v1945, 7
      %v1947 = vsub.s32 0, %v1946
      %v1948 = vrot.slane %v1943, %v1947
      %vm1950 = vcmask 23552
      %v1952 = vsel %vm1950, %v1927, 0
      %v1955 = vsel %vm1950, %v1928, 0
      %v1958 = vsel %vm1950, %v1929, 0
      %v1961 = vsel %vm1950, %v1930, 0
      %v1964 = vsel %vm1950, %v1931, 0
      %v1967 = vsel %vm1950, %v1932, 0
      %v1970 = vsel %vm1950, %v1933, 0
      %v1973 = vsel %vm1950, %v1934, 0
      %v1976 = vsel %vm1950, %v1935, 0
      %v1979 = vsel %vm1950, %v1936, 0
      %v1982 = vsel %vm1950, %v1937, 0
      %v1985 = vsel %vm1950, %v1938, 0
      %v1988 = vsel %vm1950, %v1939, 0
      %v1991 = vsel %vm1950, %v1940, 0
      %v1994 = vsel %vm1950, %v1941, 0
      %v1997 = vsel %vm1950, %v1942, 0
      %vm1999 = vcmask 1040384
      %vm2000 = vcmask 1041408
      %v2001 = vsel %vm1999, 4294967295, 65535
      %v2002 = vsel %vm2000, %v2001, 0
      %v2004 = vand.u32 %v1926, %v2002
      %2006 = vmatprep.subr.bf16.mxu0 0
      %2007 = vmatpush1.bf16.msra.mxu0 0
      %2008 = vmatprep.subr.bf16.mxu0 0
      %2009 = vmatpush1.bf16.msra.mxu0 0
      %2010 = vmatprep.subr.bf16.mxu0 0
      %2011 = vmatpush1.bf16.msra.mxu0 0
      %2012 = vmatprep.subr.bf16.mxu0 0
      %2013 = vmatpush1.bf16.msra.mxu0 0
      %2014 = vmatprep.subr.bf16.mxu0 0
      %2015 = vmatpush1.bf16.msra.mxu0 0
      %2016 = vmatprep.subr.bf16.mxu0 0
      %2017 = vmatpush1.bf16.msra.mxu0 0
      %2018 = vmatprep.subr.bf16.mxu0 0
      %2019 = vmatpush1.bf16.msra.mxu0 0
      %2020 = vmatprep.subr.bf16.mxu0 0
      %2021 = vmatpush1.bf16.msra.mxu0 %v2004
      %2022 = vmatprep.subr.bf16.mxu0 0
      %2023 = vmatpush2.bf16.msra.mxu0 0
      %2024 = vmatprep.subr.bf16.mxu0 0
      %2025 = vmatpush2.bf16.msra.mxu0 0
      %2026 = vmatprep.subr.bf16.mxu0 0
      %2027 = vmatpush2.bf16.msra.mxu0 0
      %2028 = vmatprep.subr.bf16.mxu0 0
      %2029 = vmatpush2.bf16.msra.mxu0 0
      %2030 = vmatprep.subr.bf16.mxu0 0
      %2031 = vmatpush2.bf16.msra.mxu0 0
      %2032 = vmatprep.subr.bf16.mxu0 0
      %2033 = vmatpush2.bf16.msra.mxu0 0
      %2034 = vmatprep.subr.bf16.mxu0 0
      %2035 = vmatpush2.bf16.msra.mxu0 0
      %2036 = vmatprep.subr.bf16.mxu0 0
      %2037 = vmatpush2.bf16.msra.mxu0 0
      %2038 = vmatprep.mubr.bf16.mxu0 0
      %2039 = vmatmul.mubr.bf16.gmra.mxu0 %v1952
      %v2040 = vpop.f32.mrf.mxu0
      %v2041 = vadd.f32 %v1948, %v2040
      %v2042 = vpop.f32.mrf.mxu0
      %v2043 = vpop.f32.mrf.mxu0
      %v2044 = vadd.f32 %v1948, %v2043
      %v2045 = vpop.f32.mrf.mxu0
      %2046 = vmatprep.mubr.bf16.mxu0 0
      %2047 = vmatmul.mubr.bf16.gmra.mxu0 %v1955
      %v2048 = vpop.f32.mrf.mxu0
      %v2049 = vadd.f32 %v1948, %v2048
      %v2050 = vpop.f32.mrf.mxu0
      %v2051 = vpop.f32.mrf.mxu0
      %v2052 = vadd.f32 %v1948, %v2051
      %v2053 = vpop.f32.mrf.mxu0
      %2054 = vmatprep.mubr.bf16.mxu0 0
      %2055 = vmatmul.mubr.bf16.gmra.mxu0 %v1958
      %v2056 = vpop.f32.mrf.mxu0
      %v2057 = vadd.f32 %v1948, %v2056
      %v2058 = vpop.f32.mrf.mxu0
      %v2059 = vpop.f32.mrf.mxu0
      %v2060 = vadd.f32 %v1948, %v2059
      %v2061 = vpop.f32.mrf.mxu0
      %2062 = vmatprep.mubr.bf16.mxu0 0
      %2063 = vmatmul.mubr.bf16.gmra.mxu0 %v1961
      %v2064 = vpop.f32.mrf.mxu0
      %v2065 = vadd.f32 %v1948, %v2064
      %v2066 = vpop.f32.mrf.mxu0
      %v2067 = vpop.f32.mrf.mxu0
      %v2068 = vadd.f32 %v1948, %v2067
      %v2069 = vpop.f32.mrf.mxu0
      %2070 = vmatprep.mubr.bf16.mxu0 0
      %2071 = vmatmul.mubr.bf16.gmra.mxu0 %v1964
      %v2072 = vpop.f32.mrf.mxu0
      %v2073 = vadd.f32 %v1948, %v2072
      %v2074 = vpop.f32.mrf.mxu0
      %v2075 = vpop.f32.mrf.mxu0
      %v2076 = vadd.f32 %v1948, %v2075
      %v2077 = vpop.f32.mrf.mxu0
      %2078 = vmatprep.mubr.bf16.mxu0 0
      %2079 = vmatmul.mubr.bf16.gmra.mxu0 %v1967
      %v2080 = vpop.f32.mrf.mxu0
      %v2081 = vadd.f32 %v1948, %v2080
      %v2082 = vpop.f32.mrf.mxu0
      %v2083 = vpop.f32.mrf.mxu0
      %v2084 = vadd.f32 %v1948, %v2083
      %v2085 = vpop.f32.mrf.mxu0
      %2086 = vmatprep.mubr.bf16.mxu0 0
      %2087 = vmatmul.mubr.bf16.gmra.mxu0 %v1970
      %v2088 = vpop.f32.mrf.mxu0
      %v2089 = vadd.f32 %v1948, %v2088
      %v2090 = vpop.f32.mrf.mxu0
      %v2091 = vpop.f32.mrf.mxu0
      %v2092 = vadd.f32 %v1948, %v2091
      %v2093 = vpop.f32.mrf.mxu0
      %2094 = vmatprep.mubr.bf16.mxu0 0
      %2095 = vmatmul.mubr.bf16.gmra.mxu0 %v1973
      %v2096 = vpop.f32.mrf.mxu0
      %v2097 = vadd.f32 %v1948, %v2096
      %v2098 = vpop.f32.mrf.mxu0
      %v2099 = vpop.f32.mrf.mxu0
      %v2100 = vadd.f32 %v1948, %v2099
      %v2101 = vpop.f32.mrf.mxu0
      %2102 = vmatprep.mubr.bf16.mxu0 0
      %2103 = vmatmul.mubr.bf16.gmra.mxu0 %v1976
      %v2104 = vpop.f32.mrf.mxu0
      %v2105 = vadd.f32 %v1948, %v2104
      %v2106 = vpop.f32.mrf.mxu0
      %v2107 = vpop.f32.mrf.mxu0
      %v2108 = vadd.f32 %v1948, %v2107
      %v2109 = vpop.f32.mrf.mxu0
      %2110 = vmatprep.mubr.bf16.mxu0 0
      %2111 = vmatmul.mubr.bf16.gmra.mxu0 %v1979
      %v2112 = vpop.f32.mrf.mxu0
      %v2113 = vadd.f32 %v1948, %v2112
      %v2114 = vpop.f32.mrf.mxu0
      %v2115 = vpop.f32.mrf.mxu0
      %v2116 = vadd.f32 %v1948, %v2115
      %v2117 = vpop.f32.mrf.mxu0
      %2118 = vmatprep.mubr.bf16.mxu0 0
      %2119 = vmatmul.mubr.bf16.gmra.mxu0 %v1982
      %v2120 = vpop.f32.mrf.mxu0
      %v2121 = vadd.f32 %v1948, %v2120
      %v2122 = vpop.f32.mrf.mxu0
      %v2123 = vpop.f32.mrf.mxu0
      %v2124 = vadd.f32 %v1948, %v2123
      %v2125 = vpop.f32.mrf.mxu0
      %2126 = vmatprep.mubr.bf16.mxu0 0
      %2127 = vmatmul.mubr.bf16.gmra.mxu0 %v1985
      %v2128 = vpop.f32.mrf.mxu0
      %v2129 = vadd.f32 %v1948, %v2128
      %v2130 = vpop.f32.mrf.mxu0
      %v2131 = vpop.f32.mrf.mxu0
      %v2132 = vadd.f32 %v1948, %v2131
      %v2133 = vpop.f32.mrf.mxu0
      %2134 = vmatprep.mubr.bf16.mxu0 0
      %2135 = vmatmul.mubr.bf16.gmra.mxu0 %v1988
      %v2136 = vpop.f32.mrf.mxu0
      %v2137 = vadd.f32 %v1948, %v2136
      %v2138 = vpop.f32.mrf.mxu0
      %v2139 = vpop.f32.mrf.mxu0
      %v2140 = vadd.f32 %v1948, %v2139
      %v2141 = vpop.f32.mrf.mxu0
      %2142 = vmatprep.mubr.bf16.mxu0 0
      %2143 = vmatmul.mubr.bf16.gmra.mxu0 %v1991
      %v2144 = vpop.f32.mrf.mxu0
      %v2145 = vadd.f32 %v1948, %v2144
      %v2146 = vpop.f32.mrf.mxu0
      %v2147 = vpop.f32.mrf.mxu0
      %v2148 = vadd.f32 %v1948, %v2147
      %v2149 = vpop.f32.mrf.mxu0
      %2150 = vmatprep.mubr.bf16.mxu0 0
      %2151 = vmatmul.mubr.bf16.gmra.mxu0 %v1994
      %v2152 = vpop.f32.mrf.mxu0
      %v2153 = vadd.f32 %v1948, %v2152
      %v2154 = vpop.f32.mrf.mxu0
      %v2155 = vpop.f32.mrf.mxu0
      %v2156 = vadd.f32 %v1948, %v2155
      %v2157 = vpop.f32.mrf.mxu0
      %2158 = vmatprep.mubr.bf16.mxu0 0
      %2159 = vmatmul.mubr.bf16.gmra.mxu0 %v1997
      %v2160 = vpop.f32.mrf.mxu0
      %v2161 = vadd.f32 %v1948, %v2160
      %v2162 = vpop.f32.mrf.mxu0
      %v2163 = vpop.f32.mrf.mxu0
      %v2164 = vadd.f32 %v1948, %v2163
      %v2165 = vpop.f32.mrf.mxu0
      %2166 = vdwg.mxu0
      %v2167 = vmax.f32 %v2041, 0.0
      %v2168 = vmax.f32 %v2044, 0.0
      %v2169 = vmax.f32 %v2049, 0.0
      %v2170 = vmax.f32 %v2052, 0.0
      %v2171 = vmax.f32 %v2057, 0.0
      %v2172 = vmax.f32 %v2060, 0.0
      %v2173 = vmax.f32 %v2065, 0.0
      %v2174 = vmax.f32 %v2068, 0.0
      %v2175 = vmax.f32 %v2073, 0.0
      %v2176 = vmax.f32 %v2076, 0.0
      %v2177 = vmax.f32 %v2081, 0.0
      %v2178 = vmax.f32 %v2084, 0.0
      %v2179 = vmax.f32 %v2089, 0.0
      %v2180 = vmax.f32 %v2092, 0.0
      %v2181 = vmax.f32 %v2097, 0.0
      %v2182 = vmax.f32 %v2100, 0.0
      %v2183 = vmax.f32 %v2105, 0.0
      %v2184 = vmax.f32 %v2108, 0.0
      %v2185 = vmax.f32 %v2113, 0.0
      %v2186 = vmax.f32 %v2116, 0.0
      %v2187 = vmax.f32 %v2121, 0.0
      %v2188 = vmax.f32 %v2124, 0.0
      %v2189 = vmax.f32 %v2129, 0.0
      %v2190 = vmax.f32 %v2132, 0.0
      %v2191 = vmax.f32 %v2137, 0.0
      %v2192 = vmax.f32 %v2140, 0.0
      %v2193 = vmax.f32 %v2145, 0.0
      %v2194 = vmax.f32 %v2148, 0.0
      %v2195 = vmax.f32 %v2153, 0.0
      %v2196 = vmax.f32 %v2156, 0.0
      %v2197 = vmax.f32 %v2161, 0.0
      %v2198 = vmax.f32 %v2164, 0.0
      %v2199 = vld [vmem:[%s6] sm:$0xf]
      %v2200 = vld [vmem:[%s6 + $0x4] sm:$0xf]
      %v2201 = vld [vmem:[%s6 + $0x8] sm:$0xf]
      %v2202 = vld [vmem:[%s6 + $0xc] sm:$0xf]
      %v2203 = vld [vmem:[%s6 + $0x10] sm:$0xf]
      %v2204 = vld [vmem:[%s6 + $0x14] sm:$0xf]
      %v2205 = vld [vmem:[%s6 + $0x18] sm:$0xf]
      %v2206 = vld [vmem:[%s6 + $0x1c] sm:$0xf]
      %v2207 = vpack.c.bf16 %v2168, %v2167
      %v2208 = vpack.c.bf16 %v2170, %v2169
      %v2209 = vpack.c.bf16 %v2172, %v2171
      %v2210 = vpack.c.bf16 %v2174, %v2173
      %v2211 = vpack.c.bf16 %v2176, %v2175
      %v2212 = vpack.c.bf16 %v2178, %v2177
      %v2213 = vpack.c.bf16 %v2180, %v2179
      %v2214 = vpack.c.bf16 %v2182, %v2181
      %v2215 = vpack.c.bf16 %v2184, %v2183
      %v2216 = vpack.c.bf16 %v2186, %v2185
      %v2217 = vpack.c.bf16 %v2188, %v2187
      %v2218 = vpack.c.bf16 %v2190, %v2189
      %v2219 = vpack.c.bf16 %v2192, %v2191
      %v2220 = vpack.c.bf16 %v2194, %v2193
      %v2221 = vpack.c.bf16 %v2196, %v2195
      %v2222 = vpack.c.bf16 %v2198, %v2197
      %v2223 = vld [vmem:[%s7] sm:$0x1]
      %v2225 = vlaneseq
      %v2226 = vshrl.u32 %v2225, 7
      %v2227 = vsub.s32 0, %v2226
      %v2228 = vrot.slane %v2223, %v2227
      %v2238 = vunpack.c.l.b16 %v2199
      %v2239 = vunpack.c.l.b16 %v2200
      %v2240 = vunpack.c.l.b16 %v2201
      %v2241 = vunpack.c.l.b16 %v2202
      %v2242 = vunpack.c.l.b16 %v2203
      %v2243 = vunpack.c.l.b16 %v2204
      %v2244 = vunpack.c.l.b16 %v2205
      %v2245 = vunpack.c.l.b16 %v2206
      %v2246 = vpack.c.b16 %v2239, %v2238
      %v2247 = vpack.c.b16 %v2241, %v2240
      %v2248 = vpack.c.b16 %v2243, %v2242
      %v2249 = vpack.c.b16 %v2245, %v2244
      %vm2254 = vcmask 523264
      %v2256 = vsel %vm2254, %v2207, 0
      %v2259 = vsel %vm2254, %v2208, 0
      %v2262 = vsel %vm2254, %v2209, 0
      %v2265 = vsel %vm2254, %v2210, 0
      %v2268 = vsel %vm2254, %v2211, 0
      %v2271 = vsel %vm2254, %v2212, 0
      %v2274 = vsel %vm2254, %v2213, 0
      %v2277 = vsel %vm2254, %v2214, 0
      %v2280 = vsel %vm2254, %v2215, 0
      %v2283 = vsel %vm2254, %v2216, 0
      %v2286 = vsel %vm2254, %v2217, 0
      %v2289 = vsel %vm2254, %v2218, 0
      %v2292 = vsel %vm2254, %v2219, 0
      %v2295 = vsel %vm2254, %v2220, 0
      %v2298 = vsel %vm2254, %v2221, 0
      %v2301 = vsel %vm2254, %v2222, 0
      %2303 = vmatprep.subr.bf16.mxu0 0
      %2304 = vmatpush1.bf16.msra.mxu0 0
      %2305 = vmatprep.subr.bf16.mxu0 0
      %2306 = vmatpush1.bf16.msra.mxu0 0
      %2307 = vmatprep.subr.bf16.mxu0 0
      %2308 = vmatpush1.bf16.msra.mxu0 0
      %2309 = vmatprep.subr.bf16.mxu0 0
      %2310 = vmatpush1.bf16.msra.mxu0 0
      %2311 = vmatprep.subr.bf16.mxu0 0
      %2312 = vmatpush1.bf16.msra.mxu0 %v2249
      %2313 = vmatprep.subr.bf16.mxu0 0
      %2314 = vmatpush1.bf16.msra.mxu0 %v2248
      %2315 = vmatprep.subr.bf16.mxu0 0
      %2316 = vmatpush1.bf16.msra.mxu0 %v2247
      %2317 = vmatprep.subr.bf16.mxu0 0
      %2318 = vmatpush1.bf16.msra.mxu0 %v2246
      %2319 = vmatprep.subr.bf16.mxu0 0
      %2320 = vmatpush2.bf16.msra.mxu0 0
      %2321 = vmatprep.subr.bf16.mxu0 0
      %2322 = vmatpush2.bf16.msra.mxu0 0
      %2323 = vmatprep.subr.bf16.mxu0 0
      %2324 = vmatpush2.bf16.msra.mxu0 0
      %2325 = vmatprep.subr.bf16.mxu0 0
      %2326 = vmatpush2.bf16.msra.mxu0 0
      %2327 = vmatprep.subr.bf16.mxu0 0
      %2328 = vmatpush2.bf16.msra.mxu0 0
      %2329 = vmatprep.subr.bf16.mxu0 0
      %2330 = vmatpush2.bf16.msra.mxu0 0
      %2331 = vmatprep.subr.bf16.mxu0 0
      %2332 = vmatpush2.bf16.msra.mxu0 0
      %2333 = vmatprep.subr.bf16.mxu0 0
      %2334 = vmatpush2.bf16.msra.mxu0 0
      %2335 = vmatprep.mubr.bf16.mxu0 0
      %2336 = vmatmul.mubr.bf16.gmra.mxu0 %v2256
      %v2337 = vpop.f32.mrf.mxu0
      %v2338 = vadd.f32 %v2228, %v2337
      %v2339 = vpop.f32.mrf.mxu0
      %v2340 = vpop.f32.mrf.mxu0
      %v2341 = vadd.f32 %v2228, %v2340
      %v2342 = vpop.f32.mrf.mxu0
      %2343 = vmatprep.mubr.bf16.mxu0 0
      %2344 = vmatmul.mubr.bf16.gmra.mxu0 %v2259
      %v2345 = vpop.f32.mrf.mxu0
      %v2346 = vadd.f32 %v2228, %v2345
      %v2347 = vpop.f32.mrf.mxu0
      %v2348 = vpop.f32.mrf.mxu0
      %v2349 = vadd.f32 %v2228, %v2348
      %v2350 = vpop.f32.mrf.mxu0
      %2351 = vmatprep.mubr.bf16.mxu0 0
      %2352 = vmatmul.mubr.bf16.gmra.mxu0 %v2262
      %v2353 = vpop.f32.mrf.mxu0
      %v2354 = vadd.f32 %v2228, %v2353
      %v2355 = vpop.f32.mrf.mxu0
      %v2356 = vpop.f32.mrf.mxu0
      %v2357 = vadd.f32 %v2228, %v2356
      %v2358 = vpop.f32.mrf.mxu0
      %2359 = vmatprep.mubr.bf16.mxu0 0
      %2360 = vmatmul.mubr.bf16.gmra.mxu0 %v2265
      %v2361 = vpop.f32.mrf.mxu0
      %v2362 = vadd.f32 %v2228, %v2361
      %v2363 = vpop.f32.mrf.mxu0
      %v2364 = vpop.f32.mrf.mxu0
      %v2365 = vadd.f32 %v2228, %v2364
      %v2366 = vpop.f32.mrf.mxu0
      %2367 = vmatprep.mubr.bf16.mxu0 0
      %2368 = vmatmul.mubr.bf16.gmra.mxu0 %v2268
      %v2369 = vpop.f32.mrf.mxu0
      %v2370 = vadd.f32 %v2228, %v2369
      %v2371 = vpop.f32.mrf.mxu0
      %v2372 = vpop.f32.mrf.mxu0
      %v2373 = vadd.f32 %v2228, %v2372
      %v2374 = vpop.f32.mrf.mxu0
      %2375 = vmatprep.mubr.bf16.mxu0 0
      %2376 = vmatmul.mubr.bf16.gmra.mxu0 %v2271
      %v2377 = vpop.f32.mrf.mxu0
      %v2378 = vadd.f32 %v2228, %v2377
      %v2379 = vpop.f32.mrf.mxu0
      %v2380 = vpop.f32.mrf.mxu0
      %v2381 = vadd.f32 %v2228, %v2380
      %v2382 = vpop.f32.mrf.mxu0
      %2383 = vmatprep.mubr.bf16.mxu0 0
      %2384 = vmatmul.mubr.bf16.gmra.mxu0 %v2274
      %v2385 = vpop.f32.mrf.mxu0
      %v2386 = vadd.f32 %v2228, %v2385
      %v2387 = vpop.f32.mrf.mxu0
      %v2388 = vpop.f32.mrf.mxu0
      %v2389 = vadd.f32 %v2228, %v2388
      %v2390 = vpop.f32.mrf.mxu0
      %2391 = vmatprep.mubr.bf16.mxu0 0
      %2392 = vmatmul.mubr.bf16.gmra.mxu0 %v2277
      %v2393 = vpop.f32.mrf.mxu0
      %v2394 = vadd.f32 %v2228, %v2393
      %v2395 = vpop.f32.mrf.mxu0
      %v2396 = vpop.f32.mrf.mxu0
      %v2397 = vadd.f32 %v2228, %v2396
      %v2398 = vpop.f32.mrf.mxu0
      %2399 = vmatprep.mubr.bf16.mxu0 0
      %2400 = vmatmul.mubr.bf16.gmra.mxu0 %v2280
      %v2401 = vpop.f32.mrf.mxu0
      %v2402 = vadd.f32 %v2228, %v2401
      %v2403 = vpop.f32.mrf.mxu0
      %v2404 = vpop.f32.mrf.mxu0
      %v2405 = vadd.f32 %v2228, %v2404
      %v2406 = vpop.f32.mrf.mxu0
      %2407 = vmatprep.mubr.bf16.mxu0 0
      %2408 = vmatmul.mubr.bf16.gmra.mxu0 %v2283
      %v2409 = vpop.f32.mrf.mxu0
      %v2410 = vadd.f32 %v2228, %v2409
      %v2411 = vpop.f32.mrf.mxu0
      %v2412 = vpop.f32.mrf.mxu0
      %v2413 = vadd.f32 %v2228, %v2412
      %v2414 = vpop.f32.mrf.mxu0
      %2415 = vmatprep.mubr.bf16.mxu0 0
      %2416 = vmatmul.mubr.bf16.gmra.mxu0 %v2286
      %v2417 = vpop.f32.mrf.mxu0
      %v2418 = vadd.f32 %v2228, %v2417
      %v2419 = vpop.f32.mrf.mxu0
      %v2420 = vpop.f32.mrf.mxu0
      %v2421 = vadd.f32 %v2228, %v2420
      %v2422 = vpop.f32.mrf.mxu0
      %2423 = vmatprep.mubr.bf16.mxu0 0
      %2424 = vmatmul.mubr.bf16.gmra.mxu0 %v2289
      %v2425 = vpop.f32.mrf.mxu0
      %v2426 = vadd.f32 %v2228, %v2425
      %v2427 = vpop.f32.mrf.mxu0
      %v2428 = vpop.f32.mrf.mxu0
      %v2429 = vadd.f32 %v2228, %v2428
      %v2430 = vpop.f32.mrf.mxu0
      %2431 = vmatprep.mubr.bf16.mxu0 0
      %2432 = vmatmul.mubr.bf16.gmra.mxu0 %v2292
      %v2433 = vpop.f32.mrf.mxu0
      %v2434 = vadd.f32 %v2228, %v2433
      %v2435 = vpop.f32.mrf.mxu0
      %v2436 = vpop.f32.mrf.mxu0
      %v2437 = vadd.f32 %v2228, %v2436
      %v2438 = vpop.f32.mrf.mxu0
      %2439 = vmatprep.mubr.bf16.mxu0 0
      %2440 = vmatmul.mubr.bf16.gmra.mxu0 %v2295
      %v2441 = vpop.f32.mrf.mxu0
      %v2442 = vadd.f32 %v2228, %v2441
      %v2443 = vpop.f32.mrf.mxu0
      %v2444 = vpop.f32.mrf.mxu0
      %v2445 = vadd.f32 %v2228, %v2444
      %v2446 = vpop.f32.mrf.mxu0
      %2447 = vmatprep.mubr.bf16.mxu0 0
      %2448 = vmatmul.mubr.bf16.gmra.mxu0 %v2298
      %v2449 = vpop.f32.mrf.mxu0
      %v2450 = vadd.f32 %v2228, %v2449
      %v2451 = vpop.f32.mrf.mxu0
      %v2452 = vpop.f32.mrf.mxu0
      %v2453 = vadd.f32 %v2228, %v2452
      %v2454 = vpop.f32.mrf.mxu0
      %2455 = vmatprep.mubr.bf16.mxu0 0
      %2456 = vmatmul.mubr.bf16.gmra.mxu0 %v2301
      %v2457 = vpop.f32.mrf.mxu0
      %v2458 = vadd.f32 %v2228, %v2457
      %v2459 = vpop.f32.mrf.mxu0
      %v2460 = vpop.f32.mrf.mxu0
      %v2461 = vadd.f32 %v2228, %v2460
      %v2462 = vpop.f32.mrf.mxu0
      %2463 = vdwg.mxu0
      %v2465 = vunpack.c.l.s4 1966171168
      %v2466 = vunpack.c.0.s8 %v2465
      %v2467 = vlaneseq
      %v2468 = vshrl.u32 %v2467, 7
      %v2469 = vsub.s32 %v2466, %v2468
      %v2470 = vrot.slane %v622, %v2469
      %v2471 = vcombine.high %v2470, %v2470
      %v2473 = vunpack.c.l.s4 1966171168
      %v2474 = vunpack.c.0.s8 %v2473
      %v2475 = vlaneseq
      %v2476 = vshrl.u32 %v2475, 7
      %v2477 = vsub.s32 %v2474, %v2476
      %v2478 = vrot.slane %v2470, %v2477
      %v2480 = vunpack.c.l.s4 1966171168
      %v2481 = vunpack.c.0.s8 %v2480
      %v2482 = vlaneseq
      %v2483 = vshrl.u32 %v2482, 7
      %v2484 = vsub.s32 %v2481, %v2483
      %v2485 = vrot.slane %v2471, %v2484
      %v2486 = vcombine.high %v2478, %v2478
      %v2487 = vcombine.high %v2485, %v2485
      %v2489 = vunpack.c.l.s4 1966171168
      %v2490 = vunpack.c.0.s8 %v2489
      %v2491 = vlaneseq
      %v2492 = vshrl.u32 %v2491, 7
      %v2493 = vsub.s32 %v2490, %v2492
      %v2494 = vrot.slane %v623, %v2493
      %v2495 = vcombine.high %v2494, %v2494
      %v2497 = vunpack.c.l.s4 1966171168
      %v2498 = vunpack.c.0.s8 %v2497
      %v2499 = vlaneseq
      %v2500 = vshrl.u32 %v2499, 7
      %v2501 = vsub.s32 %v2498, %v2500
      %v2502 = vrot.slane %v2494, %v2501
      %v2504 = vunpack.c.l.s4 1966171168
      %v2505 = vunpack.c.0.s8 %v2504
      %v2506 = vlaneseq
      %v2507 = vshrl.u32 %v2506, 7
      %v2508 = vsub.s32 %v2505, %v2507
      %v2509 = vrot.slane %v2495, %v2508
      %v2510 = vcombine.high %v2502, %v2502
      %v2511 = vcombine.high %v2509, %v2509
      %v2512 = vunpack.i.l.s16 %v2478
      %v2513 = vunpack.i.h.s16 %v2478
      %v2514 = vunpack.i.l.s16 %v2485
      %v2515 = vunpack.i.h.s16 %v2485
      %v2516 = vunpack.i.l.s16 %v2486
      %v2517 = vunpack.i.h.s16 %v2486
      %v2518 = vunpack.i.l.s16 %v2487
      %v2519 = vunpack.i.h.s16 %v2487
      %v2520 = vunpack.i.l.s16 %v2502
      %v2521 = vunpack.i.h.s16 %v2502
      %v2522 = vunpack.i.l.s16 %v2509
      %v2523 = vunpack.i.h.s16 %v2509
      %v2524 = vunpack.i.l.s16 %v2510
      %v2525 = vunpack.i.h.s16 %v2510
      %v2526 = vunpack.i.l.s16 %v2511
      %v2527 = vunpack.i.h.s16 %v2511
      %v2528 = vpack.i.b16 %v2512, %v2512
      %v2529 = vpack.i.b16 %v2513, %v2513
      %v2530 = vpack.i.b16 %v2514, %v2514
      %v2531 = vpack.i.b16 %v2515, %v2515
      %v2532 = vpack.i.b16 %v2516, %v2516
      %v2533 = vpack.i.b16 %v2517, %v2517
      %v2534 = vpack.i.b16 %v2518, %v2518
      %v2535 = vpack.i.b16 %v2519, %v2519
      %v2536 = vpack.i.b16 %v2520, %v2520
      %v2537 = vpack.i.b16 %v2521, %v2521
      %v2538 = vpack.i.b16 %v2522, %v2522
      %v2539 = vpack.i.b16 %v2523, %v2523
      %v2540 = vpack.i.b16 %v2524, %v2524
      %v2541 = vpack.i.b16 %v2525, %v2525
      %v2542 = vpack.i.b16 %v2526, %v2526
      %v2543 = vpack.i.b16 %v2527, %v2527
      %v2544 = vlaneseq
      %v2545 = vshrl.u32 %v2544, 7
      %v2546 = vsub.s32 0, %v2545
      %v2547 = vrot.slane %v2528, %v2546
      %v2548 = vlaneseq
      %v2549 = vshrl.u32 %v2548, 7
      %v2550 = vsub.s32 0, %v2549
      %v2551 = vrot.slane %v2529, %v2550
      %v2552 = vlaneseq
      %v2553 = vshrl.u32 %v2552, 7
      %v2554 = vsub.s32 0, %v2553
      %v2555 = vrot.slane %v2530, %v2554
      %v2556 = vlaneseq
      %v2557 = vshrl.u32 %v2556, 7
      %v2558 = vsub.s32 0, %v2557
      %v2559 = vrot.slane %v2531, %v2558
      %v2560 = vlaneseq
      %v2561 = vshrl.u32 %v2560, 7
      %v2562 = vsub.s32 0, %v2561
      %v2563 = vrot.slane %v2532, %v2562
      %v2564 = vlaneseq
      %v2565 = vshrl.u32 %v2564, 7
      %v2566 = vsub.s32 0, %v2565
      %v2567 = vrot.slane %v2533, %v2566
      %v2568 = vlaneseq
      %v2569 = vshrl.u32 %v2568, 7
      %v2570 = vsub.s32 0, %v2569
      %v2571 = vrot.slane %v2534, %v2570
      %v2572 = vlaneseq
      %v2573 = vshrl.u32 %v2572, 7
      %v2574 = vsub.s32 0, %v2573
      %v2575 = vrot.slane %v2535, %v2574
      %v2576 = vlaneseq
      %v2577 = vshrl.u32 %v2576, 7
      %v2578 = vsub.s32 0, %v2577
      %v2579 = vrot.slane %v2536, %v2578
      %v2580 = vlaneseq
      %v2581 = vshrl.u32 %v2580, 7
      %v2582 = vsub.s32 0, %v2581
      %v2583 = vrot.slane %v2537, %v2582
      %v2584 = vlaneseq
      %v2585 = vshrl.u32 %v2584, 7
      %v2586 = vsub.s32 0, %v2585
      %v2587 = vrot.slane %v2538, %v2586
      %v2588 = vlaneseq
      %v2589 = vshrl.u32 %v2588, 7
      %v2590 = vsub.s32 0, %v2589
      %v2591 = vrot.slane %v2539, %v2590
      %v2592 = vlaneseq
      %v2593 = vshrl.u32 %v2592, 7
      %v2594 = vsub.s32 0, %v2593
      %v2595 = vrot.slane %v2540, %v2594
      %v2596 = vlaneseq
      %v2597 = vshrl.u32 %v2596, 7
      %v2598 = vsub.s32 0, %v2597
      %v2599 = vrot.slane %v2541, %v2598
      %v2600 = vlaneseq
      %v2601 = vshrl.u32 %v2600, 7
      %v2602 = vsub.s32 0, %v2601
      %v2603 = vrot.slane %v2542, %v2602
      %v2604 = vlaneseq
      %v2605 = vshrl.u32 %v2604, 7
      %v2606 = vsub.s32 0, %v2605
      %v2607 = vrot.slane %v2543, %v2606
      %v2609 = vpack.i.b16 %v2547, %v2547
      %v2611 = vlaneseq
      %v2612 = vshrl.u32 %v2611, 7
      %v2613 = vsub.s32 0, %v2612
      %v2614 = vrot.slane %v2609, %v2613
      %v2616 = vpack.i.b16 %v2551, %v2551
      %v2618 = vlaneseq
      %v2619 = vshrl.u32 %v2618, 7
      %v2620 = vsub.s32 0, %v2619
      %v2621 = vrot.slane %v2616, %v2620
      %v2623 = vpack.i.b16 %v2555, %v2555
      %v2625 = vlaneseq
      %v2626 = vshrl.u32 %v2625, 7
      %v2627 = vsub.s32 0, %v2626
      %v2628 = vrot.slane %v2623, %v2627
      %v2630 = vpack.i.b16 %v2559, %v2559
      %v2632 = vlaneseq
      %v2633 = vshrl.u32 %v2632, 7
      %v2634 = vsub.s32 0, %v2633
      %v2635 = vrot.slane %v2630, %v2634
      %v2637 = vpack.i.b16 %v2563, %v2563
      %v2639 = vlaneseq
      %v2640 = vshrl.u32 %v2639, 7
      %v2641 = vsub.s32 0, %v2640
      %v2642 = vrot.slane %v2637, %v2641
      %v2644 = vpack.i.b16 %v2567, %v2567
      %v2646 = vlaneseq
      %v2647 = vshrl.u32 %v2646, 7
      %v2648 = vsub.s32 0, %v2647
      %v2649 = vrot.slane %v2644, %v2648
      %v2651 = vpack.i.b16 %v2571, %v2571
      %v2653 = vlaneseq
      %v2654 = vshrl.u32 %v2653, 7
      %v2655 = vsub.s32 0, %v2654
      %v2656 = vrot.slane %v2651, %v2655
      %v2658 = vpack.i.b16 %v2575, %v2575
      %v2660 = vlaneseq
      %v2661 = vshrl.u32 %v2660, 7
      %v2662 = vsub.s32 0, %v2661
      %v2663 = vrot.slane %v2658, %v2662
      %v2665 = vpack.i.b16 %v2579, %v2579
      %v2667 = vlaneseq
      %v2668 = vshrl.u32 %v2667, 7
      %v2669 = vsub.s32 0, %v2668
      %v2670 = vrot.slane %v2665, %v2669
      %v2672 = vpack.i.b16 %v2583, %v2583
      %v2674 = vlaneseq
      %v2675 = vshrl.u32 %v2674, 7
      %v2676 = vsub.s32 0, %v2675
      %v2677 = vrot.slane %v2672, %v2676
      %v2679 = vpack.i.b16 %v2587, %v2587
      %v2681 = vlaneseq
      %v2682 = vshrl.u32 %v2681, 7
      %v2683 = vsub.s32 0, %v2682
      %v2684 = vrot.slane %v2679, %v2683
      %v2686 = vpack.i.b16 %v2591, %v2591
      %v2688 = vlaneseq
      %v2689 = vshrl.u32 %v2688, 7
      %v2690 = vsub.s32 0, %v2689
      %v2691 = vrot.slane %v2686, %v2690
      %v2693 = vpack.i.b16 %v2595, %v2595
      %v2695 = vlaneseq
      %v2696 = vshrl.u32 %v2695, 7
      %v2697 = vsub.s32 0, %v2696
      %v2698 = vrot.slane %v2693, %v2697
      %v2700 = vpack.i.b16 %v2599, %v2599
      %v2702 = vlaneseq
      %v2703 = vshrl.u32 %v2702, 7
      %v2704 = vsub.s32 0, %v2703
      %v2705 = vrot.slane %v2700, %v2704
      %v2707 = vpack.i.b16 %v2603, %v2603
      %v2709 = vlaneseq
      %v2710 = vshrl.u32 %v2709, 7
      %v2711 = vsub.s32 0, %v2710
      %v2712 = vrot.slane %v2707, %v2711
      %v2714 = vpack.i.b16 %v2607, %v2607
      %v2716 = vlaneseq
      %v2717 = vshrl.u32 %v2716, 7
      %v2718 = vsub.s32 0, %v2717
      %v2719 = vrot.slane %v2714, %v2718
      %v2720 = vunpack.c.l.b16 %v980
      %v2721 = vunpack.c.l.b16 %v1028
      %v2722 = vunpack.c.l.b16 %v983
      %v2723 = vunpack.c.l.b16 %v1031
      %v2724 = vunpack.c.l.b16 %v986
      %v2725 = vunpack.c.l.b16 %v1034
      %v2726 = vunpack.c.l.b16 %v989
      %v2727 = vunpack.c.l.b16 %v1037
      %v2728 = vunpack.c.l.b16 %v992
      %v2729 = vunpack.c.l.b16 %v1040
      %v2730 = vunpack.c.l.b16 %v995
      %v2731 = vunpack.c.l.b16 %v1043
      %v2732 = vunpack.c.l.b16 %v998
      %v2733 = vunpack.c.l.b16 %v1046
      %v2734 = vunpack.c.l.b16 %v1001
      %v2735 = vunpack.c.l.b16 %v1049
      %v2736 = vunpack.c.l.b16 %v1004
      %v2737 = vunpack.c.l.b16 %v1052
      %v2738 = vunpack.c.l.b16 %v1007
      %v2739 = vunpack.c.l.b16 %v1055
      %v2740 = vunpack.c.l.b16 %v1010
      %v2741 = vunpack.c.l.b16 %v1058
      %v2742 = vunpack.c.l.b16 %v1013
      %v2743 = vunpack.c.l.b16 %v1061
      %v2744 = vunpack.c.l.b16 %v1016
      %v2745 = vunpack.c.l.b16 %v1064
      %v2746 = vunpack.c.l.b16 %v1019
      %v2747 = vunpack.c.l.b16 %v1067
      %v2748 = vunpack.c.l.b16 %v1022
      %v2749 = vunpack.c.l.b16 %v1070
      %v2750 = vunpack.c.l.b16 %v1025
      %v2751 = vunpack.c.l.b16 %v1073
      %v2752 = vpack.c.b16 %v2721, %v2720
      %v2753 = vpack.c.b16 %v2723, %v2722
      %v2754 = vpack.c.b16 %v2725, %v2724
      %v2755 = vpack.c.b16 %v2727, %v2726
      %v2756 = vpack.c.b16 %v2729, %v2728
      %v2757 = vpack.c.b16 %v2731, %v2730
      %v2758 = vpack.c.b16 %v2733, %v2732
      %v2759 = vpack.c.b16 %v2735, %v2734
      %v2760 = vpack.c.b16 %v2737, %v2736
      %v2761 = vpack.c.b16 %v2739, %v2738
      %v2762 = vpack.c.b16 %v2741, %v2740
      %v2763 = vpack.c.b16 %v2743, %v2742
      %v2764 = vpack.c.b16 %v2745, %v2744
      %v2765 = vpack.c.b16 %v2747, %v2746
      %v2766 = vpack.c.b16 %v2749, %v2748
      %v2767 = vpack.c.b16 %v2751, %v2750
      %v2784 = vsub.bf16 %v2614, %v2752
      %v2785 = vsub.bf16 %v2621, %v2753
      %v2786 = vsub.bf16 %v2628, %v2754
      %v2787 = vsub.bf16 %v2635, %v2755
      %v2788 = vsub.bf16 %v2642, %v2756
      %v2789 = vsub.bf16 %v2649, %v2757
      %v2790 = vsub.bf16 %v2656, %v2758
      %v2791 = vsub.bf16 %v2663, %v2759
      %v2792 = vsub.bf16 %v2670, %v2760
      %v2793 = vsub.bf16 %v2677, %v2761
      %v2794 = vsub.bf16 %v2684, %v2762
      %v2795 = vsub.bf16 %v2691, %v2763
      %v2796 = vsub.bf16 %v2698, %v2764
      %v2797 = vsub.bf16 %v2705, %v2765
      %v2798 = vsub.bf16 %v2712, %v2766
      %v2799 = vsub.bf16 %v2719, %v2767
      %v2800 = vunpack.c.l.bf16 %v2784
      %v2801 = vunpack.c.h.bf16 %v2784
      %v2802 = vunpack.c.l.bf16 %v2785
      %v2803 = vunpack.c.h.bf16 %v2785
      %v2804 = vunpack.c.l.bf16 %v2786
      %v2805 = vunpack.c.h.bf16 %v2786
      %v2806 = vunpack.c.l.bf16 %v2787
      %v2807 = vunpack.c.h.bf16 %v2787
      %v2808 = vunpack.c.l.bf16 %v2788
      %v2809 = vunpack.c.h.bf16 %v2788
      %v2810 = vunpack.c.l.bf16 %v2789
      %v2811 = vunpack.c.h.bf16 %v2789
      %v2812 = vunpack.c.l.bf16 %v2790
      %v2813 = vunpack.c.h.bf16 %v2790
      %v2814 = vunpack.c.l.bf16 %v2791
      %v2815 = vunpack.c.h.bf16 %v2791
      %v2816 = vunpack.c.l.bf16 %v2792
      %v2817 = vunpack.c.h.bf16 %v2792
      %v2818 = vunpack.c.l.bf16 %v2793
      %v2819 = vunpack.c.h.bf16 %v2793
      %v2820 = vunpack.c.l.bf16 %v2794
      %v2821 = vunpack.c.h.bf16 %v2794
      %v2822 = vunpack.c.l.bf16 %v2795
      %v2823 = vunpack.c.h.bf16 %v2795
      %v2824 = vunpack.c.l.bf16 %v2796
      %v2825 = vunpack.c.h.bf16 %v2796
      %v2826 = vunpack.c.l.bf16 %v2797
      %v2827 = vunpack.c.h.bf16 %v2797
      %v2828 = vunpack.c.l.bf16 %v2798
      %v2829 = vunpack.c.h.bf16 %v2798
      %v2830 = vunpack.c.l.bf16 %v2799
      %v2831 = vunpack.c.h.bf16 %v2799
      %v2832 = vadd.f32 %v2800, %v2338
      %v2833 = vadd.f32 %v2801, %v2341
      %v2834 = vadd.f32 %v2802, %v2346
      %v2835 = vadd.f32 %v2803, %v2349
      %v2836 = vadd.f32 %v2804, %v2354
      %v2837 = vadd.f32 %v2805, %v2357
      %v2838 = vadd.f32 %v2806, %v2362
      %v2839 = vadd.f32 %v2807, %v2365
      %v2840 = vadd.f32 %v2808, %v2370
      %v2841 = vadd.f32 %v2809, %v2373
      %v2842 = vadd.f32 %v2810, %v2378
      %v2843 = vadd.f32 %v2811, %v2381
      %v2844 = vadd.f32 %v2812, %v2386
      %v2845 = vadd.f32 %v2813, %v2389
      %v2846 = vadd.f32 %v2814, %v2394
      %v2847 = vadd.f32 %v2815, %v2397
      %v2848 = vadd.f32 %v2816, %v2402
      %v2849 = vadd.f32 %v2817, %v2405
      %v2850 = vadd.f32 %v2818, %v2410
      %v2851 = vadd.f32 %v2819, %v2413
      %v2852 = vadd.f32 %v2820, %v2418
      %v2853 = vadd.f32 %v2821, %v2421
      %v2854 = vadd.f32 %v2822, %v2426
      %v2855 = vadd.f32 %v2823, %v2429
      %v2856 = vadd.f32 %v2824, %v2434
      %v2857 = vadd.f32 %v2825, %v2437
      %v2858 = vadd.f32 %v2826, %v2442
      %v2859 = vadd.f32 %v2827, %v2445
      %v2860 = vadd.f32 %v2828, %v2450
      %v2861 = vadd.f32 %v2829, %v2453
      %v2862 = vadd.f32 %v2830, %v2458
      %v2863 = vadd.f32 %v2831, %v2461
      %v2864 = vld [vmem:[%s8] sm:$0xff]
      %v2865 = vld [vmem:[%s8 + $0x8] sm:$0xff]
      %v2866 = vld [vmem:[%s8 + $0x10] sm:$0xff]
      %v2867 = vld [vmem:[%s8 + $0x18] sm:$0xff]
      %v2868 = vld [vmem:[%s8 + $0x20] sm:$0xff]
      %v2869 = vld [vmem:[%s8 + $0x28] sm:$0xff]
      %v2870 = vld [vmem:[%s8 + $0x30] sm:$0xff]
      %v2871 = vld [vmem:[%s8 + $0x38] sm:$0xff]
      %v2872 = vpack.c.bf16 %v2833, %v2832
      %v2873 = vpack.c.bf16 %v2835, %v2834
      %v2874 = vpack.c.bf16 %v2837, %v2836
      %v2875 = vpack.c.bf16 %v2839, %v2838
      %v2876 = vpack.c.bf16 %v2841, %v2840
      %v2877 = vpack.c.bf16 %v2843, %v2842
      %v2878 = vpack.c.bf16 %v2845, %v2844
      %v2879 = vpack.c.bf16 %v2847, %v2846
      %v2880 = vpack.c.bf16 %v2849, %v2848
      %v2881 = vpack.c.bf16 %v2851, %v2850
      %v2882 = vpack.c.bf16 %v2853, %v2852
      %v2883 = vpack.c.bf16 %v2855, %v2854
      %v2884 = vpack.c.bf16 %v2857, %v2856
      %v2885 = vpack.c.bf16 %v2859, %v2858
      %v2886 = vpack.c.bf16 %v2861, %v2860
      %v2887 = vpack.c.bf16 %v2863, %v2862
      %v2888 = vld [vmem:[%s9] sm:$0x3]
      %v2890 = vlaneseq
      %v2891 = vshrl.u32 %v2890, 7
      %v2892 = vsub.s32 0, %v2891
      %v2893 = vrot.slane %v2888, %v2892
      %v2894 = vlaneseq
      %v2895 = vshrl.u32 %v2894, 7
      %v2896 = vsub.s32 1, %v2895
      %v2897 = vrot.slane %v2888, %v2896
      %v2908 = vunpack.c.l.b16 %v2864
      %v2909 = vunpack.c.h.b16 %v2864
      %v2910 = vunpack.c.l.b16 %v2865
      %v2911 = vunpack.c.h.b16 %v2865
      %v2912 = vunpack.c.l.b16 %v2866
      %v2913 = vunpack.c.h.b16 %v2866
      %v2914 = vunpack.c.l.b16 %v2867
      %v2915 = vunpack.c.h.b16 %v2867
      %v2916 = vunpack.c.l.b16 %v2868
      %v2917 = vunpack.c.h.b16 %v2868
      %v2918 = vunpack.c.l.b16 %v2869
      %v2919 = vunpack.c.h.b16 %v2869
      %v2920 = vunpack.c.l.b16 %v2870
      %v2921 = vunpack.c.h.b16 %v2870
      %v2922 = vunpack.c.l.b16 %v2871
      %v2923 = vunpack.c.h.b16 %v2871
      %v2924 = vpack.c.b16 %v2910, %v2908
      %v2925 = vpack.c.b16 %v2911, %v2909
      %v2926 = vpack.c.b16 %v2914, %v2912
      %v2927 = vpack.c.b16 %v2915, %v2913
      %v2928 = vpack.c.b16 %v2918, %v2916
      %v2929 = vpack.c.b16 %v2919, %v2917
      %v2930 = vpack.c.b16 %v2922, %v2920
      %v2931 = vpack.c.b16 %v2923, %v2921
      %v2941 = vsel %vm2254, %v2872, 0
      %v2944 = vsel %vm2254, %v2873, 0
      %v2947 = vsel %vm2254, %v2874, 0
      %v2950 = vsel %vm2254, %v2875, 0
      %v2953 = vsel %vm2254, %v2876, 0
      %v2956 = vsel %vm2254, %v2877, 0
      %v2959 = vsel %vm2254, %v2878, 0
      %v2962 = vsel %vm2254, %v2879, 0
      %v2965 = vsel %vm2254, %v2880, 0
      %v2968 = vsel %vm2254, %v2881, 0
      %v2971 = vsel %vm2254, %v2882, 0
      %v2974 = vsel %vm2254, %v2883, 0
      %v2977 = vsel %vm2254, %v2884, 0
      %v2980 = vsel %vm2254, %v2885, 0
      %v2983 = vsel %vm2254, %v2886, 0
      %v2986 = vsel %vm2254, %v2887, 0
      %2988 = vmatprep.subr.bf16.mxu0 0
      %2989 = vmatpush1.bf16.msra.mxu0 0
      %2990 = vmatprep.subr.bf16.mxu0 0
      %2991 = vmatpush1.bf16.msra.mxu0 0
      %2992 = vmatprep.subr.bf16.mxu0 0
      %2993 = vmatpush1.bf16.msra.mxu0 0
      %2994 = vmatprep.subr.bf16.mxu0 0
      %2995 = vmatpush1.bf16.msra.mxu0 0
      %2996 = vmatprep.subr.bf16.mxu0 %v2931
      %2997 = vmatpush1.bf16.msra.mxu0 %v2930
      %2998 = vmatprep.subr.bf16.mxu0 %v2929
      %2999 = vmatpush1.bf16.msra.mxu0 %v2928
      %3000 = vmatprep.subr.bf16.mxu0 %v2927
      %3001 = vmatpush1.bf16.msra.mxu0 %v2926
      %3002 = vmatprep.subr.bf16.mxu0 %v2925
      %3003 = vmatpush1.bf16.msra.mxu0 %v2924
      %3004 = vmatprep.subr.bf16.mxu0 0
      %3005 = vmatpush2.bf16.msra.mxu0 0
      %3006 = vmatprep.subr.bf16.mxu0 0
      %3007 = vmatpush2.bf16.msra.mxu0 0
      %3008 = vmatprep.subr.bf16.mxu0 0
      %3009 = vmatpush2.bf16.msra.mxu0 0
      %3010 = vmatprep.subr.bf16.mxu0 0
      %3011 = vmatpush2.bf16.msra.mxu0 0
      %3012 = vmatprep.subr.bf16.mxu0 0
      %3013 = vmatpush2.bf16.msra.mxu0 0
      %3014 = vmatprep.subr.bf16.mxu0 0
      %3015 = vmatpush2.bf16.msra.mxu0 0
      %3016 = vmatprep.subr.bf16.mxu0 0
      %3017 = vmatpush2.bf16.msra.mxu0 0
      %3018 = vmatprep.subr.bf16.mxu0 0
      %3019 = vmatpush2.bf16.msra.mxu0 0
      %3020 = vmatprep.mubr.bf16.mxu0 0
      %3021 = vmatmul.mubr.bf16.gmra.mxu0 %v2941
      %v3022 = vpop.f32.mrf.mxu0
      %v3023 = vadd.f32 %v2893, %v3022
      %v3024 = vpop.f32.mrf.mxu0
      %v3025 = vadd.f32 %v2897, %v3024
      %v3026 = vpop.f32.mrf.mxu0
      %v3027 = vadd.f32 %v2893, %v3026
      %v3028 = vpop.f32.mrf.mxu0
      %v3029 = vadd.f32 %v2897, %v3028
      %3030 = vmatprep.mubr.bf16.mxu0 0
      %3031 = vmatmul.mubr.bf16.gmra.mxu0 %v2944
      %v3032 = vpop.f32.mrf.mxu0
      %v3033 = vadd.f32 %v2893, %v3032
      %v3034 = vpop.f32.mrf.mxu0
      %v3035 = vadd.f32 %v2897, %v3034
      %v3036 = vpop.f32.mrf.mxu0
      %v3037 = vadd.f32 %v2893, %v3036
      %v3038 = vpop.f32.mrf.mxu0
      %v3039 = vadd.f32 %v2897, %v3038
      %3040 = vmatprep.mubr.bf16.mxu0 0
      %3041 = vmatmul.mubr.bf16.gmra.mxu0 %v2947
      %v3042 = vpop.f32.mrf.mxu0
      %v3043 = vadd.f32 %v2893, %v3042
      %v3044 = vpop.f32.mrf.mxu0
      %v3045 = vadd.f32 %v2897, %v3044
      %v3046 = vpop.f32.mrf.mxu0
      %v3047 = vadd.f32 %v2893, %v3046
      %v3048 = vpop.f32.mrf.mxu0
      %v3049 = vadd.f32 %v2897, %v3048
      %3050 = vmatprep.mubr.bf16.mxu0 0
      %3051 = vmatmul.mubr.bf16.gmra.mxu0 %v2950
      %v3052 = vpop.f32.mrf.mxu0
      %v3053 = vadd.f32 %v2893, %v3052
      %v3054 = vpop.f32.mrf.mxu0
      %v3055 = vadd.f32 %v2897, %v3054
      %v3056 = vpop.f32.mrf.mxu0
      %v3057 = vadd.f32 %v2893, %v3056
      %v3058 = vpop.f32.mrf.mxu0
      %v3059 = vadd.f32 %v2897, %v3058
      %3060 = vmatprep.mubr.bf16.mxu0 0
      %3061 = vmatmul.mubr.bf16.gmra.mxu0 %v2953
      %v3062 = vpop.f32.mrf.mxu0
      %v3063 = vadd.f32 %v2893, %v3062
      %v3064 = vpop.f32.mrf.mxu0
      %v3065 = vadd.f32 %v2897, %v3064
      %v3066 = vpop.f32.mrf.mxu0
      %v3067 = vadd.f32 %v2893, %v3066
      %v3068 = vpop.f32.mrf.mxu0
      %v3069 = vadd.f32 %v2897, %v3068
      %3070 = vmatprep.mubr.bf16.mxu0 0
      %3071 = vmatmul.mubr.bf16.gmra.mxu0 %v2956
      %v3072 = vpop.f32.mrf.mxu0
      %v3073 = vadd.f32 %v2893, %v3072
      %v3074 = vpop.f32.mrf.mxu0
      %v3075 = vadd.f32 %v2897, %v3074
      %v3076 = vpop.f32.mrf.mxu0
      %v3077 = vadd.f32 %v2893, %v3076
      %v3078 = vpop.f32.mrf.mxu0
      %v3079 = vadd.f32 %v2897, %v3078
      %3080 = vmatprep.mubr.bf16.mxu0 0
      %3081 = vmatmul.mubr.bf16.gmra.mxu0 %v2959
      %v3082 = vpop.f32.mrf.mxu0
      %v3083 = vadd.f32 %v2893, %v3082
      %v3084 = vpop.f32.mrf.mxu0
      %v3085 = vadd.f32 %v2897, %v3084
      %v3086 = vpop.f32.mrf.mxu0
      %v3087 = vadd.f32 %v2893, %v3086
      %v3088 = vpop.f32.mrf.mxu0
      %v3089 = vadd.f32 %v2897, %v3088
      %3090 = vmatprep.mubr.bf16.mxu0 0
      %3091 = vmatmul.mubr.bf16.gmra.mxu0 %v2962
      %v3092 = vpop.f32.mrf.mxu0
      %v3093 = vadd.f32 %v2893, %v3092
      %v3094 = vpop.f32.mrf.mxu0
      %v3095 = vadd.f32 %v2897, %v3094
      %v3096 = vpop.f32.mrf.mxu0
      %v3097 = vadd.f32 %v2893, %v3096
      %v3098 = vpop.f32.mrf.mxu0
      %v3099 = vadd.f32 %v2897, %v3098
      %3100 = vmatprep.mubr.bf16.mxu0 0
      %3101 = vmatmul.mubr.bf16.gmra.mxu0 %v2965
      %v3102 = vpop.f32.mrf.mxu0
      %v3103 = vadd.f32 %v2893, %v3102
      %v3104 = vpop.f32.mrf.mxu0
      %v3105 = vadd.f32 %v2897, %v3104
      %v3106 = vpop.f32.mrf.mxu0
      %v3107 = vadd.f32 %v2893, %v3106
      %v3108 = vpop.f32.mrf.mxu0
      %v3109 = vadd.f32 %v2897, %v3108
      %3110 = vmatprep.mubr.bf16.mxu0 0
      %3111 = vmatmul.mubr.bf16.gmra.mxu0 %v2968
      %v3112 = vpop.f32.mrf.mxu0
      %v3113 = vadd.f32 %v2893, %v3112
      %v3114 = vpop.f32.mrf.mxu0
      %v3115 = vadd.f32 %v2897, %v3114
      %v3116 = vpop.f32.mrf.mxu0
      %v3117 = vadd.f32 %v2893, %v3116
      %v3118 = vpop.f32.mrf.mxu0
      %v3119 = vadd.f32 %v2897, %v3118
      %3120 = vmatprep.mubr.bf16.mxu0 0
      %3121 = vmatmul.mubr.bf16.gmra.mxu0 %v2971
      %v3122 = vpop.f32.mrf.mxu0
      %v3123 = vadd.f32 %v2893, %v3122
      %v3124 = vpop.f32.mrf.mxu0
      %v3125 = vadd.f32 %v2897, %v3124
      %v3126 = vpop.f32.mrf.mxu0
      %v3127 = vadd.f32 %v2893, %v3126
      %v3128 = vpop.f32.mrf.mxu0
      %v3129 = vadd.f32 %v2897, %v3128
      %3130 = vmatprep.mubr.bf16.mxu0 0
      %3131 = vmatmul.mubr.bf16.gmra.mxu0 %v2974
      %v3132 = vpop.f32.mrf.mxu0
      %v3133 = vadd.f32 %v2893, %v3132
      %v3134 = vpop.f32.mrf.mxu0
      %v3135 = vadd.f32 %v2897, %v3134
      %v3136 = vpop.f32.mrf.mxu0
      %v3137 = vadd.f32 %v2893, %v3136
      %v3138 = vpop.f32.mrf.mxu0
      %v3139 = vadd.f32 %v2897, %v3138
      %3140 = vmatprep.mubr.bf16.mxu0 0
      %3141 = vmatmul.mubr.bf16.gmra.mxu0 %v2977
      %v3142 = vpop.f32.mrf.mxu0
      %v3143 = vadd.f32 %v2893, %v3142
      %v3144 = vpop.f32.mrf.mxu0
      %v3145 = vadd.f32 %v2897, %v3144
      %v3146 = vpop.f32.mrf.mxu0
      %v3147 = vadd.f32 %v2893, %v3146
      %v3148 = vpop.f32.mrf.mxu0
      %v3149 = vadd.f32 %v2897, %v3148
      %3150 = vmatprep.mubr.bf16.mxu0 0
      %3151 = vmatmul.mubr.bf16.gmra.mxu0 %v2980
      %v3152 = vpop.f32.mrf.mxu0
      %v3153 = vadd.f32 %v2893, %v3152
      %v3154 = vpop.f32.mrf.mxu0
      %v3155 = vadd.f32 %v2897, %v3154
      %v3156 = vpop.f32.mrf.mxu0
      %v3157 = vadd.f32 %v2893, %v3156
      %v3158 = vpop.f32.mrf.mxu0
      %v3159 = vadd.f32 %v2897, %v3158
      %3160 = vmatprep.mubr.bf16.mxu0 0
      %3161 = vmatmul.mubr.bf16.gmra.mxu0 %v2983
      %v3162 = vpop.f32.mrf.mxu0
      %v3163 = vadd.f32 %v2893, %v3162
      %v3164 = vpop.f32.mrf.mxu0
      %v3165 = vadd.f32 %v2897, %v3164
      %v3166 = vpop.f32.mrf.mxu0
      %v3167 = vadd.f32 %v2893, %v3166
      %v3168 = vpop.f32.mrf.mxu0
      %v3169 = vadd.f32 %v2897, %v3168
      %3170 = vmatprep.mubr.bf16.mxu0 0
      %3171 = vmatmul.mubr.bf16.gmra.mxu0 %v2986
      %v3172 = vpop.f32.mrf.mxu0
      %v3173 = vadd.f32 %v2893, %v3172
      %v3174 = vpop.f32.mrf.mxu0
      %v3175 = vadd.f32 %v2897, %v3174
      %v3176 = vpop.f32.mrf.mxu0
      %v3177 = vadd.f32 %v2893, %v3176
      %v3178 = vpop.f32.mrf.mxu0
      %v3179 = vadd.f32 %v2897, %v3178
      %3180 = vdwg.mxu0
      %v3181 = vmax.f32 %v3023, 0.0
      %v3182 = vmax.f32 %v3025, 0.0
      %v3183 = vmax.f32 %v3027, 0.0
      %v3184 = vmax.f32 %v3029, 0.0
      %v3185 = vmax.f32 %v3033, 0.0
      %v3186 = vmax.f32 %v3035, 0.0
      %v3187 = vmax.f32 %v3037, 0.0
      %v3188 = vmax.f32 %v3039, 0.0
      %v3189 = vmax.f32 %v3043, 0.0
      %v3190 = vmax.f32 %v3045, 0.0
      %v3191 = vmax.f32 %v3047, 0.0
      %v3192 = vmax.f32 %v3049, 0.0
      %v3193 = vmax.f32 %v3053, 0.0
      %v3194 = vmax.f32 %v3055, 0.0
      %v3195 = vmax.f32 %v3057, 0.0
      %v3196 = vmax.f32 %v3059, 0.0
      %v3197 = vmax.f32 %v3063, 0.0
      %v3198 = vmax.f32 %v3065, 0.0
      %v3199 = vmax.f32 %v3067, 0.0
      %v3200 = vmax.f32 %v3069, 0.0
      %v3201 = vmax.f32 %v3073, 0.0
      %v3202 = vmax.f32 %v3075, 0.0
      %v3203 = vmax.f32 %v3077, 0.0
      %v3204 = vmax.f32 %v3079, 0.0
      %v3205 = vmax.f32 %v3083, 0.0
      %v3206 = vmax.f32 %v3085, 0.0
      %v3207 = vmax.f32 %v3087, 0.0
      %v3208 = vmax.f32 %v3089, 0.0
      %v3209 = vmax.f32 %v3093, 0.0
      %v3210 = vmax.f32 %v3095, 0.0
      %v3211 = vmax.f32 %v3097, 0.0
      %v3212 = vmax.f32 %v3099, 0.0
      %v3213 = vmax.f32 %v3103, 0.0
      %v3214 = vmax.f32 %v3105, 0.0
      %v3215 = vmax.f32 %v3107, 0.0
      %v3216 = vmax.f32 %v3109, 0.0
      %v3217 = vmax.f32 %v3113, 0.0
      %v3218 = vmax.f32 %v3115, 0.0
      %v3219 = vmax.f32 %v3117, 0.0
      %v3220 = vmax.f32 %v3119, 0.0
      %v3221 = vmax.f32 %v3123, 0.0
      %v3222 = vmax.f32 %v3125, 0.0
      %v3223 = vmax.f32 %v3127, 0.0
      %v3224 = vmax.f32 %v3129, 0.0
      %v3225 = vmax.f32 %v3133, 0.0
      %v3226 = vmax.f32 %v3135, 0.0
      %v3227 = vmax.f32 %v3137, 0.0
      %v3228 = vmax.f32 %v3139, 0.0
      %v3229 = vmax.f32 %v3143, 0.0
      %v3230 = vmax.f32 %v3145, 0.0
      %v3231 = vmax.f32 %v3147, 0.0
      %v3232 = vmax.f32 %v3149, 0.0
      %v3233 = vmax.f32 %v3153, 0.0
      %v3234 = vmax.f32 %v3155, 0.0
      %v3235 = vmax.f32 %v3157, 0.0
      %v3236 = vmax.f32 %v3159, 0.0
      %v3237 = vmax.f32 %v3163, 0.0
      %v3238 = vmax.f32 %v3165, 0.0
      %v3239 = vmax.f32 %v3167, 0.0
      %v3240 = vmax.f32 %v3169, 0.0
      %v3241 = vmax.f32 %v3173, 0.0
      %v3242 = vmax.f32 %v3175, 0.0
      %v3243 = vmax.f32 %v3177, 0.0
      %v3244 = vmax.f32 %v3179, 0.0
      %v3245 = vld [vmem:[%s10] sm:$0xf]
      %v3246 = vld [vmem:[%s10 + $0x4] sm:$0xf]
      %v3247 = vld [vmem:[%s10 + $0x8] sm:$0xf]
      %v3248 = vld [vmem:[%s10 + $0xc] sm:$0xf]
      %v3249 = vld [vmem:[%s10 + $0x10] sm:$0xf]
      %v3250 = vld [vmem:[%s10 + $0x14] sm:$0xf]
      %v3251 = vld [vmem:[%s10 + $0x18] sm:$0xf]
      %v3252 = vld [vmem:[%s10 + $0x1c] sm:$0xf]
      %v3253 = vld [vmem:[%s10 + $0x20] sm:$0xf]
      %v3254 = vld [vmem:[%s10 + $0x24] sm:$0xf]
      %v3255 = vld [vmem:[%s10 + $0x28] sm:$0xf]
      %v3256 = vld [vmem:[%s10 + $0x2c] sm:$0xf]
      %v3257 = vld [vmem:[%s10 + $0x30] sm:$0xf]
      %v3258 = vld [vmem:[%s10 + $0x34] sm:$0xf]
      %v3259 = vld [vmem:[%s10 + $0x38] sm:$0xf]
      %v3260 = vld [vmem:[%s10 + $0x3c] sm:$0xf]
      %v3261 = vld [vmem:[%s10 + $0x40] sm:$0xf]
      %v3262 = vld [vmem:[%s10 + $0x44] sm:$0xf]
      %v3263 = vld [vmem:[%s10 + $0x48] sm:$0xf]
      %v3264 = vld [vmem:[%s10 + $0x4c] sm:$0xf]
      %v3265 = vld [vmem:[%s10 + $0x50] sm:$0xf]
      %v3266 = vld [vmem:[%s10 + $0x54] sm:$0xf]
      %v3267 = vld [vmem:[%s10 + $0x58] sm:$0xf]
      %v3268 = vld [vmem:[%s10 + $0x5c] sm:$0xf]
      %v3269 = vld [vmem:[%s10 + $0x60] sm:$0xf]
      %v3270 = vld [vmem:[%s10 + $0x64] sm:$0xf]
      %v3271 = vld [vmem:[%s10 + $0x68] sm:$0xf]
      %v3272 = vld [vmem:[%s10 + $0x6c] sm:$0xf]
      %v3273 = vld [vmem:[%s10 + $0x70] sm:$0xf]
      %v3274 = vld [vmem:[%s10 + $0x74] sm:$0xf]
      %v3275 = vld [vmem:[%s10 + $0x78] sm:$0xf]
      %v3276 = vld [vmem:[%s10 + $0x7c] sm:$0xf]
      %v3277 = vpack.c.bf16 %v3183, %v3181
      %v3278 = vpack.c.bf16 %v3184, %v3182
      %v3279 = vpack.c.bf16 %v3187, %v3185
      %v3280 = vpack.c.bf16 %v3188, %v3186
      %v3281 = vpack.c.bf16 %v3191, %v3189
      %v3282 = vpack.c.bf16 %v3192, %v3190
      %v3283 = vpack.c.bf16 %v3195, %v3193
      %v3284 = vpack.c.bf16 %v3196, %v3194
      %v3285 = vpack.c.bf16 %v3199, %v3197
      %v3286 = vpack.c.bf16 %v3200, %v3198
      %v3287 = vpack.c.bf16 %v3203, %v3201
      %v3288 = vpack.c.bf16 %v3204, %v3202
      %v3289 = vpack.c.bf16 %v3207, %v3205
      %v3290 = vpack.c.bf16 %v3208, %v3206
      %v3291 = vpack.c.bf16 %v3211, %v3209
      %v3292 = vpack.c.bf16 %v3212, %v3210
      %v3293 = vpack.c.bf16 %v3215, %v3213
      %v3294 = vpack.c.bf16 %v3216, %v3214
      %v3295 = vpack.c.bf16 %v3219, %v3217
      %v3296 = vpack.c.bf16 %v3220, %v3218
      %v3297 = vpack.c.bf16 %v3223, %v3221
      %v3298 = vpack.c.bf16 %v3224, %v3222
      %v3299 = vpack.c.bf16 %v3227, %v3225
      %v3300 = vpack.c.bf16 %v3228, %v3226
      %v3301 = vpack.c.bf16 %v3231, %v3229
      %v3302 = vpack.c.bf16 %v3232, %v3230
      %v3303 = vpack.c.bf16 %v3235, %v3233
      %v3304 = vpack.c.bf16 %v3236, %v3234
      %v3305 = vpack.c.bf16 %v3239, %v3237
      %v3306 = vpack.c.bf16 %v3240, %v3238
      %v3307 = vpack.c.bf16 %v3243, %v3241
      %v3308 = vpack.c.bf16 %v3244, %v3242
      %v3309 = vld [vmem:[%s11] sm:$0x1]
      %v3311 = vlaneseq
      %v3312 = vshrl.u32 %v3311, 7
      %v3313 = vsub.s32 0, %v3312
      %v3314 = vrot.slane %v3309, %v3313
      %v3348 = vunpack.c.l.b16 %v3245
      %v3349 = vunpack.c.l.b16 %v3246
      %v3350 = vunpack.c.l.b16 %v3247
      %v3351 = vunpack.c.l.b16 %v3248
      %v3352 = vunpack.c.l.b16 %v3249
      %v3353 = vunpack.c.l.b16 %v3250
      %v3354 = vunpack.c.l.b16 %v3251
      %v3355 = vunpack.c.l.b16 %v3252
      %v3356 = vunpack.c.l.b16 %v3253
      %v3357 = vunpack.c.l.b16 %v3254
      %v3358 = vunpack.c.l.b16 %v3255
      %v3359 = vunpack.c.l.b16 %v3256
      %v3360 = vunpack.c.l.b16 %v3257
      %v3361 = vunpack.c.l.b16 %v3258
      %v3362 = vunpack.c.l.b16 %v3259
      %v3363 = vunpack.c.l.b16 %v3260
      %v3364 = vunpack.c.l.b16 %v3261
      %v3365 = vunpack.c.l.b16 %v3262
      %v3366 = vunpack.c.l.b16 %v3263
      %v3367 = vunpack.c.l.b16 %v3264
      %v3368 = vunpack.c.l.b16 %v3265
      %v3369 = vunpack.c.l.b16 %v3266
      %v3370 = vunpack.c.l.b16 %v3267
      %v3371 = vunpack.c.l.b16 %v3268
      %v3372 = vunpack.c.l.b16 %v3269
      %v3373 = vunpack.c.l.b16 %v3270
      %v3374 = vunpack.c.l.b16 %v3271
      %v3375 = vunpack.c.l.b16 %v3272
      %v3376 = vunpack.c.l.b16 %v3273
      %v3377 = vunpack.c.l.b16 %v3274
      %v3378 = vunpack.c.l.b16 %v3275
      %v3379 = vunpack.c.l.b16 %v3276
      %v3380 = vpack.c.b16 %v3349, %v3348
      %v3381 = vpack.c.b16 %v3351, %v3350
      %v3382 = vpack.c.b16 %v3353, %v3352
      %v3383 = vpack.c.b16 %v3355, %v3354
      %v3384 = vpack.c.b16 %v3357, %v3356
      %v3385 = vpack.c.b16 %v3359, %v3358
      %v3386 = vpack.c.b16 %v3361, %v3360
      %v3387 = vpack.c.b16 %v3363, %v3362
      %v3388 = vpack.c.b16 %v3365, %v3364
      %v3389 = vpack.c.b16 %v3367, %v3366
      %v3390 = vpack.c.b16 %v3369, %v3368
      %v3391 = vpack.c.b16 %v3371, %v3370
      %v3392 = vpack.c.b16 %v3373, %v3372
      %v3393 = vpack.c.b16 %v3375, %v3374
      %v3394 = vpack.c.b16 %v3377, %v3376
      %v3395 = vpack.c.b16 %v3379, %v3378
      %3412 = vmatprep.subr.bf16.mxu0 0
      %3413 = vmatpush1.bf16.msra.mxu0 %v3387
      %3414 = vmatprep.subr.bf16.mxu0 0
      %3415 = vmatpush1.bf16.msra.mxu0 %v3386
      %3416 = vmatprep.subr.bf16.mxu0 0
      %3417 = vmatpush1.bf16.msra.mxu0 %v3385
      %3418 = vmatprep.subr.bf16.mxu0 0
      %3419 = vmatpush1.bf16.msra.mxu0 %v3384
      %3420 = vmatprep.subr.bf16.mxu0 0
      %3421 = vmatpush1.bf16.msra.mxu0 %v3383
      %3422 = vmatprep.subr.bf16.mxu0 0
      %3423 = vmatpush1.bf16.msra.mxu0 %v3382
      %3424 = vmatprep.subr.bf16.mxu0 0
      %3425 = vmatpush1.bf16.msra.mxu0 %v3381
      %3426 = vmatprep.subr.bf16.mxu0 0
      %3427 = vmatpush1.bf16.msra.mxu0 %v3380
      %3428 = vmatprep.subr.bf16.mxu0 0
      %3429 = vmatpush2.bf16.msra.mxu0 %v3395
      %3430 = vmatprep.subr.bf16.mxu0 0
      %3431 = vmatpush2.bf16.msra.mxu0 %v3394
      %3432 = vmatprep.subr.bf16.mxu0 0
      %3433 = vmatpush2.bf16.msra.mxu0 %v3393
      %3434 = vmatprep.subr.bf16.mxu0 0
      %3435 = vmatpush2.bf16.msra.mxu0 %v3392
      %3436 = vmatprep.subr.bf16.mxu0 0
      %3437 = vmatpush2.bf16.msra.mxu0 %v3391
      %3438 = vmatprep.subr.bf16.mxu0 0
      %3439 = vmatpush2.bf16.msra.mxu0 %v3390
      %3440 = vmatprep.subr.bf16.mxu0 0
      %3441 = vmatpush2.bf16.msra.mxu0 %v3389
      %3442 = vmatprep.subr.bf16.mxu0 0
      %3443 = vmatpush2.bf16.msra.mxu0 %v3388
      %3444 = vmatprep.mubr.bf16.mxu0 %v3278
      %3445 = vmatmul.mubr.bf16.gmra.mxu0 %v3277
      %v3446 = vpop.f32.mrf.mxu0
      %v3447 = vadd.f32 %v3314, %v3446
      %v3448 = vpop.f32.mrf.mxu0
      %v3449 = vpop.f32.mrf.mxu0
      %v3450 = vadd.f32 %v3314, %v3449
      %v3451 = vpop.f32.mrf.mxu0
      %3452 = vmatprep.mubr.bf16.mxu0 %v3280
      %3453 = vmatmul.mubr.bf16.gmra.mxu0 %v3279
      %v3454 = vpop.f32.mrf.mxu0
      %v3455 = vadd.f32 %v3314, %v3454
      %v3456 = vpop.f32.mrf.mxu0
      %v3457 = vpop.f32.mrf.mxu0
      %v3458 = vadd.f32 %v3314, %v3457
      %v3459 = vpop.f32.mrf.mxu0
      %3460 = vmatprep.mubr.bf16.mxu0 %v3282
      %3461 = vmatmul.mubr.bf16.gmra.mxu0 %v3281
      %v3462 = vpop.f32.mrf.mxu0
      %v3463 = vadd.f32 %v3314, %v3462
      %v3464 = vpop.f32.mrf.mxu0
      %v3465 = vpop.f32.mrf.mxu0
      %v3466 = vadd.f32 %v3314, %v3465
      %v3467 = vpop.f32.mrf.mxu0
      %3468 = vmatprep.mubr.bf16.mxu0 %v3284
      %3469 = vmatmul.mubr.bf16.gmra.mxu0 %v3283
      %v3470 = vpop.f32.mrf.mxu0
      %v3471 = vadd.f32 %v3314, %v3470
      %v3472 = vpop.f32.mrf.mxu0
      %v3473 = vpop.f32.mrf.mxu0
      %v3474 = vadd.f32 %v3314, %v3473
      %v3475 = vpop.f32.mrf.mxu0
      %3476 = vmatprep.mubr.bf16.mxu0 %v3286
      %3477 = vmatmul.mubr.bf16.gmra.mxu0 %v3285
      %v3478 = vpop.f32.mrf.mxu0
      %v3479 = vadd.f32 %v3314, %v3478
      %v3480 = vpop.f32.mrf.mxu0
      %v3481 = vpop.f32.mrf.mxu0
      %v3482 = vadd.f32 %v3314, %v3481
      %v3483 = vpop.f32.mrf.mxu0
      %3484 = vmatprep.mubr.bf16.mxu0 %v3288
      %3485 = vmatmul.mubr.bf16.gmra.mxu0 %v3287
      %v3486 = vpop.f32.mrf.mxu0
      %v3487 = vadd.f32 %v3314, %v3486
      %v3488 = vpop.f32.mrf.mxu0
      %v3489 = vpop.f32.mrf.mxu0
      %v3490 = vadd.f32 %v3314, %v3489
      %v3491 = vpop.f32.mrf.mxu0
      %3492 = vmatprep.mubr.bf16.mxu0 %v3290
      %3493 = vmatmul.mubr.bf16.gmra.mxu0 %v3289
      %v3494 = vpop.f32.mrf.mxu0
      %v3495 = vadd.f32 %v3314, %v3494
      %v3496 = vpop.f32.mrf.mxu0
      %v3497 = vpop.f32.mrf.mxu0
      %v3498 = vadd.f32 %v3314, %v3497
      %v3499 = vpop.f32.mrf.mxu0
      %3500 = vmatprep.mubr.bf16.mxu0 %v3292
      %3501 = vmatmul.mubr.bf16.gmra.mxu0 %v3291
      %v3502 = vpop.f32.mrf.mxu0
      %v3503 = vadd.f32 %v3314, %v3502
      %v3504 = vpop.f32.mrf.mxu0
      %v3505 = vpop.f32.mrf.mxu0
      %v3506 = vadd.f32 %v3314, %v3505
      %v3507 = vpop.f32.mrf.mxu0
      %3508 = vmatprep.mubr.bf16.mxu0 %v3294
      %3509 = vmatmul.mubr.bf16.gmra.mxu0 %v3293
      %v3510 = vpop.f32.mrf.mxu0
      %v3511 = vadd.f32 %v3314, %v3510
      %v3512 = vpop.f32.mrf.mxu0
      %v3513 = vpop.f32.mrf.mxu0
      %v3514 = vadd.f32 %v3314, %v3513
      %v3515 = vpop.f32.mrf.mxu0
      %3516 = vmatprep.mubr.bf16.mxu0 %v3296
      %3517 = vmatmul.mubr.bf16.gmra.mxu0 %v3295
      %v3518 = vpop.f32.mrf.mxu0
      %v3519 = vadd.f32 %v3314, %v3518
      %v3520 = vpop.f32.mrf.mxu0
      %v3521 = vpop.f32.mrf.mxu0
      %v3522 = vadd.f32 %v3314, %v3521
      %v3523 = vpop.f32.mrf.mxu0
      %3524 = vmatprep.mubr.bf16.mxu0 %v3298
      %3525 = vmatmul.mubr.bf16.gmra.mxu0 %v3297
      %v3526 = vpop.f32.mrf.mxu0
      %v3527 = vadd.f32 %v3314, %v3526
      %v3528 = vpop.f32.mrf.mxu0
      %v3529 = vpop.f32.mrf.mxu0
      %v3530 = vadd.f32 %v3314, %v3529
      %v3531 = vpop.f32.mrf.mxu0
      %3532 = vmatprep.mubr.bf16.mxu0 %v3300
      %3533 = vmatmul.mubr.bf16.gmra.mxu0 %v3299
      %v3534 = vpop.f32.mrf.mxu0
      %v3535 = vadd.f32 %v3314, %v3534
      %v3536 = vpop.f32.mrf.mxu0
      %v3537 = vpop.f32.mrf.mxu0
      %v3538 = vadd.f32 %v3314, %v3537
      %v3539 = vpop.f32.mrf.mxu0
      %3540 = vmatprep.mubr.bf16.mxu0 %v3302
      %3541 = vmatmul.mubr.bf16.gmra.mxu0 %v3301
      %v3542 = vpop.f32.mrf.mxu0
      %v3543 = vadd.f32 %v3314, %v3542
      %v3544 = vpop.f32.mrf.mxu0
      %v3545 = vpop.f32.mrf.mxu0
      %v3546 = vadd.f32 %v3314, %v3545
      %v3547 = vpop.f32.mrf.mxu0
      %3548 = vmatprep.mubr.bf16.mxu0 %v3304
      %3549 = vmatmul.mubr.bf16.gmra.mxu0 %v3303
      %v3550 = vpop.f32.mrf.mxu0
      %v3551 = vadd.f32 %v3314, %v3550
      %v3552 = vpop.f32.mrf.mxu0
      %v3553 = vpop.f32.mrf.mxu0
      %v3554 = vadd.f32 %v3314, %v3553
      %v3555 = vpop.f32.mrf.mxu0
      %3556 = vmatprep.mubr.bf16.mxu0 %v3306
      %3557 = vmatmul.mubr.bf16.gmra.mxu0 %v3305
      %v3558 = vpop.f32.mrf.mxu0
      %v3559 = vadd.f32 %v3314, %v3558
      %v3560 = vpop.f32.mrf.mxu0
      %v3561 = vpop.f32.mrf.mxu0
      %v3562 = vadd.f32 %v3314, %v3561
      %v3563 = vpop.f32.mrf.mxu0
      %3564 = vmatprep.mubr.bf16.mxu0 %v3308
      %3565 = vmatmul.mubr.bf16.gmra.mxu0 %v3307
      %v3566 = vpop.f32.mrf.mxu0
      %v3567 = vadd.f32 %v3314, %v3566
      %v3568 = vpop.f32.mrf.mxu0
      %v3569 = vpop.f32.mrf.mxu0
      %v3570 = vadd.f32 %v3314, %v3569
      %v3571 = vpop.f32.mrf.mxu0
      %3572 = vdwg.mxu0
      %v3573 = vsel %vm2254, %v3447, -inf
      %v3574 = vsel %vm2254, %v3450, -inf
      %v3575 = vmax.f32 %v3573, %v3574
      %v3576 = vrot.slane %v3575, 4
      %v3577 = vmax.f32 %v3575, %v3576
      %v3578 = vrot.slane %v3577, 2
      %v3579 = vmax.f32 %v3577, %v3578
      %v3580 = vrot.slane %v3579, 1
      %v3581 = vmax.f32 %v3579, %v3580
      %v3582 = vsel %vm2254, %v3455, -inf
      %v3583 = vsel %vm2254, %v3458, -inf
      %v3584 = vmax.f32 %v3582, %v3583
      %v3585 = vrot.slane %v3584, 4
      %v3586 = vmax.f32 %v3584, %v3585
      %v3587 = vrot.slane %v3586, 2
      %v3588 = vmax.f32 %v3586, %v3587
      %v3589 = vrot.slane %v3588, 1
      %v3590 = vmax.f32 %v3588, %v3589
      %v3591 = vsel %vm2254, %v3463, -inf
      %v3592 = vsel %vm2254, %v3466, -inf
      %v3593 = vmax.f32 %v3591, %v3592
      %v3594 = vrot.slane %v3593, 4
      %v3595 = vmax.f32 %v3593, %v3594
      %v3596 = vrot.slane %v3595, 2
      %v3597 = vmax.f32 %v3595, %v3596
      %v3598 = vrot.slane %v3597, 1
      %v3599 = vmax.f32 %v3597, %v3598
      %v3600 = vsel %vm2254, %v3471, -inf
      %v3601 = vsel %vm2254, %v3474, -inf
      %v3602 = vmax.f32 %v3600, %v3601
      %v3603 = vrot.slane %v3602, 4
      %v3604 = vmax.f32 %v3602, %v3603
      %v3605 = vrot.slane %v3604, 2
      %v3606 = vmax.f32 %v3604, %v3605
      %v3607 = vrot.slane %v3606, 1
      %v3608 = vmax.f32 %v3606, %v3607
      %v3609 = vsel %vm2254, %v3479, -inf
      %v3610 = vsel %vm2254, %v3482, -inf
      %v3611 = vmax.f32 %v3609, %v3610
      %v3612 = vrot.slane %v3611, 4
      %v3613 = vmax.f32 %v3611, %v3612
      %v3614 = vrot.slane %v3613, 2
      %v3615 = vmax.f32 %v3613, %v3614
      %v3616 = vrot.slane %v3615, 1
      %v3617 = vmax.f32 %v3615, %v3616
      %v3618 = vsel %vm2254, %v3487, -inf
      %v3619 = vsel %vm2254, %v3490, -inf
      %v3620 = vmax.f32 %v3618, %v3619
      %v3621 = vrot.slane %v3620, 4
      %v3622 = vmax.f32 %v3620, %v3621
      %v3623 = vrot.slane %v3622, 2
      %v3624 = vmax.f32 %v3622, %v3623
      %v3625 = vrot.slane %v3624, 1
      %v3626 = vmax.f32 %v3624, %v3625
      %v3627 = vsel %vm2254, %v3495, -inf
      %v3628 = vsel %vm2254, %v3498, -inf
      %v3629 = vmax.f32 %v3627, %v3628
      %v3630 = vrot.slane %v3629, 4
      %v3631 = vmax.f32 %v3629, %v3630
      %v3632 = vrot.slane %v3631, 2
      %v3633 = vmax.f32 %v3631, %v3632
      %v3634 = vrot.slane %v3633, 1
      %v3635 = vmax.f32 %v3633, %v3634
      %v3636 = vsel %vm2254, %v3503, -inf
      %v3637 = vsel %vm2254, %v3506, -inf
      %v3638 = vmax.f32 %v3636, %v3637
      %v3639 = vrot.slane %v3638, 4
      %v3640 = vmax.f32 %v3638, %v3639
      %v3641 = vrot.slane %v3640, 2
      %v3642 = vmax.f32 %v3640, %v3641
      %v3643 = vrot.slane %v3642, 1
      %v3644 = vmax.f32 %v3642, %v3643
      %v3645 = vsel %vm2254, %v3511, -inf
      %v3646 = vsel %vm2254, %v3514, -inf
      %v3647 = vmax.f32 %v3645, %v3646
      %v3648 = vrot.slane %v3647, 4
      %v3649 = vmax.f32 %v3647, %v3648
      %v3650 = vrot.slane %v3649, 2
      %v3651 = vmax.f32 %v3649, %v3650
      %v3652 = vrot.slane %v3651, 1
      %v3653 = vmax.f32 %v3651, %v3652
      %v3654 = vsel %vm2254, %v3519, -inf
      %v3655 = vsel %vm2254, %v3522, -inf
      %v3656 = vmax.f32 %v3654, %v3655
      %v3657 = vrot.slane %v3656, 4
      %v3658 = vmax.f32 %v3656, %v3657
      %v3659 = vrot.slane %v3658, 2
      %v3660 = vmax.f32 %v3658, %v3659
      %v3661 = vrot.slane %v3660, 1
      %v3662 = vmax.f32 %v3660, %v3661
      %v3663 = vsel %vm2254, %v3527, -inf
      %v3664 = vsel %vm2254, %v3530, -inf
      %v3665 = vmax.f32 %v3663, %v3664
      %v3666 = vrot.slane %v3665, 4
      %v3667 = vmax.f32 %v3665, %v3666
      %v3668 = vrot.slane %v3667, 2
      %v3669 = vmax.f32 %v3667, %v3668
      %v3670 = vrot.slane %v3669, 1
      %v3671 = vmax.f32 %v3669, %v3670
      %v3672 = vsel %vm2254, %v3535, -inf
      %v3673 = vsel %vm2254, %v3538, -inf
      %v3674 = vmax.f32 %v3672, %v3673
      %v3675 = vrot.slane %v3674, 4
      %v3676 = vmax.f32 %v3674, %v3675
      %v3677 = vrot.slane %v3676, 2
      %v3678 = vmax.f32 %v3676, %v3677
      %v3679 = vrot.slane %v3678, 1
      %v3680 = vmax.f32 %v3678, %v3679
      %v3681 = vsel %vm2254, %v3543, -inf
      %v3682 = vsel %vm2254, %v3546, -inf
      %v3683 = vmax.f32 %v3681, %v3682
      %v3684 = vrot.slane %v3683, 4
      %v3685 = vmax.f32 %v3683, %v3684
      %v3686 = vrot.slane %v3685, 2
      %v3687 = vmax.f32 %v3685, %v3686
      %v3688 = vrot.slane %v3687, 1
      %v3689 = vmax.f32 %v3687, %v3688
      %v3690 = vsel %vm2254, %v3551, -inf
      %v3691 = vsel %vm2254, %v3554, -inf
      %v3692 = vmax.f32 %v3690, %v3691
      %v3693 = vrot.slane %v3692, 4
      %v3694 = vmax.f32 %v3692, %v3693
      %v3695 = vrot.slane %v3694, 2
      %v3696 = vmax.f32 %v3694, %v3695
      %v3697 = vrot.slane %v3696, 1
      %v3698 = vmax.f32 %v3696, %v3697
      %v3699 = vsel %vm2254, %v3559, -inf
      %v3700 = vsel %vm2254, %v3562, -inf
      %v3701 = vmax.f32 %v3699, %v3700
      %v3702 = vrot.slane %v3701, 4
      %v3703 = vmax.f32 %v3701, %v3702
      %v3704 = vrot.slane %v3703, 2
      %v3705 = vmax.f32 %v3703, %v3704
      %v3706 = vrot.slane %v3705, 1
      %v3707 = vmax.f32 %v3705, %v3706
      %v3708 = vsel %vm2254, %v3567, -inf
      %v3709 = vsel %vm2254, %v3570, -inf
      %v3710 = vmax.f32 %v3708, %v3709
      %v3711 = vrot.slane %v3710, 4
      %v3712 = vmax.f32 %v3710, %v3711
      %v3713 = vrot.slane %v3712, 2
      %v3714 = vmax.f32 %v3712, %v3713
      %v3715 = vrot.slane %v3714, 1
      %v3716 = vmax.f32 %v3714, %v3715
      %v3717 = vsub.f32 %v3447, %v3581
      %v3718 = vsub.f32 %v3450, %v3581
      %v3719 = vsub.f32 %v3455, %v3590
      %v3720 = vsub.f32 %v3458, %v3590
      %v3721 = vsub.f32 %v3463, %v3599
      %v3722 = vsub.f32 %v3466, %v3599
      %v3723 = vsub.f32 %v3471, %v3608
      %v3724 = vsub.f32 %v3474, %v3608
      %v3725 = vsub.f32 %v3479, %v3617
      %v3726 = vsub.f32 %v3482, %v3617
      %v3727 = vsub.f32 %v3487, %v3626
      %v3728 = vsub.f32 %v3490, %v3626
      %v3729 = vsub.f32 %v3495, %v3635
      %v3730 = vsub.f32 %v3498, %v3635
      %v3731 = vsub.f32 %v3503, %v3644
      %v3732 = vsub.f32 %v3506, %v3644
      %v3733 = vsub.f32 %v3511, %v3653
      %v3734 = vsub.f32 %v3514, %v3653
      %v3735 = vsub.f32 %v3519, %v3662
      %v3736 = vsub.f32 %v3522, %v3662
      %v3737 = vsub.f32 %v3527, %v3671
      %v3738 = vsub.f32 %v3530, %v3671
      %v3739 = vsub.f32 %v3535, %v3680
      %v3740 = vsub.f32 %v3538, %v3680
      %v3741 = vsub.f32 %v3543, %v3689
      %v3742 = vsub.f32 %v3546, %v3689
      %v3743 = vsub.f32 %v3551, %v3698
      %v3744 = vsub.f32 %v3554, %v3698
      %v3745 = vsub.f32 %v3559, %v3707
      %v3746 = vsub.f32 %v3562, %v3707
      %v3747 = vsub.f32 %v3567, %v3716
      %v3748 = vsub.f32 %v3570, %v3716
      %v3749 = vmul.f32 %v3717, 1.442695
      %v3750 = vpow.pop %v3749
      %v3751 = vmul.f32 %v3718, 1.442695
      %v3752 = vpow.pop %v3751
      %v3753 = vmul.f32 %v3719, 1.442695
      %v3754 = vpow.pop %v3753
      %v3755 = vmul.f32 %v3720, 1.442695
      %v3756 = vpow.pop %v3755
      %v3757 = vmul.f32 %v3721, 1.442695
      %v3758 = vpow.pop %v3757
      %v3759 = vmul.f32 %v3722, 1.442695
      %v3760 = vpow.pop %v3759
      %v3761 = vmul.f32 %v3723, 1.442695
      %v3762 = vpow.pop %v3761
      %v3763 = vmul.f32 %v3724, 1.442695
      %v3764 = vpow.pop %v3763
      %v3765 = vmul.f32 %v3725, 1.442695
      %v3766 = vpow.pop %v3765
      %v3767 = vmul.f32 %v3726, 1.442695
      %v3768 = vpow.pop %v3767
      %v3769 = vmul.f32 %v3727, 1.442695
      %v3770 = vpow.pop %v3769
      %v3771 = vmul.f32 %v3728, 1.442695
      %v3772 = vpow.pop %v3771
      %v3773 = vmul.f32 %v3729, 1.442695
      %v3774 = vpow.pop %v3773
      %v3775 = vmul.f32 %v3730, 1.442695
      %v3776 = vpow.pop %v3775
      %v3777 = vmul.f32 %v3731, 1.442695
      %v3778 = vpow.pop %v3777
      %v3779 = vmul.f32 %v3732, 1.442695
      %v3780 = vpow.pop %v3779
      %v3781 = vmul.f32 %v3733, 1.442695
      %v3782 = vpow.pop %v3781
      %v3783 = vmul.f32 %v3734, 1.442695
      %v3784 = vpow.pop %v3783
      %v3785 = vmul.f32 %v3735, 1.442695
      %v3786 = vpow.pop %v3785
      %v3787 = vmul.f32 %v3736, 1.442695
      %v3788 = vpow.pop %v3787
      %v3789 = vmul.f32 %v3737, 1.442695
      %v3790 = vpow.pop %v3789
      %v3791 = vmul.f32 %v3738, 1.442695
      %v3792 = vpow.pop %v3791
      %v3793 = vmul.f32 %v3739, 1.442695
      %v3794 = vpow.pop %v3793
      %v3795 = vmul.f32 %v3740, 1.442695
      %v3796 = vpow.pop %v3795
      %v3797 = vmul.f32 %v3741, 1.442695
      %v3798 = vpow.pop %v3797
      %v3799 = vmul.f32 %v3742, 1.442695
      %v3800 = vpow.pop %v3799
      %v3801 = vmul.f32 %v3743, 1.442695
      %v3802 = vpow.pop %v3801
      %v3803 = vmul.f32 %v3744, 1.442695
      %v3804 = vpow.pop %v3803
      %v3805 = vmul.f32 %v3745, 1.442695
      %v3806 = vpow.pop %v3805
      %v3807 = vmul.f32 %v3746, 1.442695
      %v3808 = vpow.pop %v3807
      %v3809 = vmul.f32 %v3747, 1.442695
      %v3810 = vpow.pop %v3809
      %v3811 = vmul.f32 %v3748, 1.442695
      %v3812 = vpow.pop %v3811
      %v3813 = vsel %vm2254, %v3750, 0.0
      %v3814 = vsel %vm2254, %v3752, 0.0
      %v3815 = vadd.f32 %v3813, %v3814
      %v3816 = vrot.slane %v3815, 4
      %v3817 = vadd.f32 %v3815, %v3816
      %v3818 = vrot.slane %v3817, 2
      %v3819 = vadd.f32 %v3817, %v3818
      %v3820 = vrot.slane %v3819, 1
      %v3821 = vadd.f32 %v3819, %v3820
      %v3822 = vsel %vm2254, %v3754, 0.0
      %v3823 = vsel %vm2254, %v3756, 0.0
      %v3824 = vadd.f32 %v3822, %v3823
      %v3825 = vrot.slane %v3824, 4
      %v3826 = vadd.f32 %v3824, %v3825
      %v3827 = vrot.slane %v3826, 2
      %v3828 = vadd.f32 %v3826, %v3827
      %v3829 = vrot.slane %v3828, 1
      %v3830 = vadd.f32 %v3828, %v3829
      %v3831 = vsel %vm2254, %v3758, 0.0
      %v3832 = vsel %vm2254, %v3760, 0.0
      %v3833 = vadd.f32 %v3831, %v3832
      %v3834 = vrot.slane %v3833, 4
      %v3835 = vadd.f32 %v3833, %v3834
      %v3836 = vrot.slane %v3835, 2
      %v3837 = vadd.f32 %v3835, %v3836
      %v3838 = vrot.slane %v3837, 1
      %v3839 = vadd.f32 %v3837, %v3838
      %v3840 = vsel %vm2254, %v3762, 0.0
      %v3841 = vsel %vm2254, %v3764, 0.0
      %v3842 = vadd.f32 %v3840, %v3841
      %v3843 = vrot.slane %v3842, 4
      %v3844 = vadd.f32 %v3842, %v3843
      %v3845 = vrot.slane %v3844, 2
      %v3846 = vadd.f32 %v3844, %v3845
      %v3847 = vrot.slane %v3846, 1
      %v3848 = vadd.f32 %v3846, %v3847
      %v3849 = vsel %vm2254, %v3766, 0.0
      %v3850 = vsel %vm2254, %v3768, 0.0
      %v3851 = vadd.f32 %v3849, %v3850
      %v3852 = vrot.slane %v3851, 4
      %v3853 = vadd.f32 %v3851, %v3852
      %v3854 = vrot.slane %v3853, 2
      %v3855 = vadd.f32 %v3853, %v3854
      %v3856 = vrot.slane %v3855, 1
      %v3857 = vadd.f32 %v3855, %v3856
      %v3858 = vsel %vm2254, %v3770, 0.0
      %v3859 = vsel %vm2254, %v3772, 0.0
      %v3860 = vadd.f32 %v3858, %v3859
      %v3861 = vrot.slane %v3860, 4
      %v3862 = vadd.f32 %v3860, %v3861
      %v3863 = vrot.slane %v3862, 2
      %v3864 = vadd.f32 %v3862, %v3863
      %v3865 = vrot.slane %v3864, 1
      %v3866 = vadd.f32 %v3864, %v3865
      %v3867 = vsel %vm2254, %v3774, 0.0
      %v3868 = vsel %vm2254, %v3776, 0.0
      %v3869 = vadd.f32 %v3867, %v3868
      %v3870 = vrot.slane %v3869, 4
      %v3871 = vadd.f32 %v3869, %v3870
      %v3872 = vrot.slane %v3871, 2
      %v3873 = vadd.f32 %v3871, %v3872
      %v3874 = vrot.slane %v3873, 1
      %v3875 = vadd.f32 %v3873, %v3874
      %v3876 = vsel %vm2254, %v3778, 0.0
      %v3877 = vsel %vm2254, %v3780, 0.0
      %v3878 = vadd.f32 %v3876, %v3877
      %v3879 = vrot.slane %v3878, 4
      %v3880 = vadd.f32 %v3878, %v3879
      %v3881 = vrot.slane %v3880, 2
      %v3882 = vadd.f32 %v3880, %v3881
      %v3883 = vrot.slane %v3882, 1
      %v3884 = vadd.f32 %v3882, %v3883
      %v3885 = vsel %vm2254, %v3782, 0.0
      %v3886 = vsel %vm2254, %v3784, 0.0
      %v3887 = vadd.f32 %v3885, %v3886
      %v3888 = vrot.slane %v3887, 4
      %v3889 = vadd.f32 %v3887, %v3888
      %v3890 = vrot.slane %v3889, 2
      %v3891 = vadd.f32 %v3889, %v3890
      %v3892 = vrot.slane %v3891, 1
      %v3893 = vadd.f32 %v3891, %v3892
      %v3894 = vsel %vm2254, %v3786, 0.0
      %v3895 = vsel %vm2254, %v3788, 0.0
      %v3896 = vadd.f32 %v3894, %v3895
      %v3897 = vrot.slane %v3896, 4
      %v3898 = vadd.f32 %v3896, %v3897
      %v3899 = vrot.slane %v3898, 2
      %v3900 = vadd.f32 %v3898, %v3899
      %v3901 = vrot.slane %v3900, 1
      %v3902 = vadd.f32 %v3900, %v3901
      %v3903 = vsel %vm2254, %v3790, 0.0
      %v3904 = vsel %vm2254, %v3792, 0.0
      %v3905 = vadd.f32 %v3903, %v3904
      %v3906 = vrot.slane %v3905, 4
      %v3907 = vadd.f32 %v3905, %v3906
      %v3908 = vrot.slane %v3907, 2
      %v3909 = vadd.f32 %v3907, %v3908
      %v3910 = vrot.slane %v3909, 1
      %v3911 = vadd.f32 %v3909, %v3910
      %v3912 = vsel %vm2254, %v3794, 0.0
      %v3913 = vsel %vm2254, %v3796, 0.0
      %v3914 = vadd.f32 %v3912, %v3913
      %v3915 = vrot.slane %v3914, 4
      %v3916 = vadd.f32 %v3914, %v3915
      %v3917 = vrot.slane %v3916, 2
      %v3918 = vadd.f32 %v3916, %v3917
      %v3919 = vrot.slane %v3918, 1
      %v3920 = vadd.f32 %v3918, %v3919
      %v3921 = vsel %vm2254, %v3798, 0.0
      %v3922 = vsel %vm2254, %v3800, 0.0
      %v3923 = vadd.f32 %v3921, %v3922
      %v3924 = vrot.slane %v3923, 4
      %v3925 = vadd.f32 %v3923, %v3924
      %v3926 = vrot.slane %v3925, 2
      %v3927 = vadd.f32 %v3925, %v3926
      %v3928 = vrot.slane %v3927, 1
      %v3929 = vadd.f32 %v3927, %v3928
      %v3930 = vsel %vm2254, %v3802, 0.0
      %v3931 = vsel %vm2254, %v3804, 0.0
      %v3932 = vadd.f32 %v3930, %v3931
      %v3933 = vrot.slane %v3932, 4
      %v3934 = vadd.f32 %v3932, %v3933
      %v3935 = vrot.slane %v3934, 2
      %v3936 = vadd.f32 %v3934, %v3935
      %v3937 = vrot.slane %v3936, 1
      %v3938 = vadd.f32 %v3936, %v3937
      %v3939 = vsel %vm2254, %v3806, 0.0
      %v3940 = vsel %vm2254, %v3808, 0.0
      %v3941 = vadd.f32 %v3939, %v3940
      %v3942 = vrot.slane %v3941, 4
      %v3943 = vadd.f32 %v3941, %v3942
      %v3944 = vrot.slane %v3943, 2
      %v3945 = vadd.f32 %v3943, %v3944
      %v3946 = vrot.slane %v3945, 1
      %v3947 = vadd.f32 %v3945, %v3946
      %v3948 = vsel %vm2254, %v3810, 0.0
      %v3949 = vsel %vm2254, %v3812, 0.0
      %v3950 = vadd.f32 %v3948, %v3949
      %v3951 = vrot.slane %v3950, 4
      %v3952 = vadd.f32 %v3950, %v3951
      %v3953 = vrot.slane %v3952, 2
      %v3954 = vadd.f32 %v3952, %v3953
      %v3955 = vrot.slane %v3954, 1
      %v3956 = vadd.f32 %v3954, %v3955
      %v3957 = vrcp.pop %v3821
      %v3958 = vrcp.pop %v3830
      %v3959 = vrcp.pop %v3839
      %v3960 = vrcp.pop %v3848
      %v3961 = vrcp.pop %v3857
      %v3962 = vrcp.pop %v3866
      %v3963 = vrcp.pop %v3875
      %v3964 = vrcp.pop %v3884
      %v3965 = vrcp.pop %v3893
      %v3966 = vrcp.pop %v3902
      %v3967 = vrcp.pop %v3911
      %v3968 = vrcp.pop %v3920
      %v3969 = vrcp.pop %v3929
      %v3970 = vrcp.pop %v3938
      %v3971 = vrcp.pop %v3947
      %v3972 = vrcp.pop %v3956
      %v3973 = vmul.f32 %v3750, %v3957
      %v3974 = vmul.f32 %v3752, %v3957
      %v3975 = vmul.f32 %v3754, %v3958
      %v3976 = vmul.f32 %v3756, %v3958
      %v3977 = vmul.f32 %v3758, %v3959
      %v3978 = vmul.f32 %v3760, %v3959
      %v3979 = vmul.f32 %v3762, %v3960
      %v3980 = vmul.f32 %v3764, %v3960
      %v3981 = vmul.f32 %v3766, %v3961
      %v3982 = vmul.f32 %v3768, %v3961
      %v3983 = vmul.f32 %v3770, %v3962
      %v3984 = vmul.f32 %v3772, %v3962
      %v3985 = vmul.f32 %v3774, %v3963
      %v3986 = vmul.f32 %v3776, %v3963
      %v3987 = vmul.f32 %v3778, %v3964
      %v3988 = vmul.f32 %v3780, %v3964
      %v3989 = vmul.f32 %v3782, %v3965
      %v3990 = vmul.f32 %v3784, %v3965
      %v3991 = vmul.f32 %v3786, %v3966
      %v3992 = vmul.f32 %v3788, %v3966
      %v3993 = vmul.f32 %v3790, %v3967
      %v3994 = vmul.f32 %v3792, %v3967
      %v3995 = vmul.f32 %v3794, %v3968
      %v3996 = vmul.f32 %v3796, %v3968
      %v3997 = vmul.f32 %v3798, %v3969
      %v3998 = vmul.f32 %v3800, %v3969
      %v3999 = vmul.f32 %v3802, %v3970
      %v4000 = vmul.f32 %v3804, %v3970
      %v4001 = vmul.f32 %v3806, %v3971
      %v4002 = vmul.f32 %v3808, %v3971
      %v4003 = vmul.f32 %v3810, %v3972
      %v4004 = vmul.f32 %v3812, %v3972
      %v4005 = vmul.f32 %v3973, %v2338
      %v4006 = vmul.f32 %v3974, %v2341
      %v4007 = vmul.f32 %v3975, %v2346
      %v4008 = vmul.f32 %v3976, %v2349
      %v4009 = vmul.f32 %v3977, %v2354
      %v4010 = vmul.f32 %v3978, %v2357
      %v4011 = vmul.f32 %v3979, %v2362
      %v4012 = vmul.f32 %v3980, %v2365
      %v4013 = vmul.f32 %v3981, %v2370
      %v4014 = vmul.f32 %v3982, %v2373
      %v4015 = vmul.f32 %v3983, %v2378
      %v4016 = vmul.f32 %v3984, %v2381
      %v4017 = vmul.f32 %v3985, %v2386
      %v4018 = vmul.f32 %v3986, %v2389
      %v4019 = vmul.f32 %v3987, %v2394
      %v4020 = vmul.f32 %v3988, %v2397
      %v4021 = vmul.f32 %v3989, %v2402
      %v4022 = vmul.f32 %v3990, %v2405
      %v4023 = vmul.f32 %v3991, %v2410
      %v4024 = vmul.f32 %v3992, %v2413
      %v4025 = vmul.f32 %v3993, %v2418
      %v4026 = vmul.f32 %v3994, %v2421
      %v4027 = vmul.f32 %v3995, %v2426
      %v4028 = vmul.f32 %v3996, %v2429
      %v4029 = vmul.f32 %v3997, %v2434
      %v4030 = vmul.f32 %v3998, %v2437
      %v4031 = vmul.f32 %v3999, %v2442
      %v4032 = vmul.f32 %v4000, %v2445
      %v4033 = vmul.f32 %v4001, %v2450
      %v4034 = vmul.f32 %v4002, %v2453
      %v4035 = vmul.f32 %v4003, %v2458
      %v4036 = vmul.f32 %v4004, %v2461
      %v4037 = vsel %vm2254, %v4005, 0.0
      %v4038 = vsel %vm2254, %v4006, 0.0
      %v4039 = vadd.f32 %v4037, %v4038
      %v4040 = vrot.slane %v4039, 4
      %v4041 = vadd.f32 %v4039, %v4040
      %v4042 = vrot.slane %v4041, 2
      %v4043 = vadd.f32 %v4041, %v4042
      %v4044 = vrot.slane %v4043, 1
      %v4045 = vadd.f32 %v4043, %v4044
      %v4046 = vsel %vm2254, %v4007, 0.0
      %v4047 = vsel %vm2254, %v4008, 0.0
      %v4048 = vadd.f32 %v4046, %v4047
      %v4049 = vrot.slane %v4048, 4
      %v4050 = vadd.f32 %v4048, %v4049
      %v4051 = vrot.slane %v4050, 2
      %v4052 = vadd.f32 %v4050, %v4051
      %v4053 = vrot.slane %v4052, 1
      %v4054 = vadd.f32 %v4052, %v4053
      %v4055 = vsel %vm2254, %v4009, 0.0
      %v4056 = vsel %vm2254, %v4010, 0.0
      %v4057 = vadd.f32 %v4055, %v4056
      %v4058 = vrot.slane %v4057, 4
      %v4059 = vadd.f32 %v4057, %v4058
      %v4060 = vrot.slane %v4059, 2
      %v4061 = vadd.f32 %v4059, %v4060
      %v4062 = vrot.slane %v4061, 1
      %v4063 = vadd.f32 %v4061, %v4062
      %v4064 = vsel %vm2254, %v4011, 0.0
      %v4065 = vsel %vm2254, %v4012, 0.0
      %v4066 = vadd.f32 %v4064, %v4065
      %v4067 = vrot.slane %v4066, 4
      %v4068 = vadd.f32 %v4066, %v4067
      %v4069 = vrot.slane %v4068, 2
      %v4070 = vadd.f32 %v4068, %v4069
      %v4071 = vrot.slane %v4070, 1
      %v4072 = vadd.f32 %v4070, %v4071
      %v4073 = vsel %vm2254, %v4013, 0.0
      %v4074 = vsel %vm2254, %v4014, 0.0
      %v4075 = vadd.f32 %v4073, %v4074
      %v4076 = vrot.slane %v4075, 4
      %v4077 = vadd.f32 %v4075, %v4076
      %v4078 = vrot.slane %v4077, 2
      %v4079 = vadd.f32 %v4077, %v4078
      %v4080 = vrot.slane %v4079, 1
      %v4081 = vadd.f32 %v4079, %v4080
      %v4082 = vsel %vm2254, %v4015, 0.0
      %v4083 = vsel %vm2254, %v4016, 0.0
      %v4084 = vadd.f32 %v4082, %v4083
      %v4085 = vrot.slane %v4084, 4
      %v4086 = vadd.f32 %v4084, %v4085
      %v4087 = vrot.slane %v4086, 2
      %v4088 = vadd.f32 %v4086, %v4087
      %v4089 = vrot.slane %v4088, 1
      %v4090 = vadd.f32 %v4088, %v4089
      %v4091 = vsel %vm2254, %v4017, 0.0
      %v4092 = vsel %vm2254, %v4018, 0.0
      %v4093 = vadd.f32 %v4091, %v4092
      %v4094 = vrot.slane %v4093, 4
      %v4095 = vadd.f32 %v4093, %v4094
      %v4096 = vrot.slane %v4095, 2
      %v4097 = vadd.f32 %v4095, %v4096
      %v4098 = vrot.slane %v4097, 1
      %v4099 = vadd.f32 %v4097, %v4098
      %v4100 = vsel %vm2254, %v4019, 0.0
      %v4101 = vsel %vm2254, %v4020, 0.0
      %v4102 = vadd.f32 %v4100, %v4101
      %v4103 = vrot.slane %v4102, 4
      %v4104 = vadd.f32 %v4102, %v4103
      %v4105 = vrot.slane %v4104, 2
      %v4106 = vadd.f32 %v4104, %v4105
      %v4107 = vrot.slane %v4106, 1
      %v4108 = vadd.f32 %v4106, %v4107
      %v4109 = vsel %vm2254, %v4021, 0.0
      %v4110 = vsel %vm2254, %v4022, 0.0
      %v4111 = vadd.f32 %v4109, %v4110
      %v4112 = vrot.slane %v4111, 4
      %v4113 = vadd.f32 %v4111, %v4112
      %v4114 = vrot.slane %v4113, 2
      %v4115 = vadd.f32 %v4113, %v4114
      %v4116 = vrot.slane %v4115, 1
      %v4117 = vadd.f32 %v4115, %v4116
      %v4118 = vsel %vm2254, %v4023, 0.0
      %v4119 = vsel %vm2254, %v4024, 0.0
      %v4120 = vadd.f32 %v4118, %v4119
      %v4121 = vrot.slane %v4120, 4
      %v4122 = vadd.f32 %v4120, %v4121
      %v4123 = vrot.slane %v4122, 2
      %v4124 = vadd.f32 %v4122, %v4123
      %v4125 = vrot.slane %v4124, 1
      %v4126 = vadd.f32 %v4124, %v4125
      %v4127 = vsel %vm2254, %v4025, 0.0
      %v4128 = vsel %vm2254, %v4026, 0.0
      %v4129 = vadd.f32 %v4127, %v4128
      %v4130 = vrot.slane %v4129, 4
      %v4131 = vadd.f32 %v4129, %v4130
      %v4132 = vrot.slane %v4131, 2
      %v4133 = vadd.f32 %v4131, %v4132
      %v4134 = vrot.slane %v4133, 1
      %v4135 = vadd.f32 %v4133, %v4134
      %v4136 = vsel %vm2254, %v4027, 0.0
      %v4137 = vsel %vm2254, %v4028, 0.0
      %v4138 = vadd.f32 %v4136, %v4137
      %v4139 = vrot.slane %v4138, 4
      %v4140 = vadd.f32 %v4138, %v4139
      %v4141 = vrot.slane %v4140, 2
      %v4142 = vadd.f32 %v4140, %v4141
      %v4143 = vrot.slane %v4142, 1
      %v4144 = vadd.f32 %v4142, %v4143
      %v4145 = vsel %vm2254, %v4029, 0.0
      %v4146 = vsel %vm2254, %v4030, 0.0
      %v4147 = vadd.f32 %v4145, %v4146
      %v4148 = vrot.slane %v4147, 4
      %v4149 = vadd.f32 %v4147, %v4148
      %v4150 = vrot.slane %v4149, 2
      %v4151 = vadd.f32 %v4149, %v4150
      %v4152 = vrot.slane %v4151, 1
      %v4153 = vadd.f32 %v4151, %v4152
      %v4154 = vsel %vm2254, %v4031, 0.0
      %v4155 = vsel %vm2254, %v4032, 0.0
      %v4156 = vadd.f32 %v4154, %v4155
      %v4157 = vrot.slane %v4156, 4
      %v4158 = vadd.f32 %v4156, %v4157
      %v4159 = vrot.slane %v4158, 2
      %v4160 = vadd.f32 %v4158, %v4159
      %v4161 = vrot.slane %v4160, 1
      %v4162 = vadd.f32 %v4160, %v4161
      %v4163 = vsel %vm2254, %v4033, 0.0
      %v4164 = vsel %vm2254, %v4034, 0.0
      %v4165 = vadd.f32 %v4163, %v4164
      %v4166 = vrot.slane %v4165, 4
      %v4167 = vadd.f32 %v4165, %v4166
      %v4168 = vrot.slane %v4167, 2
      %v4169 = vadd.f32 %v4167, %v4168
      %v4170 = vrot.slane %v4169, 1
      %v4171 = vadd.f32 %v4169, %v4170
      %v4172 = vsel %vm2254, %v4035, 0.0
      %v4173 = vsel %vm2254, %v4036, 0.0
      %v4174 = vadd.f32 %v4172, %v4173
      %v4175 = vrot.slane %v4174, 4
      %v4176 = vadd.f32 %v4174, %v4175
      %v4177 = vrot.slane %v4176, 2
      %v4178 = vadd.f32 %v4176, %v4177
      %v4179 = vrot.slane %v4178, 1
      %v4180 = vadd.f32 %v4178, %v4179
      %vm4197 = vcmask 1041409
      %v4198 = vsel %vm4197, %v4054, %v4045
      %vm4199 = vcmask 1042434
      %v4200 = vsel %vm4199, %v4063, %v4198
      %vm4201 = vcmask 1043459
      %v4202 = vsel %vm4201, %v4072, %v4200
      %vm4203 = vcmask 1044484
      %v4204 = vsel %vm4203, %v4081, %v4202
      %vm4205 = vcmask 1045509
      %v4206 = vsel %vm4205, %v4090, %v4204
      %vm4207 = vcmask 1046534
      %v4208 = vsel %vm4207, %v4099, %v4206
      %vm4209 = vcmask 1047559
      %v4210 = vsel %vm4209, %v4108, %v4208
      %v4211 = vsel %vm4197, %v4126, %v4117
      %v4212 = vsel %vm4199, %v4135, %v4211
      %v4213 = vsel %vm4201, %v4144, %v4212
      %v4214 = vsel %vm4203, %v4153, %v4213
      %v4215 = vsel %vm4205, %v4162, %v4214
      %v4216 = vsel %vm4207, %v4171, %v4215
      %v4217 = vsel %vm4209, %v4180, %v4216
      %4218 = vrot.lane.b32.xlu0 %v4210, 64
      %v4219 = vpop.permute.xlu0 %4218
      %4220 = vrot.lane.b32.xlu0 %v4217, 64
      %v4221 = vpop.permute.xlu0 %4220
      %v4224 = vadd.f32 %v624, %v4219
      %v4225 = vadd.f32 %v625, %v4221
      %v4226 = vld [vmem:[%s12] sm:$0xf]
      %v4227 = vld [vmem:[%s12 + $0x4] sm:$0xf]
      %v4228 = vld [vmem:[%s12 + $0x8] sm:$0xf]
      %v4229 = vld [vmem:[%s12 + $0xc] sm:$0xf]
      %v4230 = vld [vmem:[%s12 + $0x10] sm:$0xf]
      %v4231 = vld [vmem:[%s12 + $0x14] sm:$0xf]
      %v4232 = vld [vmem:[%s12 + $0x18] sm:$0xf]
      %v4233 = vld [vmem:[%s12 + $0x1c] sm:$0xf]
      %v4234 = vpack.c.bf16 %v4225, %v4224
      %v4235 = vld [vmem:[%s13] sm:$0x1]
      %v4237 = vlaneseq
      %v4238 = vshrl.u32 %v4237, 7
      %v4239 = vsub.s32 0, %v4238
      %v4240 = vrot.slane %v4235, %v4239
      %4243 = vrot.lane.b32.xlu0 %v4234, 64
      %v4244 = vpop.permute.xlu0 %4243
      %v4253 = vunpack.c.l.b16 %v4226
      %v4254 = vunpack.c.l.b16 %v4227
      %v4255 = vunpack.c.l.b16 %v4228
      %v4256 = vunpack.c.l.b16 %v4229
      %v4257 = vunpack.c.l.b16 %v4230
      %v4258 = vunpack.c.l.b16 %v4231
      %v4259 = vunpack.c.l.b16 %v4232
      %v4260 = vunpack.c.l.b16 %v4233
      %v4261 = vpack.c.b16 %v4254, %v4253
      %v4262 = vpack.c.b16 %v4256, %v4255
      %v4263 = vpack.c.b16 %v4258, %v4257
      %v4264 = vpack.c.b16 %v4260, %v4259
      %v4270 = vsel %vm2254, %v4244, 0
      %4272 = vmatprep.subr.bf16.mxu0 0
      %4273 = vmatpush1.bf16.msra.mxu0 0
      %4274 = vmatprep.subr.bf16.mxu0 0
      %4275 = vmatpush1.bf16.msra.mxu0 0
      %4276 = vmatprep.subr.bf16.mxu0 0
      %4277 = vmatpush1.bf16.msra.mxu0 0
      %4278 = vmatprep.subr.bf16.mxu0 0
      %4279 = vmatpush1.bf16.msra.mxu0 0
      %4280 = vmatprep.subr.bf16.mxu0 0
      %4281 = vmatpush1.bf16.msra.mxu0 %v4264
      %4282 = vmatprep.subr.bf16.mxu0 0
      %4283 = vmatpush1.bf16.msra.mxu0 %v4263
      %4284 = vmatprep.subr.bf16.mxu0 0
      %4285 = vmatpush1.bf16.msra.mxu0 %v4262
      %4286 = vmatprep.subr.bf16.mxu0 0
      %4287 = vmatpush1.bf16.msra.mxu0 %v4261
      %4288 = vmatprep.subr.bf16.mxu0 0
      %4289 = vmatpush2.bf16.msra.mxu0 0
      %4290 = vmatprep.subr.bf16.mxu0 0
      %4291 = vmatpush2.bf16.msra.mxu0 0
      %4292 = vmatprep.subr.bf16.mxu0 0
      %4293 = vmatpush2.bf16.msra.mxu0 0
      %4294 = vmatprep.subr.bf16.mxu0 0
      %4295 = vmatpush2.bf16.msra.mxu0 0
      %4296 = vmatprep.subr.bf16.mxu0 0
      %4297 = vmatpush2.bf16.msra.mxu0 0
      %4298 = vmatprep.subr.bf16.mxu0 0
      %4299 = vmatpush2.bf16.msra.mxu0 0
      %4300 = vmatprep.subr.bf16.mxu0 0
      %4301 = vmatpush2.bf16.msra.mxu0 0
      %4302 = vmatprep.subr.bf16.mxu0 0
      %4303 = vmatpush2.bf16.msra.mxu0 0
      %4304 = vmatprep.mubr.bf16.mxu0 0
      %4305 = vmatmul.mubr.bf16.gmra.mxu0 %v4270
      %v4306 = vpop.f32.mrf.mxu0
      %v4307 = vadd.f32 %v4240, %v4306
      %v4308 = vpop.f32.mrf.mxu0
      %v4309 = vpop.f32.mrf.mxu0
      %v4310 = vadd.f32 %v4240, %v4309
      %v4311 = vpop.f32.mrf.mxu0
      %4312 = vdwg.mxu0
      %v4313 = vadd.f32 %v4307, %v632
      %v4314 = vadd.f32 %v4310, %v633
      %v4315 = vpack.c.bf16 %v4314, %v4313
      %v4317 = vunpack.c.l.b16 %v4315
      %v4318 = vunpack.c.h.b16 %v4315
      %v4319 = vpack.c.b16 %v4317, %v4317
      %v4320 = vpack.c.b16 %v4318, %v4318
      %4323 = vst [vmem:[%s619] sm:$0xf] %v4319
      %4324 = vst [vmem:[%s619 + $0x4] sm:$0xf] %v4320
      %s4325 = smul.u32 2, %s30
      %p4326 = scmp.lt.s32.totalorder %s29, 1
      %s4327 = scalar_select %p4326, %s29, 1
      %p4328 = scmp.lt.s32.totalorder %s4325, 1
      %s4329 = scalar_select %p4328, %s4325, 1
      %s4330 = smul.addr %s4327, 2
      %s4331 = sadd.s32 %s4329, %s4330
      %s4332 = smul.addr %s4331, 4
      %s4333 = scalar_lea.vmem %s14, %s4332
      // Predicated region
      $region77: #{spd_forward.10} parent=75 // pred_check
        %p4334 = pneg %p379
      $region78: #{spd_forward.10} parent=75 // pred_check_branch
        %4336 = sbr.rel (%p4334) target = $region80
      $region79: #{spd_forward.10} parent=75 // pred_region
        %s4337 = smul.u32 2, %s30
      $region80: #{spd_forward.10} parent=75 // pred_fallthru
        _
    $region76: #{spd_forward.10} parent=5 // pred_fallthru
      _
    %p4338 = scmp.le.s32.totalorder 2, %s20
    // Predicated region
    $region81: #{spd_forward.10} parent=5 // pred_check
      %p4339 = pneg %p4338
    $region82: #{spd_forward.10} parent=5 // pred_check_branch
      %4341 = sbr.rel (%p4339) target = $region84
    $region83: #{spd_forward.10} parent=5 // pred_region
      %s4342 = ssub.s32 %s20, 2
      // Predicated region
      $region85: #{spd_forward.10} parent=83 // pred_check
        %p4343 = pneg %p385
      $region86: #{spd_forward.10} parent=83 // pred_check_branch
        %4345 = sbr.rel (%p4343) target = $region88
      $region87: #{spd_forward.10} parent=83 // pred_region
        %s4346 = smul.u32 2, %s32
        %p4347 = scmp.lt.s32.totalorder %s31, 1
        %s4348 = scalar_select %p4347, %s31, 1
        %p4349 = scmp.lt.s32.totalorder %s4346, 1
        %s4350 = scalar_select %p4349, %s4346, 1
        %s4351 = smul.addr %s4348, 2
        %s4352 = sadd.s32 %s4350, %s4351
        %s4353 = smul.addr %s4352, 4
        %s4354 = scalar_lea.vmem %s14, %s4353
      $region88: #{spd_forward.10} parent=83 // pred_fallthru
        _
    $region84: #{spd_forward.10} parent=5 // pred_fallthru
      _
  $region6: #{spd_forward.10} parent=0 // loop_footer
    %s24 = sadd.s32 1, %s20
  $region7: #{spd_forward.10} parent=0 // loop_footer_branch
    %19 = sbr.rel target = $region3
  $region8: #{spd_forward.10} parent=0 // loop_exit
    _

</llo_original>
